<compile_context>
chip_gen: v6e
topology: v6e:2x2x1
jax: 0.10.0
libtpu: 0.0.40
codegen_flags: <defaults>
</compile_context>

<pallas_src>
import math
from functools import partial

import numpy as np
import jax
import jax.numpy as jnp
from jax import lax
from jax.experimental import pallas as pl
from jax.experimental.pallas import tpu as pltpu


# ----------------------------------------------------------------------------
# Gaussian kernel constants (kernel_size=3, sigma=1) — identical to the PyTorch
# GaussianSmoothing buffer.
# ----------------------------------------------------------------------------
def _gaussian_kernel_2d(ksize=3, sigma=1.0):
    mean = (ksize - 1) / 2.0
    k1 = [1.0 / (sigma * math.sqrt(2.0 * math.pi))
          * math.exp(-(((i - mean) / sigma) ** 2) / 2.0) for i in range(ksize)]
    k2 = [[a * b for b in k1] for a in k1]
    s = sum(sum(r) for r in k2)
    return tuple(tuple(v / s for v in row) for row in k2)


# ----------------------------------------------------------------------------
# In-kernel helpers
# ----------------------------------------------------------------------------
def _zero_border(ref):
    """Zero only the 1-wide border strips of a (Hp, Wp, C) padded scratch."""
    Hp, Wp, C = ref.shape
    z_row = jnp.zeros((1, Wp, C), ref.dtype)
    z_col = jnp.zeros((Hp, 1, C), ref.dtype)
    ref[pl.ds(0, 1), pl.ds(0, Wp), :] = z_row
    ref[pl.ds(Hp - 1, 1), pl.ds(0, Wp), :] = z_row
    ref[pl.ds(0, Hp), pl.ds(0, 1), :] = z_col
    ref[pl.ds(0, Hp), pl.ds(Wp - 1, 1), :] = z_col


def _conv3x3(pad_ref, w_ref, H, W):
    """3x3 stride-1 conv from a padded (H+2, W+2, Cin) bf16 scratch ref.

    w_ref holds kw-major, kh-stacked bf16 weights of shape (3, 3*Cin, Cout),
    so each kw slab is ONE MXU matmul with K = 3*Cin (fills the systolic
    array 3x better than per-tap K=Cin dots and removes 6 full-size VALU
    adds per conv).  Accumulation is f32; returns (H*W, Cout) f32.
    """
    cin = pad_ref.shape[-1]
    acc = None
    for kw in range(3):
        taps = [pad_ref[pl.ds(kh, H), pl.ds(kw, W), :] for kh in range(3)]
        patch = jnp.concatenate(taps, axis=-1).reshape(H * W, 3 * cin)
        term = jnp.dot(patch, w_ref[kw], preferred_element_type=jnp.float32)
        acc = term if acc is None else acc + term
    return acc


def _block_kernel(x_ref, w1_ref, b1_ref, w2_ref, b2_ref, *rest, H, W, identity):
    """Fused BasicBlock forward for one batch element (BN scales pre-folded)."""
    if identity:
        out_ref, xpad_ref, mpad_ref = rest
        w3_ref = b3_ref = None
    else:
        w3_ref, b3_ref, out_ref, xpad_ref, mpad_ref = rest

    cmid = mpad_ref.shape[-1]
    cout = out_ref.shape[-1]
    x = x_ref[0]                                                    # (H, W, Cin) f32

    # Border-only zeroing (interior is fully overwritten below).  Re-done
    # every step: the scratch is per-core under a "parallel" grid axis, so a
    # once-only init would leave the second core's borders uninitialised, and
    # the projection path dirties the xpad border with reflect values anyway.
    _zero_border(xpad_ref)
    _zero_border(mpad_ref)

    # ---- conv1 + bn1 (scale folded into w1) + ReLU, zero pad=1 in VMEM ----
    xpad_ref[pl.ds(1, H), pl.ds(1, W), :] = x.astype(jnp.bfloat16)
    mid = _conv3x3(xpad_ref, w1_ref, H, W) + b1_ref[0]              # (H*W, Cmid) f32
    mid = jnp.maximum(mid, 0.0)

    # ---- conv2 + bn2 (scale folded into w2), zero pad=1 in VMEM ----
    mpad_ref[pl.ds(1, H), pl.ds(1, W), :] = mid.reshape(H, W, cmid).astype(jnp.bfloat16)
    acc = _conv3x3(mpad_ref, w2_ref, H, W) + b2_ref[0]              # (H*W, Cout) f32

    # ---- shortcut tail ----
    if identity:
        # sc_low + sc_high == smooth(x) + (x - smooth(x)) == x exactly.
        acc = acc + x.reshape(H * W, cout)
    else:
        # Reflect pad=1 of x in-place in xpad_ref (interior already holds x):
        # overwrite left/right cols, then top/bottom rows (corners come free).
        xpad_ref[pl.ds(1, H), pl.ds(0, 1), :] = xpad_ref[pl.ds(1, H), pl.ds(2, 1), :]
        xpad_ref[pl.ds(1, H), pl.ds(W + 1, 1), :] = xpad_ref[pl.ds(1, H), pl.ds(W - 1, 1), :]
        xpad_ref[pl.ds(0, 1), :, :] = xpad_ref[pl.ds(2, 1), :, :]
        xpad_ref[pl.ds(H + 1, 1), :, :] = xpad_ref[pl.ds(H - 1, 1), :, :]
        # Folded tail: Gaussian split + both 1x1 shortcuts == one 3x3 conv.
        acc = acc + _conv3x3(xpad_ref, w3_ref, H, W) + b3_ref[0]

    out_ref[...] = jnp.maximum(acc, 0.0).reshape(1, H, W, cout).astype(out_ref.dtype)


# ----------------------------------------------------------------------------
# pallas_call wrapper (single fused call for the whole block)
# ----------------------------------------------------------------------------
def _vmem_limit_bytes():
    """Generation-aware VMEM cap: ~3/4 of physical, never above 100 MiB."""
    try:
        cap = int(pltpu.get_tpu_info().vmem_capacity_bytes)
    except Exception:  # non-TPU trace / older jax: conservative default
        cap = 64 * 1024 * 1024
    return int(max(32 * 1024 * 1024, min(cap * 3 // 4, 100 * 1024 * 1024)))


def basic_block_pallas(x_nhwc, w1s, b1, w2s, b2, w3s=None, b3=None):
    B, H, W, Cin = x_nhwc.shape
    Cmid = w1s.shape[-1]
    Cout = w2s.shape[-1]
    identity = w3s is None
    if identity:
        assert Cin == Cout

    kern = partial(_block_kernel, H=H, W=W, identity=identity)

    in_specs = [
        pl.BlockSpec((1, H, W, Cin), lambda b: (b, 0, 0, 0)),
        pl.BlockSpec((3, 3 * Cin, Cmid), lambda b: (0, 0, 0)),
        pl.BlockSpec((1, Cmid), lambda b: (0, 0)),
        pl.BlockSpec((3, 3 * Cmid, Cout), lambda b: (0, 0, 0)),
        pl.BlockSpec((1, Cout), lambda b: (0, 0)),
    ]
    args = [x_nhwc, w1s, b1.reshape(1, -1), w2s, b2.reshape(1, -1)]
    if not identity:
        in_specs += [
            pl.BlockSpec((3, 3 * Cin, Cout), lambda b: (0, 0, 0)),
            pl.BlockSpec((1, Cout), lambda b: (0, 0)),
        ]
        args += [w3s, b3.reshape(1, -1)]

    return pl.pallas_call(
        kern,
        out_shape=jax.ShapeDtypeStruct((B, H, W, Cout), x_nhwc.dtype),
        grid_spec=pltpu.PrefetchScalarGridSpec(
            num_scalar_prefetch=0,
            grid=(B,),
            in_specs=in_specs,
            out_specs=pl.BlockSpec((1, H, W, Cout), lambda b: (b, 0, 0, 0)),
            scratch_shapes=[
                pltpu.VMEM((H + 2, W + 2, Cin), jnp.bfloat16),   # padded x
                pltpu.VMEM((H + 2, W + 2, Cmid), jnp.bfloat16),  # padded conv1 out
            ],
        ),
        compiler_params=pltpu.CompilerParams(
            dimension_semantics=("parallel",),
            vmem_limit_bytes=_vmem_limit_bytes(),
        ),
    )(*args)


# ----------------------------------------------------------------------------
# Parameters, BN folding, weight folding, module forward
# ----------------------------------------------------------------------------
def fold_bn(gamma, beta, mean, var, eps=1e-5):
    scale = gamma / jnp.sqrt(var + eps)
    bias = beta - mean * scale
    return scale, bias


def _stack_kh(w):
    """(3,3,Cin,Cout) HWIO -> (3_kw, 3*Cin, Cout), kh stacked along K, bf16."""
    kh, kw, cin, cout = w.shape
    return jnp.transpose(w, (1, 0, 2, 3)).reshape(kw, kh * cin, cout).astype(jnp.bfloat16)


def build_block_weights(p):
    """Fold BN scales into conv weights, fold Gaussian+1x1 shortcuts into W3,
    pre-stack the kh taps along K and cast the matmul operands to bf16."""
    s1, b1 = fold_bn(*p["bn1"])
    s2, b2 = fold_bn(*p["bn2"])
    w1s = _stack_kh(p["w1"] * s1)            # (3, 3*Cin, Cmid) bf16
    w2s = _stack_kh(p["w2"] * s2)            # (3, 3*Cmid, Cout) bf16
    if "w_low" in p:
        sl, bl = fold_bn(*p["bn_low"])
        sh, bh = fold_bn(*p["bn_high"])
        wls = p["w_low"] * sl                # (Cin, Cout)
        whs = p["w_high"] * sh               # (Cin, Cout)
        gk = jnp.asarray(_gaussian_kernel_2d(3, 1.0), jnp.float32)       # (3,3)
        w3 = gk[:, :, None, None] * (wls - whs)[None, None, :, :]        # (3,3,Cin,Cout)
        w3 = w3.at[1, 1].add(whs)
        w3s = _stack_kh(w3)                  # (3, 3*Cin, Cout) bf16
        b3 = bl + bh
    else:
        w3s, b3 = None, None
    return w1s, b1, w2s, b2, w3s, b3


def init_params(key, in_planes, planes, stride=1):
    ks = jax.random.split(key, 8)

    def conv_w(k, kh, kw, cin, cout):
        fan = cin * kh * kw
        return jax.random.normal(k, (kh, kw, cin, cout), jnp.float32) / math.sqrt(fan)

    def bn_p(k, c):
        k1, k2, k3, k4 = jax.random.split(k, 4)
        gamma = 1.0 + 0.1 * jax.random.normal(k1, (c,), jnp.float32)
        beta = 0.1 * jax.random.normal(k2, (c,), jnp.float32)
        mean = 0.1 * jax.random.normal(k3, (c,), jnp.float32)
        var = 1.0 + 0.2 * jnp.abs(jax.random.normal(k4, (c,), jnp.float32))
        return (gamma, beta, mean, var)

    p = {
        "w1": conv_w(ks[0], 3, 3, in_planes, planes),
        "bn1": bn_p(ks[1], planes),
        "w2": conv_w(ks[2], 3, 3, planes, planes),
        "bn2": bn_p(ks[3], planes),
    }
    if stride != 1 or in_planes != planes:
        p["w_low"] = conv_w(ks[4], 1, 1, in_planes, planes)[0, 0]    # (Cin, Cout)
        p["bn_low"] = bn_p(ks[5], planes)
        p["w_high"] = conv_w(ks[6], 1, 1, in_planes, planes)[0, 0]   # (Cin, Cout)
        p["bn_high"] = bn_p(ks[7], planes)
    return p


def basic_block_forward(x_nchw, p, stride=1):
    assert stride == 1  # TODO(synk): stride>1 downsampling path not implemented
    x = jnp.transpose(x_nchw, (0, 2, 3, 1))                  # NCHW -> NHWC
    w1s, b1, w2s, b2, w3s, b3 = build_block_weights(p)
    out = basic_block_pallas(x, w1s, b1, w2s, b2, w3s, b3)
    return jnp.transpose(out, (0, 3, 1, 2))                  # NHWC -> NCHW


# ----------------------------------------------------------------------------
# Pure-JAX reference (direct translation of the PyTorch module, f32, un-folded)
# ----------------------------------------------------------------------------
def reference_forward(x_nchw, p):
    x = jnp.transpose(x_nchw, (0, 2, 3, 1))
    H, W = x.shape[1], x.shape[2]

    def conv(inp, w):
        return lax.conv_general_dilated(
            inp, w, (1, 1), ((1, 1), (1, 1)),
            dimension_numbers=("NHWC", "HWIO", "NHWC"))

    s1, b1 = fold_bn(*p["bn1"])
    s2, b2 = fold_bn(*p["bn2"])
    out = jnp.maximum(conv(x, p["w1"]) * s1 + b1, 0.0)
    out = conv(out, p["w2"]) * s2 + b2

    gk = _gaussian_kernel_2d(3, 1.0)
    xp = jnp.pad(x, ((0, 0), (1, 1), (1, 1), (0, 0)), mode="reflect")
    sm = sum(gk[kh][kw] * xp[:, kh:kh + H, kw:kw + W, :]
             for kh in range(3) for kw in range(3))
    img_l, img_h = sm, x - sm

    if "w_low" in p:
        sl, bl = fold_bn(*p["bn_low"])
        sh, bh = fold_bn(*p["bn_high"])
        sc_l = jnp.einsum("bhwc,cd->bhwd", img_l, p["w_low"]) * sl + bl
        sc_h = jnp.einsum("bhwc,cd->bhwd", img_h, p["w_high"]) * sh + bh
    else:
        sc_l, sc_h = img_l, img_h

    out = jnp.maximum(out + sc_l + sc_h, 0.0)
    return jnp.transpose(out, (0, 3, 1, 2))


# ----------------------------------------------------------------------------
if __name__ == "__main__":
    key = jax.random.PRNGKey(0)
    k1, k2, k3, k4 = jax.random.split(key, 4)

    # Tolerance is loosened vs. the pure-f32 version: matmul operands are bf16
    # (f32 accumulate), which costs ~0.4% relative per operand.
    RTOL = ATOL = 5e-2

    # Config 1: projection shortcut path (in_planes != planes).
    B, in_planes, planes, H, W = 2, 4, 8, 16, 16
    x = jax.random.normal(k1, (B, in_planes, H, W), jnp.float32)     # NCHW
    params = init_params(k2, in_planes, planes, stride=1)
    out = jax.jit(lambda xx: basic_block_forward(xx, params))(x)
    out = jax.block_until_ready(out)
    ref = reference_forward(x, params)
    assert out.shape == (B, planes, H, W)
    np.testing.assert_allclose(np.asarray(out), np.asarray(ref), rtol=RTOL, atol=ATOL)

    # Config 2: identity shortcut fast path (in_planes == planes).
    x2 = jax.random.normal(k3, (B, planes, H, W), jnp.float32)
    params2 = init_params(k4, planes, planes, stride=1)
    out2 = jax.jit(lambda xx: basic_block_forward(xx, params2))(x2)
    out2 = jax.block_until_ready(out2)
    ref2 = reference_forward(x2, params2)
    assert out2.shape == (B, planes, H, W)
    np.testing.assert_allclose(np.asarray(out2), np.asarray(ref2), rtol=RTOL, atol=ATOL)

    print("KERNEL_OK")
</pallas_src>

<mosaic_0001>
module attributes {stable_mosaic.version = 11 : i64} {
  func.func @_block_kernel(%arg0: i32, %arg1: memref<1x16x16x4xf32, #tpu.memory_space<vmem>>, %arg2: memref<3x12x8xbf16, #tpu.memory_space<vmem>>, %arg3: memref<1x8xf32, #tpu.memory_space<vmem>>, %arg4: memref<3x24x8xbf16, #tpu.memory_space<vmem>>, %arg5: memref<1x8xf32, #tpu.memory_space<vmem>>, %arg6: memref<3x12x8xbf16, #tpu.memory_space<vmem>>, %arg7: memref<1x8xf32, #tpu.memory_space<vmem>>, %arg8: memref<1x16x16x8xf32, #tpu.memory_space<vmem>>, %arg9: memref<18x18x4xbf16, #tpu.memory_space<vmem>>, %arg10: memref<18x18x8xbf16, #tpu.memory_space<vmem>>) attributes {dimension_semantics = [#tpu.dimension_semantics<parallel>], iteration_bounds = array<i64: 2>, scalar_prefetch = 0 : i64, scratch_operands = 2 : i64, tpu.core_type = #tpu.core_type<tc>, window_params = [{transform_indices = @transform_0, window_bounds = array<i64: 1, 16, 16, 4>}, {pipeline_mode = #tpu.pipeline_mode<synchronous>, transform_indices = @transform_1, window_bounds = array<i64: 3, 12, 8>}, {pipeline_mode = #tpu.pipeline_mode<synchronous>, transform_indices = @transform_2, window_bounds = array<i64: 1, 8>}, {pipeline_mode = #tpu.pipeline_mode<synchronous>, transform_indices = @transform_3, window_bounds = array<i64: 3, 24, 8>}, {pipeline_mode = #tpu.pipeline_mode<synchronous>, transform_indices = @transform_4, window_bounds = array<i64: 1, 8>}, {pipeline_mode = #tpu.pipeline_mode<synchronous>, transform_indices = @transform_5, window_bounds = array<i64: 3, 12, 8>}, {pipeline_mode = #tpu.pipeline_mode<synchronous>, transform_indices = @transform_6, window_bounds = array<i64: 1, 8>}, {transform_indices = @transform_7, window_bounds = array<i64: 1, 16, 16, 8>}]} {
    %c0 = arith.constant 0 : index
    %c0_0 = arith.constant 0 : index
    %c0_1 = arith.constant 0 : index
    %c0_2 = arith.constant 0 : index
    %0 = vector.load %arg1[%c0, %c0_0, %c0_1, %c0_2] : memref<1x16x16x4xf32, #tpu.memory_space<vmem>>, vector<1x16x16x4xf32>
    %1 = vector.shape_cast %0 : vector<1x16x16x4xf32> to vector<16x16x4xf32>
    %cst = arith.constant 0.000000e+00 : bf16
    %2 = vector.broadcast %cst : bf16 to vector<1x18x4xbf16>
    %cst_3 = arith.constant 0.000000e+00 : bf16
    %3 = vector.broadcast %cst_3 : bf16 to vector<18x1x4xbf16>
    %c0_4 = arith.constant 0 : index
    %c0_5 = arith.constant 0 : index
    %c0_6 = arith.constant 0 : index
    %4 = vector.load %arg9[%c0_4, %c0_5, %c0_6] : memref<18x18x4xbf16, #tpu.memory_space<vmem>>, vector<1x18x4xbf16>
    tpu.vector_store %arg9[%c0_4, %c0_5, %c0_6], %2 {strides = array<i32>} : memref<18x18x4xbf16, #tpu.memory_space<vmem>>, vector<1x18x4xbf16>,
    %c17 = arith.constant 17 : index
    %c0_7 = arith.constant 0 : index
    %c0_8 = arith.constant 0 : index
    %5 = vector.load %arg9[%c17, %c0_7, %c0_8] : memref<18x18x4xbf16, #tpu.memory_space<vmem>>, vector<1x18x4xbf16>
    tpu.vector_store %arg9[%c17, %c0_7, %c0_8], %2 {strides = array<i32>} : memref<18x18x4xbf16, #tpu.memory_space<vmem>>, vector<1x18x4xbf16>,
    %c0_9 = arith.constant 0 : index
    %c0_10 = arith.constant 0 : index
    %c0_11 = arith.constant 0 : index
    %6 = vector.load %arg9[%c0_9, %c0_10, %c0_11] : memref<18x18x4xbf16, #tpu.memory_space<vmem>>, vector<18x1x4xbf16>
    tpu.vector_store %arg9[%c0_9, %c0_10, %c0_11], %3 {strides = array<i32>} : memref<18x18x4xbf16, #tpu.memory_space<vmem>>, vector<18x1x4xbf16>,
    %c0_12 = arith.constant 0 : index
    %c17_13 = arith.constant 17 : index
    %c0_14 = arith.constant 0 : index
    %7 = vector.load %arg9[%c0_12, %c17_13, %c0_14] : memref<18x18x4xbf16, #tpu.memory_space<vmem>>, vector<18x1x4xbf16>
    tpu.vector_store %arg9[%c0_12, %c17_13, %c0_14], %3 {strides = array<i32>} : memref<18x18x4xbf16, #tpu.memory_space<vmem>>, vector<18x1x4xbf16>,
    %cst_15 = arith.constant 0.000000e+00 : bf16
    %8 = vector.broadcast %cst_15 : bf16 to vector<1x18x8xbf16>
    %cst_16 = arith.constant 0.000000e+00 : bf16
    %9 = vector.broadcast %cst_16 : bf16 to vector<18x1x8xbf16>
    %c0_17 = arith.constant 0 : index
    %c0_18 = arith.constant 0 : index
    %c0_19 = arith.constant 0 : index
    %10 = vector.load %arg10[%c0_17, %c0_18, %c0_19] : memref<18x18x8xbf16, #tpu.memory_space<vmem>>, vector<1x18x8xbf16>
    tpu.vector_store %arg10[%c0_17, %c0_18, %c0_19], %8 {strides = array<i32>} : memref<18x18x8xbf16, #tpu.memory_space<vmem>>, vector<1x18x8xbf16>,
    %c17_20 = arith.constant 17 : index
    %c0_21 = arith.constant 0 : index
    %c0_22 = arith.constant 0 : index
    %11 = vector.load %arg10[%c17_20, %c0_21, %c0_22] : memref<18x18x8xbf16, #tpu.memory_space<vmem>>, vector<1x18x8xbf16>
    tpu.vector_store %arg10[%c17_20, %c0_21, %c0_22], %8 {strides = array<i32>} : memref<18x18x8xbf16, #tpu.memory_space<vmem>>, vector<1x18x8xbf16>,
    %c0_23 = arith.constant 0 : index
    %c0_24 = arith.constant 0 : index
    %c0_25 = arith.constant 0 : index
    %12 = vector.load %arg10[%c0_23, %c0_24, %c0_25] : memref<18x18x8xbf16, #tpu.memory_space<vmem>>, vector<18x1x8xbf16>
    tpu.vector_store %arg10[%c0_23, %c0_24, %c0_25], %9 {strides = array<i32>} : memref<18x18x8xbf16, #tpu.memory_space<vmem>>, vector<18x1x8xbf16>,
    %c0_26 = arith.constant 0 : index
    %c17_27 = arith.constant 17 : index
    %c0_28 = arith.constant 0 : index
    %13 = vector.load %arg10[%c0_26, %c17_27, %c0_28] : memref<18x18x8xbf16, #tpu.memory_space<vmem>>, vector<18x1x8xbf16>
    tpu.vector_store %arg10[%c0_26, %c17_27, %c0_28], %9 {strides = array<i32>} : memref<18x18x8xbf16, #tpu.memory_space<vmem>>, vector<18x1x8xbf16>,
    %14 = arith.truncf %1 : vector<16x16x4xf32> to vector<16x16x4xbf16>
    %c1 = arith.constant 1 : index
    %c1_29 = arith.constant 1 : index
    %c0_30 = arith.constant 0 : index
    %15 = vector.load %arg9[%c1, %c1_29, %c0_30] : memref<18x18x4xbf16, #tpu.memory_space<vmem>>, vector<16x16x4xbf16>
    tpu.vector_store %arg9[%c1, %c1_29, %c0_30], %14 {strides = array<i32>} : memref<18x18x4xbf16, #tpu.memory_space<vmem>>, vector<16x16x4xbf16>,
    %c0_31 = arith.constant 0 : index
    %c0_32 = arith.constant 0 : index
    %c0_33 = arith.constant 0 : index
    %16 = vector.load %arg9[%c0_31, %c0_32, %c0_33] : memref<18x18x4xbf16, #tpu.memory_space<vmem>>, vector<16x16x4xbf16>
    %c1_34 = arith.constant 1 : index
    %c0_35 = arith.constant 0 : index
    %c0_36 = arith.constant 0 : index
    %17 = vector.load %arg9[%c1_34, %c0_35, %c0_36] : memref<18x18x4xbf16, #tpu.memory_space<vmem>>, vector<16x16x4xbf16>
    %c2 = arith.constant 2 : index
    %c0_37 = arith.constant 0 : index
    %c0_38 = arith.constant 0 : index
    %18 = vector.load %arg9[%c2, %c0_37, %c0_38] : memref<18x18x4xbf16, #tpu.memory_space<vmem>>, vector<16x16x4xbf16>
    %19 = tpu.concatenate %16, %17, %18 in 2 : vector<16x16x4xbf16>, vector<16x16x4xbf16>, vector<16x16x4xbf16> -> vector<16x16x12xbf16>
    %20 = vector.shape_cast %19 : vector<16x16x12xbf16> to vector<256x12xbf16>
    %c0_39 = arith.constant 0 : index
    %c0_40 = arith.constant 0 : index
    %c0_41 = arith.constant 0 : index
    %21 = vector.load %arg2[%c0_39, %c0_40, %c0_41] : memref<3x12x8xbf16, #tpu.memory_space<vmem>>, vector<1x12x8xbf16>
    %22 = vector.shape_cast %21 : vector<1x12x8xbf16> to vector<12x8xbf16>
    %cst_42 = arith.constant dense<0.000000e+00> : vector<256x8xf32>
    %23 = tpu.matmul %20, %22, %cst_42 {dimension_numbers = #tpu.dot_dimension_numbers<[1], [0], [0], [1], [0, 0, 1, 1], [], []>} : vector<256x12xbf16>, vector<12x8xbf16>, vector<256x8xf32> -> vector<256x8xf32>
    %c0_43 = arith.constant 0 : index
    %c1_44 = arith.constant 1 : index
    %c0_45 = arith.constant 0 : index
    %24 = vector.load %arg9[%c0_43, %c1_44, %c0_45] : memref<18x18x4xbf16, #tpu.memory_space<vmem>>, vector<16x16x4xbf16>
    %c1_46 = arith.constant 1 : index
    %c1_47 = arith.constant 1 : index
    %c0_48 = arith.constant 0 : index
    %25 = vector.load %arg9[%c1_46, %c1_47, %c0_48] : memref<18x18x4xbf16, #tpu.memory_space<vmem>>, vector<16x16x4xbf16>
    %c2_49 = arith.constant 2 : index
    %c1_50 = arith.constant 1 : index
    %c0_51 = arith.constant 0 : index
    %26 = vector.load %arg9[%c2_49, %c1_50, %c0_51] : memref<18x18x4xbf16, #tpu.memory_space<vmem>>, vector<16x16x4xbf16>
    %27 = tpu.concatenate %24, %25, %26 in 2 : vector<16x16x4xbf16>, vector<16x16x4xbf16>, vector<16x16x4xbf16> -> vector<16x16x12xbf16>
    %28 = vector.shape_cast %27 : vector<16x16x12xbf16> to vector<256x12xbf16>
    %c1_52 = arith.constant 1 : index
    %c0_53 = arith.constant 0 : index
    %c0_54 = arith.constant 0 : index
    %29 = vector.load %arg2[%c1_52, %c0_53, %c0_54] : memref<3x12x8xbf16, #tpu.memory_space<vmem>>, vector<1x12x8xbf16>
    %30 = vector.shape_cast %29 : vector<1x12x8xbf16> to vector<12x8xbf16>
    %cst_55 = arith.constant dense<0.000000e+00> : vector<256x8xf32>
    %31 = tpu.matmul %28, %30, %cst_55 {dimension_numbers = #tpu.dot_dimension_numbers<[1], [0], [0], [1], [0, 0, 1, 1], [], []>} : vector<256x12xbf16>, vector<12x8xbf16>, vector<256x8xf32> -> vector<256x8xf32>
    %32 = arith.addf %23, %31 : vector<256x8xf32>
    %c0_56 = arith.constant 0 : index
    %c2_57 = arith.constant 2 : index
    %c0_58 = arith.constant 0 : index
    %33 = vector.load %arg9[%c0_56, %c2_57, %c0_58] : memref<18x18x4xbf16, #tpu.memory_space<vmem>>, vector<16x16x4xbf16>
    %c1_59 = arith.constant 1 : index
    %c2_60 = arith.constant 2 : index
    %c0_61 = arith.constant 0 : index
    %34 = vector.load %arg9[%c1_59, %c2_60, %c0_61] : memref<18x18x4xbf16, #tpu.memory_space<vmem>>, vector<16x16x4xbf16>
    %c2_62 = arith.constant 2 : index
    %c2_63 = arith.constant 2 : index
    %c0_64 = arith.constant 0 : index
    %35 = vector.load %arg9[%c2_62, %c2_63, %c0_64] : memref<18x18x4xbf16, #tpu.memory_space<vmem>>, vector<16x16x4xbf16>
    %36 = tpu.concatenate %33, %34, %35 in 2 : vector<16x16x4xbf16>, vector<16x16x4xbf16>, vector<16x16x4xbf16> -> vector<16x16x12xbf16>
    %37 = vector.shape_cast %36 : vector<16x16x12xbf16> to vector<256x12xbf16>
    %c2_65 = arith.constant 2 : index
    %c0_66 = arith.constant 0 : index
    %c0_67 = arith.constant 0 : index
    %38 = vector.load %arg2[%c2_65, %c0_66, %c0_67] : memref<3x12x8xbf16, #tpu.memory_space<vmem>>, vector<1x12x8xbf16>
    %39 = vector.shape_cast %38 : vector<1x12x8xbf16> to vector<12x8xbf16>
    %cst_68 = arith.constant dense<0.000000e+00> : vector<256x8xf32>
    %40 = tpu.matmul %37, %39, %cst_68 {dimension_numbers = #tpu.dot_dimension_numbers<[1], [0], [0], [1], [0, 0, 1, 1], [], []>} : vector<256x12xbf16>, vector<12x8xbf16>, vector<256x8xf32> -> vector<256x8xf32>
    %41 = arith.addf %32, %40 : vector<256x8xf32>
    %c0_69 = arith.constant 0 : index
    %c0_70 = arith.constant 0 : index
    %42 = vector.load %arg3[%c0_69, %c0_70] : memref<1x8xf32, #tpu.memory_space<vmem>>, vector<1x8xf32>
    %43 = vector.shape_cast %42 : vector<1x8xf32> to vector<8xf32>
    %44 = vector.shape_cast %43 : vector<8xf32> to vector<1x8xf32>
    %45 = vector.broadcast %44 : vector<1x8xf32> to vector<256x8xf32>
    %46 = arith.addf %41, %45 : vector<256x8xf32>
    %cst_71 = arith.constant 0.000000e+00 : f32
    %47 = vector.broadcast %cst_71 : f32 to vector<256x8xf32>
    %48 = arith.maximumf %46, %47 : vector<256x8xf32>
    %49 = vector.shape_cast %48 : vector<256x8xf32> to vector<16x16x8xf32>
    %50 = arith.truncf %49 : vector<16x16x8xf32> to vector<16x16x8xbf16>
    %c1_72 = arith.constant 1 : index
    %c1_73 = arith.constant 1 : index
    %c0_74 = arith.constant 0 : index
    %51 = vector.load %arg10[%c1_72, %c1_73, %c0_74] : memref<18x18x8xbf16, #tpu.memory_space<vmem>>, vector<16x16x8xbf16>
    tpu.vector_store %arg10[%c1_72, %c1_73, %c0_74], %50 {strides = array<i32>} : memref<18x18x8xbf16, #tpu.memory_space<vmem>>, vector<16x16x8xbf16>,
    %c0_75 = arith.constant 0 : index
    %c0_76 = arith.constant 0 : index
    %c0_77 = arith.constant 0 : index
    %52 = vector.load %arg10[%c0_75, %c0_76, %c0_77] : memref<18x18x8xbf16, #tpu.memory_space<vmem>>, vector<16x16x8xbf16>
    %c1_78 = arith.constant 1 : index
    %c0_79 = arith.constant 0 : index
    %c0_80 = arith.constant 0 : index
    %53 = vector.load %arg10[%c1_78, %c0_79, %c0_80] : memref<18x18x8xbf16, #tpu.memory_space<vmem>>, vector<16x16x8xbf16>
    %c2_81 = arith.constant 2 : index
    %c0_82 = arith.constant 0 : index
    %c0_83 = arith.constant 0 : index
    %54 = vector.load %arg10[%c2_81, %c0_82, %c0_83] : memref<18x18x8xbf16, #tpu.memory_space<vmem>>, vector<16x16x8xbf16>
    %55 = tpu.concatenate %52, %53, %54 in 2 : vector<16x16x8xbf16>, vector<16x16x8xbf16>, vector<16x16x8xbf16> -> vector<16x16x24xbf16>
    %56 = vector.shape_cast %55 : vector<16x16x24xbf16> to vector<256x24xbf16>
    %c0_84 = arith.constant 0 : index
    %c0_85 = arith.constant 0 : index
    %c0_86 = arith.constant 0 : index
    %57 = vector.load %arg4[%c0_84, %c0_85, %c0_86] : memref<3x24x8xbf16, #tpu.memory_space<vmem>>, vector<1x24x8xbf16>
    %58 = vector.shape_cast %57 : vector<1x24x8xbf16> to vector<24x8xbf16>
    %cst_87 = arith.constant dense<0.000000e+00> : vector<256x8xf32>
    %59 = tpu.matmul %56, %58, %cst_87 {dimension_numbers = #tpu.dot_dimension_numbers<[1], [0], [0], [1], [0, 0, 1, 1], [], []>} : vector<256x24xbf16>, vector<24x8xbf16>, vector<256x8xf32> -> vector<256x8xf32>
    %c0_88 = arith.constant 0 : index
    %c1_89 = arith.constant 1 : index
    %c0_90 = arith.constant 0 : index
    %60 = vector.load %arg10[%c0_88, %c1_89, %c0_90] : memref<18x18x8xbf16, #tpu.memory_space<vmem>>, vector<16x16x8xbf16>
    %c1_91 = arith.constant 1 : index
    %c1_92 = arith.constant 1 : index
    %c0_93 = arith.constant 0 : index
    %61 = vector.load %arg10[%c1_91, %c1_92, %c0_93] : memref<18x18x8xbf16, #tpu.memory_space<vmem>>, vector<16x16x8xbf16>
    %c2_94 = arith.constant 2 : index
    %c1_95 = arith.constant 1 : index
    %c0_96 = arith.constant 0 : index
    %62 = vector.load %arg10[%c2_94, %c1_95, %c0_96] : memref<18x18x8xbf16, #tpu.memory_space<vmem>>, vector<16x16x8xbf16>
    %63 = tpu.concatenate %60, %61, %62 in 2 : vector<16x16x8xbf16>, vector<16x16x8xbf16>, vector<16x16x8xbf16> -> vector<16x16x24xbf16>
    %64 = vector.shape_cast %63 : vector<16x16x24xbf16> to vector<256x24xbf16>
    %c1_97 = arith.constant 1 : index
    %c0_98 = arith.constant 0 : index
    %c0_99 = arith.constant 0 : index
    %65 = vector.load %arg4[%c1_97, %c0_98, %c0_99] : memref<3x24x8xbf16, #tpu.memory_space<vmem>>, vector<1x24x8xbf16>
    %66 = vector.shape_cast %65 : vector<1x24x8xbf16> to vector<24x8xbf16>
    %cst_100 = arith.constant dense<0.000000e+00> : vector<256x8xf32>
    %67 = tpu.matmul %64, %66, %cst_100 {dimension_numbers = #tpu.dot_dimension_numbers<[1], [0], [0], [1], [0, 0, 1, 1], [], []>} : vector<256x24xbf16>, vector<24x8xbf16>, vector<256x8xf32> -> vector<256x8xf32>
    %68 = arith.addf %59, %67 : vector<256x8xf32>
    %c0_101 = arith.constant 0 : index
    %c2_102 = arith.constant 2 : index
    %c0_103 = arith.constant 0 : index
    %69 = vector.load %arg10[%c0_101, %c2_102, %c0_103] : memref<18x18x8xbf16, #tpu.memory_space<vmem>>, vector<16x16x8xbf16>
    %c1_104 = arith.constant 1 : index
    %c2_105 = arith.constant 2 : index
    %c0_106 = arith.constant 0 : index
    %70 = vector.load %arg10[%c1_104, %c2_105, %c0_106] : memref<18x18x8xbf16, #tpu.memory_space<vmem>>, vector<16x16x8xbf16>
    %c2_107 = arith.constant 2 : index
    %c2_108 = arith.constant 2 : index
    %c0_109 = arith.constant 0 : index
    %71 = vector.load %arg10[%c2_107, %c2_108, %c0_109] : memref<18x18x8xbf16, #tpu.memory_space<vmem>>, vector<16x16x8xbf16>
    %72 = tpu.concatenate %69, %70, %71 in 2 : vector<16x16x8xbf16>, vector<16x16x8xbf16>, vector<16x16x8xbf16> -> vector<16x16x24xbf16>
    %73 = vector.shape_cast %72 : vector<16x16x24xbf16> to vector<256x24xbf16>
    %c2_110 = arith.constant 2 : index
    %c0_111 = arith.constant 0 : index
    %c0_112 = arith.constant 0 : index
    %74 = vector.load %arg4[%c2_110, %c0_111, %c0_112] : memref<3x24x8xbf16, #tpu.memory_space<vmem>>, vector<1x24x8xbf16>
    %75 = vector.shape_cast %74 : vector<1x24x8xbf16> to vector<24x8xbf16>
    %cst_113 = arith.constant dense<0.000000e+00> : vector<256x8xf32>
    %76 = tpu.matmul %73, %75, %cst_113 {dimension_numbers = #tpu.dot_dimension_numbers<[1], [0], [0], [1], [0, 0, 1, 1], [], []>} : vector<256x24xbf16>, vector<24x8xbf16>, vector<256x8xf32> -> vector<256x8xf32>
    %77 = arith.addf %68, %76 : vector<256x8xf32>
    %c0_114 = arith.constant 0 : index
    %c0_115 = arith.constant 0 : index
    %78 = vector.load %arg5[%c0_114, %c0_115] : memref<1x8xf32, #tpu.memory_space<vmem>>, vector<1x8xf32>
    %79 = vector.shape_cast %78 : vector<1x8xf32> to vector<8xf32>
    %80 = vector.shape_cast %79 : vector<8xf32> to vector<1x8xf32>
    %81 = vector.broadcast %80 : vector<1x8xf32> to vector<256x8xf32>
    %82 = arith.addf %77, %81 : vector<256x8xf32>
    %c1_116 = arith.constant 1 : index
    %c2_117 = arith.constant 2 : index
    %c0_118 = arith.constant 0 : index
    %83 = vector.load %arg9[%c1_116, %c2_117, %c0_118] : memref<18x18x4xbf16, #tpu.memory_space<vmem>>, vector<16x1x4xbf16>
    %c1_119 = arith.constant 1 : index
    %c0_120 = arith.constant 0 : index
    %c0_121 = arith.constant 0 : index
    %84 = vector.load %arg9[%c1_119, %c0_120, %c0_121] : memref<18x18x4xbf16, #tpu.memory_space<vmem>>, vector<16x1x4xbf16>
    tpu.vector_store %arg9[%c1_119, %c0_120, %c0_121], %83 {strides = array<i32>} : memref<18x18x4xbf16, #tpu.memory_space<vmem>>, vector<16x1x4xbf16>,
    %c1_122 = arith.constant 1 : index
    %c15 = arith.constant 15 : index
    %c0_123 = arith.constant 0 : index
    %85 = vector.load %arg9[%c1_122, %c15, %c0_123] : memref<18x18x4xbf16, #tpu.memory_space<vmem>>, vector<16x1x4xbf16>
    %c1_124 = arith.constant 1 : index
    %c17_125 = arith.constant 17 : index
    %c0_126 = arith.constant 0 : index
    %86 = vector.load %arg9[%c1_124, %c17_125, %c0_126] : memref<18x18x4xbf16, #tpu.memory_space<vmem>>, vector<16x1x4xbf16>
    tpu.vector_store %arg9[%c1_124, %c17_125, %c0_126], %85 {strides = array<i32>} : memref<18x18x4xbf16, #tpu.memory_space<vmem>>, vector<16x1x4xbf16>,
    %c2_127 = arith.constant 2 : index
    %c0_128 = arith.constant 0 : index
    %c0_129 = arith.constant 0 : index
    %87 = vector.load %arg9[%c2_127, %c0_128, %c0_129] : memref<18x18x4xbf16, #tpu.memory_space<vmem>>, vector<1x18x4xbf16>
    %c0_130 = arith.constant 0 : index
    %c0_131 = arith.constant 0 : index
    %c0_132 = arith.constant 0 : index
    %88 = vector.load %arg9[%c0_130, %c0_131, %c0_132] : memref<18x18x4xbf16, #tpu.memory_space<vmem>>, vector<1x18x4xbf16>
    tpu.vector_store %arg9[%c0_130, %c0_131, %c0_132], %87 {strides = array<i32>} : memref<18x18x4xbf16, #tpu.memory_space<vmem>>, vector<1x18x4xbf16>,
    %c15_133 = arith.constant 15 : index
    %c0_134 = arith.constant 0 : index
    %c0_135 = arith.constant 0 : index
    %89 = vector.load %arg9[%c15_133, %c0_134, %c0_135] : memref<18x18x4xbf16, #tpu.memory_space<vmem>>, vector<1x18x4xbf16>
    %c17_136 = arith.constant 17 : index
    %c0_137 = arith.constant 0 : index
    %c0_138 = arith.constant 0 : index
    %90 = vector.load %arg9[%c17_136, %c0_137, %c0_138] : memref<18x18x4xbf16, #tpu.memory_space<vmem>>, vector<1x18x4xbf16>
    tpu.vector_store %arg9[%c17_136, %c0_137, %c0_138], %89 {strides = array<i32>} : memref<18x18x4xbf16, #tpu.memory_space<vmem>>, vector<1x18x4xbf16>,
    %c0_139 = arith.constant 0 : index
    %c0_140 = arith.constant 0 : index
    %c0_141 = arith.constant 0 : index
    %91 = vector.load %arg9[%c0_139, %c0_140, %c0_141] : memref<18x18x4xbf16, #tpu.memory_space<vmem>>, vector<16x16x4xbf16>
    %c1_142 = arith.constant 1 : index
    %c0_143 = arith.constant 0 : index
    %c0_144 = arith.constant 0 : index
    %92 = vector.load %arg9[%c1_142, %c0_143, %c0_144] : memref<18x18x4xbf16, #tpu.memory_space<vmem>>, vector<16x16x4xbf16>
    %c2_145 = arith.constant 2 : index
    %c0_146 = arith.constant 0 : index
    %c0_147 = arith.constant 0 : index
    %93 = vector.load %arg9[%c2_145, %c0_146, %c0_147] : memref<18x18x4xbf16, #tpu.memory_space<vmem>>, vector<16x16x4xbf16>
    %94 = tpu.concatenate %91, %92, %93 in 2 : vector<16x16x4xbf16>, vector<16x16x4xbf16>, vector<16x16x4xbf16> -> vector<16x16x12xbf16>
    %95 = vector.shape_cast %94 : vector<16x16x12xbf16> to vector<256x12xbf16>
    %c0_148 = arith.constant 0 : index
    %c0_149 = arith.constant 0 : index
    %c0_150 = arith.constant 0 : index
    %96 = vector.load %arg6[%c0_148, %c0_149, %c0_150] : memref<3x12x8xbf16, #tpu.memory_space<vmem>>, vector<1x12x8xbf16>
    %97 = vector.shape_cast %96 : vector<1x12x8xbf16> to vector<12x8xbf16>
    %cst_151 = arith.constant dense<0.000000e+00> : vector<256x8xf32>
    %98 = tpu.matmul %95, %97, %cst_151 {dimension_numbers = #tpu.dot_dimension_numbers<[1], [0], [0], [1], [0, 0, 1, 1], [], []>} : vector<256x12xbf16>, vector<12x8xbf16>, vector<256x8xf32> -> vector<256x8xf32>
    %c0_152 = arith.constant 0 : index
    %c1_153 = arith.constant 1 : index
    %c0_154 = arith.constant 0 : index
    %99 = vector.load %arg9[%c0_152, %c1_153, %c0_154] : memref<18x18x4xbf16, #tpu.memory_space<vmem>>, vector<16x16x4xbf16>
    %c1_155 = arith.constant 1 : index
    %c1_156 = arith.constant 1 : index
    %c0_157 = arith.constant 0 : index
    %100 = vector.load %arg9[%c1_155, %c1_156, %c0_157] : memref<18x18x4xbf16, #tpu.memory_space<vmem>>, vector<16x16x4xbf16>
    %c2_158 = arith.constant 2 : index
    %c1_159 = arith.constant 1 : index
    %c0_160 = arith.constant 0 : index
    %101 = vector.load %arg9[%c2_158, %c1_159, %c0_160] : memref<18x18x4xbf16, #tpu.memory_space<vmem>>, vector<16x16x4xbf16>
    %102 = tpu.concatenate %99, %100, %101 in 2 : vector<16x16x4xbf16>, vector<16x16x4xbf16>, vector<16x16x4xbf16> -> vector<16x16x12xbf16>
    %103 = vector.shape_cast %102 : vector<16x16x12xbf16> to vector<256x12xbf16>
    %c1_161 = arith.constant 1 : index
    %c0_162 = arith.constant 0 : index
    %c0_163 = arith.constant 0 : index
    %104 = vector.load %arg6[%c1_161, %c0_162, %c0_163] : memref<3x12x8xbf16, #tpu.memory_space<vmem>>, vector<1x12x8xbf16>
    %105 = vector.shape_cast %104 : vector<1x12x8xbf16> to vector<12x8xbf16>
    %cst_164 = arith.constant dense<0.000000e+00> : vector<256x8xf32>
    %106 = tpu.matmul %103, %105, %cst_164 {dimension_numbers = #tpu.dot_dimension_numbers<[1], [0], [0], [1], [0, 0, 1, 1], [], []>} : vector<256x12xbf16>, vector<12x8xbf16>, vector<256x8xf32> -> vector<256x8xf32>
    %107 = arith.addf %98, %106 : vector<256x8xf32>
    %c0_165 = arith.constant 0 : index
    %c2_166 = arith.constant 2 : index
    %c0_167 = arith.constant 0 : index
    %108 = vector.load %arg9[%c0_165, %c2_166, %c0_167] : memref<18x18x4xbf16, #tpu.memory_space<vmem>>, vector<16x16x4xbf16>
    %c1_168 = arith.constant 1 : index
    %c2_169 = arith.constant 2 : index
    %c0_170 = arith.constant 0 : index
    %109 = vector.load %arg9[%c1_168, %c2_169, %c0_170] : memref<18x18x4xbf16, #tpu.memory_space<vmem>>, vector<16x16x4xbf16>
    %c2_171 = arith.constant 2 : index
    %c2_172 = arith.constant 2 : index
    %c0_173 = arith.constant 0 : index
    %110 = vector.load %arg9[%c2_171, %c2_172, %c0_173] : memref<18x18x4xbf16, #tpu.memory_space<vmem>>, vector<16x16x4xbf16>
    %111 = tpu.concatenate %108, %109, %110 in 2 : vector<16x16x4xbf16>, vector<16x16x4xbf16>, vector<16x16x4xbf16> -> vector<16x16x12xbf16>
    %112 = vector.shape_cast %111 : vector<16x16x12xbf16> to vector<256x12xbf16>
    %c2_174 = arith.constant 2 : index
    %c0_175 = arith.constant 0 : index
    %c0_176 = arith.constant 0 : index
    %113 = vector.load %arg6[%c2_174, %c0_175, %c0_176] : memref<3x12x8xbf16, #tpu.memory_space<vmem>>, vector<1x12x8xbf16>
    %114 = vector.shape_cast %113 : vector<1x12x8xbf16> to vector<12x8xbf16>
    %cst_177 = arith.constant dense<0.000000e+00> : vector<256x8xf32>
    %115 = tpu.matmul %112, %114, %cst_177 {dimension_numbers = #tpu.dot_dimension_numbers<[1], [0], [0], [1], [0, 0, 1, 1], [], []>} : vector<256x12xbf16>, vector<12x8xbf16>, vector<256x8xf32> -> vector<256x8xf32>
    %116 = arith.addf %107, %115 : vector<256x8xf32>
    %117 = arith.addf %82, %116 : vector<256x8xf32>
    %c0_178 = arith.constant 0 : index
    %c0_179 = arith.constant 0 : index
    %118 = vector.load %arg7[%c0_178, %c0_179] : memref<1x8xf32, #tpu.memory_space<vmem>>, vector<1x8xf32>
    %119 = vector.shape_cast %118 : vector<1x8xf32> to vector<8xf32>
    %120 = vector.shape_cast %119 : vector<8xf32> to vector<1x8xf32>
    %121 = vector.broadcast %120 : vector<1x8xf32> to vector<256x8xf32>
    %122 = arith.addf %117, %121 : vector<256x8xf32>
    %cst_180 = arith.constant 0.000000e+00 : f32
    %123 = vector.broadcast %cst_180 : f32 to vector<256x8xf32>
    %124 = arith.maximumf %122, %123 : vector<256x8xf32>
    %125 = vector.shape_cast %124 : vector<256x8xf32> to vector<1x16x16x8xf32>
    %c0_181 = arith.constant 0 : index
    %c0_182 = arith.constant 0 : index
    %c0_183 = arith.constant 0 : index
    %c0_184 = arith.constant 0 : index
    %126 = vector.load %arg8[%c0_181, %c0_182, %c0_183, %c0_184] : memref<1x16x16x8xf32, #tpu.memory_space<vmem>>, vector<1x16x16x8xf32>
    tpu.vector_store %arg8[%c0_181, %c0_182, %c0_183, %c0_184], %125 {strides = array<i32>} : memref<1x16x16x8xf32, #tpu.memory_space<vmem>>, vector<1x16x16x8xf32>,
    return
  }
  func.func @transform_0(%arg0: i32) -> (i32, i32, i32, i32) {
    %c0_i32 = arith.constant 0 : i32
    %c0_i32_0 = arith.constant 0 : i32
    %c0_i32_1 = arith.constant 0 : i32
    %c0_i32_2 = arith.constant 0 : i32
    return %arg0, %c0_i32, %c0_i32_0, %c0_i32_1 : i32, i32, i32, i32
  }
  func.func @transform_1(%arg0: i32) -> (i32, i32, i32) {
    %c0_i32 = arith.constant 0 : i32
    %c0_i32_0 = arith.constant 0 : i32
    %c0_i32_1 = arith.constant 0 : i32
    %c0_i32_2 = arith.constant 0 : i32
    return %c0_i32, %c0_i32_0, %c0_i32_1 : i32, i32, i32
  }
  func.func @transform_2(%arg0: i32) -> (i32, i32) {
    %c0_i32 = arith.constant 0 : i32
    %c0_i32_0 = arith.constant 0 : i32
    %c0_i32_1 = arith.constant 0 : i32
    return %c0_i32, %c0_i32_0 : i32, i32
  }
  func.func @transform_3(%arg0: i32) -> (i32, i32, i32) {
    %c0_i32 = arith.constant 0 : i32
    %c0_i32_0 = arith.constant 0 : i32
    %c0_i32_1 = arith.constant 0 : i32
    %c0_i32_2 = arith.constant 0 : i32
    return %c0_i32, %c0_i32_0, %c0_i32_1 : i32, i32, i32
  }
  func.func @transform_4(%arg0: i32) -> (i32, i32) {
    %c0_i32 = arith.constant 0 : i32
    %c0_i32_0 = arith.constant 0 : i32
    %c0_i32_1 = arith.constant 0 : i32
    return %c0_i32, %c0_i32_0 : i32, i32
  }
  func.func @transform_5(%arg0: i32) -> (i32, i32, i32) {
    %c0_i32 = arith.constant 0 : i32
    %c0_i32_0 = arith.constant 0 : i32
    %c0_i32_1 = arith.constant 0 : i32
    %c0_i32_2 = arith.constant 0 : i32
    return %c0_i32, %c0_i32_0, %c0_i32_1 : i32, i32, i32
  }
  func.func @transform_6(%arg0: i32) -> (i32, i32) {
    %c0_i32 = arith.constant 0 : i32
    %c0_i32_0 = arith.constant 0 : i32
    %c0_i32_1 = arith.constant 0 : i32
    return %c0_i32, %c0_i32_0 : i32, i32
  }
  func.func @transform_7(%arg0: i32) -> (i32, i32, i32, i32) {
    %c0_i32 = arith.constant 0 : i32
    %c0_i32_0 = arith.constant 0 : i32
    %c0_i32_1 = arith.constant 0 : i32
    %c0_i32_2 = arith.constant 0 : i32
    return %arg0, %c0_i32, %c0_i32_0, %c0_i32_1 : i32, i32, i32, i32
  }
}

</mosaic_0001>

<llo_original>
// kernel: _lambda_.1
$region0: #{_lambda_.1}
  #allocation0 [shape = 'u32[]', space=smem, size = 0x4, offset = 0x4, fixed_abs, tag = 'smem constant byte address 0x4 - core index']
  #allocation1 [shape = 'u32[144,128]{1,0:T(1,128)}', space=vmem, size = 0x12000, scoped, tag = 'internal scratch']
  #allocation2 [shape = 'bf16[18,18,4]{2,1,0:T(8,128)(2,1)}', space=vmem, size = 0x1b000, scoped, tag = 'scratch operand']
  #allocation3 [shape = 'bf16[18,18,8]{2,1,0:T(8,128)(2,1)}', space=vmem, size = 0x1b000, scoped, tag = 'scratch operand']
  %s0 = inlined_call_operand.vmem [shape: f32[2,16,16,4], index: 0, kind: input, shape index: {}]
  %s1 = inlined_call_operand.vmem [shape: bf16[3,12,8], index: 1, kind: input, shape index: {}]
  %s2 = inlined_call_operand.vmem [shape: f32[1,8], index: 2, kind: input, shape index: {}]
  %s3 = inlined_call_operand.vmem [shape: bf16[3,24,8], index: 3, kind: input, shape index: {}]
  %s4 = inlined_call_operand.vmem [shape: f32[1,8], index: 4, kind: input, shape index: {}]
  %s5 = inlined_call_operand.vmem [shape: bf16[3,12,8], index: 5, kind: input, shape index: {}]
  %s6 = inlined_call_operand.vmem [shape: f32[1,8], index: 6, kind: input, shape index: {}]
  %s7 = inlined_call_operand.vmem [shape: f32[2,16,16,8], index: 7, kind: output, shape index: {}]
  %s8 = sld [smem:[#allocation0]]
  $region61: #{_lambda_.1} parent=0
    _
  %s10 = ssub.s32 1, %s8
  %s11 = scalar_select 0, %s10, %s8
  loop: start=0, step=1, limit=4
  $region2: #{_lambda_.1} parent=0 // loop_pre_header
    _
  $region3: #{_lambda_.1} parent=0 // loop_header
    %s13 = sphi 0, %s17
    %p14 = scmp.ge.s32.totalorder %s13, 4
    %s23 = sphi 0, %s25
    %s26 = sphi 0, %s23
    %s27 = sphi 0, %s26
    %s43 = sphi 0, %s27
    %s47 = sphi 0, %s47
    %s49 = sphi 0, %s47
    %s50 = sphi 0, %s49
    %s64 = sphi 0, %s50
    %s68 = sphi 0, %s68
    %s70 = sphi 0, %s68
    %s71 = sphi 0, %s70
    %s85 = sphi 0, %s71
    %s89 = sphi 0, %s89
    %s91 = sphi 0, %s89
    %s92 = sphi 0, %s91
    %s106 = sphi 0, %s92
    %s110 = sphi 0, %s110
    %s112 = sphi 0, %s110
    %s113 = sphi 0, %s112
    %s127 = sphi 0, %s113
    %s131 = sphi 0, %s131
    %s133 = sphi 0, %s131
    %s134 = sphi 0, %s133
    %s148 = sphi 0, %s134
    %s152 = sphi 0, %s152
    %s154 = sphi 0, %s152
    %s155 = sphi 0, %s154
    %s169 = sphi 0, %s155
    %s175 = sphi 0, %s177
    %s178 = sphi 0, %s175
    %s179 = sphi 0, %s178
    %s195 = sphi 0, %s179
  $region4: #{_lambda_.1} parent=0 // loop_header_branch
    %16 = sbr.rel (%p14) target = $region8
  $region5: #{_lambda_.1} parent=0 // loop_body
    %s18 = ssub.s32 %s13, 1
    %s19 = ssub.s32 %s13, 2
    %s20 = sadd.s32 %s13, 1
    %s21 = ssub.s32 %s13, %s20
    %p22 = scmp.eq.s32.totalorder %s21, 0
    %s24 = sadd.s32 %s23, 1
    %s25 = scalar_select %p22, %s23, %s24
    %p28 = pneg %p22
    %p29 = scmp.eq.s32.totalorder %s13, 1
    %p30 = por %p28, %p29
    %p31 = scmp.ne.s32.totalorder %s23, %s26
    %p32 = scmp.eq.s32.totalorder %s13, 0
    %p33 = por %p31, %p32
    %p34 = scmp.ne.s32.totalorder %s23, %s26
    %p35 = scmp.eq.s32.totalorder %s18, 1
    %p36 = por %p34, %p35
    %p37 = scmp.ne.s32.totalorder %s26, %s27
    %p38 = scmp.eq.s32.totalorder %s18, 0
    %p39 = por %p37, %p38
    %p40 = scmp.ne.s32.totalorder %s26, %s27
    %p41 = scmp.eq.s32.totalorder %s19, 1
    %p42 = por %p40, %p41
    %p44 = scmp.ne.s32.totalorder %s27, %s43
    %p45 = scmp.eq.s32.totalorder %s19, 0
    %p46 = por %p44, %p45
    %s48 = sadd.s32 %s47, 1
    %p51 = scmp.eq.s32.totalorder %s13, 1
    %p52 = scmp.ne.s32.totalorder %s47, %s49
    %p53 = scmp.eq.s32.totalorder %s13, 0
    %p54 = por %p52, %p53
    %p55 = scmp.ne.s32.totalorder %s47, %s49
    %p56 = scmp.eq.s32.totalorder %s18, 1
    %p57 = por %p55, %p56
    %p58 = scmp.ne.s32.totalorder %s49, %s50
    %p59 = scmp.eq.s32.totalorder %s18, 0
    %p60 = por %p58, %p59
    %p61 = scmp.ne.s32.totalorder %s49, %s50
    %p62 = scmp.eq.s32.totalorder %s19, 1
    %p63 = por %p61, %p62
    %p65 = scmp.ne.s32.totalorder %s50, %s64
    %p66 = scmp.eq.s32.totalorder %s19, 0
    %p67 = por %p65, %p66
    %s69 = sadd.s32 %s68, 1
    %p72 = scmp.eq.s32.totalorder %s13, 1
    %p73 = scmp.ne.s32.totalorder %s68, %s70
    %p74 = scmp.eq.s32.totalorder %s13, 0
    %p75 = por %p73, %p74
    %p76 = scmp.ne.s32.totalorder %s68, %s70
    %p77 = scmp.eq.s32.totalorder %s18, 1
    %p78 = por %p76, %p77
    %p79 = scmp.ne.s32.totalorder %s70, %s71
    %p80 = scmp.eq.s32.totalorder %s18, 0
    %p81 = por %p79, %p80
    %p82 = scmp.ne.s32.totalorder %s70, %s71
    %p83 = scmp.eq.s32.totalorder %s19, 1
    %p84 = por %p82, %p83
    %p86 = scmp.ne.s32.totalorder %s71, %s85
    %p87 = scmp.eq.s32.totalorder %s19, 0
    %p88 = por %p86, %p87
    %s90 = sadd.s32 %s89, 1
    %p93 = scmp.eq.s32.totalorder %s13, 1
    %p94 = scmp.ne.s32.totalorder %s89, %s91
    %p95 = scmp.eq.s32.totalorder %s13, 0
    %p96 = por %p94, %p95
    %p97 = scmp.ne.s32.totalorder %s89, %s91
    %p98 = scmp.eq.s32.totalorder %s18, 1
    %p99 = por %p97, %p98
    %p100 = scmp.ne.s32.totalorder %s91, %s92
    %p101 = scmp.eq.s32.totalorder %s18, 0
    %p102 = por %p100, %p101
    %p103 = scmp.ne.s32.totalorder %s91, %s92
    %p104 = scmp.eq.s32.totalorder %s19, 1
    %p105 = por %p103, %p104
    %p107 = scmp.ne.s32.totalorder %s92, %s106
    %p108 = scmp.eq.s32.totalorder %s19, 0
    %p109 = por %p107, %p108
    %s111 = sadd.s32 %s110, 1
    %p114 = scmp.eq.s32.totalorder %s13, 1
    %p115 = scmp.ne.s32.totalorder %s110, %s112
    %p116 = scmp.eq.s32.totalorder %s13, 0
    %p117 = por %p115, %p116
    %p118 = scmp.ne.s32.totalorder %s110, %s112
    %p119 = scmp.eq.s32.totalorder %s18, 1
    %p120 = por %p118, %p119
    %p121 = scmp.ne.s32.totalorder %s112, %s113
    %p122 = scmp.eq.s32.totalorder %s18, 0
    %p123 = por %p121, %p122
    %p124 = scmp.ne.s32.totalorder %s112, %s113
    %p125 = scmp.eq.s32.totalorder %s19, 1
    %p126 = por %p124, %p125
    %p128 = scmp.ne.s32.totalorder %s113, %s127
    %p129 = scmp.eq.s32.totalorder %s19, 0
    %p130 = por %p128, %p129
    %s132 = sadd.s32 %s131, 1
    %p135 = scmp.eq.s32.totalorder %s13, 1
    %p136 = scmp.ne.s32.totalorder %s131, %s133
    %p137 = scmp.eq.s32.totalorder %s13, 0
    %p138 = por %p136, %p137
    %p139 = scmp.ne.s32.totalorder %s131, %s133
    %p140 = scmp.eq.s32.totalorder %s18, 1
    %p141 = por %p139, %p140
    %p142 = scmp.ne.s32.totalorder %s133, %s134
    %p143 = scmp.eq.s32.totalorder %s18, 0
    %p144 = por %p142, %p143
    %p145 = scmp.ne.s32.totalorder %s133, %s134
    %p146 = scmp.eq.s32.totalorder %s19, 1
    %p147 = por %p145, %p146
    %p149 = scmp.ne.s32.totalorder %s134, %s148
    %p150 = scmp.eq.s32.totalorder %s19, 0
    %p151 = por %p149, %p150
    %s153 = sadd.s32 %s152, 1
    %p156 = scmp.eq.s32.totalorder %s13, 1
    %p157 = scmp.ne.s32.totalorder %s152, %s154
    %p158 = scmp.eq.s32.totalorder %s13, 0
    %p159 = por %p157, %p158
    %p160 = scmp.ne.s32.totalorder %s152, %s154
    %p161 = scmp.eq.s32.totalorder %s18, 1
    %p162 = por %p160, %p161
    %p163 = scmp.ne.s32.totalorder %s154, %s155
    %p164 = scmp.eq.s32.totalorder %s18, 0
    %p165 = por %p163, %p164
    %p166 = scmp.ne.s32.totalorder %s154, %s155
    %p167 = scmp.eq.s32.totalorder %s19, 1
    %p168 = por %p166, %p167
    %p170 = scmp.ne.s32.totalorder %s155, %s169
    %p171 = scmp.eq.s32.totalorder %s19, 0
    %p172 = por %p170, %p171
    %s173 = ssub.s32 %s13, %s20
    %p174 = scmp.eq.s32.totalorder %s173, 0
    %s176 = sadd.s32 %s175, 1
    %s177 = scalar_select %p174, %s175, %s176
    %p180 = pneg %p174
    %p181 = scmp.eq.s32.totalorder %s13, 1
    %p182 = por %p180, %p181
    %p183 = scmp.ne.s32.totalorder %s175, %s178
    %p184 = scmp.eq.s32.totalorder %s13, 0
    %p185 = por %p183, %p184
    %p186 = scmp.ne.s32.totalorder %s175, %s178
    %p187 = scmp.eq.s32.totalorder %s18, 1
    %p188 = por %p186, %p187
    %p189 = scmp.ne.s32.totalorder %s178, %s179
    %p190 = scmp.eq.s32.totalorder %s18, 0
    %p191 = por %p189, %p190
    %p192 = scmp.ne.s32.totalorder %s178, %s179
    %p193 = scmp.eq.s32.totalorder %s19, 1
    %p194 = por %p192, %p193
    %p196 = scmp.ne.s32.totalorder %s179, %s195
    %p197 = scmp.eq.s32.totalorder %s19, 0
    %p198 = por %p196, %p197
    %p199 = scmp.le.s32.totalorder 1, %s13
    %p200 = scmp.lt.s32.totalorder %s13, 3
    %p201 = pnand %p199, %p200
    %p202 = pneg %p201
    // Predicated region
    $region9: #{_lambda_.1} parent=5 // pred_check
      _
    $region10: #{_lambda_.1} parent=5 // pred_check_branch
      %204 = sbr.rel (%p201) target = $region12
    $region11: #{_lambda_.1} parent=5 // pred_region
      %s205 = ssub.s32 %s13, 1
      // Predicated region
      $region13: #{_lambda_.1} parent=11 // pred_check
        %p206 = pneg %p60
      $region14: #{_lambda_.1} parent=11 // pred_check_branch
        %208 = sbr.rel (%p206) target = $region16
      $region15: #{_lambda_.1} parent=11 // pred_region
        _
      $region16: #{_lambda_.1} parent=11 // pred_fallthru
        _
      // Predicated region
      $region17: #{_lambda_.1} parent=11 // pred_check
        %p209 = pneg %p81
      $region18: #{_lambda_.1} parent=11 // pred_check_branch
        %211 = sbr.rel (%p209) target = $region20
      $region19: #{_lambda_.1} parent=11 // pred_region
        _
      $region20: #{_lambda_.1} parent=11 // pred_fallthru
        _
      // Predicated region
      $region21: #{_lambda_.1} parent=11 // pred_check
        %p212 = pneg %p102
      $region22: #{_lambda_.1} parent=11 // pred_check_branch
        %214 = sbr.rel (%p212) target = $region24
      $region23: #{_lambda_.1} parent=11 // pred_region
        _
      $region24: #{_lambda_.1} parent=11 // pred_fallthru
        _
      // Predicated region
      $region25: #{_lambda_.1} parent=11 // pred_check
        %p215 = pneg %p123
      $region26: #{_lambda_.1} parent=11 // pred_check_branch
        %217 = sbr.rel (%p215) target = $region28
      $region27: #{_lambda_.1} parent=11 // pred_region
        _
      $region28: #{_lambda_.1} parent=11 // pred_fallthru
        _
      // Predicated region
      $region29: #{_lambda_.1} parent=11 // pred_check
        %p218 = pneg %p144
      $region30: #{_lambda_.1} parent=11 // pred_check_branch
        %220 = sbr.rel (%p218) target = $region32
      $region31: #{_lambda_.1} parent=11 // pred_region
        _
      $region32: #{_lambda_.1} parent=11 // pred_fallthru
        _
      // Predicated region
      $region33: #{_lambda_.1} parent=11 // pred_check
        %p221 = pneg %p165
      $region34: #{_lambda_.1} parent=11 // pred_check_branch
        %223 = sbr.rel (%p221) target = $region36
      $region35: #{_lambda_.1} parent=11 // pred_region
        _
      $region36: #{_lambda_.1} parent=11 // pred_fallthru
        _
    $region12: #{_lambda_.1} parent=5 // pred_fallthru
      _
    %p224 = scmp.lt.s32.totalorder %s13, 2
    // Predicated region
    $region37: #{_lambda_.1} parent=5 // pred_check
      %p225 = pneg %p224
    $region38: #{_lambda_.1} parent=5 // pred_check_branch
      %227 = sbr.rel (%p225) target = $region40
    $region39: #{_lambda_.1} parent=5 // pred_region
      // Predicated region
      $region41: #{_lambda_.1} parent=39 // pred_check
        %p228 = pneg %p33
      $region42: #{_lambda_.1} parent=39 // pred_check_branch
        %230 = sbr.rel (%p228) target = $region44
      $region43: #{_lambda_.1} parent=39 // pred_region
        %p231 = scmp.lt.s32.totalorder %s13, 1
        %s232 = scalar_select %p231, %s13, 1
        %s233 = smul.addr %s232, 32
        %s234 = smul.addr %s233, 8
        %s235 = scalar_lea.vmem %s0, %s234
      $region44: #{_lambda_.1} parent=39 // pred_fallthru
        _
    $region40: #{_lambda_.1} parent=5 // pred_fallthru
      _
    %p236 = scmp.le.s32.totalorder 1, %s13
    %p237 = scmp.lt.s32.totalorder %s13, 3
    %p238 = pnand %p236, %p237
    %p239 = pneg %p238
    // Predicated region
    $region45: #{_lambda_.1} parent=5 // pred_check
      _
    $region46: #{_lambda_.1} parent=5 // pred_check_branch
      %241 = sbr.rel (%p238) target = $region48
    $region47: #{_lambda_.1} parent=5 // pred_region
      %s242 = ssub.s32 %s13, 1
      %p243 = scmp.lt.s32.totalorder %s18, 1
      %s244 = scalar_select %p243, %s18, 1
      %s245 = smul.addr %s244, 32
      %s246 = smul.addr %s245, 8
      %s247 = scalar_lea.vmem %s0, %s246
      %p248 = pneg %p39
      %p249 = pneg %p36
      %p250 = pneg %p60
      %p251 = pneg %p57
      %p252 = pneg %p81
      %p253 = pneg %p78
      %p254 = pneg %p102
      %p255 = pneg %p99
      %p256 = pneg %p123
      %p257 = pneg %p120
      %p258 = pneg %p144
      %p259 = pneg %p141
      %p260 = pneg %p165
      %p261 = pneg %p162
      %p262 = pneg %p191
      %p263 = pneg %p188
      %p264 = scmp.lt.s32.totalorder %s18, 1
      %s265 = scalar_select %p264, %s18, 1
      %s266 = smul.addr %s265, 32
      %s267 = smul.addr %s266, 8
      %s268 = scalar_lea.vmem %s7, %s267
      %p269 = scmp.lt.s32.totalorder %s18, 1
      %s270 = scalar_select %p269, %s18, 1
      %s271 = smul.addr %s270, 32
      %s272 = smul.addr %s271, 8
      %s273 = scalar_lea.vmem %s0, %s272
      %p274 = scmp.lt.s32.totalorder %s18, 1
      %s275 = scalar_select %p274, %s18, 1
      %s276 = smul.addr %s275, 32
      %s277 = smul.addr %s276, 8
      %s278 = scalar_lea.vmem %s7, %s277
      %v280 = vld [vmem:[%s273] sm:$0xff]
      %v281 = vld [vmem:[%s273 + $0x8] sm:$0xff]
      %v282 = vld [vmem:[%s273 + $0x10] sm:$0xff]
      %v283 = vld [vmem:[%s273 + $0x18] sm:$0xff]
      %v284 = vld [vmem:[%s273 + $0x20] sm:$0xff]
      %v285 = vld [vmem:[%s273 + $0x28] sm:$0xff]
      %v286 = vld [vmem:[%s273 + $0x30] sm:$0xff]
      %v287 = vld [vmem:[%s273 + $0x38] sm:$0xff]
      %v288 = vld [vmem:[%s273 + $0x40] sm:$0xff]
      %v289 = vld [vmem:[%s273 + $0x48] sm:$0xff]
      %v290 = vld [vmem:[%s273 + $0x50] sm:$0xff]
      %v291 = vld [vmem:[%s273 + $0x58] sm:$0xff]
      %v292 = vld [vmem:[%s273 + $0x60] sm:$0xff]
      %v293 = vld [vmem:[%s273 + $0x68] sm:$0xff]
      %v294 = vld [vmem:[%s273 + $0x70] sm:$0xff]
      %v295 = vld [vmem:[%s273 + $0x78] sm:$0xff]
      %v296 = vld [vmem:[%s273 + $0x80] sm:$0xff]
      %v297 = vld [vmem:[%s273 + $0x88] sm:$0xff]
      %v298 = vld [vmem:[%s273 + $0x90] sm:$0xff]
      %v299 = vld [vmem:[%s273 + $0x98] sm:$0xff]
      %v300 = vld [vmem:[%s273 + $0xa0] sm:$0xff]
      %v301 = vld [vmem:[%s273 + $0xa8] sm:$0xff]
      %v302 = vld [vmem:[%s273 + $0xb0] sm:$0xff]
      %v303 = vld [vmem:[%s273 + $0xb8] sm:$0xff]
      %v304 = vld [vmem:[%s273 + $0xc0] sm:$0xff]
      %v305 = vld [vmem:[%s273 + $0xc8] sm:$0xff]
      %v306 = vld [vmem:[%s273 + $0xd0] sm:$0xff]
      %v307 = vld [vmem:[%s273 + $0xd8] sm:$0xff]
      %v308 = vld [vmem:[%s273 + $0xe0] sm:$0xff]
      %v309 = vld [vmem:[%s273 + $0xe8] sm:$0xff]
      %v310 = vld [vmem:[%s273 + $0xf0] sm:$0xff]
      %v311 = vld [vmem:[%s273 + $0xf8] sm:$0xff]
      %vm312 = vcmask 27648
      %313 = vst.msk [vmem:[#allocation2] sm:$0xf] %vm312, 0
      %314 = vst.msk [vmem:[#allocation2 + $0x4] sm:$0xf] %vm312, 0
      %vm315 = vcmask 24576
      %316 = vst.msk [vmem:[#allocation2 + $0x8] sm:$0x1] %vm315, 0
      %s317 = scalar_lea.vmem [#allocation2], 204
      %318 = vst.msk [vmem:[%s317] sm:$0xf] %vm312, 0
      %319 = vst.msk [vmem:[%s317 + $0x4] sm:$0xf] %vm312, 0
      %320 = vst.msk [vmem:[%s317 + $0x8] sm:$0x1] %vm315, 0
      %vm321 = vcmask 24576
      %vm322 = vsmask.f32 256
      %vm323 = vmand %vm321, %vm322
      %v324 = vld [vmem:[#allocation2] sm:$0x1]
      %v325 = vsel %vm323, 0, %v324
      %326 = vst [vmem:[#allocation2] sm:$0x1] %v325
      %v327 = vld [vmem:[#allocation2 + $0xc] sm:$0x1]
      %v328 = vsel %vm323, 0, %v327
      %329 = vst [vmem:[#allocation2 + $0xc] sm:$0x1] %v328
      %v330 = vld [vmem:[#allocation2 + $0x18] sm:$0x1]
      %v331 = vsel %vm323, 0, %v330
      %332 = vst [vmem:[#allocation2 + $0x18] sm:$0x1] %v331
      %v333 = vld [vmem:[#allocation2 + $0x24] sm:$0x1]
      %v334 = vsel %vm323, 0, %v333
      %335 = vst [vmem:[#allocation2 + $0x24] sm:$0x1] %v334
      %v336 = vld [vmem:[#allocation2 + $0x30] sm:$0x1]
      %v337 = vsel %vm323, 0, %v336
      %338 = vst [vmem:[#allocation2 + $0x30] sm:$0x1] %v337
      %v339 = vld [vmem:[#allocation2 + $0x3c] sm:$0x1]
      %v340 = vsel %vm323, 0, %v339
      %341 = vst [vmem:[#allocation2 + $0x3c] sm:$0x1] %v340
      %v342 = vld [vmem:[#allocation2 + $0x48] sm:$0x1]
      %v343 = vsel %vm323, 0, %v342
      %344 = vst [vmem:[#allocation2 + $0x48] sm:$0x1] %v343
      %v345 = vld [vmem:[#allocation2 + $0x54] sm:$0x1]
      %v346 = vsel %vm323, 0, %v345
      %347 = vst [vmem:[#allocation2 + $0x54] sm:$0x1] %v346
      %v348 = vld [vmem:[#allocation2 + $0x60] sm:$0x1]
      %v349 = vsel %vm323, 0, %v348
      %350 = vst [vmem:[#allocation2 + $0x60] sm:$0x1] %v349
      %v351 = vld [vmem:[#allocation2 + $0x6c] sm:$0x1]
      %v352 = vsel %vm323, 0, %v351
      %353 = vst [vmem:[#allocation2 + $0x6c] sm:$0x1] %v352
      %v354 = vld [vmem:[#allocation2 + $0x78] sm:$0x1]
      %v355 = vsel %vm323, 0, %v354
      %356 = vst [vmem:[#allocation2 + $0x78] sm:$0x1] %v355
      %v357 = vld [vmem:[#allocation2 + $0x84] sm:$0x1]
      %v358 = vsel %vm323, 0, %v357
      %359 = vst [vmem:[#allocation2 + $0x84] sm:$0x1] %v358
      %v360 = vld [vmem:[#allocation2 + $0x90] sm:$0x1]
      %v361 = vsel %vm323, 0, %v360
      %362 = vst [vmem:[#allocation2 + $0x90] sm:$0x1] %v361
      %v363 = vld [vmem:[#allocation2 + $0x9c] sm:$0x1]
      %v364 = vsel %vm323, 0, %v363
      %365 = vst [vmem:[#allocation2 + $0x9c] sm:$0x1] %v364
      %v366 = vld [vmem:[#allocation2 + $0xa8] sm:$0x1]
      %v367 = vsel %vm323, 0, %v366
      %368 = vst [vmem:[#allocation2 + $0xa8] sm:$0x1] %v367
      %v369 = vld [vmem:[#allocation2 + $0xb4] sm:$0x1]
      %v370 = vsel %vm323, 0, %v369
      %371 = vst [vmem:[#allocation2 + $0xb4] sm:$0x1] %v370
      %v372 = vld [vmem:[#allocation2 + $0xc0] sm:$0x1]
      %v373 = vsel %vm323, 0, %v372
      %374 = vst [vmem:[#allocation2 + $0xc0] sm:$0x1] %v373
      %v375 = vld [vmem:[#allocation2 + $0xcc] sm:$0x1]
      %v376 = vsel %vm323, 0, %v375
      %377 = vst [vmem:[#allocation2 + $0xcc] sm:$0x1] %v376
      %vm378 = vsmask.f32 7938
      %vm379 = vmand %vm321, %vm378
      %v380 = vld [vmem:[#allocation2 + $0x8] sm:$0x1]
      %v381 = vsel %vm379, 0, %v380
      %382 = vst [vmem:[#allocation2 + $0x8] sm:$0x1] %v381
      %v383 = vld [vmem:[#allocation2 + $0x14] sm:$0x1]
      %v384 = vsel %vm379, 0, %v383
      %385 = vst [vmem:[#allocation2 + $0x14] sm:$0x1] %v384
      %v386 = vld [vmem:[#allocation2 + $0x20] sm:$0x1]
      %v387 = vsel %vm379, 0, %v386
      %388 = vst [vmem:[#allocation2 + $0x20] sm:$0x1] %v387
      %v389 = vld [vmem:[#allocation2 + $0x2c] sm:$0x1]
      %v390 = vsel %vm379, 0, %v389
      %391 = vst [vmem:[#allocation2 + $0x2c] sm:$0x1] %v390
      %v392 = vld [vmem:[#allocation2 + $0x38] sm:$0x1]
      %v393 = vsel %vm379, 0, %v392
      %394 = vst [vmem:[#allocation2 + $0x38] sm:$0x1] %v393
      %v395 = vld [vmem:[#allocation2 + $0x44] sm:$0x1]
      %v396 = vsel %vm379, 0, %v395
      %397 = vst [vmem:[#allocation2 + $0x44] sm:$0x1] %v396
      %v398 = vld [vmem:[#allocation2 + $0x50] sm:$0x1]
      %v399 = vsel %vm379, 0, %v398
      %400 = vst [vmem:[#allocation2 + $0x50] sm:$0x1] %v399
      %v401 = vld [vmem:[#allocation2 + $0x5c] sm:$0x1]
      %v402 = vsel %vm379, 0, %v401
      %403 = vst [vmem:[#allocation2 + $0x5c] sm:$0x1] %v402
      %v404 = vld [vmem:[#allocation2 + $0x68] sm:$0x1]
      %v405 = vsel %vm379, 0, %v404
      %406 = vst [vmem:[#allocation2 + $0x68] sm:$0x1] %v405
      %v407 = vld [vmem:[#allocation2 + $0x74] sm:$0x1]
      %v408 = vsel %vm379, 0, %v407
      %409 = vst [vmem:[#allocation2 + $0x74] sm:$0x1] %v408
      %v410 = vld [vmem:[#allocation2 + $0x80] sm:$0x1]
      %v411 = vsel %vm379, 0, %v410
      %412 = vst [vmem:[#allocation2 + $0x80] sm:$0x1] %v411
      %v413 = vld [vmem:[#allocation2 + $0x8c] sm:$0x1]
      %v414 = vsel %vm379, 0, %v413
      %415 = vst [vmem:[#allocation2 + $0x8c] sm:$0x1] %v414
      %v416 = vld [vmem:[#allocation2 + $0x98] sm:$0x1]
      %v417 = vsel %vm379, 0, %v416
      %418 = vst [vmem:[#allocation2 + $0x98] sm:$0x1] %v417
      %v419 = vld [vmem:[#allocation2 + $0xa4] sm:$0x1]
      %v420 = vsel %vm379, 0, %v419
      %421 = vst [vmem:[#allocation2 + $0xa4] sm:$0x1] %v420
      %v422 = vld [vmem:[#allocation2 + $0xb0] sm:$0x1]
      %v423 = vsel %vm379, 0, %v422
      %424 = vst [vmem:[#allocation2 + $0xb0] sm:$0x1] %v423
      %v425 = vld [vmem:[#allocation2 + $0xbc] sm:$0x1]
      %v426 = vsel %vm379, 0, %v425
      %427 = vst [vmem:[#allocation2 + $0xbc] sm:$0x1] %v426
      %v428 = vld [vmem:[#allocation2 + $0xc8] sm:$0x1]
      %v429 = vsel %vm379, 0, %v428
      %430 = vst [vmem:[#allocation2 + $0xc8] sm:$0x1] %v429
      %v431 = vld [vmem:[#allocation2 + $0xd4] sm:$0x1]
      %v432 = vsel %vm379, 0, %v431
      %433 = vst [vmem:[#allocation2 + $0xd4] sm:$0x1] %v432
      %vm434 = vcmask 60416
      %435 = vst.msk [vmem:[#allocation3] sm:$0xf] %vm434, 0
      %436 = vst.msk [vmem:[#allocation3 + $0x4] sm:$0xf] %vm434, 0
      %vm437 = vcmask 57344
      %438 = vst.msk [vmem:[#allocation3 + $0x8] sm:$0x1] %vm437, 0
      %s439 = scalar_lea.vmem [#allocation3], 204
      %440 = vst.msk [vmem:[%s439] sm:$0xf] %vm434, 0
      %441 = vst.msk [vmem:[%s439 + $0x4] sm:$0xf] %vm434, 0
      %442 = vst.msk [vmem:[%s439 + $0x8] sm:$0x1] %vm437, 0
      %vm443 = vcmask 57344
      %vm444 = vmand %vm443, %vm322
      %v445 = vld [vmem:[#allocation3] sm:$0x1]
      %v446 = vsel %vm444, 0, %v445
      %447 = vst [vmem:[#allocation3] sm:$0x1] %v446
      %v448 = vld [vmem:[#allocation3 + $0xc] sm:$0x1]
      %v449 = vsel %vm444, 0, %v448
      %450 = vst [vmem:[#allocation3 + $0xc] sm:$0x1] %v449
      %v451 = vld [vmem:[#allocation3 + $0x18] sm:$0x1]
      %v452 = vsel %vm444, 0, %v451
      %453 = vst [vmem:[#allocation3 + $0x18] sm:$0x1] %v452
      %v454 = vld [vmem:[#allocation3 + $0x24] sm:$0x1]
      %v455 = vsel %vm444, 0, %v454
      %456 = vst [vmem:[#allocation3 + $0x24] sm:$0x1] %v455
      %v457 = vld [vmem:[#allocation3 + $0x30] sm:$0x1]
      %v458 = vsel %vm444, 0, %v457
      %459 = vst [vmem:[#allocation3 + $0x30] sm:$0x1] %v458
      %v460 = vld [vmem:[#allocation3 + $0x3c] sm:$0x1]
      %v461 = vsel %vm444, 0, %v460
      %462 = vst [vmem:[#allocation3 + $0x3c] sm:$0x1] %v461
      %v463 = vld [vmem:[#allocation3 + $0x48] sm:$0x1]
      %v464 = vsel %vm444, 0, %v463
      %465 = vst [vmem:[#allocation3 + $0x48] sm:$0x1] %v464
      %v466 = vld [vmem:[#allocation3 + $0x54] sm:$0x1]
      %v467 = vsel %vm444, 0, %v466
      %468 = vst [vmem:[#allocation3 + $0x54] sm:$0x1] %v467
      %v469 = vld [vmem:[#allocation3 + $0x60] sm:$0x1]
      %v470 = vsel %vm444, 0, %v469
      %471 = vst [vmem:[#allocation3 + $0x60] sm:$0x1] %v470
      %v472 = vld [vmem:[#allocation3 + $0x6c] sm:$0x1]
      %v473 = vsel %vm444, 0, %v472
      %474 = vst [vmem:[#allocation3 + $0x6c] sm:$0x1] %v473
      %v475 = vld [vmem:[#allocation3 + $0x78] sm:$0x1]
      %v476 = vsel %vm444, 0, %v475
      %477 = vst [vmem:[#allocation3 + $0x78] sm:$0x1] %v476
      %v478 = vld [vmem:[#allocation3 + $0x84] sm:$0x1]
      %v479 = vsel %vm444, 0, %v478
      %480 = vst [vmem:[#allocation3 + $0x84] sm:$0x1] %v479
      %v481 = vld [vmem:[#allocation3 + $0x90] sm:$0x1]
      %v482 = vsel %vm444, 0, %v481
      %483 = vst [vmem:[#allocation3 + $0x90] sm:$0x1] %v482
      %v484 = vld [vmem:[#allocation3 + $0x9c] sm:$0x1]
      %v485 = vsel %vm444, 0, %v484
      %486 = vst [vmem:[#allocation3 + $0x9c] sm:$0x1] %v485
      %v487 = vld [vmem:[#allocation3 + $0xa8] sm:$0x1]
      %v488 = vsel %vm444, 0, %v487
      %489 = vst [vmem:[#allocation3 + $0xa8] sm:$0x1] %v488
      %v490 = vld [vmem:[#allocation3 + $0xb4] sm:$0x1]
      %v491 = vsel %vm444, 0, %v490
      %492 = vst [vmem:[#allocation3 + $0xb4] sm:$0x1] %v491
      %v493 = vld [vmem:[#allocation3 + $0xc0] sm:$0x1]
      %v494 = vsel %vm444, 0, %v493
      %495 = vst [vmem:[#allocation3 + $0xc0] sm:$0x1] %v494
      %v496 = vld [vmem:[#allocation3 + $0xcc] sm:$0x1]
      %v497 = vsel %vm444, 0, %v496
      %498 = vst [vmem:[#allocation3 + $0xcc] sm:$0x1] %v497
      %vm499 = vmand %vm443, %vm378
      %v500 = vld [vmem:[#allocation3 + $0x8] sm:$0x1]
      %v501 = vsel %vm499, 0, %v500
      %502 = vst [vmem:[#allocation3 + $0x8] sm:$0x1] %v501
      %v503 = vld [vmem:[#allocation3 + $0x14] sm:$0x1]
      %v504 = vsel %vm499, 0, %v503
      %505 = vst [vmem:[#allocation3 + $0x14] sm:$0x1] %v504
      %v506 = vld [vmem:[#allocation3 + $0x20] sm:$0x1]
      %v507 = vsel %vm499, 0, %v506
      %508 = vst [vmem:[#allocation3 + $0x20] sm:$0x1] %v507
      %v509 = vld [vmem:[#allocation3 + $0x2c] sm:$0x1]
      %v510 = vsel %vm499, 0, %v509
      %511 = vst [vmem:[#allocation3 + $0x2c] sm:$0x1] %v510
      %v512 = vld [vmem:[#allocation3 + $0x38] sm:$0x1]
      %v513 = vsel %vm499, 0, %v512
      %514 = vst [vmem:[#allocation3 + $0x38] sm:$0x1] %v513
      %v515 = vld [vmem:[#allocation3 + $0x44] sm:$0x1]
      %v516 = vsel %vm499, 0, %v515
      %517 = vst [vmem:[#allocation3 + $0x44] sm:$0x1] %v516
      %v518 = vld [vmem:[#allocation3 + $0x50] sm:$0x1]
      %v519 = vsel %vm499, 0, %v518
      %520 = vst [vmem:[#allocation3 + $0x50] sm:$0x1] %v519
      %v521 = vld [vmem:[#allocation3 + $0x5c] sm:$0x1]
      %v522 = vsel %vm499, 0, %v521
      %523 = vst [vmem:[#allocation3 + $0x5c] sm:$0x1] %v522
      %v524 = vld [vmem:[#allocation3 + $0x68] sm:$0x1]
      %v525 = vsel %vm499, 0, %v524
      %526 = vst [vmem:[#allocation3 + $0x68] sm:$0x1] %v525
      %v527 = vld [vmem:[#allocation3 + $0x74] sm:$0x1]
      %v528 = vsel %vm499, 0, %v527
      %529 = vst [vmem:[#allocation3 + $0x74] sm:$0x1] %v528
      %v530 = vld [vmem:[#allocation3 + $0x80] sm:$0x1]
      %v531 = vsel %vm499, 0, %v530
      %532 = vst [vmem:[#allocation3 + $0x80] sm:$0x1] %v531
      %v533 = vld [vmem:[#allocation3 + $0x8c] sm:$0x1]
      %v534 = vsel %vm499, 0, %v533
      %535 = vst [vmem:[#allocation3 + $0x8c] sm:$0x1] %v534
      %v536 = vld [vmem:[#allocation3 + $0x98] sm:$0x1]
      %v537 = vsel %vm499, 0, %v536
      %538 = vst [vmem:[#allocation3 + $0x98] sm:$0x1] %v537
      %v539 = vld [vmem:[#allocation3 + $0xa4] sm:$0x1]
      %v540 = vsel %vm499, 0, %v539
      %541 = vst [vmem:[#allocation3 + $0xa4] sm:$0x1] %v540
      %v542 = vld [vmem:[#allocation3 + $0xb0] sm:$0x1]
      %v543 = vsel %vm499, 0, %v542
      %544 = vst [vmem:[#allocation3 + $0xb0] sm:$0x1] %v543
      %v545 = vld [vmem:[#allocation3 + $0xbc] sm:$0x1]
      %v546 = vsel %vm499, 0, %v545
      %547 = vst [vmem:[#allocation3 + $0xbc] sm:$0x1] %v546
      %v548 = vld [vmem:[#allocation3 + $0xc8] sm:$0x1]
      %v549 = vsel %vm499, 0, %v548
      %550 = vst [vmem:[#allocation3 + $0xc8] sm:$0x1] %v549
      %v551 = vld [vmem:[#allocation3 + $0xd4] sm:$0x1]
      %v552 = vsel %vm499, 0, %v551
      %553 = vst [vmem:[#allocation3 + $0xd4] sm:$0x1] %v552
      %v554 = vpack.c.bf16 %v281, %v280
      %v555 = vpack.c.bf16 %v283, %v282
      %v556 = vpack.c.bf16 %v285, %v284
      %v557 = vpack.c.bf16 %v287, %v286
      %v558 = vpack.c.bf16 %v289, %v288
      %v559 = vpack.c.bf16 %v291, %v290
      %v560 = vpack.c.bf16 %v293, %v292
      %v561 = vpack.c.bf16 %v295, %v294
      %v562 = vpack.c.bf16 %v297, %v296
      %v563 = vpack.c.bf16 %v299, %v298
      %v564 = vpack.c.bf16 %v301, %v300
      %v565 = vpack.c.bf16 %v303, %v302
      %v566 = vpack.c.bf16 %v305, %v304
      %v567 = vpack.c.bf16 %v307, %v306
      %v568 = vpack.c.bf16 %v309, %v308
      %v569 = vpack.c.bf16 %v311, %v310
      %v586 = vunpack.c.l.b16 %v554
      %v587 = vunpack.c.h.b16 %v554
      %v588 = vunpack.c.l.b16 %v555
      %v589 = vunpack.c.h.b16 %v555
      %v590 = vunpack.c.l.b16 %v556
      %v591 = vunpack.c.h.b16 %v556
      %v592 = vunpack.c.l.b16 %v557
      %v593 = vunpack.c.h.b16 %v557
      %v594 = vunpack.c.l.b16 %v558
      %v595 = vunpack.c.h.b16 %v558
      %v596 = vunpack.c.l.b16 %v559
      %v597 = vunpack.c.h.b16 %v559
      %v598 = vunpack.c.l.b16 %v560
      %v599 = vunpack.c.h.b16 %v560
      %v600 = vunpack.c.l.b16 %v561
      %v601 = vunpack.c.h.b16 %v561
      %v602 = vunpack.c.l.b16 %v562
      %v603 = vunpack.c.h.b16 %v562
      %v604 = vunpack.c.l.b16 %v563
      %v605 = vunpack.c.h.b16 %v563
      %v606 = vunpack.c.l.b16 %v564
      %v607 = vunpack.c.h.b16 %v564
      %v608 = vunpack.c.l.b16 %v565
      %v609 = vunpack.c.h.b16 %v565
      %v610 = vunpack.c.l.b16 %v566
      %v611 = vunpack.c.h.b16 %v566
      %v612 = vunpack.c.l.b16 %v567
      %v613 = vunpack.c.h.b16 %v567
      %v614 = vunpack.c.l.b16 %v568
      %v615 = vunpack.c.h.b16 %v568
      %v616 = vunpack.c.l.b16 %v569
      %v617 = vunpack.c.h.b16 %v569
      %v618 = vpack.c.b16 %v586, %v586
      %v619 = vpack.c.b16 %v587, %v587
      %v620 = vpack.c.b16 %v588, %v588
      %v621 = vpack.c.b16 %v589, %v589
      %v622 = vpack.c.b16 %v590, %v590
      %v623 = vpack.c.b16 %v591, %v591
      %v624 = vpack.c.b16 %v592, %v592
      %v625 = vpack.c.b16 %v593, %v593
      %v626 = vpack.c.b16 %v594, %v594
      %v627 = vpack.c.b16 %v595, %v595
      %v628 = vpack.c.b16 %v596, %v596
      %v629 = vpack.c.b16 %v597, %v597
      %v630 = vpack.c.b16 %v598, %v598
      %v631 = vpack.c.b16 %v599, %v599
      %v632 = vpack.c.b16 %v600, %v600
      %v633 = vpack.c.b16 %v601, %v601
      %v634 = vpack.c.b16 %v602, %v602
      %v635 = vpack.c.b16 %v603, %v603
      %v636 = vpack.c.b16 %v604, %v604
      %v637 = vpack.c.b16 %v605, %v605
      %v638 = vpack.c.b16 %v606, %v606
      %v639 = vpack.c.b16 %v607, %v607
      %v640 = vpack.c.b16 %v608, %v608
      %v641 = vpack.c.b16 %v609, %v609
      %v642 = vpack.c.b16 %v610, %v610
      %v643 = vpack.c.b16 %v611, %v611
      %v644 = vpack.c.b16 %v612, %v612
      %v645 = vpack.c.b16 %v613, %v613
      %v646 = vpack.c.b16 %v614, %v614
      %v647 = vpack.c.b16 %v615, %v615
      %v648 = vpack.c.b16 %v616, %v616
      %v649 = vpack.c.b16 %v617, %v617
      %vm650 = vsmask.f32 4368
      %vm651 = vmor %vm322, %vm650
      %v653 = vshrl.u32 %v618, 16
      %v655 = vrot.slane %v653, 7
      %v656 = vshll.u32 %v618, 16
      %v658 = vor.u32 %v655, %v656
      %v659 = vrot.slane %v655, 4
      %v661 = vshrl.u32 %v619, 16
      %v663 = vrot.slane %v661, 7
      %v664 = vshll.u32 %v619, 16
      %v666 = vor.u32 %v663, %v664
      %v667 = vsel %vm651, %v659, %v666
      %v668 = vrot.slane %v663, 4
      %v670 = vshrl.u32 %v620, 16
      %v672 = vrot.slane %v670, 7
      %v673 = vshll.u32 %v620, 16
      %v675 = vor.u32 %v672, %v673
      %v676 = vrot.slane %v672, 4
      %v678 = vshrl.u32 %v621, 16
      %v680 = vrot.slane %v678, 7
      %v681 = vshll.u32 %v621, 16
      %v683 = vor.u32 %v680, %v681
      %v684 = vsel %vm651, %v676, %v683
      %v685 = vrot.slane %v680, 4
      %v687 = vshrl.u32 %v622, 16
      %v689 = vrot.slane %v687, 7
      %v690 = vshll.u32 %v622, 16
      %v692 = vor.u32 %v689, %v690
      %v693 = vrot.slane %v689, 4
      %v695 = vshrl.u32 %v623, 16
      %v697 = vrot.slane %v695, 7
      %v698 = vshll.u32 %v623, 16
      %v700 = vor.u32 %v697, %v698
      %v701 = vsel %vm651, %v693, %v700
      %v702 = vrot.slane %v697, 4
      %v704 = vshrl.u32 %v624, 16
      %v706 = vrot.slane %v704, 7
      %v707 = vshll.u32 %v624, 16
      %v709 = vor.u32 %v706, %v707
      %v710 = vrot.slane %v706, 4
      %v712 = vshrl.u32 %v625, 16
      %v714 = vrot.slane %v712, 7
      %v715 = vshll.u32 %v625, 16
      %v717 = vor.u32 %v714, %v715
      %v718 = vsel %vm651, %v710, %v717
      %v719 = vrot.slane %v714, 4
      %v721 = vshrl.u32 %v626, 16
      %v723 = vrot.slane %v721, 7
      %v724 = vshll.u32 %v626, 16
      %v726 = vor.u32 %v723, %v724
      %v727 = vrot.slane %v723, 4
      %v729 = vshrl.u32 %v627, 16
      %v731 = vrot.slane %v729, 7
      %v732 = vshll.u32 %v627, 16
      %v734 = vor.u32 %v731, %v732
      %v735 = vsel %vm651, %v727, %v734
      %v736 = vrot.slane %v731, 4
      %v738 = vshrl.u32 %v628, 16
      %v740 = vrot.slane %v738, 7
      %v741 = vshll.u32 %v628, 16
      %v743 = vor.u32 %v740, %v741
      %v744 = vrot.slane %v740, 4
      %v746 = vshrl.u32 %v629, 16
      %v748 = vrot.slane %v746, 7
      %v749 = vshll.u32 %v629, 16
      %v751 = vor.u32 %v748, %v749
      %v752 = vsel %vm651, %v744, %v751
      %v753 = vrot.slane %v748, 4
      %v755 = vshrl.u32 %v630, 16
      %v757 = vrot.slane %v755, 7
      %v758 = vshll.u32 %v630, 16
      %v760 = vor.u32 %v757, %v758
      %v761 = vrot.slane %v757, 4
      %v763 = vshrl.u32 %v631, 16
      %v765 = vrot.slane %v763, 7
      %v766 = vshll.u32 %v631, 16
      %v768 = vor.u32 %v765, %v766
      %v769 = vsel %vm651, %v761, %v768
      %v770 = vrot.slane %v765, 4
      %v772 = vshrl.u32 %v632, 16
      %v774 = vrot.slane %v772, 7
      %v775 = vshll.u32 %v632, 16
      %v777 = vor.u32 %v774, %v775
      %v778 = vrot.slane %v774, 4
      %v780 = vshrl.u32 %v633, 16
      %v782 = vrot.slane %v780, 7
      %v783 = vshll.u32 %v633, 16
      %v785 = vor.u32 %v782, %v783
      %v786 = vsel %vm651, %v778, %v785
      %v787 = vrot.slane %v782, 4
      %v789 = vshrl.u32 %v634, 16
      %v791 = vrot.slane %v789, 7
      %v792 = vshll.u32 %v634, 16
      %v794 = vor.u32 %v791, %v792
      %v795 = vrot.slane %v791, 4
      %v797 = vshrl.u32 %v635, 16
      %v799 = vrot.slane %v797, 7
      %v800 = vshll.u32 %v635, 16
      %v802 = vor.u32 %v799, %v800
      %v803 = vsel %vm651, %v795, %v802
      %v804 = vrot.slane %v799, 4
      %v806 = vshrl.u32 %v636, 16
      %v808 = vrot.slane %v806, 7
      %v809 = vshll.u32 %v636, 16
      %v811 = vor.u32 %v808, %v809
      %v812 = vrot.slane %v808, 4
      %v814 = vshrl.u32 %v637, 16
      %v816 = vrot.slane %v814, 7
      %v817 = vshll.u32 %v637, 16
      %v819 = vor.u32 %v816, %v817
      %v820 = vsel %vm651, %v812, %v819
      %v821 = vrot.slane %v816, 4
      %v823 = vshrl.u32 %v638, 16
      %v825 = vrot.slane %v823, 7
      %v826 = vshll.u32 %v638, 16
      %v828 = vor.u32 %v825, %v826
      %v829 = vrot.slane %v825, 4
      %v831 = vshrl.u32 %v639, 16
      %v833 = vrot.slane %v831, 7
      %v834 = vshll.u32 %v639, 16
      %v836 = vor.u32 %v833, %v834
      %v837 = vsel %vm651, %v829, %v836
      %v838 = vrot.slane %v833, 4
      %v840 = vshrl.u32 %v640, 16
      %v842 = vrot.slane %v840, 7
      %v843 = vshll.u32 %v640, 16
      %v845 = vor.u32 %v842, %v843
      %v846 = vrot.slane %v842, 4
      %v848 = vshrl.u32 %v641, 16
      %v850 = vrot.slane %v848, 7
      %v851 = vshll.u32 %v641, 16
      %v853 = vor.u32 %v850, %v851
      %v854 = vsel %vm651, %v846, %v853
      %v855 = vrot.slane %v850, 4
      %v857 = vshrl.u32 %v642, 16
      %v859 = vrot.slane %v857, 7
      %v860 = vshll.u32 %v642, 16
      %v862 = vor.u32 %v859, %v860
      %v863 = vrot.slane %v859, 4
      %v865 = vshrl.u32 %v643, 16
      %v867 = vrot.slane %v865, 7
      %v868 = vshll.u32 %v643, 16
      %v870 = vor.u32 %v867, %v868
      %v871 = vsel %vm651, %v863, %v870
      %v872 = vrot.slane %v867, 4
      %v874 = vshrl.u32 %v644, 16
      %v876 = vrot.slane %v874, 7
      %v877 = vshll.u32 %v644, 16
      %v879 = vor.u32 %v876, %v877
      %v880 = vrot.slane %v876, 4
      %v882 = vshrl.u32 %v645, 16
      %v884 = vrot.slane %v882, 7
      %v885 = vshll.u32 %v645, 16
      %v887 = vor.u32 %v884, %v885
      %v888 = vsel %vm651, %v880, %v887
      %v889 = vrot.slane %v884, 4
      %v891 = vshrl.u32 %v646, 16
      %v893 = vrot.slane %v891, 7
      %v894 = vshll.u32 %v646, 16
      %v896 = vor.u32 %v893, %v894
      %v897 = vrot.slane %v893, 4
      %v899 = vshrl.u32 %v647, 16
      %v901 = vrot.slane %v899, 7
      %v902 = vshll.u32 %v647, 16
      %v904 = vor.u32 %v901, %v902
      %v905 = vsel %vm651, %v897, %v904
      %v906 = vrot.slane %v901, 4
      %v908 = vshrl.u32 %v648, 16
      %v910 = vrot.slane %v908, 7
      %v911 = vshll.u32 %v648, 16
      %v913 = vor.u32 %v910, %v911
      %v914 = vrot.slane %v910, 4
      %v916 = vshrl.u32 %v649, 16
      %v918 = vrot.slane %v916, 7
      %v919 = vshll.u32 %v649, 16
      %v921 = vor.u32 %v918, %v919
      %v922 = vsel %vm651, %v914, %v921
      %v923 = vrot.slane %v918, 4
      %s972 = scalar_lea.vmem [#allocation2], 12
      %vm973 = vcmask 27648
      %vm974 = vmand %vm973, %vm378
      %v975 = vld [vmem:[%s972] sm:$0xf]
      %v976 = vsel %vm974, %v658, %v975
      %977 = vst [vmem:[%s972] sm:$0xf] %v976
      %978 = vst.msk [vmem:[%s972 + $0x4] sm:$0xf] %vm312, %v667
      %v979 = vld [vmem:[%s972 + $0x8] sm:$0x1]
      %v980 = vsel %vm323, %v668, %v979
      %981 = vst [vmem:[%s972 + $0x8] sm:$0x1] %v980
      %v982 = vld [vmem:[%s972 + $0xc] sm:$0xf]
      %v983 = vsel %vm974, %v675, %v982
      %984 = vst [vmem:[%s972 + $0xc] sm:$0xf] %v983
      %985 = vst.msk [vmem:[%s972 + $0x10] sm:$0xf] %vm312, %v684
      %v986 = vld [vmem:[%s972 + $0x14] sm:$0x1]
      %v987 = vsel %vm323, %v685, %v986
      %988 = vst [vmem:[%s972 + $0x14] sm:$0x1] %v987
      %v989 = vld [vmem:[%s972 + $0x18] sm:$0xf]
      %v990 = vsel %vm974, %v692, %v989
      %991 = vst [vmem:[%s972 + $0x18] sm:$0xf] %v990
      %992 = vst.msk [vmem:[%s972 + $0x1c] sm:$0xf] %vm312, %v701
      %v993 = vld [vmem:[%s972 + $0x20] sm:$0x1]
      %v994 = vsel %vm323, %v702, %v993
      %995 = vst [vmem:[%s972 + $0x20] sm:$0x1] %v994
      %v996 = vld [vmem:[%s972 + $0x24] sm:$0xf]
      %v997 = vsel %vm974, %v709, %v996
      %998 = vst [vmem:[%s972 + $0x24] sm:$0xf] %v997
      %999 = vst.msk [vmem:[%s972 + $0x28] sm:$0xf] %vm312, %v718
      %v1000 = vld [vmem:[%s972 + $0x2c] sm:$0x1]
      %v1001 = vsel %vm323, %v719, %v1000
      %1002 = vst [vmem:[%s972 + $0x2c] sm:$0x1] %v1001
      %v1003 = vld [vmem:[%s972 + $0x30] sm:$0xf]
      %v1004 = vsel %vm974, %v726, %v1003
      %1005 = vst [vmem:[%s972 + $0x30] sm:$0xf] %v1004
      %1006 = vst.msk [vmem:[%s972 + $0x34] sm:$0xf] %vm312, %v735
      %v1007 = vld [vmem:[%s972 + $0x38] sm:$0x1]
      %v1008 = vsel %vm323, %v736, %v1007
      %1009 = vst [vmem:[%s972 + $0x38] sm:$0x1] %v1008
      %v1010 = vld [vmem:[%s972 + $0x3c] sm:$0xf]
      %v1011 = vsel %vm974, %v743, %v1010
      %1012 = vst [vmem:[%s972 + $0x3c] sm:$0xf] %v1011
      %1013 = vst.msk [vmem:[%s972 + $0x40] sm:$0xf] %vm312, %v752
      %v1014 = vld [vmem:[%s972 + $0x44] sm:$0x1]
      %v1015 = vsel %vm323, %v753, %v1014
      %1016 = vst [vmem:[%s972 + $0x44] sm:$0x1] %v1015
      %v1017 = vld [vmem:[%s972 + $0x48] sm:$0xf]
      %v1018 = vsel %vm974, %v760, %v1017
      %1019 = vst [vmem:[%s972 + $0x48] sm:$0xf] %v1018
      %1020 = vst.msk [vmem:[%s972 + $0x4c] sm:$0xf] %vm312, %v769
      %v1021 = vld [vmem:[%s972 + $0x50] sm:$0x1]
      %v1022 = vsel %vm323, %v770, %v1021
      %1023 = vst [vmem:[%s972 + $0x50] sm:$0x1] %v1022
      %v1024 = vld [vmem:[%s972 + $0x54] sm:$0xf]
      %v1025 = vsel %vm974, %v777, %v1024
      %1026 = vst [vmem:[%s972 + $0x54] sm:$0xf] %v1025
      %1027 = vst.msk [vmem:[%s972 + $0x58] sm:$0xf] %vm312, %v786
      %v1028 = vld [vmem:[%s972 + $0x5c] sm:$0x1]
      %v1029 = vsel %vm323, %v787, %v1028
      %1030 = vst [vmem:[%s972 + $0x5c] sm:$0x1] %v1029
      %v1031 = vld [vmem:[%s972 + $0x60] sm:$0xf]
      %v1032 = vsel %vm974, %v794, %v1031
      %1033 = vst [vmem:[%s972 + $0x60] sm:$0xf] %v1032
      %1034 = vst.msk [vmem:[%s972 + $0x64] sm:$0xf] %vm312, %v803
      %v1035 = vld [vmem:[%s972 + $0x68] sm:$0x1]
      %v1036 = vsel %vm323, %v804, %v1035
      %1037 = vst [vmem:[%s972 + $0x68] sm:$0x1] %v1036
      %v1038 = vld [vmem:[%s972 + $0x6c] sm:$0xf]
      %v1039 = vsel %vm974, %v811, %v1038
      %1040 = vst [vmem:[%s972 + $0x6c] sm:$0xf] %v1039
      %1041 = vst.msk [vmem:[%s972 + $0x70] sm:$0xf] %vm312, %v820
      %v1042 = vld [vmem:[%s972 + $0x74] sm:$0x1]
      %v1043 = vsel %vm323, %v821, %v1042
      %1044 = vst [vmem:[%s972 + $0x74] sm:$0x1] %v1043
      %v1045 = vld [vmem:[%s972 + $0x78] sm:$0xf]
      %v1046 = vsel %vm974, %v828, %v1045
      %1047 = vst [vmem:[%s972 + $0x78] sm:$0xf] %v1046
      %1048 = vst.msk [vmem:[%s972 + $0x7c] sm:$0xf] %vm312, %v837
      %v1049 = vld [vmem:[%s972 + $0x80] sm:$0x1]
      %v1050 = vsel %vm323, %v838, %v1049
      %1051 = vst [vmem:[%s972 + $0x80] sm:$0x1] %v1050
      %v1052 = vld [vmem:[%s972 + $0x84] sm:$0xf]
      %v1053 = vsel %vm974, %v845, %v1052
      %1054 = vst [vmem:[%s972 + $0x84] sm:$0xf] %v1053
      %1055 = vst.msk [vmem:[%s972 + $0x88] sm:$0xf] %vm312, %v854
      %v1056 = vld [vmem:[%s972 + $0x8c] sm:$0x1]
      %v1057 = vsel %vm323, %v855, %v1056
      %1058 = vst [vmem:[%s972 + $0x8c] sm:$0x1] %v1057
      %v1059 = vld [vmem:[%s972 + $0x90] sm:$0xf]
      %v1060 = vsel %vm974, %v862, %v1059
      %1061 = vst [vmem:[%s972 + $0x90] sm:$0xf] %v1060
      %1062 = vst.msk [vmem:[%s972 + $0x94] sm:$0xf] %vm312, %v871
      %v1063 = vld [vmem:[%s972 + $0x98] sm:$0x1]
      %v1064 = vsel %vm323, %v872, %v1063
      %1065 = vst [vmem:[%s972 + $0x98] sm:$0x1] %v1064
      %v1066 = vld [vmem:[%s972 + $0x9c] sm:$0xf]
      %v1067 = vsel %vm974, %v879, %v1066
      %1068 = vst [vmem:[%s972 + $0x9c] sm:$0xf] %v1067
      %1069 = vst.msk [vmem:[%s972 + $0xa0] sm:$0xf] %vm312, %v888
      %v1070 = vld [vmem:[%s972 + $0xa4] sm:$0x1]
      %v1071 = vsel %vm323, %v889, %v1070
      %1072 = vst [vmem:[%s972 + $0xa4] sm:$0x1] %v1071
      %v1073 = vld [vmem:[%s972 + $0xa8] sm:$0xf]
      %v1074 = vsel %vm974, %v896, %v1073
      %1075 = vst [vmem:[%s972 + $0xa8] sm:$0xf] %v1074
      %1076 = vst.msk [vmem:[%s972 + $0xac] sm:$0xf] %vm312, %v905
      %v1077 = vld [vmem:[%s972 + $0xb0] sm:$0x1]
      %v1078 = vsel %vm323, %v906, %v1077
      %1079 = vst [vmem:[%s972 + $0xb0] sm:$0x1] %v1078
      %v1080 = vld [vmem:[%s972 + $0xb4] sm:$0xf]
      %v1081 = vsel %vm974, %v913, %v1080
      %1082 = vst [vmem:[%s972 + $0xb4] sm:$0xf] %v1081
      %1083 = vst.msk [vmem:[%s972 + $0xb8] sm:$0xf] %vm312, %v922
      %v1084 = vld [vmem:[%s972 + $0xbc] sm:$0x1]
      %v1085 = vsel %vm323, %v923, %v1084
      %1086 = vst [vmem:[%s972 + $0xbc] sm:$0x1] %v1085
      %v1087 = vld [vmem:[#allocation2] sm:$0xf]
      %v1088 = vld [vmem:[#allocation2 + $0x4] sm:$0xf]
      %v1089 = vld [vmem:[#allocation2 + $0xc] sm:$0xf]
      %v1090 = vld [vmem:[#allocation2 + $0x10] sm:$0xf]
      %v1091 = vld [vmem:[#allocation2 + $0x18] sm:$0xf]
      %v1092 = vld [vmem:[#allocation2 + $0x1c] sm:$0xf]
      %v1093 = vld [vmem:[#allocation2 + $0x24] sm:$0xf]
      %v1094 = vld [vmem:[#allocation2 + $0x28] sm:$0xf]
      %v1095 = vld [vmem:[#allocation2 + $0x30] sm:$0xf]
      %v1096 = vld [vmem:[#allocation2 + $0x34] sm:$0xf]
      %v1097 = vld [vmem:[#allocation2 + $0x3c] sm:$0xf]
      %v1098 = vld [vmem:[#allocation2 + $0x40] sm:$0xf]
      %v1099 = vld [vmem:[#allocation2 + $0x48] sm:$0xf]
      %v1100 = vld [vmem:[#allocation2 + $0x4c] sm:$0xf]
      %v1101 = vld [vmem:[#allocation2 + $0x54] sm:$0xf]
      %v1102 = vld [vmem:[#allocation2 + $0x58] sm:$0xf]
      %v1103 = vld [vmem:[#allocation2 + $0x60] sm:$0xf]
      %v1104 = vld [vmem:[#allocation2 + $0x64] sm:$0xf]
      %v1105 = vld [vmem:[#allocation2 + $0x6c] sm:$0xf]
      %v1106 = vld [vmem:[#allocation2 + $0x70] sm:$0xf]
      %v1107 = vld [vmem:[#allocation2 + $0x78] sm:$0xf]
      %v1108 = vld [vmem:[#allocation2 + $0x7c] sm:$0xf]
      %v1109 = vld [vmem:[#allocation2 + $0x84] sm:$0xf]
      %v1110 = vld [vmem:[#allocation2 + $0x88] sm:$0xf]
      %v1111 = vld [vmem:[#allocation2 + $0x90] sm:$0xf]
      %v1112 = vld [vmem:[#allocation2 + $0x94] sm:$0xf]
      %v1113 = vld [vmem:[#allocation2 + $0x9c] sm:$0xf]
      %v1114 = vld [vmem:[#allocation2 + $0xa0] sm:$0xf]
      %v1115 = vld [vmem:[#allocation2 + $0xa8] sm:$0xf]
      %v1116 = vld [vmem:[#allocation2 + $0xac] sm:$0xf]
      %v1117 = vld [vmem:[#allocation2 + $0xb4] sm:$0xf]
      %v1118 = vld [vmem:[#allocation2 + $0xb8] sm:$0xf]
      %v1119 = vld [vmem:[%s972] sm:$0xf]
      %v1120 = vld [vmem:[%s972 + $0x4] sm:$0xf]
      %v1121 = vld [vmem:[%s972 + $0xc] sm:$0xf]
      %v1122 = vld [vmem:[%s972 + $0x10] sm:$0xf]
      %v1123 = vld [vmem:[%s972 + $0x18] sm:$0xf]
      %v1124 = vld [vmem:[%s972 + $0x1c] sm:$0xf]
      %v1125 = vld [vmem:[%s972 + $0x24] sm:$0xf]
      %v1126 = vld [vmem:[%s972 + $0x28] sm:$0xf]
      %v1127 = vld [vmem:[%s972 + $0x30] sm:$0xf]
      %v1128 = vld [vmem:[%s972 + $0x34] sm:$0xf]
      %v1129 = vld [vmem:[%s972 + $0x3c] sm:$0xf]
      %v1130 = vld [vmem:[%s972 + $0x40] sm:$0xf]
      %v1131 = vld [vmem:[%s972 + $0x48] sm:$0xf]
      %v1132 = vld [vmem:[%s972 + $0x4c] sm:$0xf]
      %v1133 = vld [vmem:[%s972 + $0x54] sm:$0xf]
      %v1134 = vld [vmem:[%s972 + $0x58] sm:$0xf]
      %v1135 = vld [vmem:[%s972 + $0x60] sm:$0xf]
      %v1136 = vld [vmem:[%s972 + $0x64] sm:$0xf]
      %v1137 = vld [vmem:[%s972 + $0x6c] sm:$0xf]
      %v1138 = vld [vmem:[%s972 + $0x70] sm:$0xf]
      %v1139 = vld [vmem:[%s972 + $0x78] sm:$0xf]
      %v1140 = vld [vmem:[%s972 + $0x7c] sm:$0xf]
      %v1141 = vld [vmem:[%s972 + $0x84] sm:$0xf]
      %v1142 = vld [vmem:[%s972 + $0x88] sm:$0xf]
      %v1143 = vld [vmem:[%s972 + $0x90] sm:$0xf]
      %v1144 = vld [vmem:[%s972 + $0x94] sm:$0xf]
      %v1145 = vld [vmem:[%s972 + $0x9c] sm:$0xf]
      %v1146 = vld [vmem:[%s972 + $0xa0] sm:$0xf]
      %v1147 = vld [vmem:[%s972 + $0xa8] sm:$0xf]
      %v1148 = vld [vmem:[%s972 + $0xac] sm:$0xf]
      %v1149 = vld [vmem:[%s972 + $0xb4] sm:$0xf]
      %v1150 = vld [vmem:[%s972 + $0xb8] sm:$0xf]
      %s1151 = scalar_lea.vmem [#allocation2], 24
      %v1152 = vld [vmem:[%s1151] sm:$0xf]
      %v1153 = vld [vmem:[%s1151 + $0x4] sm:$0xf]
      %v1154 = vld [vmem:[%s1151 + $0xc] sm:$0xf]
      %v1155 = vld [vmem:[%s1151 + $0x10] sm:$0xf]
      %v1156 = vld [vmem:[%s1151 + $0x18] sm:$0xf]
      %v1157 = vld [vmem:[%s1151 + $0x1c] sm:$0xf]
      %v1158 = vld [vmem:[%s1151 + $0x24] sm:$0xf]
      %v1159 = vld [vmem:[%s1151 + $0x28] sm:$0xf]
      %v1160 = vld [vmem:[%s1151 + $0x30] sm:$0xf]
      %v1161 = vld [vmem:[%s1151 + $0x34] sm:$0xf]
      %v1162 = vld [vmem:[%s1151 + $0x3c] sm:$0xf]
      %v1163 = vld [vmem:[%s1151 + $0x40] sm:$0xf]
      %v1164 = vld [vmem:[%s1151 + $0x48] sm:$0xf]
      %v1165 = vld [vmem:[%s1151 + $0x4c] sm:$0xf]
      %v1166 = vld [vmem:[%s1151 + $0x54] sm:$0xf]
      %v1167 = vld [vmem:[%s1151 + $0x58] sm:$0xf]
      %v1168 = vld [vmem:[%s1151 + $0x60] sm:$0xf]
      %v1169 = vld [vmem:[%s1151 + $0x64] sm:$0xf]
      %v1170 = vld [vmem:[%s1151 + $0x6c] sm:$0xf]
      %v1171 = vld [vmem:[%s1151 + $0x70] sm:$0xf]
      %v1172 = vld [vmem:[%s1151 + $0x78] sm:$0xf]
      %v1173 = vld [vmem:[%s1151 + $0x7c] sm:$0xf]
      %v1174 = vld [vmem:[%s1151 + $0x84] sm:$0xf]
      %v1175 = vld [vmem:[%s1151 + $0x88] sm:$0xf]
      %v1176 = vld [vmem:[%s1151 + $0x90] sm:$0xf]
      %v1177 = vld [vmem:[%s1151 + $0x94] sm:$0xf]
      %v1178 = vld [vmem:[%s1151 + $0x9c] sm:$0xf]
      %v1179 = vld [vmem:[%s1151 + $0xa0] sm:$0xf]
      %v1180 = vld [vmem:[%s1151 + $0xa8] sm:$0xf]
      %v1181 = vld [vmem:[%s1151 + $0xac] sm:$0xf]
      %v1182 = vld [vmem:[%s1151 + $0xb4] sm:$0xf]
      %v1183 = vld [vmem:[%s1151 + $0xb8] sm:$0xf]
      %v1216 = vunpack.c.l.b16 %v1087
      %v1217 = vunpack.c.l.b16 %v1088
      %v1218 = vunpack.c.l.b16 %v1089
      %v1219 = vunpack.c.l.b16 %v1090
      %v1220 = vunpack.c.l.b16 %v1091
      %v1221 = vunpack.c.l.b16 %v1092
      %v1222 = vunpack.c.l.b16 %v1093
      %v1223 = vunpack.c.l.b16 %v1094
      %v1224 = vunpack.c.l.b16 %v1095
      %v1225 = vunpack.c.l.b16 %v1096
      %v1226 = vunpack.c.l.b16 %v1097
      %v1227 = vunpack.c.l.b16 %v1098
      %v1228 = vunpack.c.l.b16 %v1099
      %v1229 = vunpack.c.l.b16 %v1100
      %v1230 = vunpack.c.l.b16 %v1101
      %v1231 = vunpack.c.l.b16 %v1102
      %v1232 = vunpack.c.l.b16 %v1103
      %v1233 = vunpack.c.l.b16 %v1104
      %v1234 = vunpack.c.l.b16 %v1105
      %v1235 = vunpack.c.l.b16 %v1106
      %v1236 = vunpack.c.l.b16 %v1107
      %v1237 = vunpack.c.l.b16 %v1108
      %v1238 = vunpack.c.l.b16 %v1109
      %v1239 = vunpack.c.l.b16 %v1110
      %v1240 = vunpack.c.l.b16 %v1111
      %v1241 = vunpack.c.l.b16 %v1112
      %v1242 = vunpack.c.l.b16 %v1113
      %v1243 = vunpack.c.l.b16 %v1114
      %v1244 = vunpack.c.l.b16 %v1115
      %v1245 = vunpack.c.l.b16 %v1116
      %v1246 = vunpack.c.l.b16 %v1117
      %v1247 = vunpack.c.l.b16 %v1118
      %v1248 = vpack.c.b16 %v1217, %v1216
      %v1249 = vpack.c.b16 %v1219, %v1218
      %v1250 = vpack.c.b16 %v1221, %v1220
      %v1251 = vpack.c.b16 %v1223, %v1222
      %v1252 = vpack.c.b16 %v1225, %v1224
      %v1253 = vpack.c.b16 %v1227, %v1226
      %v1254 = vpack.c.b16 %v1229, %v1228
      %v1255 = vpack.c.b16 %v1231, %v1230
      %v1256 = vpack.c.b16 %v1233, %v1232
      %v1257 = vpack.c.b16 %v1235, %v1234
      %v1258 = vpack.c.b16 %v1237, %v1236
      %v1259 = vpack.c.b16 %v1239, %v1238
      %v1260 = vpack.c.b16 %v1241, %v1240
      %v1261 = vpack.c.b16 %v1243, %v1242
      %v1262 = vpack.c.b16 %v1245, %v1244
      %v1263 = vpack.c.b16 %v1247, %v1246
      %v1296 = vunpack.c.l.b16 %v1119
      %v1297 = vunpack.c.l.b16 %v1120
      %v1298 = vunpack.c.l.b16 %v1121
      %v1299 = vunpack.c.l.b16 %v1122
      %v1300 = vunpack.c.l.b16 %v1123
      %v1301 = vunpack.c.l.b16 %v1124
      %v1302 = vunpack.c.l.b16 %v1125
      %v1303 = vunpack.c.l.b16 %v1126
      %v1304 = vunpack.c.l.b16 %v1127
      %v1305 = vunpack.c.l.b16 %v1128
      %v1306 = vunpack.c.l.b16 %v1129
      %v1307 = vunpack.c.l.b16 %v1130
      %v1308 = vunpack.c.l.b16 %v1131
      %v1309 = vunpack.c.l.b16 %v1132
      %v1310 = vunpack.c.l.b16 %v1133
      %v1311 = vunpack.c.l.b16 %v1134
      %v1312 = vunpack.c.l.b16 %v1135
      %v1313 = vunpack.c.l.b16 %v1136
      %v1314 = vunpack.c.l.b16 %v1137
      %v1315 = vunpack.c.l.b16 %v1138
      %v1316 = vunpack.c.l.b16 %v1139
      %v1317 = vunpack.c.l.b16 %v1140
      %v1318 = vunpack.c.l.b16 %v1141
      %v1319 = vunpack.c.l.b16 %v1142
      %v1320 = vunpack.c.l.b16 %v1143
      %v1321 = vunpack.c.l.b16 %v1144
      %v1322 = vunpack.c.l.b16 %v1145
      %v1323 = vunpack.c.l.b16 %v1146
      %v1324 = vunpack.c.l.b16 %v1147
      %v1325 = vunpack.c.l.b16 %v1148
      %v1326 = vunpack.c.l.b16 %v1149
      %v1327 = vunpack.c.l.b16 %v1150
      %v1328 = vpack.c.b16 %v1297, %v1296
      %v1329 = vpack.c.b16 %v1299, %v1298
      %v1330 = vpack.c.b16 %v1301, %v1300
      %v1331 = vpack.c.b16 %v1303, %v1302
      %v1332 = vpack.c.b16 %v1305, %v1304
      %v1333 = vpack.c.b16 %v1307, %v1306
      %v1334 = vpack.c.b16 %v1309, %v1308
      %v1335 = vpack.c.b16 %v1311, %v1310
      %v1336 = vpack.c.b16 %v1313, %v1312
      %v1337 = vpack.c.b16 %v1315, %v1314
      %v1338 = vpack.c.b16 %v1317, %v1316
      %v1339 = vpack.c.b16 %v1319, %v1318
      %v1340 = vpack.c.b16 %v1321, %v1320
      %v1341 = vpack.c.b16 %v1323, %v1322
      %v1342 = vpack.c.b16 %v1325, %v1324
      %v1343 = vpack.c.b16 %v1327, %v1326
      %1344 = vrot.lane.b32.xlu0 %v1328, 4
      %v1345 = vpop.permute.xlu0 %1344
      %1346 = vrot.lane.b32.xlu0 %v1329, 4
      %v1347 = vpop.permute.xlu0 %1346
      %1348 = vrot.lane.b32.xlu0 %v1330, 4
      %v1349 = vpop.permute.xlu0 %1348
      %1350 = vrot.lane.b32.xlu0 %v1331, 4
      %v1351 = vpop.permute.xlu0 %1350
      %1352 = vrot.lane.b32.xlu0 %v1332, 4
      %v1353 = vpop.permute.xlu0 %1352
      %1354 = vrot.lane.b32.xlu0 %v1333, 4
      %v1355 = vpop.permute.xlu0 %1354
      %1356 = vrot.lane.b32.xlu0 %v1334, 4
      %v1357 = vpop.permute.xlu0 %1356
      %1358 = vrot.lane.b32.xlu0 %v1335, 4
      %v1359 = vpop.permute.xlu0 %1358
      %1360 = vrot.lane.b32.xlu0 %v1336, 4
      %v1361 = vpop.permute.xlu0 %1360
      %1362 = vrot.lane.b32.xlu0 %v1337, 4
      %v1363 = vpop.permute.xlu0 %1362
      %1364 = vrot.lane.b32.xlu0 %v1338, 4
      %v1365 = vpop.permute.xlu0 %1364
      %1366 = vrot.lane.b32.xlu0 %v1339, 4
      %v1367 = vpop.permute.xlu0 %1366
      %1368 = vrot.lane.b32.xlu0 %v1340, 4
      %v1369 = vpop.permute.xlu0 %1368
      %1370 = vrot.lane.b32.xlu0 %v1341, 4
      %v1371 = vpop.permute.xlu0 %1370
      %1372 = vrot.lane.b32.xlu0 %v1342, 4
      %v1373 = vpop.permute.xlu0 %1372
      %1374 = vrot.lane.b32.xlu0 %v1343, 4
      %v1375 = vpop.permute.xlu0 %1374
      %v1408 = vunpack.c.l.b16 %v1152
      %v1409 = vunpack.c.l.b16 %v1153
      %v1410 = vunpack.c.l.b16 %v1154
      %v1411 = vunpack.c.l.b16 %v1155
      %v1412 = vunpack.c.l.b16 %v1156
      %v1413 = vunpack.c.l.b16 %v1157
      %v1414 = vunpack.c.l.b16 %v1158
      %v1415 = vunpack.c.l.b16 %v1159
      %v1416 = vunpack.c.l.b16 %v1160
      %v1417 = vunpack.c.l.b16 %v1161
      %v1418 = vunpack.c.l.b16 %v1162
      %v1419 = vunpack.c.l.b16 %v1163
      %v1420 = vunpack.c.l.b16 %v1164
      %v1421 = vunpack.c.l.b16 %v1165
      %v1422 = vunpack.c.l.b16 %v1166
      %v1423 = vunpack.c.l.b16 %v1167
      %v1424 = vunpack.c.l.b16 %v1168
      %v1425 = vunpack.c.l.b16 %v1169
      %v1426 = vunpack.c.l.b16 %v1170
      %v1427 = vunpack.c.l.b16 %v1171
      %v1428 = vunpack.c.l.b16 %v1172
      %v1429 = vunpack.c.l.b16 %v1173
      %v1430 = vunpack.c.l.b16 %v1174
      %v1431 = vunpack.c.l.b16 %v1175
      %v1432 = vunpack.c.l.b16 %v1176
      %v1433 = vunpack.c.l.b16 %v1177
      %v1434 = vunpack.c.l.b16 %v1178
      %v1435 = vunpack.c.l.b16 %v1179
      %v1436 = vunpack.c.l.b16 %v1180
      %v1437 = vunpack.c.l.b16 %v1181
      %v1438 = vunpack.c.l.b16 %v1182
      %v1439 = vunpack.c.l.b16 %v1183
      %v1440 = vpack.c.b16 %v1409, %v1408
      %v1441 = vpack.c.b16 %v1411, %v1410
      %v1442 = vpack.c.b16 %v1413, %v1412
      %v1443 = vpack.c.b16 %v1415, %v1414
      %v1444 = vpack.c.b16 %v1417, %v1416
      %v1445 = vpack.c.b16 %v1419, %v1418
      %v1446 = vpack.c.b16 %v1421, %v1420
      %v1447 = vpack.c.b16 %v1423, %v1422
      %v1448 = vpack.c.b16 %v1425, %v1424
      %v1449 = vpack.c.b16 %v1427, %v1426
      %v1450 = vpack.c.b16 %v1429, %v1428
      %v1451 = vpack.c.b16 %v1431, %v1430
      %v1452 = vpack.c.b16 %v1433, %v1432
      %v1453 = vpack.c.b16 %v1435, %v1434
      %v1454 = vpack.c.b16 %v1437, %v1436
      %v1455 = vpack.c.b16 %v1439, %v1438
      %1456 = vrot.lane.b32.xlu0 %v1440, 8
      %v1457 = vpop.permute.xlu0 %1456
      %1458 = vrot.lane.b32.xlu0 %v1441, 8
      %v1459 = vpop.permute.xlu0 %1458
      %1460 = vrot.lane.b32.xlu0 %v1442, 8
      %v1461 = vpop.permute.xlu0 %1460
      %1462 = vrot.lane.b32.xlu0 %v1443, 8
      %v1463 = vpop.permute.xlu0 %1462
      %1464 = vrot.lane.b32.xlu0 %v1444, 8
      %v1465 = vpop.permute.xlu0 %1464
      %1466 = vrot.lane.b32.xlu0 %v1445, 8
      %v1467 = vpop.permute.xlu0 %1466
      %1468 = vrot.lane.b32.xlu0 %v1446, 8
      %v1469 = vpop.permute.xlu0 %1468
      %1470 = vrot.lane.b32.xlu0 %v1447, 8
      %v1471 = vpop.permute.xlu0 %1470
      %1472 = vrot.lane.b32.xlu0 %v1448, 8
      %v1473 = vpop.permute.xlu0 %1472
      %1474 = vrot.lane.b32.xlu0 %v1449, 8
      %v1475 = vpop.permute.xlu0 %1474
      %1476 = vrot.lane.b32.xlu0 %v1450, 8
      %v1477 = vpop.permute.xlu0 %1476
      %1478 = vrot.lane.b32.xlu0 %v1451, 8
      %v1479 = vpop.permute.xlu0 %1478
      %1480 = vrot.lane.b32.xlu0 %v1452, 8
      %v1481 = vpop.permute.xlu0 %1480
      %1482 = vrot.lane.b32.xlu0 %v1453, 8
      %v1483 = vpop.permute.xlu0 %1482
      %1484 = vrot.lane.b32.xlu0 %v1454, 8
      %v1485 = vpop.permute.xlu0 %1484
      %1486 = vrot.lane.b32.xlu0 %v1455, 8
      %v1487 = vpop.permute.xlu0 %1486
      %vm1488 = vcmask 31744
      %v1491 = vsel %vm1488, %v1248, %v1345
      %v1494 = vsel %vm1488, %v1249, %v1347
      %v1497 = vsel %vm1488, %v1250, %v1349
      %v1500 = vsel %vm1488, %v1251, %v1351
      %v1503 = vsel %vm1488, %v1252, %v1353
      %v1506 = vsel %vm1488, %v1253, %v1355
      %v1509 = vsel %vm1488, %v1254, %v1357
      %v1512 = vsel %vm1488, %v1255, %v1359
      %v1515 = vsel %vm1488, %v1256, %v1361
      %v1518 = vsel %vm1488, %v1257, %v1363
      %v1521 = vsel %vm1488, %v1258, %v1365
      %v1524 = vsel %vm1488, %v1259, %v1367
      %v1527 = vsel %vm1488, %v1260, %v1369
      %v1530 = vsel %vm1488, %v1261, %v1371
      %v1533 = vsel %vm1488, %v1262, %v1373
      %v1536 = vsel %vm1488, %v1263, %v1375
      %vm1537 = vcmask 64512
      %v1539 = vsel %vm1537, %v1491, %v1457
      %v1541 = vsel %vm1537, %v1494, %v1459
      %v1543 = vsel %vm1537, %v1497, %v1461
      %v1545 = vsel %vm1537, %v1500, %v1463
      %v1547 = vsel %vm1537, %v1503, %v1465
      %v1549 = vsel %vm1537, %v1506, %v1467
      %v1551 = vsel %vm1537, %v1509, %v1469
      %v1553 = vsel %vm1537, %v1512, %v1471
      %v1555 = vsel %vm1537, %v1515, %v1473
      %v1557 = vsel %vm1537, %v1518, %v1475
      %v1559 = vsel %vm1537, %v1521, %v1477
      %v1561 = vsel %vm1537, %v1524, %v1479
      %v1563 = vsel %vm1537, %v1527, %v1481
      %v1565 = vsel %vm1537, %v1530, %v1483
      %v1567 = vsel %vm1537, %v1533, %v1485
      %v1569 = vsel %vm1537, %v1536, %v1487
      %v1570 = vld [vmem:[%s1] sm:$0xf]
      %v1571 = vld [vmem:[%s1 + $0x4] sm:$0x3]
      %v1572 = vld [vmem:[#allocation2 + $0x8] sm:$0x1]
      %v1573 = vld [vmem:[#allocation2 + $0x14] sm:$0x1]
      %v1574 = vld [vmem:[#allocation2 + $0x20] sm:$0x1]
      %v1575 = vld [vmem:[#allocation2 + $0x2c] sm:$0x1]
      %v1576 = vld [vmem:[#allocation2 + $0x38] sm:$0x1]
      %v1577 = vld [vmem:[#allocation2 + $0x44] sm:$0x1]
      %v1578 = vld [vmem:[#allocation2 + $0x50] sm:$0x1]
      %v1579 = vld [vmem:[#allocation2 + $0x5c] sm:$0x1]
      %v1580 = vld [vmem:[#allocation2 + $0x68] sm:$0x1]
      %v1581 = vld [vmem:[#allocation2 + $0x74] sm:$0x1]
      %v1582 = vld [vmem:[#allocation2 + $0x80] sm:$0x1]
      %v1583 = vld [vmem:[#allocation2 + $0x8c] sm:$0x1]
      %v1584 = vld [vmem:[#allocation2 + $0x98] sm:$0x1]
      %v1585 = vld [vmem:[#allocation2 + $0xa4] sm:$0x1]
      %v1586 = vld [vmem:[#allocation2 + $0xb0] sm:$0x1]
      %v1587 = vld [vmem:[#allocation2 + $0xbc] sm:$0x1]
      %v1588 = vld [vmem:[%s972 + $0x8] sm:$0x1]
      %v1589 = vld [vmem:[%s972 + $0x14] sm:$0x1]
      %v1590 = vld [vmem:[%s972 + $0x20] sm:$0x1]
      %v1591 = vld [vmem:[%s972 + $0x2c] sm:$0x1]
      %v1592 = vld [vmem:[%s972 + $0x38] sm:$0x1]
      %v1593 = vld [vmem:[%s972 + $0x44] sm:$0x1]
      %v1594 = vld [vmem:[%s972 + $0x50] sm:$0x1]
      %v1595 = vld [vmem:[%s972 + $0x5c] sm:$0x1]
      %v1596 = vld [vmem:[%s972 + $0x68] sm:$0x1]
      %v1597 = vld [vmem:[%s972 + $0x74] sm:$0x1]
      %v1598 = vld [vmem:[%s972 + $0x80] sm:$0x1]
      %v1599 = vld [vmem:[%s972 + $0x8c] sm:$0x1]
      %v1600 = vld [vmem:[%s972 + $0x98] sm:$0x1]
      %v1601 = vld [vmem:[%s972 + $0xa4] sm:$0x1]
      %v1602 = vld [vmem:[%s972 + $0xb0] sm:$0x1]
      %v1603 = vld [vmem:[%s972 + $0xbc] sm:$0x1]
      %v1604 = vld [vmem:[%s1151 + $0x8] sm:$0x1]
      %v1605 = vld [vmem:[%s1151 + $0x14] sm:$0x1]
      %v1606 = vld [vmem:[%s1151 + $0x20] sm:$0x1]
      %v1607 = vld [vmem:[%s1151 + $0x2c] sm:$0x1]
      %v1608 = vld [vmem:[%s1151 + $0x38] sm:$0x1]
      %v1609 = vld [vmem:[%s1151 + $0x44] sm:$0x1]
      %v1610 = vld [vmem:[%s1151 + $0x50] sm:$0x1]
      %v1611 = vld [vmem:[%s1151 + $0x5c] sm:$0x1]
      %v1612 = vld [vmem:[%s1151 + $0x68] sm:$0x1]
      %v1613 = vld [vmem:[%s1151 + $0x74] sm:$0x1]
      %v1614 = vld [vmem:[%s1151 + $0x80] sm:$0x1]
      %v1615 = vld [vmem:[%s1151 + $0x8c] sm:$0x1]
      %v1616 = vld [vmem:[%s1151 + $0x98] sm:$0x1]
      %v1617 = vld [vmem:[%s1151 + $0xa4] sm:$0x1]
      %v1618 = vld [vmem:[%s1151 + $0xb0] sm:$0x1]
      %v1619 = vld [vmem:[%s1151 + $0xbc] sm:$0x1]
      %v1636 = vunpack.c.l.b16 %v1572
      %v1637 = vunpack.c.l.b16 %v1573
      %v1638 = vunpack.c.l.b16 %v1574
      %v1639 = vunpack.c.l.b16 %v1575
      %v1640 = vunpack.c.l.b16 %v1576
      %v1641 = vunpack.c.l.b16 %v1577
      %v1642 = vunpack.c.l.b16 %v1578
      %v1643 = vunpack.c.l.b16 %v1579
      %v1644 = vunpack.c.l.b16 %v1580
      %v1645 = vunpack.c.l.b16 %v1581
      %v1646 = vunpack.c.l.b16 %v1582
      %v1647 = vunpack.c.l.b16 %v1583
      %v1648 = vunpack.c.l.b16 %v1584
      %v1649 = vunpack.c.l.b16 %v1585
      %v1650 = vunpack.c.l.b16 %v1586
      %v1651 = vunpack.c.l.b16 %v1587
      %v1652 = vpack.c.b16 %v1636, %v1636
      %v1653 = vpack.c.b16 %v1637, %v1637
      %v1654 = vpack.c.b16 %v1638, %v1638
      %v1655 = vpack.c.b16 %v1639, %v1639
      %v1656 = vpack.c.b16 %v1640, %v1640
      %v1657 = vpack.c.b16 %v1641, %v1641
      %v1658 = vpack.c.b16 %v1642, %v1642
      %v1659 = vpack.c.b16 %v1643, %v1643
      %v1660 = vpack.c.b16 %v1644, %v1644
      %v1661 = vpack.c.b16 %v1645, %v1645
      %v1662 = vpack.c.b16 %v1646, %v1646
      %v1663 = vpack.c.b16 %v1647, %v1647
      %v1664 = vpack.c.b16 %v1648, %v1648
      %v1665 = vpack.c.b16 %v1649, %v1649
      %v1666 = vpack.c.b16 %v1650, %v1650
      %v1667 = vpack.c.b16 %v1651, %v1651
      %v1684 = vunpack.c.l.b16 %v1588
      %v1685 = vunpack.c.l.b16 %v1589
      %v1686 = vunpack.c.l.b16 %v1590
      %v1687 = vunpack.c.l.b16 %v1591
      %v1688 = vunpack.c.l.b16 %v1592
      %v1689 = vunpack.c.l.b16 %v1593
      %v1690 = vunpack.c.l.b16 %v1594
      %v1691 = vunpack.c.l.b16 %v1595
      %v1692 = vunpack.c.l.b16 %v1596
      %v1693 = vunpack.c.l.b16 %v1597
      %v1694 = vunpack.c.l.b16 %v1598
      %v1695 = vunpack.c.l.b16 %v1599
      %v1696 = vunpack.c.l.b16 %v1600
      %v1697 = vunpack.c.l.b16 %v1601
      %v1698 = vunpack.c.l.b16 %v1602
      %v1699 = vunpack.c.l.b16 %v1603
      %v1700 = vpack.c.b16 %v1684, %v1684
      %v1701 = vpack.c.b16 %v1685, %v1685
      %v1702 = vpack.c.b16 %v1686, %v1686
      %v1703 = vpack.c.b16 %v1687, %v1687
      %v1704 = vpack.c.b16 %v1688, %v1688
      %v1705 = vpack.c.b16 %v1689, %v1689
      %v1706 = vpack.c.b16 %v1690, %v1690
      %v1707 = vpack.c.b16 %v1691, %v1691
      %v1708 = vpack.c.b16 %v1692, %v1692
      %v1709 = vpack.c.b16 %v1693, %v1693
      %v1710 = vpack.c.b16 %v1694, %v1694
      %v1711 = vpack.c.b16 %v1695, %v1695
      %v1712 = vpack.c.b16 %v1696, %v1696
      %v1713 = vpack.c.b16 %v1697, %v1697
      %v1714 = vpack.c.b16 %v1698, %v1698
      %v1715 = vpack.c.b16 %v1699, %v1699
      %1716 = vrot.lane.b32.xlu0 %v1700, 4
      %v1717 = vpop.permute.xlu0 %1716
      %1718 = vrot.lane.b32.xlu0 %v1701, 4
      %v1719 = vpop.permute.xlu0 %1718
      %1720 = vrot.lane.b32.xlu0 %v1702, 4
      %v1721 = vpop.permute.xlu0 %1720
      %1722 = vrot.lane.b32.xlu0 %v1703, 4
      %v1723 = vpop.permute.xlu0 %1722
      %1724 = vrot.lane.b32.xlu0 %v1704, 4
      %v1725 = vpop.permute.xlu0 %1724
      %1726 = vrot.lane.b32.xlu0 %v1705, 4
      %v1727 = vpop.permute.xlu0 %1726
      %1728 = vrot.lane.b32.xlu0 %v1706, 4
      %v1729 = vpop.permute.xlu0 %1728
      %1730 = vrot.lane.b32.xlu0 %v1707, 4
      %v1731 = vpop.permute.xlu0 %1730
      %1732 = vrot.lane.b32.xlu0 %v1708, 4
      %v1733 = vpop.permute.xlu0 %1732
      %1734 = vrot.lane.b32.xlu0 %v1709, 4
      %v1735 = vpop.permute.xlu0 %1734
      %1736 = vrot.lane.b32.xlu0 %v1710, 4
      %v1737 = vpop.permute.xlu0 %1736
      %1738 = vrot.lane.b32.xlu0 %v1711, 4
      %v1739 = vpop.permute.xlu0 %1738
      %1740 = vrot.lane.b32.xlu0 %v1712, 4
      %v1741 = vpop.permute.xlu0 %1740
      %1742 = vrot.lane.b32.xlu0 %v1713, 4
      %v1743 = vpop.permute.xlu0 %1742
      %1744 = vrot.lane.b32.xlu0 %v1714, 4
      %v1745 = vpop.permute.xlu0 %1744
      %1746 = vrot.lane.b32.xlu0 %v1715, 4
      %v1747 = vpop.permute.xlu0 %1746
      %v1764 = vunpack.c.l.b16 %v1604
      %v1765 = vunpack.c.l.b16 %v1605
      %v1766 = vunpack.c.l.b16 %v1606
      %v1767 = vunpack.c.l.b16 %v1607
      %v1768 = vunpack.c.l.b16 %v1608
      %v1769 = vunpack.c.l.b16 %v1609
      %v1770 = vunpack.c.l.b16 %v1610
      %v1771 = vunpack.c.l.b16 %v1611
      %v1772 = vunpack.c.l.b16 %v1612
      %v1773 = vunpack.c.l.b16 %v1613
      %v1774 = vunpack.c.l.b16 %v1614
      %v1775 = vunpack.c.l.b16 %v1615
      %v1776 = vunpack.c.l.b16 %v1616
      %v1777 = vunpack.c.l.b16 %v1617
      %v1778 = vunpack.c.l.b16 %v1618
      %v1779 = vunpack.c.l.b16 %v1619
      %v1780 = vpack.c.b16 %v1764, %v1764
      %v1781 = vpack.c.b16 %v1765, %v1765
      %v1782 = vpack.c.b16 %v1766, %v1766
      %v1783 = vpack.c.b16 %v1767, %v1767
      %v1784 = vpack.c.b16 %v1768, %v1768
      %v1785 = vpack.c.b16 %v1769, %v1769
      %v1786 = vpack.c.b16 %v1770, %v1770
      %v1787 = vpack.c.b16 %v1771, %v1771
      %v1788 = vpack.c.b16 %v1772, %v1772
      %v1789 = vpack.c.b16 %v1773, %v1773
      %v1790 = vpack.c.b16 %v1774, %v1774
      %v1791 = vpack.c.b16 %v1775, %v1775
      %v1792 = vpack.c.b16 %v1776, %v1776
      %v1793 = vpack.c.b16 %v1777, %v1777
      %v1794 = vpack.c.b16 %v1778, %v1778
      %v1795 = vpack.c.b16 %v1779, %v1779
      %1796 = vrot.lane.b32.xlu0 %v1780, 8
      %v1797 = vpop.permute.xlu0 %1796
      %1798 = vrot.lane.b32.xlu0 %v1781, 8
      %v1799 = vpop.permute.xlu0 %1798
      %1800 = vrot.lane.b32.xlu0 %v1782, 8
      %v1801 = vpop.permute.xlu0 %1800
      %1802 = vrot.lane.b32.xlu0 %v1783, 8
      %v1803 = vpop.permute.xlu0 %1802
      %1804 = vrot.lane.b32.xlu0 %v1784, 8
      %v1805 = vpop.permute.xlu0 %1804
      %1806 = vrot.lane.b32.xlu0 %v1785, 8
      %v1807 = vpop.permute.xlu0 %1806
      %1808 = vrot.lane.b32.xlu0 %v1786, 8
      %v1809 = vpop.permute.xlu0 %1808
      %1810 = vrot.lane.b32.xlu0 %v1787, 8
      %v1811 = vpop.permute.xlu0 %1810
      %1812 = vrot.lane.b32.xlu0 %v1788, 8
      %v1813 = vpop.permute.xlu0 %1812
      %1814 = vrot.lane.b32.xlu0 %v1789, 8
      %v1815 = vpop.permute.xlu0 %1814
      %1816 = vrot.lane.b32.xlu0 %v1790, 8
      %v1817 = vpop.permute.xlu0 %1816
      %1818 = vrot.lane.b32.xlu0 %v1791, 8
      %v1819 = vpop.permute.xlu0 %1818
      %1820 = vrot.lane.b32.xlu0 %v1792, 8
      %v1821 = vpop.permute.xlu0 %1820
      %1822 = vrot.lane.b32.xlu0 %v1793, 8
      %v1823 = vpop.permute.xlu0 %1822
      %1824 = vrot.lane.b32.xlu0 %v1794, 8
      %v1825 = vpop.permute.xlu0 %1824
      %1826 = vrot.lane.b32.xlu0 %v1795, 8
      %v1827 = vpop.permute.xlu0 %1826
      %v1830 = vsel %vm1488, %v1652, %v1717
      %v1833 = vsel %vm1488, %v1653, %v1719
      %v1836 = vsel %vm1488, %v1654, %v1721
      %v1839 = vsel %vm1488, %v1655, %v1723
      %v1842 = vsel %vm1488, %v1656, %v1725
      %v1845 = vsel %vm1488, %v1657, %v1727
      %v1848 = vsel %vm1488, %v1658, %v1729
      %v1851 = vsel %vm1488, %v1659, %v1731
      %v1854 = vsel %vm1488, %v1660, %v1733
      %v1857 = vsel %vm1488, %v1661, %v1735
      %v1860 = vsel %vm1488, %v1662, %v1737
      %v1863 = vsel %vm1488, %v1663, %v1739
      %v1866 = vsel %vm1488, %v1664, %v1741
      %v1869 = vsel %vm1488, %v1665, %v1743
      %v1872 = vsel %vm1488, %v1666, %v1745
      %v1875 = vsel %vm1488, %v1667, %v1747
      %v1877 = vsel %vm1537, %v1830, %v1797
      %v1879 = vsel %vm1537, %v1833, %v1799
      %v1881 = vsel %vm1537, %v1836, %v1801
      %v1883 = vsel %vm1537, %v1839, %v1803
      %v1885 = vsel %vm1537, %v1842, %v1805
      %v1887 = vsel %vm1537, %v1845, %v1807
      %v1889 = vsel %vm1537, %v1848, %v1809
      %v1891 = vsel %vm1537, %v1851, %v1811
      %v1893 = vsel %vm1537, %v1854, %v1813
      %v1895 = vsel %vm1537, %v1857, %v1815
      %v1897 = vsel %vm1537, %v1860, %v1817
      %v1899 = vsel %vm1537, %v1863, %v1819
      %v1901 = vsel %vm1537, %v1866, %v1821
      %v1903 = vsel %vm1537, %v1869, %v1823
      %v1905 = vsel %vm1537, %v1872, %v1825
      %v1907 = vsel %vm1537, %v1875, %v1827
      %vm1908 = vsmask.f32 7424
      %v1909 = vshrl.u32 %v1539, 16
      %v1911 = vshll.u32 %v1539, 16
      %v1913 = vrot.slane %v1911, 1
      %v1914 = vor.u32 %v1909, %v1913
      %v1915 = vshll.u32 %v1877, 16
      %v1917 = vrot.slane %v1915, 1
      %v1918 = vsel %vm1908, %v1914, %v1917
      %v1919 = vshrl.u32 %v1541, 16
      %v1921 = vshll.u32 %v1541, 16
      %v1923 = vrot.slane %v1921, 1
      %v1924 = vor.u32 %v1919, %v1923
      %v1925 = vshll.u32 %v1879, 16
      %v1927 = vrot.slane %v1925, 1
      %v1928 = vsel %vm1908, %v1924, %v1927
      %v1929 = vshrl.u32 %v1543, 16
      %v1931 = vshll.u32 %v1543, 16
      %v1933 = vrot.slane %v1931, 1
      %v1934 = vor.u32 %v1929, %v1933
      %v1935 = vshll.u32 %v1881, 16
      %v1937 = vrot.slane %v1935, 1
      %v1938 = vsel %vm1908, %v1934, %v1937
      %v1939 = vshrl.u32 %v1545, 16
      %v1941 = vshll.u32 %v1545, 16
      %v1943 = vrot.slane %v1941, 1
      %v1944 = vor.u32 %v1939, %v1943
      %v1945 = vshll.u32 %v1883, 16
      %v1947 = vrot.slane %v1945, 1
      %v1948 = vsel %vm1908, %v1944, %v1947
      %v1949 = vshrl.u32 %v1547, 16
      %v1951 = vshll.u32 %v1547, 16
      %v1953 = vrot.slane %v1951, 1
      %v1954 = vor.u32 %v1949, %v1953
      %v1955 = vshll.u32 %v1885, 16
      %v1957 = vrot.slane %v1955, 1
      %v1958 = vsel %vm1908, %v1954, %v1957
      %v1959 = vshrl.u32 %v1549, 16
      %v1961 = vshll.u32 %v1549, 16
      %v1963 = vrot.slane %v1961, 1
      %v1964 = vor.u32 %v1959, %v1963
      %v1965 = vshll.u32 %v1887, 16
      %v1967 = vrot.slane %v1965, 1
      %v1968 = vsel %vm1908, %v1964, %v1967
      %v1969 = vshrl.u32 %v1551, 16
      %v1971 = vshll.u32 %v1551, 16
      %v1973 = vrot.slane %v1971, 1
      %v1974 = vor.u32 %v1969, %v1973
      %v1975 = vshll.u32 %v1889, 16
      %v1977 = vrot.slane %v1975, 1
      %v1978 = vsel %vm1908, %v1974, %v1977
      %v1979 = vshrl.u32 %v1553, 16
      %v1981 = vshll.u32 %v1553, 16
      %v1983 = vrot.slane %v1981, 1
      %v1984 = vor.u32 %v1979, %v1983
      %v1985 = vshll.u32 %v1891, 16
      %v1987 = vrot.slane %v1985, 1
      %v1988 = vsel %vm1908, %v1984, %v1987
      %v1989 = vshrl.u32 %v1555, 16
      %v1991 = vshll.u32 %v1555, 16
      %v1993 = vrot.slane %v1991, 1
      %v1994 = vor.u32 %v1989, %v1993
      %v1995 = vshll.u32 %v1893, 16
      %v1997 = vrot.slane %v1995, 1
      %v1998 = vsel %vm1908, %v1994, %v1997
      %v1999 = vshrl.u32 %v1557, 16
      %v2001 = vshll.u32 %v1557, 16
      %v2003 = vrot.slane %v2001, 1
      %v2004 = vor.u32 %v1999, %v2003
      %v2005 = vshll.u32 %v1895, 16
      %v2007 = vrot.slane %v2005, 1
      %v2008 = vsel %vm1908, %v2004, %v2007
      %v2009 = vshrl.u32 %v1559, 16
      %v2011 = vshll.u32 %v1559, 16
      %v2013 = vrot.slane %v2011, 1
      %v2014 = vor.u32 %v2009, %v2013
      %v2015 = vshll.u32 %v1897, 16
      %v2017 = vrot.slane %v2015, 1
      %v2018 = vsel %vm1908, %v2014, %v2017
      %v2019 = vshrl.u32 %v1561, 16
      %v2021 = vshll.u32 %v1561, 16
      %v2023 = vrot.slane %v2021, 1
      %v2024 = vor.u32 %v2019, %v2023
      %v2025 = vshll.u32 %v1899, 16
      %v2027 = vrot.slane %v2025, 1
      %v2028 = vsel %vm1908, %v2024, %v2027
      %v2029 = vshrl.u32 %v1563, 16
      %v2031 = vshll.u32 %v1563, 16
      %v2033 = vrot.slane %v2031, 1
      %v2034 = vor.u32 %v2029, %v2033
      %v2035 = vshll.u32 %v1901, 16
      %v2037 = vrot.slane %v2035, 1
      %v2038 = vsel %vm1908, %v2034, %v2037
      %v2039 = vshrl.u32 %v1565, 16
      %v2041 = vshll.u32 %v1565, 16
      %v2043 = vrot.slane %v2041, 1
      %v2044 = vor.u32 %v2039, %v2043
      %v2045 = vshll.u32 %v1903, 16
      %v2047 = vrot.slane %v2045, 1
      %v2048 = vsel %vm1908, %v2044, %v2047
      %v2049 = vshrl.u32 %v1567, 16
      %v2051 = vshll.u32 %v1567, 16
      %v2053 = vrot.slane %v2051, 1
      %v2054 = vor.u32 %v2049, %v2053
      %v2055 = vshll.u32 %v1905, 16
      %v2057 = vrot.slane %v2055, 1
      %v2058 = vsel %vm1908, %v2054, %v2057
      %v2059 = vshrl.u32 %v1569, 16
      %v2061 = vshll.u32 %v1569, 16
      %v2063 = vrot.slane %v2061, 1
      %v2064 = vor.u32 %v2059, %v2063
      %v2065 = vshll.u32 %v1907, 16
      %v2067 = vrot.slane %v2065, 1
      %v2068 = vsel %vm1908, %v2064, %v2067
      %s2069 = scalar_lea.vmem %s1, 8
      %v2070 = vld [vmem:[%s2069] sm:$0xf]
      %v2071 = vld [vmem:[%s2069 + $0x4] sm:$0x3]
      %v2074 = vunpack.c.l.b16 %v2070
      %v2075 = vunpack.c.l.b16 %v2071
      %v2076 = vpack.c.b16 %v2075, %v2074
      %vm2077 = vcmask 97280
      %v2079 = vsel %vm2077, %v1918, 0
      %v2082 = vsel %vm2077, %v1928, 0
      %v2085 = vsel %vm2077, %v1938, 0
      %v2088 = vsel %vm2077, %v1948, 0
      %v2091 = vsel %vm2077, %v1958, 0
      %v2094 = vsel %vm2077, %v1968, 0
      %v2097 = vsel %vm2077, %v1978, 0
      %v2100 = vsel %vm2077, %v1988, 0
      %v2103 = vsel %vm2077, %v1998, 0
      %v2106 = vsel %vm2077, %v2008, 0
      %v2109 = vsel %vm2077, %v2018, 0
      %v2112 = vsel %vm2077, %v2028, 0
      %v2115 = vsel %vm2077, %v2038, 0
      %v2118 = vsel %vm2077, %v2048, 0
      %v2121 = vsel %vm2077, %v2058, 0
      %v2124 = vsel %vm2077, %v2068, 0
      %vm2126 = vcmask 1045504
      %v2128 = vsel %vm2126, %v2076, 0
      %2130 = vmatprep.subr.bf16.mxu0 0
      %2131 = vmatpush1.bf16.msra.mxu0 0
      %2132 = vmatprep.subr.bf16.mxu0 0
      %2133 = vmatpush1.bf16.msra.mxu0 0
      %2134 = vmatprep.subr.bf16.mxu0 0
      %2135 = vmatpush1.bf16.msra.mxu0 0
      %2136 = vmatprep.subr.bf16.mxu0 0
      %2137 = vmatpush1.bf16.msra.mxu0 0
      %2138 = vmatprep.subr.bf16.mxu0 0
      %2139 = vmatpush1.bf16.msra.mxu0 0
      %2140 = vmatprep.subr.bf16.mxu0 0
      %2141 = vmatpush1.bf16.msra.mxu0 0
      %2142 = vmatprep.subr.bf16.mxu0 0
      %2143 = vmatpush1.bf16.msra.mxu0 0
      %2144 = vmatprep.subr.bf16.mxu0 0
      %2145 = vmatpush1.bf16.msra.mxu0 %v2128
      %2146 = vmatprep.subr.bf16.mxu0 0
      %2147 = vmatpush2.bf16.msra.mxu0 0
      %2148 = vmatprep.subr.bf16.mxu0 0
      %2149 = vmatpush2.bf16.msra.mxu0 0
      %2150 = vmatprep.subr.bf16.mxu0 0
      %2151 = vmatpush2.bf16.msra.mxu0 0
      %2152 = vmatprep.subr.bf16.mxu0 0
      %2153 = vmatpush2.bf16.msra.mxu0 0
      %2154 = vmatprep.subr.bf16.mxu0 0
      %2155 = vmatpush2.bf16.msra.mxu0 0
      %2156 = vmatprep.subr.bf16.mxu0 0
      %2157 = vmatpush2.bf16.msra.mxu0 0
      %2158 = vmatprep.subr.bf16.mxu0 0
      %2159 = vmatpush2.bf16.msra.mxu0 0
      %2160 = vmatprep.subr.bf16.mxu0 0
      %2161 = vmatpush2.bf16.msra.mxu0 0
      %2162 = vmatprep.mubr.bf16.mxu0 0
      %2163 = vmatmul.mubr.bf16.gmra.mxu0 %v2079
      %v2164 = vpop.f32.mrf.mxu0
      %v2165 = vadd.f32 0.0, %v2164
      %v2166 = vpop.f32.mrf.mxu0
      %v2167 = vpop.f32.mrf.mxu0
      %v2168 = vadd.f32 0.0, %v2167
      %v2169 = vpop.f32.mrf.mxu0
      %2170 = vmatprep.mubr.bf16.mxu0 0
      %2171 = vmatmul.mubr.bf16.gmra.mxu0 %v2082
      %v2172 = vpop.f32.mrf.mxu0
      %v2173 = vadd.f32 0.0, %v2172
      %v2174 = vpop.f32.mrf.mxu0
      %v2175 = vpop.f32.mrf.mxu0
      %v2176 = vadd.f32 0.0, %v2175
      %v2177 = vpop.f32.mrf.mxu0
      %2178 = vmatprep.mubr.bf16.mxu0 0
      %2179 = vmatmul.mubr.bf16.gmra.mxu0 %v2085
      %v2180 = vpop.f32.mrf.mxu0
      %v2181 = vadd.f32 0.0, %v2180
      %v2182 = vpop.f32.mrf.mxu0
      %v2183 = vpop.f32.mrf.mxu0
      %v2184 = vadd.f32 0.0, %v2183
      %v2185 = vpop.f32.mrf.mxu0
      %2186 = vmatprep.mubr.bf16.mxu0 0
      %2187 = vmatmul.mubr.bf16.gmra.mxu0 %v2088
      %v2188 = vpop.f32.mrf.mxu0
      %v2189 = vadd.f32 0.0, %v2188
      %v2190 = vpop.f32.mrf.mxu0
      %v2191 = vpop.f32.mrf.mxu0
      %v2192 = vadd.f32 0.0, %v2191
      %v2193 = vpop.f32.mrf.mxu0
      %2194 = vmatprep.mubr.bf16.mxu0 0
      %2195 = vmatmul.mubr.bf16.gmra.mxu0 %v2091
      %v2196 = vpop.f32.mrf.mxu0
      %v2197 = vadd.f32 0.0, %v2196
      %v2198 = vpop.f32.mrf.mxu0
      %v2199 = vpop.f32.mrf.mxu0
      %v2200 = vadd.f32 0.0, %v2199
      %v2201 = vpop.f32.mrf.mxu0
      %2202 = vmatprep.mubr.bf16.mxu0 0
      %2203 = vmatmul.mubr.bf16.gmra.mxu0 %v2094
      %v2204 = vpop.f32.mrf.mxu0
      %v2205 = vadd.f32 0.0, %v2204
      %v2206 = vpop.f32.mrf.mxu0
      %v2207 = vpop.f32.mrf.mxu0
      %v2208 = vadd.f32 0.0, %v2207
      %v2209 = vpop.f32.mrf.mxu0
      %2210 = vmatprep.mubr.bf16.mxu0 0
      %2211 = vmatmul.mubr.bf16.gmra.mxu0 %v2097
      %v2212 = vpop.f32.mrf.mxu0
      %v2213 = vadd.f32 0.0, %v2212
      %v2214 = vpop.f32.mrf.mxu0
      %v2215 = vpop.f32.mrf.mxu0
      %v2216 = vadd.f32 0.0, %v2215
      %v2217 = vpop.f32.mrf.mxu0
      %2218 = vmatprep.mubr.bf16.mxu0 0
      %2219 = vmatmul.mubr.bf16.gmra.mxu0 %v2100
      %v2220 = vpop.f32.mrf.mxu0
      %v2221 = vadd.f32 0.0, %v2220
      %v2222 = vpop.f32.mrf.mxu0
      %v2223 = vpop.f32.mrf.mxu0
      %v2224 = vadd.f32 0.0, %v2223
      %v2225 = vpop.f32.mrf.mxu0
      %2226 = vmatprep.mubr.bf16.mxu0 0
      %2227 = vmatmul.mubr.bf16.gmra.mxu0 %v2103
      %v2228 = vpop.f32.mrf.mxu0
      %v2229 = vadd.f32 0.0, %v2228
      %v2230 = vpop.f32.mrf.mxu0
      %v2231 = vpop.f32.mrf.mxu0
      %v2232 = vadd.f32 0.0, %v2231
      %v2233 = vpop.f32.mrf.mxu0
      %2234 = vmatprep.mubr.bf16.mxu0 0
      %2235 = vmatmul.mubr.bf16.gmra.mxu0 %v2106
      %v2236 = vpop.f32.mrf.mxu0
      %v2237 = vadd.f32 0.0, %v2236
      %v2238 = vpop.f32.mrf.mxu0
      %v2239 = vpop.f32.mrf.mxu0
      %v2240 = vadd.f32 0.0, %v2239
      %v2241 = vpop.f32.mrf.mxu0
      %2242 = vmatprep.mubr.bf16.mxu0 0
      %2243 = vmatmul.mubr.bf16.gmra.mxu0 %v2109
      %v2244 = vpop.f32.mrf.mxu0
      %v2245 = vadd.f32 0.0, %v2244
      %v2246 = vpop.f32.mrf.mxu0
      %v2247 = vpop.f32.mrf.mxu0
      %v2248 = vadd.f32 0.0, %v2247
      %v2249 = vpop.f32.mrf.mxu0
      %2250 = vmatprep.mubr.bf16.mxu0 0
      %2251 = vmatmul.mubr.bf16.gmra.mxu0 %v2112
      %v2252 = vpop.f32.mrf.mxu0
      %v2253 = vadd.f32 0.0, %v2252
      %v2254 = vpop.f32.mrf.mxu0
      %v2255 = vpop.f32.mrf.mxu0
      %v2256 = vadd.f32 0.0, %v2255
      %v2257 = vpop.f32.mrf.mxu0
      %2258 = vmatprep.mubr.bf16.mxu0 0
      %2259 = vmatmul.mubr.bf16.gmra.mxu0 %v2115
      %v2260 = vpop.f32.mrf.mxu0
      %v2261 = vadd.f32 0.0, %v2260
      %v2262 = vpop.f32.mrf.mxu0
      %v2263 = vpop.f32.mrf.mxu0
      %v2264 = vadd.f32 0.0, %v2263
      %v2265 = vpop.f32.mrf.mxu0
      %2266 = vmatprep.mubr.bf16.mxu0 0
      %2267 = vmatmul.mubr.bf16.gmra.mxu0 %v2118
      %v2268 = vpop.f32.mrf.mxu0
      %v2269 = vadd.f32 0.0, %v2268
      %v2270 = vpop.f32.mrf.mxu0
      %v2271 = vpop.f32.mrf.mxu0
      %v2272 = vadd.f32 0.0, %v2271
      %v2273 = vpop.f32.mrf.mxu0
      %2274 = vmatprep.mubr.bf16.mxu0 0
      %2275 = vmatmul.mubr.bf16.gmra.mxu0 %v2121
      %v2276 = vpop.f32.mrf.mxu0
      %v2277 = vadd.f32 0.0, %v2276
      %v2278 = vpop.f32.mrf.mxu0
      %v2279 = vpop.f32.mrf.mxu0
      %v2280 = vadd.f32 0.0, %v2279
      %v2281 = vpop.f32.mrf.mxu0
      %2282 = vmatprep.mubr.bf16.mxu0 0
      %2283 = vmatmul.mubr.bf16.gmra.mxu0 %v2124
      %v2284 = vpop.f32.mrf.mxu0
      %v2285 = vadd.f32 0.0, %v2284
      %v2286 = vpop.f32.mrf.mxu0
      %v2287 = vpop.f32.mrf.mxu0
      %v2288 = vadd.f32 0.0, %v2287
      %v2289 = vpop.f32.mrf.mxu0
      %2290 = vdwg.mxu0
      %v2293 = vunpack.c.l.b16 %v1570
      %v2294 = vunpack.c.l.b16 %v1571
      %v2295 = vpack.c.b16 %v2294, %v2293
      %v2296 = vsel %vm2077, %v1539, 0
      %v2298 = vsel %vm2077, %v1541, 0
      %v2300 = vsel %vm2077, %v1543, 0
      %v2302 = vsel %vm2077, %v1545, 0
      %v2304 = vsel %vm2077, %v1547, 0
      %v2306 = vsel %vm2077, %v1549, 0
      %v2308 = vsel %vm2077, %v1551, 0
      %v2310 = vsel %vm2077, %v1553, 0
      %v2312 = vsel %vm2077, %v1555, 0
      %v2314 = vsel %vm2077, %v1557, 0
      %v2316 = vsel %vm2077, %v1559, 0
      %v2318 = vsel %vm2077, %v1561, 0
      %v2320 = vsel %vm2077, %v1563, 0
      %v2322 = vsel %vm2077, %v1565, 0
      %v2324 = vsel %vm2077, %v1567, 0
      %v2326 = vsel %vm2077, %v1569, 0
      %v2329 = vsel %vm2126, %v2295, 0
      %2331 = vmatprep.subr.bf16.mxu0 0
      %2332 = vmatpush1.bf16.msra.mxu0 0
      %2333 = vmatprep.subr.bf16.mxu0 0
      %2334 = vmatpush1.bf16.msra.mxu0 0
      %2335 = vmatprep.subr.bf16.mxu0 0
      %2336 = vmatpush1.bf16.msra.mxu0 0
      %2337 = vmatprep.subr.bf16.mxu0 0
      %2338 = vmatpush1.bf16.msra.mxu0 0
      %2339 = vmatprep.subr.bf16.mxu0 0
      %2340 = vmatpush1.bf16.msra.mxu0 0
      %2341 = vmatprep.subr.bf16.mxu0 0
      %2342 = vmatpush1.bf16.msra.mxu0 0
      %2343 = vmatprep.subr.bf16.mxu0 0
      %2344 = vmatpush1.bf16.msra.mxu0 0
      %2345 = vmatprep.subr.bf16.mxu0 0
      %2346 = vmatpush1.bf16.msra.mxu0 %v2329
      %2347 = vmatprep.subr.bf16.mxu0 0
      %2348 = vmatpush2.bf16.msra.mxu0 0
      %2349 = vmatprep.subr.bf16.mxu0 0
      %2350 = vmatpush2.bf16.msra.mxu0 0
      %2351 = vmatprep.subr.bf16.mxu0 0
      %2352 = vmatpush2.bf16.msra.mxu0 0
      %2353 = vmatprep.subr.bf16.mxu0 0
      %2354 = vmatpush2.bf16.msra.mxu0 0
      %2355 = vmatprep.subr.bf16.mxu0 0
      %2356 = vmatpush2.bf16.msra.mxu0 0
      %2357 = vmatprep.subr.bf16.mxu0 0
      %2358 = vmatpush2.bf16.msra.mxu0 0
      %2359 = vmatprep.subr.bf16.mxu0 0
      %2360 = vmatpush2.bf16.msra.mxu0 0
      %2361 = vmatprep.subr.bf16.mxu0 0
      %2362 = vmatpush2.bf16.msra.mxu0 0
      %2363 = vmatprep.mubr.bf16.mxu0 0
      %2364 = vmatmul.mubr.bf16.gmra.mxu0 %v2296
      %v2365 = vpop.f32.mrf.mxu0
      %v2366 = vadd.f32 %v2165, %v2365
      %v2367 = vpop.f32.mrf.mxu0
      %v2368 = vpop.f32.mrf.mxu0
      %v2369 = vadd.f32 %v2168, %v2368
      %v2370 = vpop.f32.mrf.mxu0
      %2371 = vmatprep.mubr.bf16.mxu0 0
      %2372 = vmatmul.mubr.bf16.gmra.mxu0 %v2298
      %v2373 = vpop.f32.mrf.mxu0
      %v2374 = vadd.f32 %v2173, %v2373
      %v2375 = vpop.f32.mrf.mxu0
      %v2376 = vpop.f32.mrf.mxu0
      %v2377 = vadd.f32 %v2176, %v2376
      %v2378 = vpop.f32.mrf.mxu0
      %2379 = vmatprep.mubr.bf16.mxu0 0
      %2380 = vmatmul.mubr.bf16.gmra.mxu0 %v2300
      %v2381 = vpop.f32.mrf.mxu0
      %v2382 = vadd.f32 %v2181, %v2381
      %v2383 = vpop.f32.mrf.mxu0
      %v2384 = vpop.f32.mrf.mxu0
      %v2385 = vadd.f32 %v2184, %v2384
      %v2386 = vpop.f32.mrf.mxu0
      %2387 = vmatprep.mubr.bf16.mxu0 0
      %2388 = vmatmul.mubr.bf16.gmra.mxu0 %v2302
      %v2389 = vpop.f32.mrf.mxu0
      %v2390 = vadd.f32 %v2189, %v2389
      %v2391 = vpop.f32.mrf.mxu0
      %v2392 = vpop.f32.mrf.mxu0
      %v2393 = vadd.f32 %v2192, %v2392
      %v2394 = vpop.f32.mrf.mxu0
      %2395 = vmatprep.mubr.bf16.mxu0 0
      %2396 = vmatmul.mubr.bf16.gmra.mxu0 %v2304
      %v2397 = vpop.f32.mrf.mxu0
      %v2398 = vadd.f32 %v2197, %v2397
      %v2399 = vpop.f32.mrf.mxu0
      %v2400 = vpop.f32.mrf.mxu0
      %v2401 = vadd.f32 %v2200, %v2400
      %v2402 = vpop.f32.mrf.mxu0
      %2403 = vmatprep.mubr.bf16.mxu0 0
      %2404 = vmatmul.mubr.bf16.gmra.mxu0 %v2306
      %v2405 = vpop.f32.mrf.mxu0
      %v2406 = vadd.f32 %v2205, %v2405
      %v2407 = vpop.f32.mrf.mxu0
      %v2408 = vpop.f32.mrf.mxu0
      %v2409 = vadd.f32 %v2208, %v2408
      %v2410 = vpop.f32.mrf.mxu0
      %2411 = vmatprep.mubr.bf16.mxu0 0
      %2412 = vmatmul.mubr.bf16.gmra.mxu0 %v2308
      %v2413 = vpop.f32.mrf.mxu0
      %v2414 = vadd.f32 %v2213, %v2413
      %v2415 = vpop.f32.mrf.mxu0
      %v2416 = vpop.f32.mrf.mxu0
      %v2417 = vadd.f32 %v2216, %v2416
      %v2418 = vpop.f32.mrf.mxu0
      %2419 = vmatprep.mubr.bf16.mxu0 0
      %2420 = vmatmul.mubr.bf16.gmra.mxu0 %v2310
      %v2421 = vpop.f32.mrf.mxu0
      %v2422 = vadd.f32 %v2221, %v2421
      %v2423 = vpop.f32.mrf.mxu0
      %v2424 = vpop.f32.mrf.mxu0
      %v2425 = vadd.f32 %v2224, %v2424
      %v2426 = vpop.f32.mrf.mxu0
      %2427 = vmatprep.mubr.bf16.mxu0 0
      %2428 = vmatmul.mubr.bf16.gmra.mxu0 %v2312
      %v2429 = vpop.f32.mrf.mxu0
      %v2430 = vadd.f32 %v2229, %v2429
      %v2431 = vpop.f32.mrf.mxu0
      %v2432 = vpop.f32.mrf.mxu0
      %v2433 = vadd.f32 %v2232, %v2432
      %v2434 = vpop.f32.mrf.mxu0
      %2435 = vmatprep.mubr.bf16.mxu0 0
      %2436 = vmatmul.mubr.bf16.gmra.mxu0 %v2314
      %v2437 = vpop.f32.mrf.mxu0
      %v2438 = vadd.f32 %v2237, %v2437
      %v2439 = vpop.f32.mrf.mxu0
      %v2440 = vpop.f32.mrf.mxu0
      %v2441 = vadd.f32 %v2240, %v2440
      %v2442 = vpop.f32.mrf.mxu0
      %2443 = vmatprep.mubr.bf16.mxu0 0
      %2444 = vmatmul.mubr.bf16.gmra.mxu0 %v2316
      %v2445 = vpop.f32.mrf.mxu0
      %v2446 = vadd.f32 %v2245, %v2445
      %v2447 = vpop.f32.mrf.mxu0
      %v2448 = vpop.f32.mrf.mxu0
      %v2449 = vadd.f32 %v2248, %v2448
      %v2450 = vpop.f32.mrf.mxu0
      %2451 = vmatprep.mubr.bf16.mxu0 0
      %2452 = vmatmul.mubr.bf16.gmra.mxu0 %v2318
      %v2453 = vpop.f32.mrf.mxu0
      %v2454 = vadd.f32 %v2253, %v2453
      %v2455 = vpop.f32.mrf.mxu0
      %v2456 = vpop.f32.mrf.mxu0
      %v2457 = vadd.f32 %v2256, %v2456
      %v2458 = vpop.f32.mrf.mxu0
      %2459 = vmatprep.mubr.bf16.mxu0 0
      %2460 = vmatmul.mubr.bf16.gmra.mxu0 %v2320
      %v2461 = vpop.f32.mrf.mxu0
      %v2462 = vadd.f32 %v2261, %v2461
      %v2463 = vpop.f32.mrf.mxu0
      %v2464 = vpop.f32.mrf.mxu0
      %v2465 = vadd.f32 %v2264, %v2464
      %v2466 = vpop.f32.mrf.mxu0
      %2467 = vmatprep.mubr.bf16.mxu0 0
      %2468 = vmatmul.mubr.bf16.gmra.mxu0 %v2322
      %v2469 = vpop.f32.mrf.mxu0
      %v2470 = vadd.f32 %v2269, %v2469
      %v2471 = vpop.f32.mrf.mxu0
      %v2472 = vpop.f32.mrf.mxu0
      %v2473 = vadd.f32 %v2272, %v2472
      %v2474 = vpop.f32.mrf.mxu0
      %2475 = vmatprep.mubr.bf16.mxu0 0
      %2476 = vmatmul.mubr.bf16.gmra.mxu0 %v2324
      %v2477 = vpop.f32.mrf.mxu0
      %v2478 = vadd.f32 %v2277, %v2477
      %v2479 = vpop.f32.mrf.mxu0
      %v2480 = vpop.f32.mrf.mxu0
      %v2481 = vadd.f32 %v2280, %v2480
      %v2482 = vpop.f32.mrf.mxu0
      %2483 = vmatprep.mubr.bf16.mxu0 0
      %2484 = vmatmul.mubr.bf16.gmra.mxu0 %v2326
      %v2485 = vpop.f32.mrf.mxu0
      %v2486 = vadd.f32 %v2285, %v2485
      %v2487 = vpop.f32.mrf.mxu0
      %v2488 = vpop.f32.mrf.mxu0
      %v2489 = vadd.f32 %v2288, %v2488
      %v2490 = vpop.f32.mrf.mxu0
      %2491 = vdwg.mxu0
      %v2492 = vld [vmem:[#allocation2] sm:$0xe]
      %v2493 = vld [vmem:[#allocation2 + $0xc] sm:$0xe]
      %v2494 = vld [vmem:[#allocation2 + $0x18] sm:$0xe]
      %v2495 = vld [vmem:[#allocation2 + $0x24] sm:$0xe]
      %v2496 = vld [vmem:[#allocation2 + $0x30] sm:$0xe]
      %v2497 = vld [vmem:[#allocation2 + $0x3c] sm:$0xe]
      %v2498 = vld [vmem:[#allocation2 + $0x48] sm:$0xe]
      %v2499 = vld [vmem:[#allocation2 + $0x54] sm:$0xe]
      %v2500 = vld [vmem:[#allocation2 + $0x60] sm:$0xe]
      %v2501 = vld [vmem:[#allocation2 + $0x6c] sm:$0xe]
      %v2502 = vld [vmem:[#allocation2 + $0x78] sm:$0xe]
      %v2503 = vld [vmem:[#allocation2 + $0x84] sm:$0xe]
      %v2504 = vld [vmem:[#allocation2 + $0x90] sm:$0xe]
      %v2505 = vld [vmem:[#allocation2 + $0x9c] sm:$0xe]
      %v2506 = vld [vmem:[#allocation2 + $0xa8] sm:$0xe]
      %v2507 = vld [vmem:[#allocation2 + $0xb4] sm:$0xe]
      %v2508 = vld [vmem:[%s972] sm:$0xe]
      %v2509 = vld [vmem:[%s972 + $0xc] sm:$0xe]
      %v2510 = vld [vmem:[%s972 + $0x18] sm:$0xe]
      %v2511 = vld [vmem:[%s972 + $0x24] sm:$0xe]
      %v2512 = vld [vmem:[%s972 + $0x30] sm:$0xe]
      %v2513 = vld [vmem:[%s972 + $0x3c] sm:$0xe]
      %v2514 = vld [vmem:[%s972 + $0x48] sm:$0xe]
      %v2515 = vld [vmem:[%s972 + $0x54] sm:$0xe]
      %v2516 = vld [vmem:[%s972 + $0x60] sm:$0xe]
      %v2517 = vld [vmem:[%s972 + $0x6c] sm:$0xe]
      %v2518 = vld [vmem:[%s972 + $0x78] sm:$0xe]
      %v2519 = vld [vmem:[%s972 + $0x84] sm:$0xe]
      %v2520 = vld [vmem:[%s972 + $0x90] sm:$0xe]
      %v2521 = vld [vmem:[%s972 + $0x9c] sm:$0xe]
      %v2522 = vld [vmem:[%s972 + $0xa8] sm:$0xe]
      %v2523 = vld [vmem:[%s972 + $0xb4] sm:$0xe]
      %v2524 = vld [vmem:[%s1151] sm:$0xe]
      %v2525 = vld [vmem:[%s1151 + $0xc] sm:$0xe]
      %v2526 = vld [vmem:[%s1151 + $0x18] sm:$0xe]
      %v2527 = vld [vmem:[%s1151 + $0x24] sm:$0xe]
      %v2528 = vld [vmem:[%s1151 + $0x30] sm:$0xe]
      %v2529 = vld [vmem:[%s1151 + $0x3c] sm:$0xe]
      %v2530 = vld [vmem:[%s1151 + $0x48] sm:$0xe]
      %v2531 = vld [vmem:[%s1151 + $0x54] sm:$0xe]
      %v2532 = vld [vmem:[%s1151 + $0x60] sm:$0xe]
      %v2533 = vld [vmem:[%s1151 + $0x6c] sm:$0xe]
      %v2534 = vld [vmem:[%s1151 + $0x78] sm:$0xe]
      %v2535 = vld [vmem:[%s1151 + $0x84] sm:$0xe]
      %v2536 = vld [vmem:[%s1151 + $0x90] sm:$0xe]
      %v2537 = vld [vmem:[%s1151 + $0x9c] sm:$0xe]
      %v2538 = vld [vmem:[%s1151 + $0xa8] sm:$0xe]
      %v2539 = vld [vmem:[%s1151 + $0xb4] sm:$0xe]
      %v2556 = vunpack.c.l.b16 %v2492
      %v2557 = vunpack.c.l.b16 %v2493
      %v2558 = vunpack.c.l.b16 %v2494
      %v2559 = vunpack.c.l.b16 %v2495
      %v2560 = vunpack.c.l.b16 %v2496
      %v2561 = vunpack.c.l.b16 %v2497
      %v2562 = vunpack.c.l.b16 %v2498
      %v2563 = vunpack.c.l.b16 %v2499
      %v2564 = vunpack.c.l.b16 %v2500
      %v2565 = vunpack.c.l.b16 %v2501
      %v2566 = vunpack.c.l.b16 %v2502
      %v2567 = vunpack.c.l.b16 %v2503
      %v2568 = vunpack.c.l.b16 %v2504
      %v2569 = vunpack.c.l.b16 %v2505
      %v2570 = vunpack.c.l.b16 %v2506
      %v2571 = vunpack.c.l.b16 %v2507
      %v2572 = vpack.c.b16 %v1217, %v2556
      %v2573 = vpack.c.b16 %v1219, %v2557
      %v2574 = vpack.c.b16 %v1221, %v2558
      %v2575 = vpack.c.b16 %v1223, %v2559
      %v2576 = vpack.c.b16 %v1225, %v2560
      %v2577 = vpack.c.b16 %v1227, %v2561
      %v2578 = vpack.c.b16 %v1229, %v2562
      %v2579 = vpack.c.b16 %v1231, %v2563
      %v2580 = vpack.c.b16 %v1233, %v2564
      %v2581 = vpack.c.b16 %v1235, %v2565
      %v2582 = vpack.c.b16 %v1237, %v2566
      %v2583 = vpack.c.b16 %v1239, %v2567
      %v2584 = vpack.c.b16 %v1241, %v2568
      %v2585 = vpack.c.b16 %v1243, %v2569
      %v2586 = vpack.c.b16 %v1245, %v2570
      %v2587 = vpack.c.b16 %v1247, %v2571
      %v2604 = vunpack.c.l.b16 %v2508
      %v2605 = vunpack.c.l.b16 %v2509
      %v2606 = vunpack.c.l.b16 %v2510
      %v2607 = vunpack.c.l.b16 %v2511
      %v2608 = vunpack.c.l.b16 %v2512
      %v2609 = vunpack.c.l.b16 %v2513
      %v2610 = vunpack.c.l.b16 %v2514
      %v2611 = vunpack.c.l.b16 %v2515
      %v2612 = vunpack.c.l.b16 %v2516
      %v2613 = vunpack.c.l.b16 %v2517
      %v2614 = vunpack.c.l.b16 %v2518
      %v2615 = vunpack.c.l.b16 %v2519
      %v2616 = vunpack.c.l.b16 %v2520
      %v2617 = vunpack.c.l.b16 %v2521
      %v2618 = vunpack.c.l.b16 %v2522
      %v2619 = vunpack.c.l.b16 %v2523
      %v2620 = vpack.c.b16 %v1297, %v2604
      %v2621 = vpack.c.b16 %v1299, %v2605
      %v2622 = vpack.c.b16 %v1301, %v2606
      %v2623 = vpack.c.b16 %v1303, %v2607
      %v2624 = vpack.c.b16 %v1305, %v2608
      %v2625 = vpack.c.b16 %v1307, %v2609
      %v2626 = vpack.c.b16 %v1309, %v2610
      %v2627 = vpack.c.b16 %v1311, %v2611
      %v2628 = vpack.c.b16 %v1313, %v2612
      %v2629 = vpack.c.b16 %v1315, %v2613
      %v2630 = vpack.c.b16 %v1317, %v2614
      %v2631 = vpack.c.b16 %v1319, %v2615
      %v2632 = vpack.c.b16 %v1321, %v2616
      %v2633 = vpack.c.b16 %v1323, %v2617
      %v2634 = vpack.c.b16 %v1325, %v2618
      %v2635 = vpack.c.b16 %v1327, %v2619
      %2636 = vrot.lane.b32.xlu0 %v2620, 4
      %v2637 = vpop.permute.xlu0 %2636
      %2638 = vrot.lane.b32.xlu0 %v2621, 4
      %v2639 = vpop.permute.xlu0 %2638
      %2640 = vrot.lane.b32.xlu0 %v2622, 4
      %v2641 = vpop.permute.xlu0 %2640
      %2642 = vrot.lane.b32.xlu0 %v2623, 4
      %v2643 = vpop.permute.xlu0 %2642
      %2644 = vrot.lane.b32.xlu0 %v2624, 4
      %v2645 = vpop.permute.xlu0 %2644
      %2646 = vrot.lane.b32.xlu0 %v2625, 4
      %v2647 = vpop.permute.xlu0 %2646
      %2648 = vrot.lane.b32.xlu0 %v2626, 4
      %v2649 = vpop.permute.xlu0 %2648
      %2650 = vrot.lane.b32.xlu0 %v2627, 4
      %v2651 = vpop.permute.xlu0 %2650
      %2652 = vrot.lane.b32.xlu0 %v2628, 4
      %v2653 = vpop.permute.xlu0 %2652
      %2654 = vrot.lane.b32.xlu0 %v2629, 4
      %v2655 = vpop.permute.xlu0 %2654
      %2656 = vrot.lane.b32.xlu0 %v2630, 4
      %v2657 = vpop.permute.xlu0 %2656
      %2658 = vrot.lane.b32.xlu0 %v2631, 4
      %v2659 = vpop.permute.xlu0 %2658
      %2660 = vrot.lane.b32.xlu0 %v2632, 4
      %v2661 = vpop.permute.xlu0 %2660
      %2662 = vrot.lane.b32.xlu0 %v2633, 4
      %v2663 = vpop.permute.xlu0 %2662
      %2664 = vrot.lane.b32.xlu0 %v2634, 4
      %v2665 = vpop.permute.xlu0 %2664
      %2666 = vrot.lane.b32.xlu0 %v2635, 4
      %v2667 = vpop.permute.xlu0 %2666
      %v2684 = vunpack.c.l.b16 %v2524
      %v2685 = vunpack.c.l.b16 %v2525
      %v2686 = vunpack.c.l.b16 %v2526
      %v2687 = vunpack.c.l.b16 %v2527
      %v2688 = vunpack.c.l.b16 %v2528
      %v2689 = vunpack.c.l.b16 %v2529
      %v2690 = vunpack.c.l.b16 %v2530
      %v2691 = vunpack.c.l.b16 %v2531
      %v2692 = vunpack.c.l.b16 %v2532
      %v2693 = vunpack.c.l.b16 %v2533
      %v2694 = vunpack.c.l.b16 %v2534
      %v2695 = vunpack.c.l.b16 %v2535
      %v2696 = vunpack.c.l.b16 %v2536
      %v2697 = vunpack.c.l.b16 %v2537
      %v2698 = vunpack.c.l.b16 %v2538
      %v2699 = vunpack.c.l.b16 %v2539
      %v2700 = vpack.c.b16 %v1409, %v2684
      %v2701 = vpack.c.b16 %v1411, %v2685
      %v2702 = vpack.c.b16 %v1413, %v2686
      %v2703 = vpack.c.b16 %v1415, %v2687
      %v2704 = vpack.c.b16 %v1417, %v2688
      %v2705 = vpack.c.b16 %v1419, %v2689
      %v2706 = vpack.c.b16 %v1421, %v2690
      %v2707 = vpack.c.b16 %v1423, %v2691
      %v2708 = vpack.c.b16 %v1425, %v2692
      %v2709 = vpack.c.b16 %v1427, %v2693
      %v2710 = vpack.c.b16 %v1429, %v2694
      %v2711 = vpack.c.b16 %v1431, %v2695
      %v2712 = vpack.c.b16 %v1433, %v2696
      %v2713 = vpack.c.b16 %v1435, %v2697
      %v2714 = vpack.c.b16 %v1437, %v2698
      %v2715 = vpack.c.b16 %v1439, %v2699
      %2716 = vrot.lane.b32.xlu0 %v2700, 8
      %v2717 = vpop.permute.xlu0 %2716
      %2718 = vrot.lane.b32.xlu0 %v2701, 8
      %v2719 = vpop.permute.xlu0 %2718
      %2720 = vrot.lane.b32.xlu0 %v2702, 8
      %v2721 = vpop.permute.xlu0 %2720
      %2722 = vrot.lane.b32.xlu0 %v2703, 8
      %v2723 = vpop.permute.xlu0 %2722
      %2724 = vrot.lane.b32.xlu0 %v2704, 8
      %v2725 = vpop.permute.xlu0 %2724
      %2726 = vrot.lane.b32.xlu0 %v2705, 8
      %v2727 = vpop.permute.xlu0 %2726
      %2728 = vrot.lane.b32.xlu0 %v2706, 8
      %v2729 = vpop.permute.xlu0 %2728
      %2730 = vrot.lane.b32.xlu0 %v2707, 8
      %v2731 = vpop.permute.xlu0 %2730
      %2732 = vrot.lane.b32.xlu0 %v2708, 8
      %v2733 = vpop.permute.xlu0 %2732
      %2734 = vrot.lane.b32.xlu0 %v2709, 8
      %v2735 = vpop.permute.xlu0 %2734
      %2736 = vrot.lane.b32.xlu0 %v2710, 8
      %v2737 = vpop.permute.xlu0 %2736
      %2738 = vrot.lane.b32.xlu0 %v2711, 8
      %v2739 = vpop.permute.xlu0 %2738
      %2740 = vrot.lane.b32.xlu0 %v2712, 8
      %v2741 = vpop.permute.xlu0 %2740
      %2742 = vrot.lane.b32.xlu0 %v2713, 8
      %v2743 = vpop.permute.xlu0 %2742
      %2744 = vrot.lane.b32.xlu0 %v2714, 8
      %v2745 = vpop.permute.xlu0 %2744
      %2746 = vrot.lane.b32.xlu0 %v2715, 8
      %v2747 = vpop.permute.xlu0 %2746
      %v2750 = vsel %vm1488, %v2572, %v2637
      %v2753 = vsel %vm1488, %v2573, %v2639
      %v2756 = vsel %vm1488, %v2574, %v2641
      %v2759 = vsel %vm1488, %v2575, %v2643
      %v2762 = vsel %vm1488, %v2576, %v2645
      %v2765 = vsel %vm1488, %v2577, %v2647
      %v2768 = vsel %vm1488, %v2578, %v2649
      %v2771 = vsel %vm1488, %v2579, %v2651
      %v2774 = vsel %vm1488, %v2580, %v2653
      %v2777 = vsel %vm1488, %v2581, %v2655
      %v2780 = vsel %vm1488, %v2582, %v2657
      %v2783 = vsel %vm1488, %v2583, %v2659
      %v2786 = vsel %vm1488, %v2584, %v2661
      %v2789 = vsel %vm1488, %v2585, %v2663
      %v2792 = vsel %vm1488, %v2586, %v2665
      %v2795 = vsel %vm1488, %v2587, %v2667
      %v2797 = vsel %vm1537, %v2750, %v2717
      %v2799 = vsel %vm1537, %v2753, %v2719
      %v2801 = vsel %vm1537, %v2756, %v2721
      %v2803 = vsel %vm1537, %v2759, %v2723
      %v2805 = vsel %vm1537, %v2762, %v2725
      %v2807 = vsel %vm1537, %v2765, %v2727
      %v2809 = vsel %vm1537, %v2768, %v2729
      %v2811 = vsel %vm1537, %v2771, %v2731
      %v2813 = vsel %vm1537, %v2774, %v2733
      %v2815 = vsel %vm1537, %v2777, %v2735
      %v2817 = vsel %vm1537, %v2780, %v2737
      %v2819 = vsel %vm1537, %v2783, %v2739
      %v2821 = vsel %vm1537, %v2786, %v2741
      %v2823 = vsel %vm1537, %v2789, %v2743
      %v2825 = vsel %vm1537, %v2792, %v2745
      %v2827 = vsel %vm1537, %v2795, %v2747
      %vm2860 = vcmask 1046528
      %v2861 = vrot.slane %v2797, 1
      %v2862 = vrot.slane %v1877, 1
      %v2863 = vsel %vm2860, %v2861, %v2862
      %v2864 = vrot.slane %v2799, 1
      %v2865 = vrot.slane %v1879, 1
      %v2866 = vsel %vm2860, %v2864, %v2865
      %v2867 = vrot.slane %v2801, 1
      %v2868 = vrot.slane %v1881, 1
      %v2869 = vsel %vm2860, %v2867, %v2868
      %v2870 = vrot.slane %v2803, 1
      %v2871 = vrot.slane %v1883, 1
      %v2872 = vsel %vm2860, %v2870, %v2871
      %v2873 = vrot.slane %v2805, 1
      %v2874 = vrot.slane %v1885, 1
      %v2875 = vsel %vm2860, %v2873, %v2874
      %v2876 = vrot.slane %v2807, 1
      %v2877 = vrot.slane %v1887, 1
      %v2878 = vsel %vm2860, %v2876, %v2877
      %v2879 = vrot.slane %v2809, 1
      %v2880 = vrot.slane %v1889, 1
      %v2881 = vsel %vm2860, %v2879, %v2880
      %v2882 = vrot.slane %v2811, 1
      %v2883 = vrot.slane %v1891, 1
      %v2884 = vsel %vm2860, %v2882, %v2883
      %v2885 = vrot.slane %v2813, 1
      %v2886 = vrot.slane %v1893, 1
      %v2887 = vsel %vm2860, %v2885, %v2886
      %v2888 = vrot.slane %v2815, 1
      %v2889 = vrot.slane %v1895, 1
      %v2890 = vsel %vm2860, %v2888, %v2889
      %v2891 = vrot.slane %v2817, 1
      %v2892 = vrot.slane %v1897, 1
      %v2893 = vsel %vm2860, %v2891, %v2892
      %v2894 = vrot.slane %v2819, 1
      %v2895 = vrot.slane %v1899, 1
      %v2896 = vsel %vm2860, %v2894, %v2895
      %v2897 = vrot.slane %v2821, 1
      %v2898 = vrot.slane %v1901, 1
      %v2899 = vsel %vm2860, %v2897, %v2898
      %v2900 = vrot.slane %v2823, 1
      %v2901 = vrot.slane %v1903, 1
      %v2902 = vsel %vm2860, %v2900, %v2901
      %v2903 = vrot.slane %v2825, 1
      %v2904 = vrot.slane %v1905, 1
      %v2905 = vsel %vm2860, %v2903, %v2904
      %v2906 = vrot.slane %v2827, 1
      %v2907 = vrot.slane %v1907, 1
      %v2908 = vsel %vm2860, %v2906, %v2907
      %s2909 = scalar_lea.vmem %s1, 16
      %v2910 = vld [vmem:[%s2909] sm:$0xf]
      %v2911 = vld [vmem:[%s2909 + $0x4] sm:$0x3]
      %v2914 = vunpack.c.l.b16 %v2910
      %v2915 = vunpack.c.l.b16 %v2911
      %v2916 = vpack.c.b16 %v2915, %v2914
      %v2918 = vsel %vm2077, %v2863, 0
      %v2921 = vsel %vm2077, %v2866, 0
      %v2924 = vsel %vm2077, %v2869, 0
      %v2927 = vsel %vm2077, %v2872, 0
      %v2930 = vsel %vm2077, %v2875, 0
      %v2933 = vsel %vm2077, %v2878, 0
      %v2936 = vsel %vm2077, %v2881, 0
      %v2939 = vsel %vm2077, %v2884, 0
      %v2942 = vsel %vm2077, %v2887, 0
      %v2945 = vsel %vm2077, %v2890, 0
      %v2948 = vsel %vm2077, %v2893, 0
      %v2951 = vsel %vm2077, %v2896, 0
      %v2954 = vsel %vm2077, %v2899, 0
      %v2957 = vsel %vm2077, %v2902, 0
      %v2960 = vsel %vm2077, %v2905, 0
      %v2963 = vsel %vm2077, %v2908, 0
      %v2966 = vsel %vm2126, %v2916, 0
      %2968 = vmatprep.subr.bf16.mxu0 0
      %2969 = vmatpush1.bf16.msra.mxu0 0
      %2970 = vmatprep.subr.bf16.mxu0 0
      %2971 = vmatpush1.bf16.msra.mxu0 0
      %2972 = vmatprep.subr.bf16.mxu0 0
      %2973 = vmatpush1.bf16.msra.mxu0 0
      %2974 = vmatprep.subr.bf16.mxu0 0
      %2975 = vmatpush1.bf16.msra.mxu0 0
      %2976 = vmatprep.subr.bf16.mxu0 0
      %2977 = vmatpush1.bf16.msra.mxu0 0
      %2978 = vmatprep.subr.bf16.mxu0 0
      %2979 = vmatpush1.bf16.msra.mxu0 0
      %2980 = vmatprep.subr.bf16.mxu0 0
      %2981 = vmatpush1.bf16.msra.mxu0 0
      %2982 = vmatprep.subr.bf16.mxu0 0
      %2983 = vmatpush1.bf16.msra.mxu0 %v2966
      %2984 = vmatprep.subr.bf16.mxu0 0
      %2985 = vmatpush2.bf16.msra.mxu0 0
      %2986 = vmatprep.subr.bf16.mxu0 0
      %2987 = vmatpush2.bf16.msra.mxu0 0
      %2988 = vmatprep.subr.bf16.mxu0 0
      %2989 = vmatpush2.bf16.msra.mxu0 0
      %2990 = vmatprep.subr.bf16.mxu0 0
      %2991 = vmatpush2.bf16.msra.mxu0 0
      %2992 = vmatprep.subr.bf16.mxu0 0
      %2993 = vmatpush2.bf16.msra.mxu0 0
      %2994 = vmatprep.subr.bf16.mxu0 0
      %2995 = vmatpush2.bf16.msra.mxu0 0
      %2996 = vmatprep.subr.bf16.mxu0 0
      %2997 = vmatpush2.bf16.msra.mxu0 0
      %2998 = vmatprep.subr.bf16.mxu0 0
      %2999 = vmatpush2.bf16.msra.mxu0 0
      %3000 = vmatprep.mubr.bf16.mxu0 0
      %3001 = vmatmul.mubr.bf16.gmra.mxu0 %v2918
      %v3002 = vpop.f32.mrf.mxu0
      %v3003 = vadd.f32 0.0, %v3002
      %v3004 = vpop.f32.mrf.mxu0
      %v3005 = vpop.f32.mrf.mxu0
      %v3006 = vadd.f32 0.0, %v3005
      %v3007 = vpop.f32.mrf.mxu0
      %3008 = vmatprep.mubr.bf16.mxu0 0
      %3009 = vmatmul.mubr.bf16.gmra.mxu0 %v2921
      %v3010 = vpop.f32.mrf.mxu0
      %v3011 = vadd.f32 0.0, %v3010
      %v3012 = vpop.f32.mrf.mxu0
      %v3013 = vpop.f32.mrf.mxu0
      %v3014 = vadd.f32 0.0, %v3013
      %v3015 = vpop.f32.mrf.mxu0
      %3016 = vmatprep.mubr.bf16.mxu0 0
      %3017 = vmatmul.mubr.bf16.gmra.mxu0 %v2924
      %v3018 = vpop.f32.mrf.mxu0
      %v3019 = vadd.f32 0.0, %v3018
      %v3020 = vpop.f32.mrf.mxu0
      %v3021 = vpop.f32.mrf.mxu0
      %v3022 = vadd.f32 0.0, %v3021
      %v3023 = vpop.f32.mrf.mxu0
      %3024 = vmatprep.mubr.bf16.mxu0 0
      %3025 = vmatmul.mubr.bf16.gmra.mxu0 %v2927
      %v3026 = vpop.f32.mrf.mxu0
      %v3027 = vadd.f32 0.0, %v3026
      %v3028 = vpop.f32.mrf.mxu0
      %v3029 = vpop.f32.mrf.mxu0
      %v3030 = vadd.f32 0.0, %v3029
      %v3031 = vpop.f32.mrf.mxu0
      %3032 = vmatprep.mubr.bf16.mxu0 0
      %3033 = vmatmul.mubr.bf16.gmra.mxu0 %v2930
      %v3034 = vpop.f32.mrf.mxu0
      %v3035 = vadd.f32 0.0, %v3034
      %v3036 = vpop.f32.mrf.mxu0
      %v3037 = vpop.f32.mrf.mxu0
      %v3038 = vadd.f32 0.0, %v3037
      %v3039 = vpop.f32.mrf.mxu0
      %3040 = vmatprep.mubr.bf16.mxu0 0
      %3041 = vmatmul.mubr.bf16.gmra.mxu0 %v2933
      %v3042 = vpop.f32.mrf.mxu0
      %v3043 = vadd.f32 0.0, %v3042
      %v3044 = vpop.f32.mrf.mxu0
      %v3045 = vpop.f32.mrf.mxu0
      %v3046 = vadd.f32 0.0, %v3045
      %v3047 = vpop.f32.mrf.mxu0
      %3048 = vmatprep.mubr.bf16.mxu0 0
      %3049 = vmatmul.mubr.bf16.gmra.mxu0 %v2936
      %v3050 = vpop.f32.mrf.mxu0
      %v3051 = vadd.f32 0.0, %v3050
      %v3052 = vpop.f32.mrf.mxu0
      %v3053 = vpop.f32.mrf.mxu0
      %v3054 = vadd.f32 0.0, %v3053
      %v3055 = vpop.f32.mrf.mxu0
      %3056 = vmatprep.mubr.bf16.mxu0 0
      %3057 = vmatmul.mubr.bf16.gmra.mxu0 %v2939
      %v3058 = vpop.f32.mrf.mxu0
      %v3059 = vadd.f32 0.0, %v3058
      %v3060 = vpop.f32.mrf.mxu0
      %v3061 = vpop.f32.mrf.mxu0
      %v3062 = vadd.f32 0.0, %v3061
      %v3063 = vpop.f32.mrf.mxu0
      %3064 = vmatprep.mubr.bf16.mxu0 0
      %3065 = vmatmul.mubr.bf16.gmra.mxu0 %v2942
      %v3066 = vpop.f32.mrf.mxu0
      %v3067 = vadd.f32 0.0, %v3066
      %v3068 = vpop.f32.mrf.mxu0
      %v3069 = vpop.f32.mrf.mxu0
      %v3070 = vadd.f32 0.0, %v3069
      %v3071 = vpop.f32.mrf.mxu0
      %3072 = vmatprep.mubr.bf16.mxu0 0
      %3073 = vmatmul.mubr.bf16.gmra.mxu0 %v2945
      %v3074 = vpop.f32.mrf.mxu0
      %v3075 = vadd.f32 0.0, %v3074
      %v3076 = vpop.f32.mrf.mxu0
      %v3077 = vpop.f32.mrf.mxu0
      %v3078 = vadd.f32 0.0, %v3077
      %v3079 = vpop.f32.mrf.mxu0
      %3080 = vmatprep.mubr.bf16.mxu0 0
      %3081 = vmatmul.mubr.bf16.gmra.mxu0 %v2948
      %v3082 = vpop.f32.mrf.mxu0
      %v3083 = vadd.f32 0.0, %v3082
      %v3084 = vpop.f32.mrf.mxu0
      %v3085 = vpop.f32.mrf.mxu0
      %v3086 = vadd.f32 0.0, %v3085
      %v3087 = vpop.f32.mrf.mxu0
      %3088 = vmatprep.mubr.bf16.mxu0 0
      %3089 = vmatmul.mubr.bf16.gmra.mxu0 %v2951
      %v3090 = vpop.f32.mrf.mxu0
      %v3091 = vadd.f32 0.0, %v3090
      %v3092 = vpop.f32.mrf.mxu0
      %v3093 = vpop.f32.mrf.mxu0
      %v3094 = vadd.f32 0.0, %v3093
      %v3095 = vpop.f32.mrf.mxu0
      %3096 = vmatprep.mubr.bf16.mxu0 0
      %3097 = vmatmul.mubr.bf16.gmra.mxu0 %v2954
      %v3098 = vpop.f32.mrf.mxu0
      %v3099 = vadd.f32 0.0, %v3098
      %v3100 = vpop.f32.mrf.mxu0
      %v3101 = vpop.f32.mrf.mxu0
      %v3102 = vadd.f32 0.0, %v3101
      %v3103 = vpop.f32.mrf.mxu0
      %3104 = vmatprep.mubr.bf16.mxu0 0
      %3105 = vmatmul.mubr.bf16.gmra.mxu0 %v2957
      %v3106 = vpop.f32.mrf.mxu0
      %v3107 = vadd.f32 0.0, %v3106
      %v3108 = vpop.f32.mrf.mxu0
      %v3109 = vpop.f32.mrf.mxu0
      %v3110 = vadd.f32 0.0, %v3109
      %v3111 = vpop.f32.mrf.mxu0
      %3112 = vmatprep.mubr.bf16.mxu0 0
      %3113 = vmatmul.mubr.bf16.gmra.mxu0 %v2960
      %v3114 = vpop.f32.mrf.mxu0
      %v3115 = vadd.f32 0.0, %v3114
      %v3116 = vpop.f32.mrf.mxu0
      %v3117 = vpop.f32.mrf.mxu0
      %v3118 = vadd.f32 0.0, %v3117
      %v3119 = vpop.f32.mrf.mxu0
      %3120 = vmatprep.mubr.bf16.mxu0 0
      %3121 = vmatmul.mubr.bf16.gmra.mxu0 %v2963
      %v3122 = vpop.f32.mrf.mxu0
      %v3123 = vadd.f32 0.0, %v3122
      %v3124 = vpop.f32.mrf.mxu0
      %v3125 = vpop.f32.mrf.mxu0
      %v3126 = vadd.f32 0.0, %v3125
      %v3127 = vpop.f32.mrf.mxu0
      %3128 = vdwg.mxu0
      %v3129 = vadd.f32 %v2366, %v3003
      %v3130 = vadd.f32 %v2369, %v3006
      %v3131 = vadd.f32 %v2374, %v3011
      %v3132 = vadd.f32 %v2377, %v3014
      %v3133 = vadd.f32 %v2382, %v3019
      %v3134 = vadd.f32 %v2385, %v3022
      %v3135 = vadd.f32 %v2390, %v3027
      %v3136 = vadd.f32 %v2393, %v3030
      %v3137 = vadd.f32 %v2398, %v3035
      %v3138 = vadd.f32 %v2401, %v3038
      %v3139 = vadd.f32 %v2406, %v3043
      %v3140 = vadd.f32 %v2409, %v3046
      %v3141 = vadd.f32 %v2414, %v3051
      %v3142 = vadd.f32 %v2417, %v3054
      %v3143 = vadd.f32 %v2422, %v3059
      %v3144 = vadd.f32 %v2425, %v3062
      %v3145 = vadd.f32 %v2430, %v3067
      %v3146 = vadd.f32 %v2433, %v3070
      %v3147 = vadd.f32 %v2438, %v3075
      %v3148 = vadd.f32 %v2441, %v3078
      %v3149 = vadd.f32 %v2446, %v3083
      %v3150 = vadd.f32 %v2449, %v3086
      %v3151 = vadd.f32 %v2454, %v3091
      %v3152 = vadd.f32 %v2457, %v3094
      %v3153 = vadd.f32 %v2462, %v3099
      %v3154 = vadd.f32 %v2465, %v3102
      %v3155 = vadd.f32 %v2470, %v3107
      %v3156 = vadd.f32 %v2473, %v3110
      %v3157 = vadd.f32 %v2478, %v3115
      %v3158 = vadd.f32 %v2481, %v3118
      %v3159 = vadd.f32 %v2486, %v3123
      %v3160 = vadd.f32 %v2489, %v3126
      %v3161 = vld [vmem:[%s2] sm:$0x1]
      %v3163 = vlaneseq
      %v3164 = vshrl.u32 %v3163, 7
      %v3165 = vsub.s32 0, %v3164
      %v3166 = vrot.slane %v3161, %v3165
      %v3168 = vadd.f32 %v3129, %v3166
      %v3169 = vadd.f32 %v3130, %v3166
      %v3170 = vadd.f32 %v3131, %v3166
      %v3171 = vadd.f32 %v3132, %v3166
      %v3172 = vadd.f32 %v3133, %v3166
      %v3173 = vadd.f32 %v3134, %v3166
      %v3174 = vadd.f32 %v3135, %v3166
      %v3175 = vadd.f32 %v3136, %v3166
      %v3176 = vadd.f32 %v3137, %v3166
      %v3177 = vadd.f32 %v3138, %v3166
      %v3178 = vadd.f32 %v3139, %v3166
      %v3179 = vadd.f32 %v3140, %v3166
      %v3180 = vadd.f32 %v3141, %v3166
      %v3181 = vadd.f32 %v3142, %v3166
      %v3182 = vadd.f32 %v3143, %v3166
      %v3183 = vadd.f32 %v3144, %v3166
      %v3184 = vadd.f32 %v3145, %v3166
      %v3185 = vadd.f32 %v3146, %v3166
      %v3186 = vadd.f32 %v3147, %v3166
      %v3187 = vadd.f32 %v3148, %v3166
      %v3188 = vadd.f32 %v3149, %v3166
      %v3189 = vadd.f32 %v3150, %v3166
      %v3190 = vadd.f32 %v3151, %v3166
      %v3191 = vadd.f32 %v3152, %v3166
      %v3192 = vadd.f32 %v3153, %v3166
      %v3193 = vadd.f32 %v3154, %v3166
      %v3194 = vadd.f32 %v3155, %v3166
      %v3195 = vadd.f32 %v3156, %v3166
      %v3196 = vadd.f32 %v3157, %v3166
      %v3197 = vadd.f32 %v3158, %v3166
      %v3198 = vadd.f32 %v3159, %v3166
      %v3199 = vadd.f32 %v3160, %v3166
      %v3200 = vmax.f32 %v3168, 0.0
      %v3201 = vmax.f32 %v3169, 0.0
      %v3202 = vmax.f32 %v3170, 0.0
      %v3203 = vmax.f32 %v3171, 0.0
      %v3204 = vmax.f32 %v3172, 0.0
      %v3205 = vmax.f32 %v3173, 0.0
      %v3206 = vmax.f32 %v3174, 0.0
      %v3207 = vmax.f32 %v3175, 0.0
      %v3208 = vmax.f32 %v3176, 0.0
      %v3209 = vmax.f32 %v3177, 0.0
      %v3210 = vmax.f32 %v3178, 0.0
      %v3211 = vmax.f32 %v3179, 0.0
      %v3212 = vmax.f32 %v3180, 0.0
      %v3213 = vmax.f32 %v3181, 0.0
      %v3214 = vmax.f32 %v3182, 0.0
      %v3215 = vmax.f32 %v3183, 0.0
      %v3216 = vmax.f32 %v3184, 0.0
      %v3217 = vmax.f32 %v3185, 0.0
      %v3218 = vmax.f32 %v3186, 0.0
      %v3219 = vmax.f32 %v3187, 0.0
      %v3220 = vmax.f32 %v3188, 0.0
      %v3221 = vmax.f32 %v3189, 0.0
      %v3222 = vmax.f32 %v3190, 0.0
      %v3223 = vmax.f32 %v3191, 0.0
      %v3224 = vmax.f32 %v3192, 0.0
      %v3225 = vmax.f32 %v3193, 0.0
      %v3226 = vmax.f32 %v3194, 0.0
      %v3227 = vmax.f32 %v3195, 0.0
      %v3228 = vmax.f32 %v3196, 0.0
      %v3229 = vmax.f32 %v3197, 0.0
      %v3230 = vmax.f32 %v3198, 0.0
      %v3231 = vmax.f32 %v3199, 0.0
      %v3232 = vpack.c.bf16 %v3201, %v3200
      %v3233 = vpack.c.bf16 %v3203, %v3202
      %v3234 = vpack.c.bf16 %v3205, %v3204
      %v3235 = vpack.c.bf16 %v3207, %v3206
      %v3236 = vpack.c.bf16 %v3209, %v3208
      %v3237 = vpack.c.bf16 %v3211, %v3210
      %v3238 = vpack.c.bf16 %v3213, %v3212
      %v3239 = vpack.c.bf16 %v3215, %v3214
      %v3240 = vpack.c.bf16 %v3217, %v3216
      %v3241 = vpack.c.bf16 %v3219, %v3218
      %v3242 = vpack.c.bf16 %v3221, %v3220
      %v3243 = vpack.c.bf16 %v3223, %v3222
      %v3244 = vpack.c.bf16 %v3225, %v3224
      %v3245 = vpack.c.bf16 %v3227, %v3226
      %v3246 = vpack.c.bf16 %v3229, %v3228
      %v3247 = vpack.c.bf16 %v3231, %v3230
      %v3264 = vunpack.c.l.b16 %v3232
      %v3265 = vunpack.c.h.b16 %v3232
      %v3266 = vunpack.c.l.b16 %v3233
      %v3267 = vunpack.c.h.b16 %v3233
      %v3268 = vunpack.c.l.b16 %v3234
      %v3269 = vunpack.c.h.b16 %v3234
      %v3270 = vunpack.c.l.b16 %v3235
      %v3271 = vunpack.c.h.b16 %v3235
      %v3272 = vunpack.c.l.b16 %v3236
      %v3273 = vunpack.c.h.b16 %v3236
      %v3274 = vunpack.c.l.b16 %v3237
      %v3275 = vunpack.c.h.b16 %v3237
      %v3276 = vunpack.c.l.b16 %v3238
      %v3277 = vunpack.c.h.b16 %v3238
      %v3278 = vunpack.c.l.b16 %v3239
      %v3279 = vunpack.c.h.b16 %v3239
      %v3280 = vunpack.c.l.b16 %v3240
      %v3281 = vunpack.c.h.b16 %v3240
      %v3282 = vunpack.c.l.b16 %v3241
      %v3283 = vunpack.c.h.b16 %v3241
      %v3284 = vunpack.c.l.b16 %v3242
      %v3285 = vunpack.c.h.b16 %v3242
      %v3286 = vunpack.c.l.b16 %v3243
      %v3287 = vunpack.c.h.b16 %v3243
      %v3288 = vunpack.c.l.b16 %v3244
      %v3289 = vunpack.c.h.b16 %v3244
      %v3290 = vunpack.c.l.b16 %v3245
      %v3291 = vunpack.c.h.b16 %v3245
      %v3292 = vunpack.c.l.b16 %v3246
      %v3293 = vunpack.c.h.b16 %v3246
      %v3294 = vunpack.c.l.b16 %v3247
      %v3295 = vunpack.c.h.b16 %v3247
      %v3296 = vpack.c.b16 %v3264, %v3264
      %v3297 = vpack.c.b16 %v3265, %v3265
      %v3298 = vpack.c.b16 %v3266, %v3266
      %v3299 = vpack.c.b16 %v3267, %v3267
      %v3300 = vpack.c.b16 %v3268, %v3268
      %v3301 = vpack.c.b16 %v3269, %v3269
      %v3302 = vpack.c.b16 %v3270, %v3270
      %v3303 = vpack.c.b16 %v3271, %v3271
      %v3304 = vpack.c.b16 %v3272, %v3272
      %v3305 = vpack.c.b16 %v3273, %v3273
      %v3306 = vpack.c.b16 %v3274, %v3274
      %v3307 = vpack.c.b16 %v3275, %v3275
      %v3308 = vpack.c.b16 %v3276, %v3276
      %v3309 = vpack.c.b16 %v3277, %v3277
      %v3310 = vpack.c.b16 %v3278, %v3278
      %v3311 = vpack.c.b16 %v3279, %v3279
      %v3312 = vpack.c.b16 %v3280, %v3280
      %v3313 = vpack.c.b16 %v3281, %v3281
      %v3314 = vpack.c.b16 %v3282, %v3282
      %v3315 = vpack.c.b16 %v3283, %v3283
      %v3316 = vpack.c.b16 %v3284, %v3284
      %v3317 = vpack.c.b16 %v3285, %v3285
      %v3318 = vpack.c.b16 %v3286, %v3286
      %v3319 = vpack.c.b16 %v3287, %v3287
      %v3320 = vpack.c.b16 %v3288, %v3288
      %v3321 = vpack.c.b16 %v3289, %v3289
      %v3322 = vpack.c.b16 %v3290, %v3290
      %v3323 = vpack.c.b16 %v3291, %v3291
      %v3324 = vpack.c.b16 %v3292, %v3292
      %v3325 = vpack.c.b16 %v3293, %v3293
      %v3326 = vpack.c.b16 %v3294, %v3294
      %v3327 = vpack.c.b16 %v3295, %v3295
      %v3329 = vshrl.u32 %v3296, 16
      %v3331 = vrot.slane %v3329, 7
      %v3332 = vshll.u32 %v3296, 16
      %v3334 = vor.u32 %v3331, %v3332
      %v3335 = vrot.slane %v3331, 4
      %v3337 = vshrl.u32 %v3297, 16
      %v3339 = vrot.slane %v3337, 7
      %v3340 = vshll.u32 %v3297, 16
      %v3342 = vor.u32 %v3339, %v3340
      %v3343 = vsel %vm651, %v3335, %v3342
      %v3344 = vrot.slane %v3339, 4
      %v3346 = vshrl.u32 %v3298, 16
      %v3348 = vrot.slane %v3346, 7
      %v3349 = vshll.u32 %v3298, 16
      %v3351 = vor.u32 %v3348, %v3349
      %v3352 = vrot.slane %v3348, 4
      %v3354 = vshrl.u32 %v3299, 16
      %v3356 = vrot.slane %v3354, 7
      %v3357 = vshll.u32 %v3299, 16
      %v3359 = vor.u32 %v3356, %v3357
      %v3360 = vsel %vm651, %v3352, %v3359
      %v3361 = vrot.slane %v3356, 4
      %v3363 = vshrl.u32 %v3300, 16
      %v3365 = vrot.slane %v3363, 7
      %v3366 = vshll.u32 %v3300, 16
      %v3368 = vor.u32 %v3365, %v3366
      %v3369 = vrot.slane %v3365, 4
      %v3371 = vshrl.u32 %v3301, 16
      %v3373 = vrot.slane %v3371, 7
      %v3374 = vshll.u32 %v3301, 16
      %v3376 = vor.u32 %v3373, %v3374
      %v3377 = vsel %vm651, %v3369, %v3376
      %v3378 = vrot.slane %v3373, 4
      %v3380 = vshrl.u32 %v3302, 16
      %v3382 = vrot.slane %v3380, 7
      %v3383 = vshll.u32 %v3302, 16
      %v3385 = vor.u32 %v3382, %v3383
      %v3386 = vrot.slane %v3382, 4
      %v3388 = vshrl.u32 %v3303, 16
      %v3390 = vrot.slane %v3388, 7
      %v3391 = vshll.u32 %v3303, 16
      %v3393 = vor.u32 %v3390, %v3391
      %v3394 = vsel %vm651, %v3386, %v3393
      %v3395 = vrot.slane %v3390, 4
      %v3397 = vshrl.u32 %v3304, 16
      %v3399 = vrot.slane %v3397, 7
      %v3400 = vshll.u32 %v3304, 16
      %v3402 = vor.u32 %v3399, %v3400
      %v3403 = vrot.slane %v3399, 4
      %v3405 = vshrl.u32 %v3305, 16
      %v3407 = vrot.slane %v3405, 7
      %v3408 = vshll.u32 %v3305, 16
      %v3410 = vor.u32 %v3407, %v3408
      %v3411 = vsel %vm651, %v3403, %v3410
      %v3412 = vrot.slane %v3407, 4
      %v3414 = vshrl.u32 %v3306, 16
      %v3416 = vrot.slane %v3414, 7
      %v3417 = vshll.u32 %v3306, 16
      %v3419 = vor.u32 %v3416, %v3417
      %v3420 = vrot.slane %v3416, 4
      %v3422 = vshrl.u32 %v3307, 16
      %v3424 = vrot.slane %v3422, 7
      %v3425 = vshll.u32 %v3307, 16
      %v3427 = vor.u32 %v3424, %v3425
      %v3428 = vsel %vm651, %v3420, %v3427
      %v3429 = vrot.slane %v3424, 4
      %v3431 = vshrl.u32 %v3308, 16
      %v3433 = vrot.slane %v3431, 7
      %v3434 = vshll.u32 %v3308, 16
      %v3436 = vor.u32 %v3433, %v3434
      %v3437 = vrot.slane %v3433, 4
      %v3439 = vshrl.u32 %v3309, 16
      %v3441 = vrot.slane %v3439, 7
      %v3442 = vshll.u32 %v3309, 16
      %v3444 = vor.u32 %v3441, %v3442
      %v3445 = vsel %vm651, %v3437, %v3444
      %v3446 = vrot.slane %v3441, 4
      %v3448 = vshrl.u32 %v3310, 16
      %v3450 = vrot.slane %v3448, 7
      %v3451 = vshll.u32 %v3310, 16
      %v3453 = vor.u32 %v3450, %v3451
      %v3454 = vrot.slane %v3450, 4
      %v3456 = vshrl.u32 %v3311, 16
      %v3458 = vrot.slane %v3456, 7
      %v3459 = vshll.u32 %v3311, 16
      %v3461 = vor.u32 %v3458, %v3459
      %v3462 = vsel %vm651, %v3454, %v3461
      %v3463 = vrot.slane %v3458, 4
      %v3465 = vshrl.u32 %v3312, 16
      %v3467 = vrot.slane %v3465, 7
      %v3468 = vshll.u32 %v3312, 16
      %v3470 = vor.u32 %v3467, %v3468
      %v3471 = vrot.slane %v3467, 4
      %v3473 = vshrl.u32 %v3313, 16
      %v3475 = vrot.slane %v3473, 7
      %v3476 = vshll.u32 %v3313, 16
      %v3478 = vor.u32 %v3475, %v3476
      %v3479 = vsel %vm651, %v3471, %v3478
      %v3480 = vrot.slane %v3475, 4
      %v3482 = vshrl.u32 %v3314, 16
      %v3484 = vrot.slane %v3482, 7
      %v3485 = vshll.u32 %v3314, 16
      %v3487 = vor.u32 %v3484, %v3485
      %v3488 = vrot.slane %v3484, 4
      %v3490 = vshrl.u32 %v3315, 16
      %v3492 = vrot.slane %v3490, 7
      %v3493 = vshll.u32 %v3315, 16
      %v3495 = vor.u32 %v3492, %v3493
      %v3496 = vsel %vm651, %v3488, %v3495
      %v3497 = vrot.slane %v3492, 4
      %v3499 = vshrl.u32 %v3316, 16
      %v3501 = vrot.slane %v3499, 7
      %v3502 = vshll.u32 %v3316, 16
      %v3504 = vor.u32 %v3501, %v3502
      %v3505 = vrot.slane %v3501, 4
      %v3507 = vshrl.u32 %v3317, 16
      %v3509 = vrot.slane %v3507, 7
      %v3510 = vshll.u32 %v3317, 16
      %v3512 = vor.u32 %v3509, %v3510
      %v3513 = vsel %vm651, %v3505, %v3512
      %v3514 = vrot.slane %v3509, 4
      %v3516 = vshrl.u32 %v3318, 16
      %v3518 = vrot.slane %v3516, 7
      %v3519 = vshll.u32 %v3318, 16
      %v3521 = vor.u32 %v3518, %v3519
      %v3522 = vrot.slane %v3518, 4
      %v3524 = vshrl.u32 %v3319, 16
      %v3526 = vrot.slane %v3524, 7
      %v3527 = vshll.u32 %v3319, 16
      %v3529 = vor.u32 %v3526, %v3527
      %v3530 = vsel %vm651, %v3522, %v3529
      %v3531 = vrot.slane %v3526, 4
      %v3533 = vshrl.u32 %v3320, 16
      %v3535 = vrot.slane %v3533, 7
      %v3536 = vshll.u32 %v3320, 16
      %v3538 = vor.u32 %v3535, %v3536
      %v3539 = vrot.slane %v3535, 4
      %v3541 = vshrl.u32 %v3321, 16
      %v3543 = vrot.slane %v3541, 7
      %v3544 = vshll.u32 %v3321, 16
      %v3546 = vor.u32 %v3543, %v3544
      %v3547 = vsel %vm651, %v3539, %v3546
      %v3548 = vrot.slane %v3543, 4
      %v3550 = vshrl.u32 %v3322, 16
      %v3552 = vrot.slane %v3550, 7
      %v3553 = vshll.u32 %v3322, 16
      %v3555 = vor.u32 %v3552, %v3553
      %v3556 = vrot.slane %v3552, 4
      %v3558 = vshrl.u32 %v3323, 16
      %v3560 = vrot.slane %v3558, 7
      %v3561 = vshll.u32 %v3323, 16
      %v3563 = vor.u32 %v3560, %v3561
      %v3564 = vsel %vm651, %v3556, %v3563
      %v3565 = vrot.slane %v3560, 4
      %v3567 = vshrl.u32 %v3324, 16
      %v3569 = vrot.slane %v3567, 7
      %v3570 = vshll.u32 %v3324, 16
      %v3572 = vor.u32 %v3569, %v3570
      %v3573 = vrot.slane %v3569, 4
      %v3575 = vshrl.u32 %v3325, 16
      %v3577 = vrot.slane %v3575, 7
      %v3578 = vshll.u32 %v3325, 16
      %v3580 = vor.u32 %v3577, %v3578
      %v3581 = vsel %vm651, %v3573, %v3580
      %v3582 = vrot.slane %v3577, 4
      %v3584 = vshrl.u32 %v3326, 16
      %v3586 = vrot.slane %v3584, 7
      %v3587 = vshll.u32 %v3326, 16
      %v3589 = vor.u32 %v3586, %v3587
      %v3590 = vrot.slane %v3586, 4
      %v3592 = vshrl.u32 %v3327, 16
      %v3594 = vrot.slane %v3592, 7
      %v3595 = vshll.u32 %v3327, 16
      %v3597 = vor.u32 %v3594, %v3595
      %v3598 = vsel %vm651, %v3590, %v3597
      %v3599 = vrot.slane %v3594, 4
      %s3648 = scalar_lea.vmem [#allocation3], 12
      %vm3649 = vcmask 60416
      %vm3650 = vmand %vm3649, %vm378
      %v3651 = vld [vmem:[%s3648] sm:$0xf]
      %v3652 = vsel %vm3650, %v3334, %v3651
      %3653 = vst [vmem:[%s3648] sm:$0xf] %v3652
      %3654 = vst.msk [vmem:[%s3648 + $0x4] sm:$0xf] %vm434, %v3343
      %v3655 = vld [vmem:[%s3648 + $0x8] sm:$0x1]
      %v3656 = vsel %vm444, %v3344, %v3655
      %3657 = vst [vmem:[%s3648 + $0x8] sm:$0x1] %v3656
      %v3658 = vld [vmem:[%s3648 + $0xc] sm:$0xf]
      %v3659 = vsel %vm3650, %v3351, %v3658
      %3660 = vst [vmem:[%s3648 + $0xc] sm:$0xf] %v3659
      %3661 = vst.msk [vmem:[%s3648 + $0x10] sm:$0xf] %vm434, %v3360
      %v3662 = vld [vmem:[%s3648 + $0x14] sm:$0x1]
      %v3663 = vsel %vm444, %v3361, %v3662
      %3664 = vst [vmem:[%s3648 + $0x14] sm:$0x1] %v3663
      %v3665 = vld [vmem:[%s3648 + $0x18] sm:$0xf]
      %v3666 = vsel %vm3650, %v3368, %v3665
      %3667 = vst [vmem:[%s3648 + $0x18] sm:$0xf] %v3666
      %3668 = vst.msk [vmem:[%s3648 + $0x1c] sm:$0xf] %vm434, %v3377
      %v3669 = vld [vmem:[%s3648 + $0x20] sm:$0x1]
      %v3670 = vsel %vm444, %v3378, %v3669
      %3671 = vst [vmem:[%s3648 + $0x20] sm:$0x1] %v3670
      %v3672 = vld [vmem:[%s3648 + $0x24] sm:$0xf]
      %v3673 = vsel %vm3650, %v3385, %v3672
      %3674 = vst [vmem:[%s3648 + $0x24] sm:$0xf] %v3673
      %3675 = vst.msk [vmem:[%s3648 + $0x28] sm:$0xf] %vm434, %v3394
      %v3676 = vld [vmem:[%s3648 + $0x2c] sm:$0x1]
      %v3677 = vsel %vm444, %v3395, %v3676
      %3678 = vst [vmem:[%s3648 + $0x2c] sm:$0x1] %v3677
      %v3679 = vld [vmem:[%s3648 + $0x30] sm:$0xf]
      %v3680 = vsel %vm3650, %v3402, %v3679
      %3681 = vst [vmem:[%s3648 + $0x30] sm:$0xf] %v3680
      %3682 = vst.msk [vmem:[%s3648 + $0x34] sm:$0xf] %vm434, %v3411
      %v3683 = vld [vmem:[%s3648 + $0x38] sm:$0x1]
      %v3684 = vsel %vm444, %v3412, %v3683
      %3685 = vst [vmem:[%s3648 + $0x38] sm:$0x1] %v3684
      %v3686 = vld [vmem:[%s3648 + $0x3c] sm:$0xf]
      %v3687 = vsel %vm3650, %v3419, %v3686
      %3688 = vst [vmem:[%s3648 + $0x3c] sm:$0xf] %v3687
      %3689 = vst.msk [vmem:[%s3648 + $0x40] sm:$0xf] %vm434, %v3428
      %v3690 = vld [vmem:[%s3648 + $0x44] sm:$0x1]
      %v3691 = vsel %vm444, %v3429, %v3690
      %3692 = vst [vmem:[%s3648 + $0x44] sm:$0x1] %v3691
      %v3693 = vld [vmem:[%s3648 + $0x48] sm:$0xf]
      %v3694 = vsel %vm3650, %v3436, %v3693
      %3695 = vst [vmem:[%s3648 + $0x48] sm:$0xf] %v3694
      %3696 = vst.msk [vmem:[%s3648 + $0x4c] sm:$0xf] %vm434, %v3445
      %v3697 = vld [vmem:[%s3648 + $0x50] sm:$0x1]
      %v3698 = vsel %vm444, %v3446, %v3697
      %3699 = vst [vmem:[%s3648 + $0x50] sm:$0x1] %v3698
      %v3700 = vld [vmem:[%s3648 + $0x54] sm:$0xf]
      %v3701 = vsel %vm3650, %v3453, %v3700
      %3702 = vst [vmem:[%s3648 + $0x54] sm:$0xf] %v3701
      %3703 = vst.msk [vmem:[%s3648 + $0x58] sm:$0xf] %vm434, %v3462
      %v3704 = vld [vmem:[%s3648 + $0x5c] sm:$0x1]
      %v3705 = vsel %vm444, %v3463, %v3704
      %3706 = vst [vmem:[%s3648 + $0x5c] sm:$0x1] %v3705
      %v3707 = vld [vmem:[%s3648 + $0x60] sm:$0xf]
      %v3708 = vsel %vm3650, %v3470, %v3707
      %3709 = vst [vmem:[%s3648 + $0x60] sm:$0xf] %v3708
      %3710 = vst.msk [vmem:[%s3648 + $0x64] sm:$0xf] %vm434, %v3479
      %v3711 = vld [vmem:[%s3648 + $0x68] sm:$0x1]
      %v3712 = vsel %vm444, %v3480, %v3711
      %3713 = vst [vmem:[%s3648 + $0x68] sm:$0x1] %v3712
      %v3714 = vld [vmem:[%s3648 + $0x6c] sm:$0xf]
      %v3715 = vsel %vm3650, %v3487, %v3714
      %3716 = vst [vmem:[%s3648 + $0x6c] sm:$0xf] %v3715
      %3717 = vst.msk [vmem:[%s3648 + $0x70] sm:$0xf] %vm434, %v3496
      %v3718 = vld [vmem:[%s3648 + $0x74] sm:$0x1]
      %v3719 = vsel %vm444, %v3497, %v3718
      %3720 = vst [vmem:[%s3648 + $0x74] sm:$0x1] %v3719
      %v3721 = vld [vmem:[%s3648 + $0x78] sm:$0xf]
      %v3722 = vsel %vm3650, %v3504, %v3721
      %3723 = vst [vmem:[%s3648 + $0x78] sm:$0xf] %v3722
      %3724 = vst.msk [vmem:[%s3648 + $0x7c] sm:$0xf] %vm434, %v3513
      %v3725 = vld [vmem:[%s3648 + $0x80] sm:$0x1]
      %v3726 = vsel %vm444, %v3514, %v3725
      %3727 = vst [vmem:[%s3648 + $0x80] sm:$0x1] %v3726
      %v3728 = vld [vmem:[%s3648 + $0x84] sm:$0xf]
      %v3729 = vsel %vm3650, %v3521, %v3728
      %3730 = vst [vmem:[%s3648 + $0x84] sm:$0xf] %v3729
      %3731 = vst.msk [vmem:[%s3648 + $0x88] sm:$0xf] %vm434, %v3530
      %v3732 = vld [vmem:[%s3648 + $0x8c] sm:$0x1]
      %v3733 = vsel %vm444, %v3531, %v3732
      %3734 = vst [vmem:[%s3648 + $0x8c] sm:$0x1] %v3733
      %v3735 = vld [vmem:[%s3648 + $0x90] sm:$0xf]
      %v3736 = vsel %vm3650, %v3538, %v3735
      %3737 = vst [vmem:[%s3648 + $0x90] sm:$0xf] %v3736
      %3738 = vst.msk [vmem:[%s3648 + $0x94] sm:$0xf] %vm434, %v3547
      %v3739 = vld [vmem:[%s3648 + $0x98] sm:$0x1]
      %v3740 = vsel %vm444, %v3548, %v3739
      %3741 = vst [vmem:[%s3648 + $0x98] sm:$0x1] %v3740
      %v3742 = vld [vmem:[%s3648 + $0x9c] sm:$0xf]
      %v3743 = vsel %vm3650, %v3555, %v3742
      %3744 = vst [vmem:[%s3648 + $0x9c] sm:$0xf] %v3743
      %3745 = vst.msk [vmem:[%s3648 + $0xa0] sm:$0xf] %vm434, %v3564
      %v3746 = vld [vmem:[%s3648 + $0xa4] sm:$0x1]
      %v3747 = vsel %vm444, %v3565, %v3746
      %3748 = vst [vmem:[%s3648 + $0xa4] sm:$0x1] %v3747
      %v3749 = vld [vmem:[%s3648 + $0xa8] sm:$0xf]
      %v3750 = vsel %vm3650, %v3572, %v3749
      %3751 = vst [vmem:[%s3648 + $0xa8] sm:$0xf] %v3750
      %3752 = vst.msk [vmem:[%s3648 + $0xac] sm:$0xf] %vm434, %v3581
      %v3753 = vld [vmem:[%s3648 + $0xb0] sm:$0x1]
      %v3754 = vsel %vm444, %v3582, %v3753
      %3755 = vst [vmem:[%s3648 + $0xb0] sm:$0x1] %v3754
      %v3756 = vld [vmem:[%s3648 + $0xb4] sm:$0xf]
      %v3757 = vsel %vm3650, %v3589, %v3756
      %3758 = vst [vmem:[%s3648 + $0xb4] sm:$0xf] %v3757
      %3759 = vst.msk [vmem:[%s3648 + $0xb8] sm:$0xf] %vm434, %v3598
      %v3760 = vld [vmem:[%s3648 + $0xbc] sm:$0x1]
      %v3761 = vsel %vm444, %v3599, %v3760
      %3762 = vst [vmem:[%s3648 + $0xbc] sm:$0x1] %v3761
      %v3763 = vld [vmem:[#allocation3] sm:$0xf]
      %v3764 = vld [vmem:[#allocation3 + $0x4] sm:$0xf]
      %v3765 = vld [vmem:[#allocation3 + $0xc] sm:$0xf]
      %v3766 = vld [vmem:[#allocation3 + $0x10] sm:$0xf]
      %v3767 = vld [vmem:[#allocation3 + $0x18] sm:$0xf]
      %v3768 = vld [vmem:[#allocation3 + $0x1c] sm:$0xf]
      %v3769 = vld [vmem:[#allocation3 + $0x24] sm:$0xf]
      %v3770 = vld [vmem:[#allocation3 + $0x28] sm:$0xf]
      %v3771 = vld [vmem:[#allocation3 + $0x30] sm:$0xf]
      %v3772 = vld [vmem:[#allocation3 + $0x34] sm:$0xf]
      %v3773 = vld [vmem:[#allocation3 + $0x3c] sm:$0xf]
      %v3774 = vld [vmem:[#allocation3 + $0x40] sm:$0xf]
      %v3775 = vld [vmem:[#allocation3 + $0x48] sm:$0xf]
      %v3776 = vld [vmem:[#allocation3 + $0x4c] sm:$0xf]
      %v3777 = vld [vmem:[#allocation3 + $0x54] sm:$0xf]
      %v3778 = vld [vmem:[#allocation3 + $0x58] sm:$0xf]
      %v3779 = vld [vmem:[#allocation3 + $0x60] sm:$0xf]
      %v3780 = vld [vmem:[#allocation3 + $0x64] sm:$0xf]
      %v3781 = vld [vmem:[#allocation3 + $0x6c] sm:$0xf]
      %v3782 = vld [vmem:[#allocation3 + $0x70] sm:$0xf]
      %v3783 = vld [vmem:[#allocation3 + $0x78] sm:$0xf]
      %v3784 = vld [vmem:[#allocation3 + $0x7c] sm:$0xf]
      %v3785 = vld [vmem:[#allocation3 + $0x84] sm:$0xf]
      %v3786 = vld [vmem:[#allocation3 + $0x88] sm:$0xf]
      %v3787 = vld [vmem:[#allocation3 + $0x90] sm:$0xf]
      %v3788 = vld [vmem:[#allocation3 + $0x94] sm:$0xf]
      %v3789 = vld [vmem:[#allocation3 + $0x9c] sm:$0xf]
      %v3790 = vld [vmem:[#allocation3 + $0xa0] sm:$0xf]
      %v3791 = vld [vmem:[#allocation3 + $0xa8] sm:$0xf]
      %v3792 = vld [vmem:[#allocation3 + $0xac] sm:$0xf]
      %v3793 = vld [vmem:[#allocation3 + $0xb4] sm:$0xf]
      %v3794 = vld [vmem:[#allocation3 + $0xb8] sm:$0xf]
      %v3795 = vld [vmem:[%s3648] sm:$0xf]
      %v3796 = vld [vmem:[%s3648 + $0x4] sm:$0xf]
      %v3797 = vld [vmem:[%s3648 + $0xc] sm:$0xf]
      %v3798 = vld [vmem:[%s3648 + $0x10] sm:$0xf]
      %v3799 = vld [vmem:[%s3648 + $0x18] sm:$0xf]
      %v3800 = vld [vmem:[%s3648 + $0x1c] sm:$0xf]
      %v3801 = vld [vmem:[%s3648 + $0x24] sm:$0xf]
      %v3802 = vld [vmem:[%s3648 + $0x28] sm:$0xf]
      %v3803 = vld [vmem:[%s3648 + $0x30] sm:$0xf]
      %v3804 = vld [vmem:[%s3648 + $0x34] sm:$0xf]
      %v3805 = vld [vmem:[%s3648 + $0x3c] sm:$0xf]
      %v3806 = vld [vmem:[%s3648 + $0x40] sm:$0xf]
      %v3807 = vld [vmem:[%s3648 + $0x48] sm:$0xf]
      %v3808 = vld [vmem:[%s3648 + $0x4c] sm:$0xf]
      %v3809 = vld [vmem:[%s3648 + $0x54] sm:$0xf]
      %v3810 = vld [vmem:[%s3648 + $0x58] sm:$0xf]
      %v3811 = vld [vmem:[%s3648 + $0x60] sm:$0xf]
      %v3812 = vld [vmem:[%s3648 + $0x64] sm:$0xf]
      %v3813 = vld [vmem:[%s3648 + $0x6c] sm:$0xf]
      %v3814 = vld [vmem:[%s3648 + $0x70] sm:$0xf]
      %v3815 = vld [vmem:[%s3648 + $0x78] sm:$0xf]
      %v3816 = vld [vmem:[%s3648 + $0x7c] sm:$0xf]
      %v3817 = vld [vmem:[%s3648 + $0x84] sm:$0xf]
      %v3818 = vld [vmem:[%s3648 + $0x88] sm:$0xf]
      %v3819 = vld [vmem:[%s3648 + $0x90] sm:$0xf]
      %v3820 = vld [vmem:[%s3648 + $0x94] sm:$0xf]
      %v3821 = vld [vmem:[%s3648 + $0x9c] sm:$0xf]
      %v3822 = vld [vmem:[%s3648 + $0xa0] sm:$0xf]
      %v3823 = vld [vmem:[%s3648 + $0xa8] sm:$0xf]
      %v3824 = vld [vmem:[%s3648 + $0xac] sm:$0xf]
      %v3825 = vld [vmem:[%s3648 + $0xb4] sm:$0xf]
      %v3826 = vld [vmem:[%s3648 + $0xb8] sm:$0xf]
      %s3827 = scalar_lea.vmem [#allocation3], 24
      %v3828 = vld [vmem:[%s3827] sm:$0xf]
      %v3829 = vld [vmem:[%s3827 + $0x4] sm:$0xf]
      %v3830 = vld [vmem:[%s3827 + $0xc] sm:$0xf]
      %v3831 = vld [vmem:[%s3827 + $0x10] sm:$0xf]
      %v3832 = vld [vmem:[%s3827 + $0x18] sm:$0xf]
      %v3833 = vld [vmem:[%s3827 + $0x1c] sm:$0xf]
      %v3834 = vld [vmem:[%s3827 + $0x24] sm:$0xf]
      %v3835 = vld [vmem:[%s3827 + $0x28] sm:$0xf]
      %v3836 = vld [vmem:[%s3827 + $0x30] sm:$0xf]
      %v3837 = vld [vmem:[%s3827 + $0x34] sm:$0xf]
      %v3838 = vld [vmem:[%s3827 + $0x3c] sm:$0xf]
      %v3839 = vld [vmem:[%s3827 + $0x40] sm:$0xf]
      %v3840 = vld [vmem:[%s3827 + $0x48] sm:$0xf]
      %v3841 = vld [vmem:[%s3827 + $0x4c] sm:$0xf]
      %v3842 = vld [vmem:[%s3827 + $0x54] sm:$0xf]
      %v3843 = vld [vmem:[%s3827 + $0x58] sm:$0xf]
      %v3844 = vld [vmem:[%s3827 + $0x60] sm:$0xf]
      %v3845 = vld [vmem:[%s3827 + $0x64] sm:$0xf]
      %v3846 = vld [vmem:[%s3827 + $0x6c] sm:$0xf]
      %v3847 = vld [vmem:[%s3827 + $0x70] sm:$0xf]
      %v3848 = vld [vmem:[%s3827 + $0x78] sm:$0xf]
      %v3849 = vld [vmem:[%s3827 + $0x7c] sm:$0xf]
      %v3850 = vld [vmem:[%s3827 + $0x84] sm:$0xf]
      %v3851 = vld [vmem:[%s3827 + $0x88] sm:$0xf]
      %v3852 = vld [vmem:[%s3827 + $0x90] sm:$0xf]
      %v3853 = vld [vmem:[%s3827 + $0x94] sm:$0xf]
      %v3854 = vld [vmem:[%s3827 + $0x9c] sm:$0xf]
      %v3855 = vld [vmem:[%s3827 + $0xa0] sm:$0xf]
      %v3856 = vld [vmem:[%s3827 + $0xa8] sm:$0xf]
      %v3857 = vld [vmem:[%s3827 + $0xac] sm:$0xf]
      %v3858 = vld [vmem:[%s3827 + $0xb4] sm:$0xf]
      %v3859 = vld [vmem:[%s3827 + $0xb8] sm:$0xf]
      %v3892 = vunpack.c.l.b16 %v3763
      %v3893 = vunpack.c.l.b16 %v3764
      %v3894 = vunpack.c.l.b16 %v3765
      %v3895 = vunpack.c.l.b16 %v3766
      %v3896 = vunpack.c.l.b16 %v3767
      %v3897 = vunpack.c.l.b16 %v3768
      %v3898 = vunpack.c.l.b16 %v3769
      %v3899 = vunpack.c.l.b16 %v3770
      %v3900 = vunpack.c.l.b16 %v3771
      %v3901 = vunpack.c.l.b16 %v3772
      %v3902 = vunpack.c.l.b16 %v3773
      %v3903 = vunpack.c.l.b16 %v3774
      %v3904 = vunpack.c.l.b16 %v3775
      %v3905 = vunpack.c.l.b16 %v3776
      %v3906 = vunpack.c.l.b16 %v3777
      %v3907 = vunpack.c.l.b16 %v3778
      %v3908 = vunpack.c.l.b16 %v3779
      %v3909 = vunpack.c.l.b16 %v3780
      %v3910 = vunpack.c.l.b16 %v3781
      %v3911 = vunpack.c.l.b16 %v3782
      %v3912 = vunpack.c.l.b16 %v3783
      %v3913 = vunpack.c.l.b16 %v3784
      %v3914 = vunpack.c.l.b16 %v3785
      %v3915 = vunpack.c.l.b16 %v3786
      %v3916 = vunpack.c.l.b16 %v3787
      %v3917 = vunpack.c.l.b16 %v3788
      %v3918 = vunpack.c.l.b16 %v3789
      %v3919 = vunpack.c.l.b16 %v3790
      %v3920 = vunpack.c.l.b16 %v3791
      %v3921 = vunpack.c.l.b16 %v3792
      %v3922 = vunpack.c.l.b16 %v3793
      %v3923 = vunpack.c.l.b16 %v3794
      %v3924 = vpack.c.b16 %v3893, %v3892
      %v3925 = vpack.c.b16 %v3895, %v3894
      %v3926 = vpack.c.b16 %v3897, %v3896
      %v3927 = vpack.c.b16 %v3899, %v3898
      %v3928 = vpack.c.b16 %v3901, %v3900
      %v3929 = vpack.c.b16 %v3903, %v3902
      %v3930 = vpack.c.b16 %v3905, %v3904
      %v3931 = vpack.c.b16 %v3907, %v3906
      %v3932 = vpack.c.b16 %v3909, %v3908
      %v3933 = vpack.c.b16 %v3911, %v3910
      %v3934 = vpack.c.b16 %v3913, %v3912
      %v3935 = vpack.c.b16 %v3915, %v3914
      %v3936 = vpack.c.b16 %v3917, %v3916
      %v3937 = vpack.c.b16 %v3919, %v3918
      %v3938 = vpack.c.b16 %v3921, %v3920
      %v3939 = vpack.c.b16 %v3923, %v3922
      %v3972 = vunpack.c.l.b16 %v3795
      %v3973 = vunpack.c.l.b16 %v3796
      %v3974 = vunpack.c.l.b16 %v3797
      %v3975 = vunpack.c.l.b16 %v3798
      %v3976 = vunpack.c.l.b16 %v3799
      %v3977 = vunpack.c.l.b16 %v3800
      %v3978 = vunpack.c.l.b16 %v3801
      %v3979 = vunpack.c.l.b16 %v3802
      %v3980 = vunpack.c.l.b16 %v3803
      %v3981 = vunpack.c.l.b16 %v3804
      %v3982 = vunpack.c.l.b16 %v3805
      %v3983 = vunpack.c.l.b16 %v3806
      %v3984 = vunpack.c.l.b16 %v3807
      %v3985 = vunpack.c.l.b16 %v3808
      %v3986 = vunpack.c.l.b16 %v3809
      %v3987 = vunpack.c.l.b16 %v3810
      %v3988 = vunpack.c.l.b16 %v3811
      %v3989 = vunpack.c.l.b16 %v3812
      %v3990 = vunpack.c.l.b16 %v3813
      %v3991 = vunpack.c.l.b16 %v3814
      %v3992 = vunpack.c.l.b16 %v3815
      %v3993 = vunpack.c.l.b16 %v3816
      %v3994 = vunpack.c.l.b16 %v3817
      %v3995 = vunpack.c.l.b16 %v3818
      %v3996 = vunpack.c.l.b16 %v3819
      %v3997 = vunpack.c.l.b16 %v3820
      %v3998 = vunpack.c.l.b16 %v3821
      %v3999 = vunpack.c.l.b16 %v3822
      %v4000 = vunpack.c.l.b16 %v3823
      %v4001 = vunpack.c.l.b16 %v3824
      %v4002 = vunpack.c.l.b16 %v3825
      %v4003 = vunpack.c.l.b16 %v3826
      %v4004 = vpack.c.b16 %v3973, %v3972
      %v4005 = vpack.c.b16 %v3975, %v3974
      %v4006 = vpack.c.b16 %v3977, %v3976
      %v4007 = vpack.c.b16 %v3979, %v3978
      %v4008 = vpack.c.b16 %v3981, %v3980
      %v4009 = vpack.c.b16 %v3983, %v3982
      %v4010 = vpack.c.b16 %v3985, %v3984
      %v4011 = vpack.c.b16 %v3987, %v3986
      %v4012 = vpack.c.b16 %v3989, %v3988
      %v4013 = vpack.c.b16 %v3991, %v3990
      %v4014 = vpack.c.b16 %v3993, %v3992
      %v4015 = vpack.c.b16 %v3995, %v3994
      %v4016 = vpack.c.b16 %v3997, %v3996
      %v4017 = vpack.c.b16 %v3999, %v3998
      %v4018 = vpack.c.b16 %v4001, %v4000
      %v4019 = vpack.c.b16 %v4003, %v4002
      %4020 = vrot.lane.b32.xlu0 %v4004, 8
      %v4021 = vpop.permute.xlu0 %4020
      %4022 = vrot.lane.b32.xlu0 %v4005, 8
      %v4023 = vpop.permute.xlu0 %4022
      %4024 = vrot.lane.b32.xlu0 %v4006, 8
      %v4025 = vpop.permute.xlu0 %4024
      %4026 = vrot.lane.b32.xlu0 %v4007, 8
      %v4027 = vpop.permute.xlu0 %4026
      %4028 = vrot.lane.b32.xlu0 %v4008, 8
      %v4029 = vpop.permute.xlu0 %4028
      %4030 = vrot.lane.b32.xlu0 %v4009, 8
      %v4031 = vpop.permute.xlu0 %4030
      %4032 = vrot.lane.b32.xlu0 %v4010, 8
      %v4033 = vpop.permute.xlu0 %4032
      %4034 = vrot.lane.b32.xlu0 %v4011, 8
      %v4035 = vpop.permute.xlu0 %4034
      %4036 = vrot.lane.b32.xlu0 %v4012, 8
      %v4037 = vpop.permute.xlu0 %4036
      %4038 = vrot.lane.b32.xlu0 %v4013, 8
      %v4039 = vpop.permute.xlu0 %4038
      %4040 = vrot.lane.b32.xlu0 %v4014, 8
      %v4041 = vpop.permute.xlu0 %4040
      %4042 = vrot.lane.b32.xlu0 %v4015, 8
      %v4043 = vpop.permute.xlu0 %4042
      %4044 = vrot.lane.b32.xlu0 %v4016, 8
      %v4045 = vpop.permute.xlu0 %4044
      %4046 = vrot.lane.b32.xlu0 %v4017, 8
      %v4047 = vpop.permute.xlu0 %4046
      %4048 = vrot.lane.b32.xlu0 %v4018, 8
      %v4049 = vpop.permute.xlu0 %4048
      %4050 = vrot.lane.b32.xlu0 %v4019, 8
      %v4051 = vpop.permute.xlu0 %4050
      %v4084 = vunpack.c.l.b16 %v3828
      %v4085 = vunpack.c.l.b16 %v3829
      %v4086 = vunpack.c.l.b16 %v3830
      %v4087 = vunpack.c.l.b16 %v3831
      %v4088 = vunpack.c.l.b16 %v3832
      %v4089 = vunpack.c.l.b16 %v3833
      %v4090 = vunpack.c.l.b16 %v3834
      %v4091 = vunpack.c.l.b16 %v3835
      %v4092 = vunpack.c.l.b16 %v3836
      %v4093 = vunpack.c.l.b16 %v3837
      %v4094 = vunpack.c.l.b16 %v3838
      %v4095 = vunpack.c.l.b16 %v3839
      %v4096 = vunpack.c.l.b16 %v3840
      %v4097 = vunpack.c.l.b16 %v3841
      %v4098 = vunpack.c.l.b16 %v3842
      %v4099 = vunpack.c.l.b16 %v3843
      %v4100 = vunpack.c.l.b16 %v3844
      %v4101 = vunpack.c.l.b16 %v3845
      %v4102 = vunpack.c.l.b16 %v3846
      %v4103 = vunpack.c.l.b16 %v3847
      %v4104 = vunpack.c.l.b16 %v3848
      %v4105 = vunpack.c.l.b16 %v3849
      %v4106 = vunpack.c.l.b16 %v3850
      %v4107 = vunpack.c.l.b16 %v3851
      %v4108 = vunpack.c.l.b16 %v3852
      %v4109 = vunpack.c.l.b16 %v3853
      %v4110 = vunpack.c.l.b16 %v3854
      %v4111 = vunpack.c.l.b16 %v3855
      %v4112 = vunpack.c.l.b16 %v3856
      %v4113 = vunpack.c.l.b16 %v3857
      %v4114 = vunpack.c.l.b16 %v3858
      %v4115 = vunpack.c.l.b16 %v3859
      %v4116 = vpack.c.b16 %v4085, %v4084
      %v4117 = vpack.c.b16 %v4087, %v4086
      %v4118 = vpack.c.b16 %v4089, %v4088
      %v4119 = vpack.c.b16 %v4091, %v4090
      %v4120 = vpack.c.b16 %v4093, %v4092
      %v4121 = vpack.c.b16 %v4095, %v4094
      %v4122 = vpack.c.b16 %v4097, %v4096
      %v4123 = vpack.c.b16 %v4099, %v4098
      %v4124 = vpack.c.b16 %v4101, %v4100
      %v4125 = vpack.c.b16 %v4103, %v4102
      %v4126 = vpack.c.b16 %v4105, %v4104
      %v4127 = vpack.c.b16 %v4107, %v4106
      %v4128 = vpack.c.b16 %v4109, %v4108
      %v4129 = vpack.c.b16 %v4111, %v4110
      %v4130 = vpack.c.b16 %v4113, %v4112
      %v4131 = vpack.c.b16 %v4115, %v4114
      %4132 = vrot.lane.b32.xlu0 %v4116, 16
      %v4133 = vpop.permute.xlu0 %4132
      %4134 = vrot.lane.b32.xlu0 %v4117, 16
      %v4135 = vpop.permute.xlu0 %4134
      %4136 = vrot.lane.b32.xlu0 %v4118, 16
      %v4137 = vpop.permute.xlu0 %4136
      %4138 = vrot.lane.b32.xlu0 %v4119, 16
      %v4139 = vpop.permute.xlu0 %4138
      %4140 = vrot.lane.b32.xlu0 %v4120, 16
      %v4141 = vpop.permute.xlu0 %4140
      %4142 = vrot.lane.b32.xlu0 %v4121, 16
      %v4143 = vpop.permute.xlu0 %4142
      %4144 = vrot.lane.b32.xlu0 %v4122, 16
      %v4145 = vpop.permute.xlu0 %4144
      %4146 = vrot.lane.b32.xlu0 %v4123, 16
      %v4147 = vpop.permute.xlu0 %4146
      %4148 = vrot.lane.b32.xlu0 %v4124, 16
      %v4149 = vpop.permute.xlu0 %4148
      %4150 = vrot.lane.b32.xlu0 %v4125, 16
      %v4151 = vpop.permute.xlu0 %4150
      %4152 = vrot.lane.b32.xlu0 %v4126, 16
      %v4153 = vpop.permute.xlu0 %4152
      %4154 = vrot.lane.b32.xlu0 %v4127, 16
      %v4155 = vpop.permute.xlu0 %4154
      %4156 = vrot.lane.b32.xlu0 %v4128, 16
      %v4157 = vpop.permute.xlu0 %4156
      %4158 = vrot.lane.b32.xlu0 %v4129, 16
      %v4159 = vpop.permute.xlu0 %4158
      %4160 = vrot.lane.b32.xlu0 %v4130, 16
      %v4161 = vpop.permute.xlu0 %4160
      %4162 = vrot.lane.b32.xlu0 %v4131, 16
      %v4163 = vpop.permute.xlu0 %4162
      %v4166 = vsel %vm1537, %v3924, %v4021
      %v4169 = vsel %vm1537, %v3925, %v4023
      %v4172 = vsel %vm1537, %v3926, %v4025
      %v4175 = vsel %vm1537, %v3927, %v4027
      %v4178 = vsel %vm1537, %v3928, %v4029
      %v4181 = vsel %vm1537, %v3929, %v4031
      %v4184 = vsel %vm1537, %v3930, %v4033
      %v4187 = vsel %vm1537, %v3931, %v4035
      %v4190 = vsel %vm1537, %v3932, %v4037
      %v4193 = vsel %vm1537, %v3933, %v4039
      %v4196 = vsel %vm1537, %v3934, %v4041
      %v4199 = vsel %vm1537, %v3935, %v4043
      %v4202 = vsel %vm1537, %v3936, %v4045
      %v4205 = vsel %vm1537, %v3937, %v4047
      %v4208 = vsel %vm1537, %v3938, %v4049
      %v4211 = vsel %vm1537, %v3939, %v4051
      %vm4212 = vcmask 130048
      %v4214 = vsel %vm4212, %v4166, %v4133
      %v4216 = vsel %vm4212, %v4169, %v4135
      %v4218 = vsel %vm4212, %v4172, %v4137
      %v4220 = vsel %vm4212, %v4175, %v4139
      %v4222 = vsel %vm4212, %v4178, %v4141
      %v4224 = vsel %vm4212, %v4181, %v4143
      %v4226 = vsel %vm4212, %v4184, %v4145
      %v4228 = vsel %vm4212, %v4187, %v4147
      %v4230 = vsel %vm4212, %v4190, %v4149
      %v4232 = vsel %vm4212, %v4193, %v4151
      %v4234 = vsel %vm4212, %v4196, %v4153
      %v4236 = vsel %vm4212, %v4199, %v4155
      %v4238 = vsel %vm4212, %v4202, %v4157
      %v4240 = vsel %vm4212, %v4205, %v4159
      %v4242 = vsel %vm4212, %v4208, %v4161
      %v4244 = vsel %vm4212, %v4211, %v4163
      %v4245 = vld [vmem:[%s3] sm:$0xf]
      %v4246 = vld [vmem:[%s3 + $0x4] sm:$0xf]
      %v4247 = vld [vmem:[%s3 + $0x8] sm:$0xf]
      %v4248 = vld [vmem:[#allocation3 + $0x8] sm:$0x1]
      %v4249 = vld [vmem:[#allocation3 + $0x14] sm:$0x1]
      %v4250 = vld [vmem:[#allocation3 + $0x20] sm:$0x1]
      %v4251 = vld [vmem:[#allocation3 + $0x2c] sm:$0x1]
      %v4252 = vld [vmem:[#allocation3 + $0x38] sm:$0x1]
      %v4253 = vld [vmem:[#allocation3 + $0x44] sm:$0x1]
      %v4254 = vld [vmem:[#allocation3 + $0x50] sm:$0x1]
      %v4255 = vld [vmem:[#allocation3 + $0x5c] sm:$0x1]
      %v4256 = vld [vmem:[#allocation3 + $0x68] sm:$0x1]
      %v4257 = vld [vmem:[#allocation3 + $0x74] sm:$0x1]
      %v4258 = vld [vmem:[#allocation3 + $0x80] sm:$0x1]
      %v4259 = vld [vmem:[#allocation3 + $0x8c] sm:$0x1]
      %v4260 = vld [vmem:[#allocation3 + $0x98] sm:$0x1]
      %v4261 = vld [vmem:[#allocation3 + $0xa4] sm:$0x1]
      %v4262 = vld [vmem:[#allocation3 + $0xb0] sm:$0x1]
      %v4263 = vld [vmem:[#allocation3 + $0xbc] sm:$0x1]
      %v4264 = vld [vmem:[%s3648 + $0x8] sm:$0x1]
      %v4265 = vld [vmem:[%s3648 + $0x14] sm:$0x1]
      %v4266 = vld [vmem:[%s3648 + $0x20] sm:$0x1]
      %v4267 = vld [vmem:[%s3648 + $0x2c] sm:$0x1]
      %v4268 = vld [vmem:[%s3648 + $0x38] sm:$0x1]
      %v4269 = vld [vmem:[%s3648 + $0x44] sm:$0x1]
      %v4270 = vld [vmem:[%s3648 + $0x50] sm:$0x1]
      %v4271 = vld [vmem:[%s3648 + $0x5c] sm:$0x1]
      %v4272 = vld [vmem:[%s3648 + $0x68] sm:$0x1]
      %v4273 = vld [vmem:[%s3648 + $0x74] sm:$0x1]
      %v4274 = vld [vmem:[%s3648 + $0x80] sm:$0x1]
      %v4275 = vld [vmem:[%s3648 + $0x8c] sm:$0x1]
      %v4276 = vld [vmem:[%s3648 + $0x98] sm:$0x1]
      %v4277 = vld [vmem:[%s3648 + $0xa4] sm:$0x1]
      %v4278 = vld [vmem:[%s3648 + $0xb0] sm:$0x1]
      %v4279 = vld [vmem:[%s3648 + $0xbc] sm:$0x1]
      %v4280 = vld [vmem:[%s3827 + $0x8] sm:$0x1]
      %v4281 = vld [vmem:[%s3827 + $0x14] sm:$0x1]
      %v4282 = vld [vmem:[%s3827 + $0x20] sm:$0x1]
      %v4283 = vld [vmem:[%s3827 + $0x2c] sm:$0x1]
      %v4284 = vld [vmem:[%s3827 + $0x38] sm:$0x1]
      %v4285 = vld [vmem:[%s3827 + $0x44] sm:$0x1]
      %v4286 = vld [vmem:[%s3827 + $0x50] sm:$0x1]
      %v4287 = vld [vmem:[%s3827 + $0x5c] sm:$0x1]
      %v4288 = vld [vmem:[%s3827 + $0x68] sm:$0x1]
      %v4289 = vld [vmem:[%s3827 + $0x74] sm:$0x1]
      %v4290 = vld [vmem:[%s3827 + $0x80] sm:$0x1]
      %v4291 = vld [vmem:[%s3827 + $0x8c] sm:$0x1]
      %v4292 = vld [vmem:[%s3827 + $0x98] sm:$0x1]
      %v4293 = vld [vmem:[%s3827 + $0xa4] sm:$0x1]
      %v4294 = vld [vmem:[%s3827 + $0xb0] sm:$0x1]
      %v4295 = vld [vmem:[%s3827 + $0xbc] sm:$0x1]
      %v4312 = vunpack.c.l.b16 %v4248
      %v4313 = vunpack.c.l.b16 %v4249
      %v4314 = vunpack.c.l.b16 %v4250
      %v4315 = vunpack.c.l.b16 %v4251
      %v4316 = vunpack.c.l.b16 %v4252
      %v4317 = vunpack.c.l.b16 %v4253
      %v4318 = vunpack.c.l.b16 %v4254
      %v4319 = vunpack.c.l.b16 %v4255
      %v4320 = vunpack.c.l.b16 %v4256
      %v4321 = vunpack.c.l.b16 %v4257
      %v4322 = vunpack.c.l.b16 %v4258
      %v4323 = vunpack.c.l.b16 %v4259
      %v4324 = vunpack.c.l.b16 %v4260
      %v4325 = vunpack.c.l.b16 %v4261
      %v4326 = vunpack.c.l.b16 %v4262
      %v4327 = vunpack.c.l.b16 %v4263
      %v4328 = vpack.c.b16 %v4312, %v4312
      %v4329 = vpack.c.b16 %v4313, %v4313
      %v4330 = vpack.c.b16 %v4314, %v4314
      %v4331 = vpack.c.b16 %v4315, %v4315
      %v4332 = vpack.c.b16 %v4316, %v4316
      %v4333 = vpack.c.b16 %v4317, %v4317
      %v4334 = vpack.c.b16 %v4318, %v4318
      %v4335 = vpack.c.b16 %v4319, %v4319
      %v4336 = vpack.c.b16 %v4320, %v4320
      %v4337 = vpack.c.b16 %v4321, %v4321
      %v4338 = vpack.c.b16 %v4322, %v4322
      %v4339 = vpack.c.b16 %v4323, %v4323
      %v4340 = vpack.c.b16 %v4324, %v4324
      %v4341 = vpack.c.b16 %v4325, %v4325
      %v4342 = vpack.c.b16 %v4326, %v4326
      %v4343 = vpack.c.b16 %v4327, %v4327
      %v4360 = vunpack.c.l.b16 %v4264
      %v4361 = vunpack.c.l.b16 %v4265
      %v4362 = vunpack.c.l.b16 %v4266
      %v4363 = vunpack.c.l.b16 %v4267
      %v4364 = vunpack.c.l.b16 %v4268
      %v4365 = vunpack.c.l.b16 %v4269
      %v4366 = vunpack.c.l.b16 %v4270
      %v4367 = vunpack.c.l.b16 %v4271
      %v4368 = vunpack.c.l.b16 %v4272
      %v4369 = vunpack.c.l.b16 %v4273
      %v4370 = vunpack.c.l.b16 %v4274
      %v4371 = vunpack.c.l.b16 %v4275
      %v4372 = vunpack.c.l.b16 %v4276
      %v4373 = vunpack.c.l.b16 %v4277
      %v4374 = vunpack.c.l.b16 %v4278
      %v4375 = vunpack.c.l.b16 %v4279
      %v4376 = vpack.c.b16 %v4360, %v4360
      %v4377 = vpack.c.b16 %v4361, %v4361
      %v4378 = vpack.c.b16 %v4362, %v4362
      %v4379 = vpack.c.b16 %v4363, %v4363
      %v4380 = vpack.c.b16 %v4364, %v4364
      %v4381 = vpack.c.b16 %v4365, %v4365
      %v4382 = vpack.c.b16 %v4366, %v4366
      %v4383 = vpack.c.b16 %v4367, %v4367
      %v4384 = vpack.c.b16 %v4368, %v4368
      %v4385 = vpack.c.b16 %v4369, %v4369
      %v4386 = vpack.c.b16 %v4370, %v4370
      %v4387 = vpack.c.b16 %v4371, %v4371
      %v4388 = vpack.c.b16 %v4372, %v4372
      %v4389 = vpack.c.b16 %v4373, %v4373
      %v4390 = vpack.c.b16 %v4374, %v4374
      %v4391 = vpack.c.b16 %v4375, %v4375
      %4392 = vrot.lane.b32.xlu0 %v4376, 8
      %v4393 = vpop.permute.xlu0 %4392
      %4394 = vrot.lane.b32.xlu0 %v4377, 8
      %v4395 = vpop.permute.xlu0 %4394
      %4396 = vrot.lane.b32.xlu0 %v4378, 8
      %v4397 = vpop.permute.xlu0 %4396
      %4398 = vrot.lane.b32.xlu0 %v4379, 8
      %v4399 = vpop.permute.xlu0 %4398
      %4400 = vrot.lane.b32.xlu0 %v4380, 8
      %v4401 = vpop.permute.xlu0 %4400
      %4402 = vrot.lane.b32.xlu0 %v4381, 8
      %v4403 = vpop.permute.xlu0 %4402
      %4404 = vrot.lane.b32.xlu0 %v4382, 8
      %v4405 = vpop.permute.xlu0 %4404
      %4406 = vrot.lane.b32.xlu0 %v4383, 8
      %v4407 = vpop.permute.xlu0 %4406
      %4408 = vrot.lane.b32.xlu0 %v4384, 8
      %v4409 = vpop.permute.xlu0 %4408
      %4410 = vrot.lane.b32.xlu0 %v4385, 8
      %v4411 = vpop.permute.xlu0 %4410
      %4412 = vrot.lane.b32.xlu0 %v4386, 8
      %v4413 = vpop.permute.xlu0 %4412
      %4414 = vrot.lane.b32.xlu0 %v4387, 8
      %v4415 = vpop.permute.xlu0 %4414
      %4416 = vrot.lane.b32.xlu0 %v4388, 8
      %v4417 = vpop.permute.xlu0 %4416
      %4418 = vrot.lane.b32.xlu0 %v4389, 8
      %v4419 = vpop.permute.xlu0 %4418
      %4420 = vrot.lane.b32.xlu0 %v4390, 8
      %v4421 = vpop.permute.xlu0 %4420
      %4422 = vrot.lane.b32.xlu0 %v4391, 8
      %v4423 = vpop.permute.xlu0 %4422
      %v4440 = vunpack.c.l.b16 %v4280
      %v4441 = vunpack.c.l.b16 %v4281
      %v4442 = vunpack.c.l.b16 %v4282
      %v4443 = vunpack.c.l.b16 %v4283
      %v4444 = vunpack.c.l.b16 %v4284
      %v4445 = vunpack.c.l.b16 %v4285
      %v4446 = vunpack.c.l.b16 %v4286
      %v4447 = vunpack.c.l.b16 %v4287
      %v4448 = vunpack.c.l.b16 %v4288
      %v4449 = vunpack.c.l.b16 %v4289
      %v4450 = vunpack.c.l.b16 %v4290
      %v4451 = vunpack.c.l.b16 %v4291
      %v4452 = vunpack.c.l.b16 %v4292
      %v4453 = vunpack.c.l.b16 %v4293
      %v4454 = vunpack.c.l.b16 %v4294
      %v4455 = vunpack.c.l.b16 %v4295
      %v4456 = vpack.c.b16 %v4440, %v4440
      %v4457 = vpack.c.b16 %v4441, %v4441
      %v4458 = vpack.c.b16 %v4442, %v4442
      %v4459 = vpack.c.b16 %v4443, %v4443
      %v4460 = vpack.c.b16 %v4444, %v4444
      %v4461 = vpack.c.b16 %v4445, %v4445
      %v4462 = vpack.c.b16 %v4446, %v4446
      %v4463 = vpack.c.b16 %v4447, %v4447
      %v4464 = vpack.c.b16 %v4448, %v4448
      %v4465 = vpack.c.b16 %v4449, %v4449
      %v4466 = vpack.c.b16 %v4450, %v4450
      %v4467 = vpack.c.b16 %v4451, %v4451
      %v4468 = vpack.c.b16 %v4452, %v4452
      %v4469 = vpack.c.b16 %v4453, %v4453
      %v4470 = vpack.c.b16 %v4454, %v4454
      %v4471 = vpack.c.b16 %v4455, %v4455
      %4472 = vrot.lane.b32.xlu0 %v4456, 16
      %v4473 = vpop.permute.xlu0 %4472
      %4474 = vrot.lane.b32.xlu0 %v4457, 16
      %v4475 = vpop.permute.xlu0 %4474
      %4476 = vrot.lane.b32.xlu0 %v4458, 16
      %v4477 = vpop.permute.xlu0 %4476
      %4478 = vrot.lane.b32.xlu0 %v4459, 16
      %v4479 = vpop.permute.xlu0 %4478
      %4480 = vrot.lane.b32.xlu0 %v4460, 16
      %v4481 = vpop.permute.xlu0 %4480
      %4482 = vrot.lane.b32.xlu0 %v4461, 16
      %v4483 = vpop.permute.xlu0 %4482
      %4484 = vrot.lane.b32.xlu0 %v4462, 16
      %v4485 = vpop.permute.xlu0 %4484
      %4486 = vrot.lane.b32.xlu0 %v4463, 16
      %v4487 = vpop.permute.xlu0 %4486
      %4488 = vrot.lane.b32.xlu0 %v4464, 16
      %v4489 = vpop.permute.xlu0 %4488
      %4490 = vrot.lane.b32.xlu0 %v4465, 16
      %v4491 = vpop.permute.xlu0 %4490
      %4492 = vrot.lane.b32.xlu0 %v4466, 16
      %v4493 = vpop.permute.xlu0 %4492
      %4494 = vrot.lane.b32.xlu0 %v4467, 16
      %v4495 = vpop.permute.xlu0 %4494
      %4496 = vrot.lane.b32.xlu0 %v4468, 16
      %v4497 = vpop.permute.xlu0 %4496
      %4498 = vrot.lane.b32.xlu0 %v4469, 16
      %v4499 = vpop.permute.xlu0 %4498
      %4500 = vrot.lane.b32.xlu0 %v4470, 16
      %v4501 = vpop.permute.xlu0 %4500
      %4502 = vrot.lane.b32.xlu0 %v4471, 16
      %v4503 = vpop.permute.xlu0 %4502
      %v4506 = vsel %vm1537, %v4328, %v4393
      %v4509 = vsel %vm1537, %v4329, %v4395
      %v4512 = vsel %vm1537, %v4330, %v4397
      %v4515 = vsel %vm1537, %v4331, %v4399
      %v4518 = vsel %vm1537, %v4332, %v4401
      %v4521 = vsel %vm1537, %v4333, %v4403
      %v4524 = vsel %vm1537, %v4334, %v4405
      %v4527 = vsel %vm1537, %v4335, %v4407
      %v4530 = vsel %vm1537, %v4336, %v4409
      %v4533 = vsel %vm1537, %v4337, %v4411
      %v4536 = vsel %vm1537, %v4338, %v4413
      %v4539 = vsel %vm1537, %v4339, %v4415
      %v4542 = vsel %vm1537, %v4340, %v4417
      %v4545 = vsel %vm1537, %v4341, %v4419
      %v4548 = vsel %vm1537, %v4342, %v4421
      %v4551 = vsel %vm1537, %v4343, %v4423
      %v4553 = vsel %vm4212, %v4506, %v4473
      %v4555 = vsel %vm4212, %v4509, %v4475
      %v4557 = vsel %vm4212, %v4512, %v4477
      %v4559 = vsel %vm4212, %v4515, %v4479
      %v4561 = vsel %vm4212, %v4518, %v4481
      %v4563 = vsel %vm4212, %v4521, %v4483
      %v4565 = vsel %vm4212, %v4524, %v4485
      %v4567 = vsel %vm4212, %v4527, %v4487
      %v4569 = vsel %vm4212, %v4530, %v4489
      %v4571 = vsel %vm4212, %v4533, %v4491
      %v4573 = vsel %vm4212, %v4536, %v4493
      %v4575 = vsel %vm4212, %v4539, %v4495
      %v4577 = vsel %vm4212, %v4542, %v4497
      %v4579 = vsel %vm4212, %v4545, %v4499
      %v4581 = vsel %vm4212, %v4548, %v4501
      %v4583 = vsel %vm4212, %v4551, %v4503
      %v4584 = vshrl.u32 %v4214, 16
      %v4586 = vshll.u32 %v4214, 16
      %v4588 = vrot.slane %v4586, 1
      %v4589 = vor.u32 %v4584, %v4588
      %v4590 = vshll.u32 %v4553, 16
      %v4592 = vrot.slane %v4590, 1
      %v4593 = vsel %vm1908, %v4589, %v4592
      %v4594 = vshrl.u32 %v4216, 16
      %v4596 = vshll.u32 %v4216, 16
      %v4598 = vrot.slane %v4596, 1
      %v4599 = vor.u32 %v4594, %v4598
      %v4600 = vshll.u32 %v4555, 16
      %v4602 = vrot.slane %v4600, 1
      %v4603 = vsel %vm1908, %v4599, %v4602
      %v4604 = vshrl.u32 %v4218, 16
      %v4606 = vshll.u32 %v4218, 16
      %v4608 = vrot.slane %v4606, 1
      %v4609 = vor.u32 %v4604, %v4608
      %v4610 = vshll.u32 %v4557, 16
      %v4612 = vrot.slane %v4610, 1
      %v4613 = vsel %vm1908, %v4609, %v4612
      %v4614 = vshrl.u32 %v4220, 16
      %v4616 = vshll.u32 %v4220, 16
      %v4618 = vrot.slane %v4616, 1
      %v4619 = vor.u32 %v4614, %v4618
      %v4620 = vshll.u32 %v4559, 16
      %v4622 = vrot.slane %v4620, 1
      %v4623 = vsel %vm1908, %v4619, %v4622
      %v4624 = vshrl.u32 %v4222, 16
      %v4626 = vshll.u32 %v4222, 16
      %v4628 = vrot.slane %v4626, 1
      %v4629 = vor.u32 %v4624, %v4628
      %v4630 = vshll.u32 %v4561, 16
      %v4632 = vrot.slane %v4630, 1
      %v4633 = vsel %vm1908, %v4629, %v4632
      %v4634 = vshrl.u32 %v4224, 16
      %v4636 = vshll.u32 %v4224, 16
      %v4638 = vrot.slane %v4636, 1
      %v4639 = vor.u32 %v4634, %v4638
      %v4640 = vshll.u32 %v4563, 16
      %v4642 = vrot.slane %v4640, 1
      %v4643 = vsel %vm1908, %v4639, %v4642
      %v4644 = vshrl.u32 %v4226, 16
      %v4646 = vshll.u32 %v4226, 16
      %v4648 = vrot.slane %v4646, 1
      %v4649 = vor.u32 %v4644, %v4648
      %v4650 = vshll.u32 %v4565, 16
      %v4652 = vrot.slane %v4650, 1
      %v4653 = vsel %vm1908, %v4649, %v4652
      %v4654 = vshrl.u32 %v4228, 16
      %v4656 = vshll.u32 %v4228, 16
      %v4658 = vrot.slane %v4656, 1
      %v4659 = vor.u32 %v4654, %v4658
      %v4660 = vshll.u32 %v4567, 16
      %v4662 = vrot.slane %v4660, 1
      %v4663 = vsel %vm1908, %v4659, %v4662
      %v4664 = vshrl.u32 %v4230, 16
      %v4666 = vshll.u32 %v4230, 16
      %v4668 = vrot.slane %v4666, 1
      %v4669 = vor.u32 %v4664, %v4668
      %v4670 = vshll.u32 %v4569, 16
      %v4672 = vrot.slane %v4670, 1
      %v4673 = vsel %vm1908, %v4669, %v4672
      %v4674 = vshrl.u32 %v4232, 16
      %v4676 = vshll.u32 %v4232, 16
      %v4678 = vrot.slane %v4676, 1
      %v4679 = vor.u32 %v4674, %v4678
      %v4680 = vshll.u32 %v4571, 16
      %v4682 = vrot.slane %v4680, 1
      %v4683 = vsel %vm1908, %v4679, %v4682
      %v4684 = vshrl.u32 %v4234, 16
      %v4686 = vshll.u32 %v4234, 16
      %v4688 = vrot.slane %v4686, 1
      %v4689 = vor.u32 %v4684, %v4688
      %v4690 = vshll.u32 %v4573, 16
      %v4692 = vrot.slane %v4690, 1
      %v4693 = vsel %vm1908, %v4689, %v4692
      %v4694 = vshrl.u32 %v4236, 16
      %v4696 = vshll.u32 %v4236, 16
      %v4698 = vrot.slane %v4696, 1
      %v4699 = vor.u32 %v4694, %v4698
      %v4700 = vshll.u32 %v4575, 16
      %v4702 = vrot.slane %v4700, 1
      %v4703 = vsel %vm1908, %v4699, %v4702
      %v4704 = vshrl.u32 %v4238, 16
      %v4706 = vshll.u32 %v4238, 16
      %v4708 = vrot.slane %v4706, 1
      %v4709 = vor.u32 %v4704, %v4708
      %v4710 = vshll.u32 %v4577, 16
      %v4712 = vrot.slane %v4710, 1
      %v4713 = vsel %vm1908, %v4709, %v4712
      %v4714 = vshrl.u32 %v4240, 16
      %v4716 = vshll.u32 %v4240, 16
      %v4718 = vrot.slane %v4716, 1
      %v4719 = vor.u32 %v4714, %v4718
      %v4720 = vshll.u32 %v4579, 16
      %v4722 = vrot.slane %v4720, 1
      %v4723 = vsel %vm1908, %v4719, %v4722
      %v4724 = vshrl.u32 %v4242, 16
      %v4726 = vshll.u32 %v4242, 16
      %v4728 = vrot.slane %v4726, 1
      %v4729 = vor.u32 %v4724, %v4728
      %v4730 = vshll.u32 %v4581, 16
      %v4732 = vrot.slane %v4730, 1
      %v4733 = vsel %vm1908, %v4729, %v4732
      %v4734 = vshrl.u32 %v4244, 16
      %v4736 = vshll.u32 %v4244, 16
      %v4738 = vrot.slane %v4736, 1
      %v4739 = vor.u32 %v4734, %v4738
      %v4740 = vshll.u32 %v4583, 16
      %v4742 = vrot.slane %v4740, 1
      %v4743 = vsel %vm1908, %v4739, %v4742
      %s4744 = scalar_lea.vmem %s3, 12
      %v4745 = vld [vmem:[%s4744] sm:$0xf]
      %v4746 = vld [vmem:[%s4744 + $0x4] sm:$0xf]
      %v4747 = vld [vmem:[%s4744 + $0x8] sm:$0xf]
      %v4751 = vunpack.c.l.b16 %v4745
      %v4752 = vunpack.c.l.b16 %v4746
      %v4753 = vunpack.c.l.b16 %v4747
      %v4754 = vpack.c.b16 %v4752, %v4751
      %v4755 = vpack.c.b16 %v4753, %v4753
      %vm4757 = vcmask 195584
      %v4759 = vsel %vm4757, %v4593, 0
      %v4762 = vsel %vm4757, %v4603, 0
      %v4765 = vsel %vm4757, %v4613, 0
      %v4768 = vsel %vm4757, %v4623, 0
      %v4771 = vsel %vm4757, %v4633, 0
      %v4774 = vsel %vm4757, %v4643, 0
      %v4777 = vsel %vm4757, %v4653, 0
      %v4780 = vsel %vm4757, %v4663, 0
      %v4783 = vsel %vm4757, %v4673, 0
      %v4786 = vsel %vm4757, %v4683, 0
      %v4789 = vsel %vm4757, %v4693, 0
      %v4792 = vsel %vm4757, %v4703, 0
      %v4795 = vsel %vm4757, %v4713, 0
      %v4798 = vsel %vm4757, %v4723, 0
      %v4801 = vsel %vm4757, %v4733, 0
      %v4804 = vsel %vm4757, %v4743, 0
      %vm4806 = vcmask 1043456
      %v4808 = vsel %vm4806, %v4755, 0
      %4810 = vmatprep.subr.bf16.mxu0 0
      %4811 = vmatpush1.bf16.msra.mxu0 0
      %4812 = vmatprep.subr.bf16.mxu0 0
      %4813 = vmatpush1.bf16.msra.mxu0 0
      %4814 = vmatprep.subr.bf16.mxu0 0
      %4815 = vmatpush1.bf16.msra.mxu0 0
      %4816 = vmatprep.subr.bf16.mxu0 0
      %4817 = vmatpush1.bf16.msra.mxu0 0
      %4818 = vmatprep.subr.bf16.mxu0 0
      %4819 = vmatpush1.bf16.msra.mxu0 0
      %4820 = vmatprep.subr.bf16.mxu0 0
      %4821 = vmatpush1.bf16.msra.mxu0 0
      %4822 = vmatprep.subr.bf16.mxu0 0
      %4823 = vmatpush1.bf16.msra.mxu0 %v4808
      %4824 = vmatprep.subr.bf16.mxu0 0
      %4825 = vmatpush1.bf16.msra.mxu0 %v4754
      %4826 = vmatprep.subr.bf16.mxu0 0
      %4827 = vmatpush2.bf16.msra.mxu0 0
      %4828 = vmatprep.subr.bf16.mxu0 0
      %4829 = vmatpush2.bf16.msra.mxu0 0
      %4830 = vmatprep.subr.bf16.mxu0 0
      %4831 = vmatpush2.bf16.msra.mxu0 0
      %4832 = vmatprep.subr.bf16.mxu0 0
      %4833 = vmatpush2.bf16.msra.mxu0 0
      %4834 = vmatprep.subr.bf16.mxu0 0
      %4835 = vmatpush2.bf16.msra.mxu0 0
      %4836 = vmatprep.subr.bf16.mxu0 0
      %4837 = vmatpush2.bf16.msra.mxu0 0
      %4838 = vmatprep.subr.bf16.mxu0 0
      %4839 = vmatpush2.bf16.msra.mxu0 0
      %4840 = vmatprep.subr.bf16.mxu0 0
      %4841 = vmatpush2.bf16.msra.mxu0 0
      %4842 = vmatprep.mubr.bf16.mxu0 0
      %4843 = vmatmul.mubr.bf16.gmra.mxu0 %v4759
      %v4844 = vpop.f32.mrf.mxu0
      %v4845 = vadd.f32 0.0, %v4844
      %v4846 = vpop.f32.mrf.mxu0
      %v4847 = vpop.f32.mrf.mxu0
      %v4848 = vadd.f32 0.0, %v4847
      %v4849 = vpop.f32.mrf.mxu0
      %4850 = vmatprep.mubr.bf16.mxu0 0
      %4851 = vmatmul.mubr.bf16.gmra.mxu0 %v4762
      %v4852 = vpop.f32.mrf.mxu0
      %v4853 = vadd.f32 0.0, %v4852
      %v4854 = vpop.f32.mrf.mxu0
      %v4855 = vpop.f32.mrf.mxu0
      %v4856 = vadd.f32 0.0, %v4855
      %v4857 = vpop.f32.mrf.mxu0
      %4858 = vmatprep.mubr.bf16.mxu0 0
      %4859 = vmatmul.mubr.bf16.gmra.mxu0 %v4765
      %v4860 = vpop.f32.mrf.mxu0
      %v4861 = vadd.f32 0.0, %v4860
      %v4862 = vpop.f32.mrf.mxu0
      %v4863 = vpop.f32.mrf.mxu0
      %v4864 = vadd.f32 0.0, %v4863
      %v4865 = vpop.f32.mrf.mxu0
      %4866 = vmatprep.mubr.bf16.mxu0 0
      %4867 = vmatmul.mubr.bf16.gmra.mxu0 %v4768
      %v4868 = vpop.f32.mrf.mxu0
      %v4869 = vadd.f32 0.0, %v4868
      %v4870 = vpop.f32.mrf.mxu0
      %v4871 = vpop.f32.mrf.mxu0
      %v4872 = vadd.f32 0.0, %v4871
      %v4873 = vpop.f32.mrf.mxu0
      %4874 = vmatprep.mubr.bf16.mxu0 0
      %4875 = vmatmul.mubr.bf16.gmra.mxu0 %v4771
      %v4876 = vpop.f32.mrf.mxu0
      %v4877 = vadd.f32 0.0, %v4876
      %v4878 = vpop.f32.mrf.mxu0
      %v4879 = vpop.f32.mrf.mxu0
      %v4880 = vadd.f32 0.0, %v4879
      %v4881 = vpop.f32.mrf.mxu0
      %4882 = vmatprep.mubr.bf16.mxu0 0
      %4883 = vmatmul.mubr.bf16.gmra.mxu0 %v4774
      %v4884 = vpop.f32.mrf.mxu0
      %v4885 = vadd.f32 0.0, %v4884
      %v4886 = vpop.f32.mrf.mxu0
      %v4887 = vpop.f32.mrf.mxu0
      %v4888 = vadd.f32 0.0, %v4887
      %v4889 = vpop.f32.mrf.mxu0
      %4890 = vmatprep.mubr.bf16.mxu0 0
      %4891 = vmatmul.mubr.bf16.gmra.mxu0 %v4777
      %v4892 = vpop.f32.mrf.mxu0
      %v4893 = vadd.f32 0.0, %v4892
      %v4894 = vpop.f32.mrf.mxu0
      %v4895 = vpop.f32.mrf.mxu0
      %v4896 = vadd.f32 0.0, %v4895
      %v4897 = vpop.f32.mrf.mxu0
      %4898 = vmatprep.mubr.bf16.mxu0 0
      %4899 = vmatmul.mubr.bf16.gmra.mxu0 %v4780
      %v4900 = vpop.f32.mrf.mxu0
      %v4901 = vadd.f32 0.0, %v4900
      %v4902 = vpop.f32.mrf.mxu0
      %v4903 = vpop.f32.mrf.mxu0
      %v4904 = vadd.f32 0.0, %v4903
      %v4905 = vpop.f32.mrf.mxu0
      %4906 = vmatprep.mubr.bf16.mxu0 0
      %4907 = vmatmul.mubr.bf16.gmra.mxu0 %v4783
      %v4908 = vpop.f32.mrf.mxu0
      %v4909 = vadd.f32 0.0, %v4908
      %v4910 = vpop.f32.mrf.mxu0
      %v4911 = vpop.f32.mrf.mxu0
      %v4912 = vadd.f32 0.0, %v4911
      %v4913 = vpop.f32.mrf.mxu0
      %4914 = vmatprep.mubr.bf16.mxu0 0
      %4915 = vmatmul.mubr.bf16.gmra.mxu0 %v4786
      %v4916 = vpop.f32.mrf.mxu0
      %v4917 = vadd.f32 0.0, %v4916
      %v4918 = vpop.f32.mrf.mxu0
      %v4919 = vpop.f32.mrf.mxu0
      %v4920 = vadd.f32 0.0, %v4919
      %v4921 = vpop.f32.mrf.mxu0
      %4922 = vmatprep.mubr.bf16.mxu0 0
      %4923 = vmatmul.mubr.bf16.gmra.mxu0 %v4789
      %v4924 = vpop.f32.mrf.mxu0
      %v4925 = vadd.f32 0.0, %v4924
      %v4926 = vpop.f32.mrf.mxu0
      %v4927 = vpop.f32.mrf.mxu0
      %v4928 = vadd.f32 0.0, %v4927
      %v4929 = vpop.f32.mrf.mxu0
      %4930 = vmatprep.mubr.bf16.mxu0 0
      %4931 = vmatmul.mubr.bf16.gmra.mxu0 %v4792
      %v4932 = vpop.f32.mrf.mxu0
      %v4933 = vadd.f32 0.0, %v4932
      %v4934 = vpop.f32.mrf.mxu0
      %v4935 = vpop.f32.mrf.mxu0
      %v4936 = vadd.f32 0.0, %v4935
      %v4937 = vpop.f32.mrf.mxu0
      %4938 = vmatprep.mubr.bf16.mxu0 0
      %4939 = vmatmul.mubr.bf16.gmra.mxu0 %v4795
      %v4940 = vpop.f32.mrf.mxu0
      %v4941 = vadd.f32 0.0, %v4940
      %v4942 = vpop.f32.mrf.mxu0
      %v4943 = vpop.f32.mrf.mxu0
      %v4944 = vadd.f32 0.0, %v4943
      %v4945 = vpop.f32.mrf.mxu0
      %4946 = vmatprep.mubr.bf16.mxu0 0
      %4947 = vmatmul.mubr.bf16.gmra.mxu0 %v4798
      %v4948 = vpop.f32.mrf.mxu0
      %v4949 = vadd.f32 0.0, %v4948
      %v4950 = vpop.f32.mrf.mxu0
      %v4951 = vpop.f32.mrf.mxu0
      %v4952 = vadd.f32 0.0, %v4951
      %v4953 = vpop.f32.mrf.mxu0
      %4954 = vmatprep.mubr.bf16.mxu0 0
      %4955 = vmatmul.mubr.bf16.gmra.mxu0 %v4801
      %v4956 = vpop.f32.mrf.mxu0
      %v4957 = vadd.f32 0.0, %v4956
      %v4958 = vpop.f32.mrf.mxu0
      %v4959 = vpop.f32.mrf.mxu0
      %v4960 = vadd.f32 0.0, %v4959
      %v4961 = vpop.f32.mrf.mxu0
      %4962 = vmatprep.mubr.bf16.mxu0 0
      %4963 = vmatmul.mubr.bf16.gmra.mxu0 %v4804
      %v4964 = vpop.f32.mrf.mxu0
      %v4965 = vadd.f32 0.0, %v4964
      %v4966 = vpop.f32.mrf.mxu0
      %v4967 = vpop.f32.mrf.mxu0
      %v4968 = vadd.f32 0.0, %v4967
      %v4969 = vpop.f32.mrf.mxu0
      %4970 = vdwg.mxu0
      %v4974 = vunpack.c.l.b16 %v4245
      %v4975 = vunpack.c.l.b16 %v4246
      %v4976 = vunpack.c.l.b16 %v4247
      %v4977 = vpack.c.b16 %v4975, %v4974
      %v4978 = vpack.c.b16 %v4976, %v4976
      %v4980 = vsel %vm4757, %v4214, 0
      %v4982 = vsel %vm4757, %v4216, 0
      %v4984 = vsel %vm4757, %v4218, 0
      %v4986 = vsel %vm4757, %v4220, 0
      %v4988 = vsel %vm4757, %v4222, 0
      %v4990 = vsel %vm4757, %v4224, 0
      %v4992 = vsel %vm4757, %v4226, 0
      %v4994 = vsel %vm4757, %v4228, 0
      %v4996 = vsel %vm4757, %v4230, 0
      %v4998 = vsel %vm4757, %v4232, 0
      %v5000 = vsel %vm4757, %v4234, 0
      %v5002 = vsel %vm4757, %v4236, 0
      %v5004 = vsel %vm4757, %v4238, 0
      %v5006 = vsel %vm4757, %v4240, 0
      %v5008 = vsel %vm4757, %v4242, 0
      %v5010 = vsel %vm4757, %v4244, 0
      %v5013 = vsel %vm4806, %v4978, 0
      %5015 = vmatprep.subr.bf16.mxu0 0
      %5016 = vmatpush1.bf16.msra.mxu0 0
      %5017 = vmatprep.subr.bf16.mxu0 0
      %5018 = vmatpush1.bf16.msra.mxu0 0
      %5019 = vmatprep.subr.bf16.mxu0 0
      %5020 = vmatpush1.bf16.msra.mxu0 0
      %5021 = vmatprep.subr.bf16.mxu0 0
      %5022 = vmatpush1.bf16.msra.mxu0 0
      %5023 = vmatprep.subr.bf16.mxu0 0
      %5024 = vmatpush1.bf16.msra.mxu0 0
      %5025 = vmatprep.subr.bf16.mxu0 0
      %5026 = vmatpush1.bf16.msra.mxu0 0
      %5027 = vmatprep.subr.bf16.mxu0 0
      %5028 = vmatpush1.bf16.msra.mxu0 %v5013
      %5029 = vmatprep.subr.bf16.mxu0 0
      %5030 = vmatpush1.bf16.msra.mxu0 %v4977
      %5031 = vmatprep.subr.bf16.mxu0 0
      %5032 = vmatpush2.bf16.msra.mxu0 0
      %5033 = vmatprep.subr.bf16.mxu0 0
      %5034 = vmatpush2.bf16.msra.mxu0 0
      %5035 = vmatprep.subr.bf16.mxu0 0
      %5036 = vmatpush2.bf16.msra.mxu0 0
      %5037 = vmatprep.subr.bf16.mxu0 0
      %5038 = vmatpush2.bf16.msra.mxu0 0
      %5039 = vmatprep.subr.bf16.mxu0 0
      %5040 = vmatpush2.bf16.msra.mxu0 0
      %5041 = vmatprep.subr.bf16.mxu0 0
      %5042 = vmatpush2.bf16.msra.mxu0 0
      %5043 = vmatprep.subr.bf16.mxu0 0
      %5044 = vmatpush2.bf16.msra.mxu0 0
      %5045 = vmatprep.subr.bf16.mxu0 0
      %5046 = vmatpush2.bf16.msra.mxu0 0
      %5047 = vmatprep.mubr.bf16.mxu0 0
      %5048 = vmatmul.mubr.bf16.gmra.mxu0 %v4980
      %v5049 = vpop.f32.mrf.mxu0
      %v5050 = vadd.f32 %v4845, %v5049
      %v5051 = vpop.f32.mrf.mxu0
      %v5052 = vpop.f32.mrf.mxu0
      %v5053 = vadd.f32 %v4848, %v5052
      %v5054 = vpop.f32.mrf.mxu0
      %5055 = vmatprep.mubr.bf16.mxu0 0
      %5056 = vmatmul.mubr.bf16.gmra.mxu0 %v4982
      %v5057 = vpop.f32.mrf.mxu0
      %v5058 = vadd.f32 %v4853, %v5057
      %v5059 = vpop.f32.mrf.mxu0
      %v5060 = vpop.f32.mrf.mxu0
      %v5061 = vadd.f32 %v4856, %v5060
      %v5062 = vpop.f32.mrf.mxu0
      %5063 = vmatprep.mubr.bf16.mxu0 0
      %5064 = vmatmul.mubr.bf16.gmra.mxu0 %v4984
      %v5065 = vpop.f32.mrf.mxu0
      %v5066 = vadd.f32 %v4861, %v5065
      %v5067 = vpop.f32.mrf.mxu0
      %v5068 = vpop.f32.mrf.mxu0
      %v5069 = vadd.f32 %v4864, %v5068
      %v5070 = vpop.f32.mrf.mxu0
      %5071 = vmatprep.mubr.bf16.mxu0 0
      %5072 = vmatmul.mubr.bf16.gmra.mxu0 %v4986
      %v5073 = vpop.f32.mrf.mxu0
      %v5074 = vadd.f32 %v4869, %v5073
      %v5075 = vpop.f32.mrf.mxu0
      %v5076 = vpop.f32.mrf.mxu0
      %v5077 = vadd.f32 %v4872, %v5076
      %v5078 = vpop.f32.mrf.mxu0
      %5079 = vmatprep.mubr.bf16.mxu0 0
      %5080 = vmatmul.mubr.bf16.gmra.mxu0 %v4988
      %v5081 = vpop.f32.mrf.mxu0
      %v5082 = vadd.f32 %v4877, %v5081
      %v5083 = vpop.f32.mrf.mxu0
      %v5084 = vpop.f32.mrf.mxu0
      %v5085 = vadd.f32 %v4880, %v5084
      %v5086 = vpop.f32.mrf.mxu0
      %5087 = vmatprep.mubr.bf16.mxu0 0
      %5088 = vmatmul.mubr.bf16.gmra.mxu0 %v4990
      %v5089 = vpop.f32.mrf.mxu0
      %v5090 = vadd.f32 %v4885, %v5089
      %v5091 = vpop.f32.mrf.mxu0
      %v5092 = vpop.f32.mrf.mxu0
      %v5093 = vadd.f32 %v4888, %v5092
      %v5094 = vpop.f32.mrf.mxu0
      %5095 = vmatprep.mubr.bf16.mxu0 0
      %5096 = vmatmul.mubr.bf16.gmra.mxu0 %v4992
      %v5097 = vpop.f32.mrf.mxu0
      %v5098 = vadd.f32 %v4893, %v5097
      %v5099 = vpop.f32.mrf.mxu0
      %v5100 = vpop.f32.mrf.mxu0
      %v5101 = vadd.f32 %v4896, %v5100
      %v5102 = vpop.f32.mrf.mxu0
      %5103 = vmatprep.mubr.bf16.mxu0 0
      %5104 = vmatmul.mubr.bf16.gmra.mxu0 %v4994
      %v5105 = vpop.f32.mrf.mxu0
      %v5106 = vadd.f32 %v4901, %v5105
      %v5107 = vpop.f32.mrf.mxu0
      %v5108 = vpop.f32.mrf.mxu0
      %v5109 = vadd.f32 %v4904, %v5108
      %v5110 = vpop.f32.mrf.mxu0
      %5111 = vmatprep.mubr.bf16.mxu0 0
      %5112 = vmatmul.mubr.bf16.gmra.mxu0 %v4996
      %v5113 = vpop.f32.mrf.mxu0
      %v5114 = vadd.f32 %v4909, %v5113
      %v5115 = vpop.f32.mrf.mxu0
      %v5116 = vpop.f32.mrf.mxu0
      %v5117 = vadd.f32 %v4912, %v5116
      %v5118 = vpop.f32.mrf.mxu0
      %5119 = vmatprep.mubr.bf16.mxu0 0
      %5120 = vmatmul.mubr.bf16.gmra.mxu0 %v4998
      %v5121 = vpop.f32.mrf.mxu0
      %v5122 = vadd.f32 %v4917, %v5121
      %v5123 = vpop.f32.mrf.mxu0
      %v5124 = vpop.f32.mrf.mxu0
      %v5125 = vadd.f32 %v4920, %v5124
      %v5126 = vpop.f32.mrf.mxu0
      %5127 = vmatprep.mubr.bf16.mxu0 0
      %5128 = vmatmul.mubr.bf16.gmra.mxu0 %v5000
      %v5129 = vpop.f32.mrf.mxu0
      %v5130 = vadd.f32 %v4925, %v5129
      %v5131 = vpop.f32.mrf.mxu0
      %v5132 = vpop.f32.mrf.mxu0
      %v5133 = vadd.f32 %v4928, %v5132
      %v5134 = vpop.f32.mrf.mxu0
      %5135 = vmatprep.mubr.bf16.mxu0 0
      %5136 = vmatmul.mubr.bf16.gmra.mxu0 %v5002
      %v5137 = vpop.f32.mrf.mxu0
      %v5138 = vadd.f32 %v4933, %v5137
      %v5139 = vpop.f32.mrf.mxu0
      %v5140 = vpop.f32.mrf.mxu0
      %v5141 = vadd.f32 %v4936, %v5140
      %v5142 = vpop.f32.mrf.mxu0
      %5143 = vmatprep.mubr.bf16.mxu0 0
      %5144 = vmatmul.mubr.bf16.gmra.mxu0 %v5004
      %v5145 = vpop.f32.mrf.mxu0
      %v5146 = vadd.f32 %v4941, %v5145
      %v5147 = vpop.f32.mrf.mxu0
      %v5148 = vpop.f32.mrf.mxu0
      %v5149 = vadd.f32 %v4944, %v5148
      %v5150 = vpop.f32.mrf.mxu0
      %5151 = vmatprep.mubr.bf16.mxu0 0
      %5152 = vmatmul.mubr.bf16.gmra.mxu0 %v5006
      %v5153 = vpop.f32.mrf.mxu0
      %v5154 = vadd.f32 %v4949, %v5153
      %v5155 = vpop.f32.mrf.mxu0
      %v5156 = vpop.f32.mrf.mxu0
      %v5157 = vadd.f32 %v4952, %v5156
      %v5158 = vpop.f32.mrf.mxu0
      %5159 = vmatprep.mubr.bf16.mxu0 0
      %5160 = vmatmul.mubr.bf16.gmra.mxu0 %v5008
      %v5161 = vpop.f32.mrf.mxu0
      %v5162 = vadd.f32 %v4957, %v5161
      %v5163 = vpop.f32.mrf.mxu0
      %v5164 = vpop.f32.mrf.mxu0
      %v5165 = vadd.f32 %v4960, %v5164
      %v5166 = vpop.f32.mrf.mxu0
      %5167 = vmatprep.mubr.bf16.mxu0 0
      %5168 = vmatmul.mubr.bf16.gmra.mxu0 %v5010
      %v5169 = vpop.f32.mrf.mxu0
      %v5170 = vadd.f32 %v4965, %v5169
      %v5171 = vpop.f32.mrf.mxu0
      %v5172 = vpop.f32.mrf.mxu0
      %v5173 = vadd.f32 %v4968, %v5172
      %v5174 = vpop.f32.mrf.mxu0
      %5175 = vdwg.mxu0
      %v5176 = vld [vmem:[#allocation3] sm:$0xe]
      %v5177 = vld [vmem:[#allocation3 + $0xc] sm:$0xe]
      %v5178 = vld [vmem:[#allocation3 + $0x18] sm:$0xe]
      %v5179 = vld [vmem:[#allocation3 + $0x24] sm:$0xe]
      %v5180 = vld [vmem:[#allocation3 + $0x30] sm:$0xe]
      %v5181 = vld [vmem:[#allocation3 + $0x3c] sm:$0xe]
      %v5182 = vld [vmem:[#allocation3 + $0x48] sm:$0xe]
      %v5183 = vld [vmem:[#allocation3 + $0x54] sm:$0xe]
      %v5184 = vld [vmem:[#allocation3 + $0x60] sm:$0xe]
      %v5185 = vld [vmem:[#allocation3 + $0x6c] sm:$0xe]
      %v5186 = vld [vmem:[#allocation3 + $0x78] sm:$0xe]
      %v5187 = vld [vmem:[#allocation3 + $0x84] sm:$0xe]
      %v5188 = vld [vmem:[#allocation3 + $0x90] sm:$0xe]
      %v5189 = vld [vmem:[#allocation3 + $0x9c] sm:$0xe]
      %v5190 = vld [vmem:[#allocation3 + $0xa8] sm:$0xe]
      %v5191 = vld [vmem:[#allocation3 + $0xb4] sm:$0xe]
      %v5192 = vld [vmem:[%s3648] sm:$0xe]
      %v5193 = vld [vmem:[%s3648 + $0xc] sm:$0xe]
      %v5194 = vld [vmem:[%s3648 + $0x18] sm:$0xe]
      %v5195 = vld [vmem:[%s3648 + $0x24] sm:$0xe]
      %v5196 = vld [vmem:[%s3648 + $0x30] sm:$0xe]
      %v5197 = vld [vmem:[%s3648 + $0x3c] sm:$0xe]
      %v5198 = vld [vmem:[%s3648 + $0x48] sm:$0xe]
      %v5199 = vld [vmem:[%s3648 + $0x54] sm:$0xe]
      %v5200 = vld [vmem:[%s3648 + $0x60] sm:$0xe]
      %v5201 = vld [vmem:[%s3648 + $0x6c] sm:$0xe]
      %v5202 = vld [vmem:[%s3648 + $0x78] sm:$0xe]
      %v5203 = vld [vmem:[%s3648 + $0x84] sm:$0xe]
      %v5204 = vld [vmem:[%s3648 + $0x90] sm:$0xe]
      %v5205 = vld [vmem:[%s3648 + $0x9c] sm:$0xe]
      %v5206 = vld [vmem:[%s3648 + $0xa8] sm:$0xe]
      %v5207 = vld [vmem:[%s3648 + $0xb4] sm:$0xe]
      %v5208 = vld [vmem:[%s3827] sm:$0xe]
      %v5209 = vld [vmem:[%s3827 + $0xc] sm:$0xe]
      %v5210 = vld [vmem:[%s3827 + $0x18] sm:$0xe]
      %v5211 = vld [vmem:[%s3827 + $0x24] sm:$0xe]
      %v5212 = vld [vmem:[%s3827 + $0x30] sm:$0xe]
      %v5213 = vld [vmem:[%s3827 + $0x3c] sm:$0xe]
      %v5214 = vld [vmem:[%s3827 + $0x48] sm:$0xe]
      %v5215 = vld [vmem:[%s3827 + $0x54] sm:$0xe]
      %v5216 = vld [vmem:[%s3827 + $0x60] sm:$0xe]
      %v5217 = vld [vmem:[%s3827 + $0x6c] sm:$0xe]
      %v5218 = vld [vmem:[%s3827 + $0x78] sm:$0xe]
      %v5219 = vld [vmem:[%s3827 + $0x84] sm:$0xe]
      %v5220 = vld [vmem:[%s3827 + $0x90] sm:$0xe]
      %v5221 = vld [vmem:[%s3827 + $0x9c] sm:$0xe]
      %v5222 = vld [vmem:[%s3827 + $0xa8] sm:$0xe]
      %v5223 = vld [vmem:[%s3827 + $0xb4] sm:$0xe]
      %v5240 = vunpack.c.l.b16 %v5176
      %v5241 = vunpack.c.l.b16 %v5177
      %v5242 = vunpack.c.l.b16 %v5178
      %v5243 = vunpack.c.l.b16 %v5179
      %v5244 = vunpack.c.l.b16 %v5180
      %v5245 = vunpack.c.l.b16 %v5181
      %v5246 = vunpack.c.l.b16 %v5182
      %v5247 = vunpack.c.l.b16 %v5183
      %v5248 = vunpack.c.l.b16 %v5184
      %v5249 = vunpack.c.l.b16 %v5185
      %v5250 = vunpack.c.l.b16 %v5186
      %v5251 = vunpack.c.l.b16 %v5187
      %v5252 = vunpack.c.l.b16 %v5188
      %v5253 = vunpack.c.l.b16 %v5189
      %v5254 = vunpack.c.l.b16 %v5190
      %v5255 = vunpack.c.l.b16 %v5191
      %v5256 = vpack.c.b16 %v3893, %v5240
      %v5257 = vpack.c.b16 %v3895, %v5241
      %v5258 = vpack.c.b16 %v3897, %v5242
      %v5259 = vpack.c.b16 %v3899, %v5243
      %v5260 = vpack.c.b16 %v3901, %v5244
      %v5261 = vpack.c.b16 %v3903, %v5245
      %v5262 = vpack.c.b16 %v3905, %v5246
      %v5263 = vpack.c.b16 %v3907, %v5247
      %v5264 = vpack.c.b16 %v3909, %v5248
      %v5265 = vpack.c.b16 %v3911, %v5249
      %v5266 = vpack.c.b16 %v3913, %v5250
      %v5267 = vpack.c.b16 %v3915, %v5251
      %v5268 = vpack.c.b16 %v3917, %v5252
      %v5269 = vpack.c.b16 %v3919, %v5253
      %v5270 = vpack.c.b16 %v3921, %v5254
      %v5271 = vpack.c.b16 %v3923, %v5255
      %v5288 = vunpack.c.l.b16 %v5192
      %v5289 = vunpack.c.l.b16 %v5193
      %v5290 = vunpack.c.l.b16 %v5194
      %v5291 = vunpack.c.l.b16 %v5195
      %v5292 = vunpack.c.l.b16 %v5196
      %v5293 = vunpack.c.l.b16 %v5197
      %v5294 = vunpack.c.l.b16 %v5198
      %v5295 = vunpack.c.l.b16 %v5199
      %v5296 = vunpack.c.l.b16 %v5200
      %v5297 = vunpack.c.l.b16 %v5201
      %v5298 = vunpack.c.l.b16 %v5202
      %v5299 = vunpack.c.l.b16 %v5203
      %v5300 = vunpack.c.l.b16 %v5204
      %v5301 = vunpack.c.l.b16 %v5205
      %v5302 = vunpack.c.l.b16 %v5206
      %v5303 = vunpack.c.l.b16 %v5207
      %v5304 = vpack.c.b16 %v3973, %v5288
      %v5305 = vpack.c.b16 %v3975, %v5289
      %v5306 = vpack.c.b16 %v3977, %v5290
      %v5307 = vpack.c.b16 %v3979, %v5291
      %v5308 = vpack.c.b16 %v3981, %v5292
      %v5309 = vpack.c.b16 %v3983, %v5293
      %v5310 = vpack.c.b16 %v3985, %v5294
      %v5311 = vpack.c.b16 %v3987, %v5295
      %v5312 = vpack.c.b16 %v3989, %v5296
      %v5313 = vpack.c.b16 %v3991, %v5297
      %v5314 = vpack.c.b16 %v3993, %v5298
      %v5315 = vpack.c.b16 %v3995, %v5299
      %v5316 = vpack.c.b16 %v3997, %v5300
      %v5317 = vpack.c.b16 %v3999, %v5301
      %v5318 = vpack.c.b16 %v4001, %v5302
      %v5319 = vpack.c.b16 %v4003, %v5303
      %5320 = vrot.lane.b32.xlu0 %v5304, 8
      %v5321 = vpop.permute.xlu0 %5320
      %5322 = vrot.lane.b32.xlu0 %v5305, 8
      %v5323 = vpop.permute.xlu0 %5322
      %5324 = vrot.lane.b32.xlu0 %v5306, 8
      %v5325 = vpop.permute.xlu0 %5324
      %5326 = vrot.lane.b32.xlu0 %v5307, 8
      %v5327 = vpop.permute.xlu0 %5326
      %5328 = vrot.lane.b32.xlu0 %v5308, 8
      %v5329 = vpop.permute.xlu0 %5328
      %5330 = vrot.lane.b32.xlu0 %v5309, 8
      %v5331 = vpop.permute.xlu0 %5330
      %5332 = vrot.lane.b32.xlu0 %v5310, 8
      %v5333 = vpop.permute.xlu0 %5332
      %5334 = vrot.lane.b32.xlu0 %v5311, 8
      %v5335 = vpop.permute.xlu0 %5334
      %5336 = vrot.lane.b32.xlu0 %v5312, 8
      %v5337 = vpop.permute.xlu0 %5336
      %5338 = vrot.lane.b32.xlu0 %v5313, 8
      %v5339 = vpop.permute.xlu0 %5338
      %5340 = vrot.lane.b32.xlu0 %v5314, 8
      %v5341 = vpop.permute.xlu0 %5340
      %5342 = vrot.lane.b32.xlu0 %v5315, 8
      %v5343 = vpop.permute.xlu0 %5342
      %5344 = vrot.lane.b32.xlu0 %v5316, 8
      %v5345 = vpop.permute.xlu0 %5344
      %5346 = vrot.lane.b32.xlu0 %v5317, 8
      %v5347 = vpop.permute.xlu0 %5346
      %5348 = vrot.lane.b32.xlu0 %v5318, 8
      %v5349 = vpop.permute.xlu0 %5348
      %5350 = vrot.lane.b32.xlu0 %v5319, 8
      %v5351 = vpop.permute.xlu0 %5350
      %v5368 = vunpack.c.l.b16 %v5208
      %v5369 = vunpack.c.l.b16 %v5209
      %v5370 = vunpack.c.l.b16 %v5210
      %v5371 = vunpack.c.l.b16 %v5211
      %v5372 = vunpack.c.l.b16 %v5212
      %v5373 = vunpack.c.l.b16 %v5213
      %v5374 = vunpack.c.l.b16 %v5214
      %v5375 = vunpack.c.l.b16 %v5215
      %v5376 = vunpack.c.l.b16 %v5216
      %v5377 = vunpack.c.l.b16 %v5217
      %v5378 = vunpack.c.l.b16 %v5218
      %v5379 = vunpack.c.l.b16 %v5219
      %v5380 = vunpack.c.l.b16 %v5220
      %v5381 = vunpack.c.l.b16 %v5221
      %v5382 = vunpack.c.l.b16 %v5222
      %v5383 = vunpack.c.l.b16 %v5223
      %v5384 = vpack.c.b16 %v4085, %v5368
      %v5385 = vpack.c.b16 %v4087, %v5369
      %v5386 = vpack.c.b16 %v4089, %v5370
      %v5387 = vpack.c.b16 %v4091, %v5371
      %v5388 = vpack.c.b16 %v4093, %v5372
      %v5389 = vpack.c.b16 %v4095, %v5373
      %v5390 = vpack.c.b16 %v4097, %v5374
      %v5391 = vpack.c.b16 %v4099, %v5375
      %v5392 = vpack.c.b16 %v4101, %v5376
      %v5393 = vpack.c.b16 %v4103, %v5377
      %v5394 = vpack.c.b16 %v4105, %v5378
      %v5395 = vpack.c.b16 %v4107, %v5379
      %v5396 = vpack.c.b16 %v4109, %v5380
      %v5397 = vpack.c.b16 %v4111, %v5381
      %v5398 = vpack.c.b16 %v4113, %v5382
      %v5399 = vpack.c.b16 %v4115, %v5383
      %5400 = vrot.lane.b32.xlu0 %v5384, 16
      %v5401 = vpop.permute.xlu0 %5400
      %5402 = vrot.lane.b32.xlu0 %v5385, 16
      %v5403 = vpop.permute.xlu0 %5402
      %5404 = vrot.lane.b32.xlu0 %v5386, 16
      %v5405 = vpop.permute.xlu0 %5404
      %5406 = vrot.lane.b32.xlu0 %v5387, 16
      %v5407 = vpop.permute.xlu0 %5406
      %5408 = vrot.lane.b32.xlu0 %v5388, 16
      %v5409 = vpop.permute.xlu0 %5408
      %5410 = vrot.lane.b32.xlu0 %v5389, 16
      %v5411 = vpop.permute.xlu0 %5410
      %5412 = vrot.lane.b32.xlu0 %v5390, 16
      %v5413 = vpop.permute.xlu0 %5412
      %5414 = vrot.lane.b32.xlu0 %v5391, 16
      %v5415 = vpop.permute.xlu0 %5414
      %5416 = vrot.lane.b32.xlu0 %v5392, 16
      %v5417 = vpop.permute.xlu0 %5416
      %5418 = vrot.lane.b32.xlu0 %v5393, 16
      %v5419 = vpop.permute.xlu0 %5418
      %5420 = vrot.lane.b32.xlu0 %v5394, 16
      %v5421 = vpop.permute.xlu0 %5420
      %5422 = vrot.lane.b32.xlu0 %v5395, 16
      %v5423 = vpop.permute.xlu0 %5422
      %5424 = vrot.lane.b32.xlu0 %v5396, 16
      %v5425 = vpop.permute.xlu0 %5424
      %5426 = vrot.lane.b32.xlu0 %v5397, 16
      %v5427 = vpop.permute.xlu0 %5426
      %5428 = vrot.lane.b32.xlu0 %v5398, 16
      %v5429 = vpop.permute.xlu0 %5428
      %5430 = vrot.lane.b32.xlu0 %v5399, 16
      %v5431 = vpop.permute.xlu0 %5430
      %v5434 = vsel %vm1537, %v5256, %v5321
      %v5437 = vsel %vm1537, %v5257, %v5323
      %v5440 = vsel %vm1537, %v5258, %v5325
      %v5443 = vsel %vm1537, %v5259, %v5327
      %v5446 = vsel %vm1537, %v5260, %v5329
      %v5449 = vsel %vm1537, %v5261, %v5331
      %v5452 = vsel %vm1537, %v5262, %v5333
      %v5455 = vsel %vm1537, %v5263, %v5335
      %v5458 = vsel %vm1537, %v5264, %v5337
      %v5461 = vsel %vm1537, %v5265, %v5339
      %v5464 = vsel %vm1537, %v5266, %v5341
      %v5467 = vsel %vm1537, %v5267, %v5343
      %v5470 = vsel %vm1537, %v5268, %v5345
      %v5473 = vsel %vm1537, %v5269, %v5347
      %v5476 = vsel %vm1537, %v5270, %v5349
      %v5479 = vsel %vm1537, %v5271, %v5351
      %v5481 = vsel %vm4212, %v5434, %v5401
      %v5483 = vsel %vm4212, %v5437, %v5403
      %v5485 = vsel %vm4212, %v5440, %v5405
      %v5487 = vsel %vm4212, %v5443, %v5407
      %v5489 = vsel %vm4212, %v5446, %v5409
      %v5491 = vsel %vm4212, %v5449, %v5411
      %v5493 = vsel %vm4212, %v5452, %v5413
      %v5495 = vsel %vm4212, %v5455, %v5415
      %v5497 = vsel %vm4212, %v5458, %v5417
      %v5499 = vsel %vm4212, %v5461, %v5419
      %v5501 = vsel %vm4212, %v5464, %v5421
      %v5503 = vsel %vm4212, %v5467, %v5423
      %v5505 = vsel %vm4212, %v5470, %v5425
      %v5507 = vsel %vm4212, %v5473, %v5427
      %v5509 = vsel %vm4212, %v5476, %v5429
      %v5511 = vsel %vm4212, %v5479, %v5431
      %v5544 = vrot.slane %v5481, 1
      %v5545 = vrot.slane %v4553, 1
      %v5546 = vsel %vm2860, %v5544, %v5545
      %v5547 = vrot.slane %v5483, 1
      %v5548 = vrot.slane %v4555, 1
      %v5549 = vsel %vm2860, %v5547, %v5548
      %v5550 = vrot.slane %v5485, 1
      %v5551 = vrot.slane %v4557, 1
      %v5552 = vsel %vm2860, %v5550, %v5551
      %v5553 = vrot.slane %v5487, 1
      %v5554 = vrot.slane %v4559, 1
      %v5555 = vsel %vm2860, %v5553, %v5554
      %v5556 = vrot.slane %v5489, 1
      %v5557 = vrot.slane %v4561, 1
      %v5558 = vsel %vm2860, %v5556, %v5557
      %v5559 = vrot.slane %v5491, 1
      %v5560 = vrot.slane %v4563, 1
      %v5561 = vsel %vm2860, %v5559, %v5560
      %v5562 = vrot.slane %v5493, 1
      %v5563 = vrot.slane %v4565, 1
      %v5564 = vsel %vm2860, %v5562, %v5563
      %v5565 = vrot.slane %v5495, 1
      %v5566 = vrot.slane %v4567, 1
      %v5567 = vsel %vm2860, %v5565, %v5566
      %v5568 = vrot.slane %v5497, 1
      %v5569 = vrot.slane %v4569, 1
      %v5570 = vsel %vm2860, %v5568, %v5569
      %v5571 = vrot.slane %v5499, 1
      %v5572 = vrot.slane %v4571, 1
      %v5573 = vsel %vm2860, %v5571, %v5572
      %v5574 = vrot.slane %v5501, 1
      %v5575 = vrot.slane %v4573, 1
      %v5576 = vsel %vm2860, %v5574, %v5575
      %v5577 = vrot.slane %v5503, 1
      %v5578 = vrot.slane %v4575, 1
      %v5579 = vsel %vm2860, %v5577, %v5578
      %v5580 = vrot.slane %v5505, 1
      %v5581 = vrot.slane %v4577, 1
      %v5582 = vsel %vm2860, %v5580, %v5581
      %v5583 = vrot.slane %v5507, 1
      %v5584 = vrot.slane %v4579, 1
      %v5585 = vsel %vm2860, %v5583, %v5584
      %v5586 = vrot.slane %v5509, 1
      %v5587 = vrot.slane %v4581, 1
      %v5588 = vsel %vm2860, %v5586, %v5587
      %v5589 = vrot.slane %v5511, 1
      %v5590 = vrot.slane %v4583, 1
      %v5591 = vsel %vm2860, %v5589, %v5590
      %s5592 = scalar_lea.vmem %s3, 24
      %v5593 = vld [vmem:[%s5592] sm:$0xf]
      %v5594 = vld [vmem:[%s5592 + $0x4] sm:$0xf]
      %v5595 = vld [vmem:[%s5592 + $0x8] sm:$0xf]
      %v5599 = vunpack.c.l.b16 %v5593
      %v5600 = vunpack.c.l.b16 %v5594
      %v5601 = vunpack.c.l.b16 %v5595
      %v5602 = vpack.c.b16 %v5600, %v5599
      %v5603 = vpack.c.b16 %v5601, %v5601
      %v5606 = vsel %vm4757, %v5546, 0
      %v5609 = vsel %vm4757, %v5549, 0
      %v5612 = vsel %vm4757, %v5552, 0
      %v5615 = vsel %vm4757, %v5555, 0
      %v5618 = vsel %vm4757, %v5558, 0
      %v5621 = vsel %vm4757, %v5561, 0
      %v5624 = vsel %vm4757, %v5564, 0
      %v5627 = vsel %vm4757, %v5567, 0
      %v5630 = vsel %vm4757, %v5570, 0
      %v5633 = vsel %vm4757, %v5573, 0
      %v5636 = vsel %vm4757, %v5576, 0
      %v5639 = vsel %vm4757, %v5579, 0
      %v5642 = vsel %vm4757, %v5582, 0
      %v5645 = vsel %vm4757, %v5585, 0
      %v5648 = vsel %vm4757, %v5588, 0
      %v5651 = vsel %vm4757, %v5591, 0
      %v5654 = vsel %vm4806, %v5603, 0
      %5656 = vmatprep.subr.bf16.mxu0 0
      %5657 = vmatpush1.bf16.msra.mxu0 0
      %5658 = vmatprep.subr.bf16.mxu0 0
      %5659 = vmatpush1.bf16.msra.mxu0 0
      %5660 = vmatprep.subr.bf16.mxu0 0
      %5661 = vmatpush1.bf16.msra.mxu0 0
      %5662 = vmatprep.subr.bf16.mxu0 0
      %5663 = vmatpush1.bf16.msra.mxu0 0
      %5664 = vmatprep.subr.bf16.mxu0 0
      %5665 = vmatpush1.bf16.msra.mxu0 0
      %5666 = vmatprep.subr.bf16.mxu0 0
      %5667 = vmatpush1.bf16.msra.mxu0 0
      %5668 = vmatprep.subr.bf16.mxu0 0
      %5669 = vmatpush1.bf16.msra.mxu0 %v5654
      %5670 = vmatprep.subr.bf16.mxu0 0
      %5671 = vmatpush1.bf16.msra.mxu0 %v5602
      %5672 = vmatprep.subr.bf16.mxu0 0
      %5673 = vmatpush2.bf16.msra.mxu0 0
      %5674 = vmatprep.subr.bf16.mxu0 0
      %5675 = vmatpush2.bf16.msra.mxu0 0
      %5676 = vmatprep.subr.bf16.mxu0 0
      %5677 = vmatpush2.bf16.msra.mxu0 0
      %5678 = vmatprep.subr.bf16.mxu0 0
      %5679 = vmatpush2.bf16.msra.mxu0 0
      %5680 = vmatprep.subr.bf16.mxu0 0
      %5681 = vmatpush2.bf16.msra.mxu0 0
      %5682 = vmatprep.subr.bf16.mxu0 0
      %5683 = vmatpush2.bf16.msra.mxu0 0
      %5684 = vmatprep.subr.bf16.mxu0 0
      %5685 = vmatpush2.bf16.msra.mxu0 0
      %5686 = vmatprep.subr.bf16.mxu0 0
      %5687 = vmatpush2.bf16.msra.mxu0 0
      %5688 = vmatprep.mubr.bf16.mxu0 0
      %5689 = vmatmul.mubr.bf16.gmra.mxu0 %v5606
      %v5690 = vpop.f32.mrf.mxu0
      %v5691 = vadd.f32 0.0, %v5690
      %v5692 = vpop.f32.mrf.mxu0
      %v5693 = vpop.f32.mrf.mxu0
      %v5694 = vadd.f32 0.0, %v5693
      %v5695 = vpop.f32.mrf.mxu0
      %5696 = vmatprep.mubr.bf16.mxu0 0
      %5697 = vmatmul.mubr.bf16.gmra.mxu0 %v5609
      %v5698 = vpop.f32.mrf.mxu0
      %v5699 = vadd.f32 0.0, %v5698
      %v5700 = vpop.f32.mrf.mxu0
      %v5701 = vpop.f32.mrf.mxu0
      %v5702 = vadd.f32 0.0, %v5701
      %v5703 = vpop.f32.mrf.mxu0
      %5704 = vmatprep.mubr.bf16.mxu0 0
      %5705 = vmatmul.mubr.bf16.gmra.mxu0 %v5612
      %v5706 = vpop.f32.mrf.mxu0
      %v5707 = vadd.f32 0.0, %v5706
      %v5708 = vpop.f32.mrf.mxu0
      %v5709 = vpop.f32.mrf.mxu0
      %v5710 = vadd.f32 0.0, %v5709
      %v5711 = vpop.f32.mrf.mxu0
      %5712 = vmatprep.mubr.bf16.mxu0 0
      %5713 = vmatmul.mubr.bf16.gmra.mxu0 %v5615
      %v5714 = vpop.f32.mrf.mxu0
      %v5715 = vadd.f32 0.0, %v5714
      %v5716 = vpop.f32.mrf.mxu0
      %v5717 = vpop.f32.mrf.mxu0
      %v5718 = vadd.f32 0.0, %v5717
      %v5719 = vpop.f32.mrf.mxu0
      %5720 = vmatprep.mubr.bf16.mxu0 0
      %5721 = vmatmul.mubr.bf16.gmra.mxu0 %v5618
      %v5722 = vpop.f32.mrf.mxu0
      %v5723 = vadd.f32 0.0, %v5722
      %v5724 = vpop.f32.mrf.mxu0
      %v5725 = vpop.f32.mrf.mxu0
      %v5726 = vadd.f32 0.0, %v5725
      %v5727 = vpop.f32.mrf.mxu0
      %5728 = vmatprep.mubr.bf16.mxu0 0
      %5729 = vmatmul.mubr.bf16.gmra.mxu0 %v5621
      %v5730 = vpop.f32.mrf.mxu0
      %v5731 = vadd.f32 0.0, %v5730
      %v5732 = vpop.f32.mrf.mxu0
      %v5733 = vpop.f32.mrf.mxu0
      %v5734 = vadd.f32 0.0, %v5733
      %v5735 = vpop.f32.mrf.mxu0
      %5736 = vmatprep.mubr.bf16.mxu0 0
      %5737 = vmatmul.mubr.bf16.gmra.mxu0 %v5624
      %v5738 = vpop.f32.mrf.mxu0
      %v5739 = vadd.f32 0.0, %v5738
      %v5740 = vpop.f32.mrf.mxu0
      %v5741 = vpop.f32.mrf.mxu0
      %v5742 = vadd.f32 0.0, %v5741
      %v5743 = vpop.f32.mrf.mxu0
      %5744 = vmatprep.mubr.bf16.mxu0 0
      %5745 = vmatmul.mubr.bf16.gmra.mxu0 %v5627
      %v5746 = vpop.f32.mrf.mxu0
      %v5747 = vadd.f32 0.0, %v5746
      %v5748 = vpop.f32.mrf.mxu0
      %v5749 = vpop.f32.mrf.mxu0
      %v5750 = vadd.f32 0.0, %v5749
      %v5751 = vpop.f32.mrf.mxu0
      %5752 = vmatprep.mubr.bf16.mxu0 0
      %5753 = vmatmul.mubr.bf16.gmra.mxu0 %v5630
      %v5754 = vpop.f32.mrf.mxu0
      %v5755 = vadd.f32 0.0, %v5754
      %v5756 = vpop.f32.mrf.mxu0
      %v5757 = vpop.f32.mrf.mxu0
      %v5758 = vadd.f32 0.0, %v5757
      %v5759 = vpop.f32.mrf.mxu0
      %5760 = vmatprep.mubr.bf16.mxu0 0
      %5761 = vmatmul.mubr.bf16.gmra.mxu0 %v5633
      %v5762 = vpop.f32.mrf.mxu0
      %v5763 = vadd.f32 0.0, %v5762
      %v5764 = vpop.f32.mrf.mxu0
      %v5765 = vpop.f32.mrf.mxu0
      %v5766 = vadd.f32 0.0, %v5765
      %v5767 = vpop.f32.mrf.mxu0
      %5768 = vmatprep.mubr.bf16.mxu0 0
      %5769 = vmatmul.mubr.bf16.gmra.mxu0 %v5636
      %v5770 = vpop.f32.mrf.mxu0
      %v5771 = vadd.f32 0.0, %v5770
      %v5772 = vpop.f32.mrf.mxu0
      %v5773 = vpop.f32.mrf.mxu0
      %v5774 = vadd.f32 0.0, %v5773
      %v5775 = vpop.f32.mrf.mxu0
      %5776 = vmatprep.mubr.bf16.mxu0 0
      %5777 = vmatmul.mubr.bf16.gmra.mxu0 %v5639
      %v5778 = vpop.f32.mrf.mxu0
      %v5779 = vadd.f32 0.0, %v5778
      %v5780 = vpop.f32.mrf.mxu0
      %v5781 = vpop.f32.mrf.mxu0
      %v5782 = vadd.f32 0.0, %v5781
      %v5783 = vpop.f32.mrf.mxu0
      %5784 = vmatprep.mubr.bf16.mxu0 0
      %5785 = vmatmul.mubr.bf16.gmra.mxu0 %v5642
      %v5786 = vpop.f32.mrf.mxu0
      %v5787 = vadd.f32 0.0, %v5786
      %v5788 = vpop.f32.mrf.mxu0
      %v5789 = vpop.f32.mrf.mxu0
      %v5790 = vadd.f32 0.0, %v5789
      %v5791 = vpop.f32.mrf.mxu0
      %5792 = vmatprep.mubr.bf16.mxu0 0
      %5793 = vmatmul.mubr.bf16.gmra.mxu0 %v5645
      %v5794 = vpop.f32.mrf.mxu0
      %v5795 = vadd.f32 0.0, %v5794
      %v5796 = vpop.f32.mrf.mxu0
      %v5797 = vpop.f32.mrf.mxu0
      %v5798 = vadd.f32 0.0, %v5797
      %v5799 = vpop.f32.mrf.mxu0
      %5800 = vmatprep.mubr.bf16.mxu0 0
      %5801 = vmatmul.mubr.bf16.gmra.mxu0 %v5648
      %v5802 = vpop.f32.mrf.mxu0
      %v5803 = vadd.f32 0.0, %v5802
      %v5804 = vpop.f32.mrf.mxu0
      %v5805 = vpop.f32.mrf.mxu0
      %v5806 = vadd.f32 0.0, %v5805
      %v5807 = vpop.f32.mrf.mxu0
      %5808 = vmatprep.mubr.bf16.mxu0 0
      %5809 = vmatmul.mubr.bf16.gmra.mxu0 %v5651
      %v5810 = vpop.f32.mrf.mxu0
      %v5811 = vadd.f32 0.0, %v5810
      %v5812 = vpop.f32.mrf.mxu0
      %v5813 = vpop.f32.mrf.mxu0
      %v5814 = vadd.f32 0.0, %v5813
      %v5815 = vpop.f32.mrf.mxu0
      %5816 = vdwg.mxu0
      %v5817 = vadd.f32 %v5050, %v5691
      %v5818 = vadd.f32 %v5053, %v5694
      %v5819 = vadd.f32 %v5058, %v5699
      %v5820 = vadd.f32 %v5061, %v5702
      %v5821 = vadd.f32 %v5066, %v5707
      %v5822 = vadd.f32 %v5069, %v5710
      %v5823 = vadd.f32 %v5074, %v5715
      %v5824 = vadd.f32 %v5077, %v5718
      %v5825 = vadd.f32 %v5082, %v5723
      %v5826 = vadd.f32 %v5085, %v5726
      %v5827 = vadd.f32 %v5090, %v5731
      %v5828 = vadd.f32 %v5093, %v5734
      %v5829 = vadd.f32 %v5098, %v5739
      %v5830 = vadd.f32 %v5101, %v5742
      %v5831 = vadd.f32 %v5106, %v5747
      %v5832 = vadd.f32 %v5109, %v5750
      %v5833 = vadd.f32 %v5114, %v5755
      %v5834 = vadd.f32 %v5117, %v5758
      %v5835 = vadd.f32 %v5122, %v5763
      %v5836 = vadd.f32 %v5125, %v5766
      %v5837 = vadd.f32 %v5130, %v5771
      %v5838 = vadd.f32 %v5133, %v5774
      %v5839 = vadd.f32 %v5138, %v5779
      %v5840 = vadd.f32 %v5141, %v5782
      %v5841 = vadd.f32 %v5146, %v5787
      %v5842 = vadd.f32 %v5149, %v5790
      %v5843 = vadd.f32 %v5154, %v5795
      %v5844 = vadd.f32 %v5157, %v5798
      %v5845 = vadd.f32 %v5162, %v5803
      %v5846 = vadd.f32 %v5165, %v5806
      %v5847 = vadd.f32 %v5170, %v5811
      %v5848 = vadd.f32 %v5173, %v5814
      %v5849 = vld [vmem:[%s4] sm:$0x1]
      %v5851 = vlaneseq
      %v5852 = vshrl.u32 %v5851, 7
      %v5853 = vsub.s32 0, %v5852
      %v5854 = vrot.slane %v5849, %v5853
      %v5856 = vadd.f32 %v5817, %v5854
      %v5857 = vadd.f32 %v5818, %v5854
      %v5858 = vadd.f32 %v5819, %v5854
      %v5859 = vadd.f32 %v5820, %v5854
      %v5860 = vadd.f32 %v5821, %v5854
      %v5861 = vadd.f32 %v5822, %v5854
      %v5862 = vadd.f32 %v5823, %v5854
      %v5863 = vadd.f32 %v5824, %v5854
      %v5864 = vadd.f32 %v5825, %v5854
      %v5865 = vadd.f32 %v5826, %v5854
      %v5866 = vadd.f32 %v5827, %v5854
      %v5867 = vadd.f32 %v5828, %v5854
      %v5868 = vadd.f32 %v5829, %v5854
      %v5869 = vadd.f32 %v5830, %v5854
      %v5870 = vadd.f32 %v5831, %v5854
      %v5871 = vadd.f32 %v5832, %v5854
      %v5872 = vadd.f32 %v5833, %v5854
      %v5873 = vadd.f32 %v5834, %v5854
      %v5874 = vadd.f32 %v5835, %v5854
      %v5875 = vadd.f32 %v5836, %v5854
      %v5876 = vadd.f32 %v5837, %v5854
      %v5877 = vadd.f32 %v5838, %v5854
      %v5878 = vadd.f32 %v5839, %v5854
      %v5879 = vadd.f32 %v5840, %v5854
      %v5880 = vadd.f32 %v5841, %v5854
      %v5881 = vadd.f32 %v5842, %v5854
      %v5882 = vadd.f32 %v5843, %v5854
      %v5883 = vadd.f32 %v5844, %v5854
      %v5884 = vadd.f32 %v5845, %v5854
      %v5885 = vadd.f32 %v5846, %v5854
      %v5886 = vadd.f32 %v5847, %v5854
      %v5887 = vadd.f32 %v5848, %v5854
      %v5888 = vld [vmem:[%s972] sm:$0x2]
      %v5889 = vld [vmem:[%s972 + $0xc] sm:$0x2]
      %v5890 = vld [vmem:[%s972 + $0x18] sm:$0x2]
      %v5891 = vld [vmem:[%s972 + $0x24] sm:$0x2]
      %v5892 = vld [vmem:[%s972 + $0x30] sm:$0x2]
      %v5893 = vld [vmem:[%s972 + $0x3c] sm:$0x2]
      %v5894 = vld [vmem:[%s972 + $0x48] sm:$0x2]
      %v5895 = vld [vmem:[%s972 + $0x54] sm:$0x2]
      %v5896 = vld [vmem:[%s972 + $0x60] sm:$0x2]
      %v5897 = vld [vmem:[%s972 + $0x6c] sm:$0x2]
      %v5898 = vld [vmem:[%s972 + $0x78] sm:$0x2]
      %v5899 = vld [vmem:[%s972 + $0x84] sm:$0x2]
      %v5900 = vld [vmem:[%s972 + $0x90] sm:$0x2]
      %v5901 = vld [vmem:[%s972 + $0x9c] sm:$0x2]
      %v5902 = vld [vmem:[%s972 + $0xa8] sm:$0x2]
      %v5903 = vld [vmem:[%s972 + $0xb4] sm:$0x2]
      %v5920 = vrot.slane %v5888, 5
      %v5921 = vrot.slane %v5920, 4
      %v5922 = vrot.slane %v5889, 5
      %v5923 = vrot.slane %v5922, 4
      %v5924 = vrot.slane %v5890, 5
      %v5925 = vrot.slane %v5924, 4
      %v5926 = vrot.slane %v5891, 5
      %v5927 = vrot.slane %v5926, 4
      %v5928 = vrot.slane %v5892, 5
      %v5929 = vrot.slane %v5928, 4
      %v5930 = vrot.slane %v5893, 5
      %v5931 = vrot.slane %v5930, 4
      %v5932 = vrot.slane %v5894, 5
      %v5933 = vrot.slane %v5932, 4
      %v5934 = vrot.slane %v5895, 5
      %v5935 = vrot.slane %v5934, 4
      %v5936 = vrot.slane %v5896, 5
      %v5937 = vrot.slane %v5936, 4
      %v5938 = vrot.slane %v5897, 5
      %v5939 = vrot.slane %v5938, 4
      %v5940 = vrot.slane %v5898, 5
      %v5941 = vrot.slane %v5940, 4
      %v5942 = vrot.slane %v5899, 5
      %v5943 = vrot.slane %v5942, 4
      %v5944 = vrot.slane %v5900, 5
      %v5945 = vrot.slane %v5944, 4
      %v5946 = vrot.slane %v5901, 5
      %v5947 = vrot.slane %v5946, 4
      %v5948 = vrot.slane %v5902, 5
      %v5949 = vrot.slane %v5948, 4
      %v5950 = vrot.slane %v5903, 5
      %v5951 = vrot.slane %v5950, 4
      %v5968 = vld [vmem:[%s972] sm:$0x1]
      %v5969 = vsel %vm323, %v5921, %v5968
      %5970 = vst [vmem:[%s972] sm:$0x1] %v5969
      %v5971 = vld [vmem:[%s972 + $0xc] sm:$0x1]
      %v5972 = vsel %vm323, %v5923, %v5971
      %5973 = vst [vmem:[%s972 + $0xc] sm:$0x1] %v5972
      %v5974 = vld [vmem:[%s972 + $0x18] sm:$0x1]
      %v5975 = vsel %vm323, %v5925, %v5974
      %5976 = vst [vmem:[%s972 + $0x18] sm:$0x1] %v5975
      %v5977 = vld [vmem:[%s972 + $0x24] sm:$0x1]
      %v5978 = vsel %vm323, %v5927, %v5977
      %5979 = vst [vmem:[%s972 + $0x24] sm:$0x1] %v5978
      %v5980 = vld [vmem:[%s972 + $0x30] sm:$0x1]
      %v5981 = vsel %vm323, %v5929, %v5980
      %5982 = vst [vmem:[%s972 + $0x30] sm:$0x1] %v5981
      %v5983 = vld [vmem:[%s972 + $0x3c] sm:$0x1]
      %v5984 = vsel %vm323, %v5931, %v5983
      %5985 = vst [vmem:[%s972 + $0x3c] sm:$0x1] %v5984
      %v5986 = vld [vmem:[%s972 + $0x48] sm:$0x1]
      %v5987 = vsel %vm323, %v5933, %v5986
      %5988 = vst [vmem:[%s972 + $0x48] sm:$0x1] %v5987
      %v5989 = vld [vmem:[%s972 + $0x54] sm:$0x1]
      %v5990 = vsel %vm323, %v5935, %v5989
      %5991 = vst [vmem:[%s972 + $0x54] sm:$0x1] %v5990
      %v5992 = vld [vmem:[%s972 + $0x60] sm:$0x1]
      %v5993 = vsel %vm323, %v5937, %v5992
      %5994 = vst [vmem:[%s972 + $0x60] sm:$0x1] %v5993
      %v5995 = vld [vmem:[%s972 + $0x6c] sm:$0x1]
      %v5996 = vsel %vm323, %v5939, %v5995
      %5997 = vst [vmem:[%s972 + $0x6c] sm:$0x1] %v5996
      %v5998 = vld [vmem:[%s972 + $0x78] sm:$0x1]
      %v5999 = vsel %vm323, %v5941, %v5998
      %6000 = vst [vmem:[%s972 + $0x78] sm:$0x1] %v5999
      %v6001 = vld [vmem:[%s972 + $0x84] sm:$0x1]
      %v6002 = vsel %vm323, %v5943, %v6001
      %6003 = vst [vmem:[%s972 + $0x84] sm:$0x1] %v6002
      %v6004 = vld [vmem:[%s972 + $0x90] sm:$0x1]
      %v6005 = vsel %vm323, %v5945, %v6004
      %6006 = vst [vmem:[%s972 + $0x90] sm:$0x1] %v6005
      %v6007 = vld [vmem:[%s972 + $0x9c] sm:$0x1]
      %v6008 = vsel %vm323, %v5947, %v6007
      %6009 = vst [vmem:[%s972 + $0x9c] sm:$0x1] %v6008
      %v6010 = vld [vmem:[%s972 + $0xa8] sm:$0x1]
      %v6011 = vsel %vm323, %v5949, %v6010
      %6012 = vst [vmem:[%s972 + $0xa8] sm:$0x1] %v6011
      %v6013 = vld [vmem:[%s972 + $0xb4] sm:$0x1]
      %v6014 = vsel %vm323, %v5951, %v6013
      %6015 = vst [vmem:[%s972 + $0xb4] sm:$0x1] %v6014
      %v6016 = vld [vmem:[%s972 + $0x4] sm:$0x8]
      %v6017 = vld [vmem:[%s972 + $0x10] sm:$0x8]
      %v6018 = vld [vmem:[%s972 + $0x1c] sm:$0x8]
      %v6019 = vld [vmem:[%s972 + $0x28] sm:$0x8]
      %v6020 = vld [vmem:[%s972 + $0x34] sm:$0x8]
      %v6021 = vld [vmem:[%s972 + $0x40] sm:$0x8]
      %v6022 = vld [vmem:[%s972 + $0x4c] sm:$0x8]
      %v6023 = vld [vmem:[%s972 + $0x58] sm:$0x8]
      %v6024 = vld [vmem:[%s972 + $0x64] sm:$0x8]
      %v6025 = vld [vmem:[%s972 + $0x70] sm:$0x8]
      %v6026 = vld [vmem:[%s972 + $0x7c] sm:$0x8]
      %v6027 = vld [vmem:[%s972 + $0x88] sm:$0x8]
      %v6028 = vld [vmem:[%s972 + $0x94] sm:$0x8]
      %v6029 = vld [vmem:[%s972 + $0xa0] sm:$0x8]
      %v6030 = vld [vmem:[%s972 + $0xac] sm:$0x8]
      %v6031 = vld [vmem:[%s972 + $0xb8] sm:$0x8]
      %v6048 = vrot.slane %v6016, 7
      %v6049 = vrot.slane %v6048, 4
      %v6050 = vrot.slane %v6017, 7
      %v6051 = vrot.slane %v6050, 4
      %v6052 = vrot.slane %v6018, 7
      %v6053 = vrot.slane %v6052, 4
      %v6054 = vrot.slane %v6019, 7
      %v6055 = vrot.slane %v6054, 4
      %v6056 = vrot.slane %v6020, 7
      %v6057 = vrot.slane %v6056, 4
      %v6058 = vrot.slane %v6021, 7
      %v6059 = vrot.slane %v6058, 4
      %v6060 = vrot.slane %v6022, 7
      %v6061 = vrot.slane %v6060, 4
      %v6062 = vrot.slane %v6023, 7
      %v6063 = vrot.slane %v6062, 4
      %v6064 = vrot.slane %v6024, 7
      %v6065 = vrot.slane %v6064, 4
      %v6066 = vrot.slane %v6025, 7
      %v6067 = vrot.slane %v6066, 4
      %v6068 = vrot.slane %v6026, 7
      %v6069 = vrot.slane %v6068, 4
      %v6070 = vrot.slane %v6027, 7
      %v6071 = vrot.slane %v6070, 4
      %v6072 = vrot.slane %v6028, 7
      %v6073 = vrot.slane %v6072, 4
      %v6074 = vrot.slane %v6029, 7
      %v6075 = vrot.slane %v6074, 4
      %v6076 = vrot.slane %v6030, 7
      %v6077 = vrot.slane %v6076, 4
      %v6078 = vrot.slane %v6031, 7
      %v6079 = vrot.slane %v6078, 4
      %v6096 = vld [vmem:[%s972 + $0x8] sm:$0x1]
      %v6097 = vsel %vm379, %v6049, %v6096
      %6098 = vst [vmem:[%s972 + $0x8] sm:$0x1] %v6097
      %v6099 = vld [vmem:[%s972 + $0x14] sm:$0x1]
      %v6100 = vsel %vm379, %v6051, %v6099
      %6101 = vst [vmem:[%s972 + $0x14] sm:$0x1] %v6100
      %v6102 = vld [vmem:[%s972 + $0x20] sm:$0x1]
      %v6103 = vsel %vm379, %v6053, %v6102
      %6104 = vst [vmem:[%s972 + $0x20] sm:$0x1] %v6103
      %v6105 = vld [vmem:[%s972 + $0x2c] sm:$0x1]
      %v6106 = vsel %vm379, %v6055, %v6105
      %6107 = vst [vmem:[%s972 + $0x2c] sm:$0x1] %v6106
      %v6108 = vld [vmem:[%s972 + $0x38] sm:$0x1]
      %v6109 = vsel %vm379, %v6057, %v6108
      %6110 = vst [vmem:[%s972 + $0x38] sm:$0x1] %v6109
      %v6111 = vld [vmem:[%s972 + $0x44] sm:$0x1]
      %v6112 = vsel %vm379, %v6059, %v6111
      %6113 = vst [vmem:[%s972 + $0x44] sm:$0x1] %v6112
      %v6114 = vld [vmem:[%s972 + $0x50] sm:$0x1]
      %v6115 = vsel %vm379, %v6061, %v6114
      %6116 = vst [vmem:[%s972 + $0x50] sm:$0x1] %v6115
      %v6117 = vld [vmem:[%s972 + $0x5c] sm:$0x1]
      %v6118 = vsel %vm379, %v6063, %v6117
      %6119 = vst [vmem:[%s972 + $0x5c] sm:$0x1] %v6118
      %v6120 = vld [vmem:[%s972 + $0x68] sm:$0x1]
      %v6121 = vsel %vm379, %v6065, %v6120
      %6122 = vst [vmem:[%s972 + $0x68] sm:$0x1] %v6121
      %v6123 = vld [vmem:[%s972 + $0x74] sm:$0x1]
      %v6124 = vsel %vm379, %v6067, %v6123
      %6125 = vst [vmem:[%s972 + $0x74] sm:$0x1] %v6124
      %v6126 = vld [vmem:[%s972 + $0x80] sm:$0x1]
      %v6127 = vsel %vm379, %v6069, %v6126
      %6128 = vst [vmem:[%s972 + $0x80] sm:$0x1] %v6127
      %v6129 = vld [vmem:[%s972 + $0x8c] sm:$0x1]
      %v6130 = vsel %vm379, %v6071, %v6129
      %6131 = vst [vmem:[%s972 + $0x8c] sm:$0x1] %v6130
      %v6132 = vld [vmem:[%s972 + $0x98] sm:$0x1]
      %v6133 = vsel %vm379, %v6073, %v6132
      %6134 = vst [vmem:[%s972 + $0x98] sm:$0x1] %v6133
      %v6135 = vld [vmem:[%s972 + $0xa4] sm:$0x1]
      %v6136 = vsel %vm379, %v6075, %v6135
      %6137 = vst [vmem:[%s972 + $0xa4] sm:$0x1] %v6136
      %v6138 = vld [vmem:[%s972 + $0xb0] sm:$0x1]
      %v6139 = vsel %vm379, %v6077, %v6138
      %6140 = vst [vmem:[%s972 + $0xb0] sm:$0x1] %v6139
      %v6141 = vld [vmem:[%s972 + $0xbc] sm:$0x1]
      %v6142 = vsel %vm379, %v6079, %v6141
      %6143 = vst [vmem:[%s972 + $0xbc] sm:$0x1] %v6142
      %v6144 = vld [vmem:[%s1151] sm:$0xf]
      %v6145 = vld [vmem:[%s1151 + $0x4] sm:$0xf]
      %v6146 = vld [vmem:[%s1151 + $0x8] sm:$0x1]
      %6147 = vst.msk [vmem:[#allocation2] sm:$0xf] %vm312, %v6144
      %6148 = vst.msk [vmem:[#allocation2 + $0x4] sm:$0xf] %vm312, %v6145
      %6149 = vst.msk [vmem:[#allocation2 + $0x8] sm:$0x1] %vm315, %v6146
      %s6150 = scalar_lea.vmem [#allocation2], 180
      %v6151 = vld [vmem:[%s6150] sm:$0xf]
      %v6152 = vld [vmem:[%s6150 + $0x4] sm:$0xf]
      %v6153 = vld [vmem:[%s6150 + $0x8] sm:$0x1]
      %6154 = vst.msk [vmem:[%s317] sm:$0xf] %vm312, %v6151
      %6155 = vst.msk [vmem:[%s317 + $0x4] sm:$0xf] %vm312, %v6152
      %6156 = vst.msk [vmem:[%s317 + $0x8] sm:$0x1] %vm315, %v6153
      %v6157 = vld [vmem:[#allocation2] sm:$0xf]
      %v6158 = vld [vmem:[#allocation2 + $0x4] sm:$0xf]
      %v6159 = vld [vmem:[#allocation2 + $0xc] sm:$0xf]
      %v6160 = vld [vmem:[#allocation2 + $0x10] sm:$0xf]
      %v6161 = vld [vmem:[#allocation2 + $0x18] sm:$0xf]
      %v6162 = vld [vmem:[#allocation2 + $0x1c] sm:$0xf]
      %v6163 = vld [vmem:[#allocation2 + $0x24] sm:$0xf]
      %v6164 = vld [vmem:[#allocation2 + $0x28] sm:$0xf]
      %v6165 = vld [vmem:[#allocation2 + $0x30] sm:$0xf]
      %v6166 = vld [vmem:[#allocation2 + $0x34] sm:$0xf]
      %v6167 = vld [vmem:[#allocation2 + $0x3c] sm:$0xf]
      %v6168 = vld [vmem:[#allocation2 + $0x40] sm:$0xf]
      %v6169 = vld [vmem:[#allocation2 + $0x48] sm:$0xf]
      %v6170 = vld [vmem:[#allocation2 + $0x4c] sm:$0xf]
      %v6171 = vld [vmem:[#allocation2 + $0x54] sm:$0xf]
      %v6172 = vld [vmem:[#allocation2 + $0x58] sm:$0xf]
      %v6173 = vld [vmem:[#allocation2 + $0x60] sm:$0xf]
      %v6174 = vld [vmem:[#allocation2 + $0x64] sm:$0xf]
      %v6175 = vld [vmem:[#allocation2 + $0x6c] sm:$0xf]
      %v6176 = vld [vmem:[#allocation2 + $0x70] sm:$0xf]
      %v6177 = vld [vmem:[#allocation2 + $0x78] sm:$0xf]
      %v6178 = vld [vmem:[#allocation2 + $0x7c] sm:$0xf]
      %v6179 = vld [vmem:[#allocation2 + $0x84] sm:$0xf]
      %v6180 = vld [vmem:[#allocation2 + $0x88] sm:$0xf]
      %v6181 = vld [vmem:[#allocation2 + $0x90] sm:$0xf]
      %v6182 = vld [vmem:[#allocation2 + $0x94] sm:$0xf]
      %v6183 = vld [vmem:[#allocation2 + $0x9c] sm:$0xf]
      %v6184 = vld [vmem:[#allocation2 + $0xa0] sm:$0xf]
      %v6185 = vld [vmem:[#allocation2 + $0xa8] sm:$0xf]
      %v6186 = vld [vmem:[#allocation2 + $0xac] sm:$0xf]
      %v6187 = vld [vmem:[#allocation2 + $0xb4] sm:$0xf]
      %v6188 = vld [vmem:[#allocation2 + $0xb8] sm:$0xf]
      %v6189 = vld [vmem:[%s972] sm:$0xf]
      %v6190 = vld [vmem:[%s972 + $0x4] sm:$0xf]
      %v6191 = vld [vmem:[%s972 + $0xc] sm:$0xf]
      %v6192 = vld [vmem:[%s972 + $0x10] sm:$0xf]
      %v6193 = vld [vmem:[%s972 + $0x18] sm:$0xf]
      %v6194 = vld [vmem:[%s972 + $0x1c] sm:$0xf]
      %v6195 = vld [vmem:[%s972 + $0x24] sm:$0xf]
      %v6196 = vld [vmem:[%s972 + $0x28] sm:$0xf]
      %v6197 = vld [vmem:[%s972 + $0x30] sm:$0xf]
      %v6198 = vld [vmem:[%s972 + $0x34] sm:$0xf]
      %v6199 = vld [vmem:[%s972 + $0x3c] sm:$0xf]
      %v6200 = vld [vmem:[%s972 + $0x40] sm:$0xf]
      %v6201 = vld [vmem:[%s972 + $0x48] sm:$0xf]
      %v6202 = vld [vmem:[%s972 + $0x4c] sm:$0xf]
      %v6203 = vld [vmem:[%s972 + $0x54] sm:$0xf]
      %v6204 = vld [vmem:[%s972 + $0x58] sm:$0xf]
      %v6205 = vld [vmem:[%s972 + $0x60] sm:$0xf]
      %v6206 = vld [vmem:[%s972 + $0x64] sm:$0xf]
      %v6207 = vld [vmem:[%s972 + $0x6c] sm:$0xf]
      %v6208 = vld [vmem:[%s972 + $0x70] sm:$0xf]
      %v6209 = vld [vmem:[%s972 + $0x78] sm:$0xf]
      %v6210 = vld [vmem:[%s972 + $0x7c] sm:$0xf]
      %v6211 = vld [vmem:[%s972 + $0x84] sm:$0xf]
      %v6212 = vld [vmem:[%s972 + $0x88] sm:$0xf]
      %v6213 = vld [vmem:[%s972 + $0x90] sm:$0xf]
      %v6214 = vld [vmem:[%s972 + $0x94] sm:$0xf]
      %v6215 = vld [vmem:[%s972 + $0x9c] sm:$0xf]
      %v6216 = vld [vmem:[%s972 + $0xa0] sm:$0xf]
      %v6217 = vld [vmem:[%s972 + $0xa8] sm:$0xf]
      %v6218 = vld [vmem:[%s972 + $0xac] sm:$0xf]
      %v6219 = vld [vmem:[%s972 + $0xb4] sm:$0xf]
      %v6220 = vld [vmem:[%s972 + $0xb8] sm:$0xf]
      %v6221 = vld [vmem:[%s1151] sm:$0xf]
      %v6222 = vld [vmem:[%s1151 + $0x4] sm:$0xf]
      %v6223 = vld [vmem:[%s1151 + $0xc] sm:$0xf]
      %v6224 = vld [vmem:[%s1151 + $0x10] sm:$0xf]
      %v6225 = vld [vmem:[%s1151 + $0x18] sm:$0xf]
      %v6226 = vld [vmem:[%s1151 + $0x1c] sm:$0xf]
      %v6227 = vld [vmem:[%s1151 + $0x24] sm:$0xf]
      %v6228 = vld [vmem:[%s1151 + $0x28] sm:$0xf]
      %v6229 = vld [vmem:[%s1151 + $0x30] sm:$0xf]
      %v6230 = vld [vmem:[%s1151 + $0x34] sm:$0xf]
      %v6231 = vld [vmem:[%s1151 + $0x3c] sm:$0xf]
      %v6232 = vld [vmem:[%s1151 + $0x40] sm:$0xf]
      %v6233 = vld [vmem:[%s1151 + $0x48] sm:$0xf]
      %v6234 = vld [vmem:[%s1151 + $0x4c] sm:$0xf]
      %v6235 = vld [vmem:[%s1151 + $0x54] sm:$0xf]
      %v6236 = vld [vmem:[%s1151 + $0x58] sm:$0xf]
      %v6237 = vld [vmem:[%s1151 + $0x60] sm:$0xf]
      %v6238 = vld [vmem:[%s1151 + $0x64] sm:$0xf]
      %v6239 = vld [vmem:[%s1151 + $0x6c] sm:$0xf]
      %v6240 = vld [vmem:[%s1151 + $0x70] sm:$0xf]
      %v6241 = vld [vmem:[%s1151 + $0x78] sm:$0xf]
      %v6242 = vld [vmem:[%s1151 + $0x7c] sm:$0xf]
      %v6243 = vld [vmem:[%s1151 + $0x84] sm:$0xf]
      %v6244 = vld [vmem:[%s1151 + $0x88] sm:$0xf]
      %v6245 = vld [vmem:[%s1151 + $0x90] sm:$0xf]
      %v6246 = vld [vmem:[%s1151 + $0x94] sm:$0xf]
      %v6247 = vld [vmem:[%s1151 + $0x9c] sm:$0xf]
      %v6248 = vld [vmem:[%s1151 + $0xa0] sm:$0xf]
      %v6249 = vld [vmem:[%s1151 + $0xa8] sm:$0xf]
      %v6250 = vld [vmem:[%s1151 + $0xac] sm:$0xf]
      %v6251 = vld [vmem:[%s1151 + $0xb4] sm:$0xf]
      %v6252 = vld [vmem:[%s1151 + $0xb8] sm:$0xf]
      %v6285 = vunpack.c.l.b16 %v6157
      %v6286 = vunpack.c.l.b16 %v6158
      %v6287 = vunpack.c.l.b16 %v6159
      %v6288 = vunpack.c.l.b16 %v6160
      %v6289 = vunpack.c.l.b16 %v6161
      %v6290 = vunpack.c.l.b16 %v6162
      %v6291 = vunpack.c.l.b16 %v6163
      %v6292 = vunpack.c.l.b16 %v6164
      %v6293 = vunpack.c.l.b16 %v6165
      %v6294 = vunpack.c.l.b16 %v6166
      %v6295 = vunpack.c.l.b16 %v6167
      %v6296 = vunpack.c.l.b16 %v6168
      %v6297 = vunpack.c.l.b16 %v6169
      %v6298 = vunpack.c.l.b16 %v6170
      %v6299 = vunpack.c.l.b16 %v6171
      %v6300 = vunpack.c.l.b16 %v6172
      %v6301 = vunpack.c.l.b16 %v6173
      %v6302 = vunpack.c.l.b16 %v6174
      %v6303 = vunpack.c.l.b16 %v6175
      %v6304 = vunpack.c.l.b16 %v6176
      %v6305 = vunpack.c.l.b16 %v6177
      %v6306 = vunpack.c.l.b16 %v6178
      %v6307 = vunpack.c.l.b16 %v6179
      %v6308 = vunpack.c.l.b16 %v6180
      %v6309 = vunpack.c.l.b16 %v6181
      %v6310 = vunpack.c.l.b16 %v6182
      %v6311 = vunpack.c.l.b16 %v6183
      %v6312 = vunpack.c.l.b16 %v6184
      %v6313 = vunpack.c.l.b16 %v6185
      %v6314 = vunpack.c.l.b16 %v6186
      %v6315 = vunpack.c.l.b16 %v6187
      %v6316 = vunpack.c.l.b16 %v6188
      %v6317 = vpack.c.b16 %v6286, %v6285
      %v6318 = vpack.c.b16 %v6288, %v6287
      %v6319 = vpack.c.b16 %v6290, %v6289
      %v6320 = vpack.c.b16 %v6292, %v6291
      %v6321 = vpack.c.b16 %v6294, %v6293
      %v6322 = vpack.c.b16 %v6296, %v6295
      %v6323 = vpack.c.b16 %v6298, %v6297
      %v6324 = vpack.c.b16 %v6300, %v6299
      %v6325 = vpack.c.b16 %v6302, %v6301
      %v6326 = vpack.c.b16 %v6304, %v6303
      %v6327 = vpack.c.b16 %v6306, %v6305
      %v6328 = vpack.c.b16 %v6308, %v6307
      %v6329 = vpack.c.b16 %v6310, %v6309
      %v6330 = vpack.c.b16 %v6312, %v6311
      %v6331 = vpack.c.b16 %v6314, %v6313
      %v6332 = vpack.c.b16 %v6316, %v6315
      %v6365 = vunpack.c.l.b16 %v6189
      %v6366 = vunpack.c.l.b16 %v6190
      %v6367 = vunpack.c.l.b16 %v6191
      %v6368 = vunpack.c.l.b16 %v6192
      %v6369 = vunpack.c.l.b16 %v6193
      %v6370 = vunpack.c.l.b16 %v6194
      %v6371 = vunpack.c.l.b16 %v6195
      %v6372 = vunpack.c.l.b16 %v6196
      %v6373 = vunpack.c.l.b16 %v6197
      %v6374 = vunpack.c.l.b16 %v6198
      %v6375 = vunpack.c.l.b16 %v6199
      %v6376 = vunpack.c.l.b16 %v6200
      %v6377 = vunpack.c.l.b16 %v6201
      %v6378 = vunpack.c.l.b16 %v6202
      %v6379 = vunpack.c.l.b16 %v6203
      %v6380 = vunpack.c.l.b16 %v6204
      %v6381 = vunpack.c.l.b16 %v6205
      %v6382 = vunpack.c.l.b16 %v6206
      %v6383 = vunpack.c.l.b16 %v6207
      %v6384 = vunpack.c.l.b16 %v6208
      %v6385 = vunpack.c.l.b16 %v6209
      %v6386 = vunpack.c.l.b16 %v6210
      %v6387 = vunpack.c.l.b16 %v6211
      %v6388 = vunpack.c.l.b16 %v6212
      %v6389 = vunpack.c.l.b16 %v6213
      %v6390 = vunpack.c.l.b16 %v6214
      %v6391 = vunpack.c.l.b16 %v6215
      %v6392 = vunpack.c.l.b16 %v6216
      %v6393 = vunpack.c.l.b16 %v6217
      %v6394 = vunpack.c.l.b16 %v6218
      %v6395 = vunpack.c.l.b16 %v6219
      %v6396 = vunpack.c.l.b16 %v6220
      %v6397 = vpack.c.b16 %v6366, %v6365
      %v6398 = vpack.c.b16 %v6368, %v6367
      %v6399 = vpack.c.b16 %v6370, %v6369
      %v6400 = vpack.c.b16 %v6372, %v6371
      %v6401 = vpack.c.b16 %v6374, %v6373
      %v6402 = vpack.c.b16 %v6376, %v6375
      %v6403 = vpack.c.b16 %v6378, %v6377
      %v6404 = vpack.c.b16 %v6380, %v6379
      %v6405 = vpack.c.b16 %v6382, %v6381
      %v6406 = vpack.c.b16 %v6384, %v6383
      %v6407 = vpack.c.b16 %v6386, %v6385
      %v6408 = vpack.c.b16 %v6388, %v6387
      %v6409 = vpack.c.b16 %v6390, %v6389
      %v6410 = vpack.c.b16 %v6392, %v6391
      %v6411 = vpack.c.b16 %v6394, %v6393
      %v6412 = vpack.c.b16 %v6396, %v6395
      %6413 = vrot.lane.b32.xlu0 %v6397, 4
      %v6414 = vpop.permute.xlu0 %6413
      %6415 = vrot.lane.b32.xlu0 %v6398, 4
      %v6416 = vpop.permute.xlu0 %6415
      %6417 = vrot.lane.b32.xlu0 %v6399, 4
      %v6418 = vpop.permute.xlu0 %6417
      %6419 = vrot.lane.b32.xlu0 %v6400, 4
      %v6420 = vpop.permute.xlu0 %6419
      %6421 = vrot.lane.b32.xlu0 %v6401, 4
      %v6422 = vpop.permute.xlu0 %6421
      %6423 = vrot.lane.b32.xlu0 %v6402, 4
      %v6424 = vpop.permute.xlu0 %6423
      %6425 = vrot.lane.b32.xlu0 %v6403, 4
      %v6426 = vpop.permute.xlu0 %6425
      %6427 = vrot.lane.b32.xlu0 %v6404, 4
      %v6428 = vpop.permute.xlu0 %6427
      %6429 = vrot.lane.b32.xlu0 %v6405, 4
      %v6430 = vpop.permute.xlu0 %6429
      %6431 = vrot.lane.b32.xlu0 %v6406, 4
      %v6432 = vpop.permute.xlu0 %6431
      %6433 = vrot.lane.b32.xlu0 %v6407, 4
      %v6434 = vpop.permute.xlu0 %6433
      %6435 = vrot.lane.b32.xlu0 %v6408, 4
      %v6436 = vpop.permute.xlu0 %6435
      %6437 = vrot.lane.b32.xlu0 %v6409, 4
      %v6438 = vpop.permute.xlu0 %6437
      %6439 = vrot.lane.b32.xlu0 %v6410, 4
      %v6440 = vpop.permute.xlu0 %6439
      %6441 = vrot.lane.b32.xlu0 %v6411, 4
      %v6442 = vpop.permute.xlu0 %6441
      %6443 = vrot.lane.b32.xlu0 %v6412, 4
      %v6444 = vpop.permute.xlu0 %6443
      %v6477 = vunpack.c.l.b16 %v6221
      %v6478 = vunpack.c.l.b16 %v6222
      %v6479 = vunpack.c.l.b16 %v6223
      %v6480 = vunpack.c.l.b16 %v6224
      %v6481 = vunpack.c.l.b16 %v6225
      %v6482 = vunpack.c.l.b16 %v6226
      %v6483 = vunpack.c.l.b16 %v6227
      %v6484 = vunpack.c.l.b16 %v6228
      %v6485 = vunpack.c.l.b16 %v6229
      %v6486 = vunpack.c.l.b16 %v6230
      %v6487 = vunpack.c.l.b16 %v6231
      %v6488 = vunpack.c.l.b16 %v6232
      %v6489 = vunpack.c.l.b16 %v6233
      %v6490 = vunpack.c.l.b16 %v6234
      %v6491 = vunpack.c.l.b16 %v6235
      %v6492 = vunpack.c.l.b16 %v6236
      %v6493 = vunpack.c.l.b16 %v6237
      %v6494 = vunpack.c.l.b16 %v6238
      %v6495 = vunpack.c.l.b16 %v6239
      %v6496 = vunpack.c.l.b16 %v6240
      %v6497 = vunpack.c.l.b16 %v6241
      %v6498 = vunpack.c.l.b16 %v6242
      %v6499 = vunpack.c.l.b16 %v6243
      %v6500 = vunpack.c.l.b16 %v6244
      %v6501 = vunpack.c.l.b16 %v6245
      %v6502 = vunpack.c.l.b16 %v6246
      %v6503 = vunpack.c.l.b16 %v6247
      %v6504 = vunpack.c.l.b16 %v6248
      %v6505 = vunpack.c.l.b16 %v6249
      %v6506 = vunpack.c.l.b16 %v6250
      %v6507 = vunpack.c.l.b16 %v6251
      %v6508 = vunpack.c.l.b16 %v6252
      %v6509 = vpack.c.b16 %v6478, %v6477
      %v6510 = vpack.c.b16 %v6480, %v6479
      %v6511 = vpack.c.b16 %v6482, %v6481
      %v6512 = vpack.c.b16 %v6484, %v6483
      %v6513 = vpack.c.b16 %v6486, %v6485
      %v6514 = vpack.c.b16 %v6488, %v6487
      %v6515 = vpack.c.b16 %v6490, %v6489
      %v6516 = vpack.c.b16 %v6492, %v6491
      %v6517 = vpack.c.b16 %v6494, %v6493
      %v6518 = vpack.c.b16 %v6496, %v6495
      %v6519 = vpack.c.b16 %v6498, %v6497
      %v6520 = vpack.c.b16 %v6500, %v6499
      %v6521 = vpack.c.b16 %v6502, %v6501
      %v6522 = vpack.c.b16 %v6504, %v6503
      %v6523 = vpack.c.b16 %v6506, %v6505
      %v6524 = vpack.c.b16 %v6508, %v6507
      %6525 = vrot.lane.b32.xlu0 %v6509, 8
      %v6526 = vpop.permute.xlu0 %6525
      %6527 = vrot.lane.b32.xlu0 %v6510, 8
      %v6528 = vpop.permute.xlu0 %6527
      %6529 = vrot.lane.b32.xlu0 %v6511, 8
      %v6530 = vpop.permute.xlu0 %6529
      %6531 = vrot.lane.b32.xlu0 %v6512, 8
      %v6532 = vpop.permute.xlu0 %6531
      %6533 = vrot.lane.b32.xlu0 %v6513, 8
      %v6534 = vpop.permute.xlu0 %6533
      %6535 = vrot.lane.b32.xlu0 %v6514, 8
      %v6536 = vpop.permute.xlu0 %6535
      %6537 = vrot.lane.b32.xlu0 %v6515, 8
      %v6538 = vpop.permute.xlu0 %6537
      %6539 = vrot.lane.b32.xlu0 %v6516, 8
      %v6540 = vpop.permute.xlu0 %6539
      %6541 = vrot.lane.b32.xlu0 %v6517, 8
      %v6542 = vpop.permute.xlu0 %6541
      %6543 = vrot.lane.b32.xlu0 %v6518, 8
      %v6544 = vpop.permute.xlu0 %6543
      %6545 = vrot.lane.b32.xlu0 %v6519, 8
      %v6546 = vpop.permute.xlu0 %6545
      %6547 = vrot.lane.b32.xlu0 %v6520, 8
      %v6548 = vpop.permute.xlu0 %6547
      %6549 = vrot.lane.b32.xlu0 %v6521, 8
      %v6550 = vpop.permute.xlu0 %6549
      %6551 = vrot.lane.b32.xlu0 %v6522, 8
      %v6552 = vpop.permute.xlu0 %6551
      %6553 = vrot.lane.b32.xlu0 %v6523, 8
      %v6554 = vpop.permute.xlu0 %6553
      %6555 = vrot.lane.b32.xlu0 %v6524, 8
      %v6556 = vpop.permute.xlu0 %6555
      %v6559 = vsel %vm1488, %v6317, %v6414
      %v6562 = vsel %vm1488, %v6318, %v6416
      %v6565 = vsel %vm1488, %v6319, %v6418
      %v6568 = vsel %vm1488, %v6320, %v6420
      %v6571 = vsel %vm1488, %v6321, %v6422
      %v6574 = vsel %vm1488, %v6322, %v6424
      %v6577 = vsel %vm1488, %v6323, %v6426
      %v6580 = vsel %vm1488, %v6324, %v6428
      %v6583 = vsel %vm1488, %v6325, %v6430
      %v6586 = vsel %vm1488, %v6326, %v6432
      %v6589 = vsel %vm1488, %v6327, %v6434
      %v6592 = vsel %vm1488, %v6328, %v6436
      %v6595 = vsel %vm1488, %v6329, %v6438
      %v6598 = vsel %vm1488, %v6330, %v6440
      %v6601 = vsel %vm1488, %v6331, %v6442
      %v6604 = vsel %vm1488, %v6332, %v6444
      %v6606 = vsel %vm1537, %v6559, %v6526
      %v6608 = vsel %vm1537, %v6562, %v6528
      %v6610 = vsel %vm1537, %v6565, %v6530
      %v6612 = vsel %vm1537, %v6568, %v6532
      %v6614 = vsel %vm1537, %v6571, %v6534
      %v6616 = vsel %vm1537, %v6574, %v6536
      %v6618 = vsel %vm1537, %v6577, %v6538
      %v6620 = vsel %vm1537, %v6580, %v6540
      %v6622 = vsel %vm1537, %v6583, %v6542
      %v6624 = vsel %vm1537, %v6586, %v6544
      %v6626 = vsel %vm1537, %v6589, %v6546
      %v6628 = vsel %vm1537, %v6592, %v6548
      %v6630 = vsel %vm1537, %v6595, %v6550
      %v6632 = vsel %vm1537, %v6598, %v6552
      %v6634 = vsel %vm1537, %v6601, %v6554
      %v6636 = vsel %vm1537, %v6604, %v6556
      %v6637 = vld [vmem:[%s5] sm:$0xf]
      %v6638 = vld [vmem:[%s5 + $0x4] sm:$0x3]
      %v6639 = vld [vmem:[#allocation2 + $0x8] sm:$0x1]
      %v6640 = vld [vmem:[#allocation2 + $0x14] sm:$0x1]
      %v6641 = vld [vmem:[#allocation2 + $0x20] sm:$0x1]
      %v6642 = vld [vmem:[#allocation2 + $0x2c] sm:$0x1]
      %v6643 = vld [vmem:[#allocation2 + $0x38] sm:$0x1]
      %v6644 = vld [vmem:[#allocation2 + $0x44] sm:$0x1]
      %v6645 = vld [vmem:[#allocation2 + $0x50] sm:$0x1]
      %v6646 = vld [vmem:[#allocation2 + $0x5c] sm:$0x1]
      %v6647 = vld [vmem:[#allocation2 + $0x68] sm:$0x1]
      %v6648 = vld [vmem:[#allocation2 + $0x74] sm:$0x1]
      %v6649 = vld [vmem:[#allocation2 + $0x80] sm:$0x1]
      %v6650 = vld [vmem:[#allocation2 + $0x8c] sm:$0x1]
      %v6651 = vld [vmem:[#allocation2 + $0x98] sm:$0x1]
      %v6652 = vld [vmem:[#allocation2 + $0xa4] sm:$0x1]
      %v6653 = vld [vmem:[#allocation2 + $0xb0] sm:$0x1]
      %v6654 = vld [vmem:[#allocation2 + $0xbc] sm:$0x1]
      %v6655 = vld [vmem:[%s972 + $0x8] sm:$0x1]
      %v6656 = vld [vmem:[%s972 + $0x14] sm:$0x1]
      %v6657 = vld [vmem:[%s972 + $0x20] sm:$0x1]
      %v6658 = vld [vmem:[%s972 + $0x2c] sm:$0x1]
      %v6659 = vld [vmem:[%s972 + $0x38] sm:$0x1]
      %v6660 = vld [vmem:[%s972 + $0x44] sm:$0x1]
      %v6661 = vld [vmem:[%s972 + $0x50] sm:$0x1]
      %v6662 = vld [vmem:[%s972 + $0x5c] sm:$0x1]
      %v6663 = vld [vmem:[%s972 + $0x68] sm:$0x1]
      %v6664 = vld [vmem:[%s972 + $0x74] sm:$0x1]
      %v6665 = vld [vmem:[%s972 + $0x80] sm:$0x1]
      %v6666 = vld [vmem:[%s972 + $0x8c] sm:$0x1]
      %v6667 = vld [vmem:[%s972 + $0x98] sm:$0x1]
      %v6668 = vld [vmem:[%s972 + $0xa4] sm:$0x1]
      %v6669 = vld [vmem:[%s972 + $0xb0] sm:$0x1]
      %v6670 = vld [vmem:[%s972 + $0xbc] sm:$0x1]
      %v6671 = vld [vmem:[%s1151 + $0x8] sm:$0x1]
      %v6672 = vld [vmem:[%s1151 + $0x14] sm:$0x1]
      %v6673 = vld [vmem:[%s1151 + $0x20] sm:$0x1]
      %v6674 = vld [vmem:[%s1151 + $0x2c] sm:$0x1]
      %v6675 = vld [vmem:[%s1151 + $0x38] sm:$0x1]
      %v6676 = vld [vmem:[%s1151 + $0x44] sm:$0x1]
      %v6677 = vld [vmem:[%s1151 + $0x50] sm:$0x1]
      %v6678 = vld [vmem:[%s1151 + $0x5c] sm:$0x1]
      %v6679 = vld [vmem:[%s1151 + $0x68] sm:$0x1]
      %v6680 = vld [vmem:[%s1151 + $0x74] sm:$0x1]
      %v6681 = vld [vmem:[%s1151 + $0x80] sm:$0x1]
      %v6682 = vld [vmem:[%s1151 + $0x8c] sm:$0x1]
      %v6683 = vld [vmem:[%s1151 + $0x98] sm:$0x1]
      %v6684 = vld [vmem:[%s1151 + $0xa4] sm:$0x1]
      %v6685 = vld [vmem:[%s1151 + $0xb0] sm:$0x1]
      %v6686 = vld [vmem:[%s1151 + $0xbc] sm:$0x1]
      %v6703 = vunpack.c.l.b16 %v6639
      %v6704 = vunpack.c.l.b16 %v6640
      %v6705 = vunpack.c.l.b16 %v6641
      %v6706 = vunpack.c.l.b16 %v6642
      %v6707 = vunpack.c.l.b16 %v6643
      %v6708 = vunpack.c.l.b16 %v6644
      %v6709 = vunpack.c.l.b16 %v6645
      %v6710 = vunpack.c.l.b16 %v6646
      %v6711 = vunpack.c.l.b16 %v6647
      %v6712 = vunpack.c.l.b16 %v6648
      %v6713 = vunpack.c.l.b16 %v6649
      %v6714 = vunpack.c.l.b16 %v6650
      %v6715 = vunpack.c.l.b16 %v6651
      %v6716 = vunpack.c.l.b16 %v6652
      %v6717 = vunpack.c.l.b16 %v6653
      %v6718 = vunpack.c.l.b16 %v6654
      %v6719 = vpack.c.b16 %v6703, %v6703
      %v6720 = vpack.c.b16 %v6704, %v6704
      %v6721 = vpack.c.b16 %v6705, %v6705
      %v6722 = vpack.c.b16 %v6706, %v6706
      %v6723 = vpack.c.b16 %v6707, %v6707
      %v6724 = vpack.c.b16 %v6708, %v6708
      %v6725 = vpack.c.b16 %v6709, %v6709
      %v6726 = vpack.c.b16 %v6710, %v6710
      %v6727 = vpack.c.b16 %v6711, %v6711
      %v6728 = vpack.c.b16 %v6712, %v6712
      %v6729 = vpack.c.b16 %v6713, %v6713
      %v6730 = vpack.c.b16 %v6714, %v6714
      %v6731 = vpack.c.b16 %v6715, %v6715
      %v6732 = vpack.c.b16 %v6716, %v6716
      %v6733 = vpack.c.b16 %v6717, %v6717
      %v6734 = vpack.c.b16 %v6718, %v6718
      %v6751 = vunpack.c.l.b16 %v6655
      %v6752 = vunpack.c.l.b16 %v6656
      %v6753 = vunpack.c.l.b16 %v6657
      %v6754 = vunpack.c.l.b16 %v6658
      %v6755 = vunpack.c.l.b16 %v6659
      %v6756 = vunpack.c.l.b16 %v6660
      %v6757 = vunpack.c.l.b16 %v6661
      %v6758 = vunpack.c.l.b16 %v6662
      %v6759 = vunpack.c.l.b16 %v6663
      %v6760 = vunpack.c.l.b16 %v6664
      %v6761 = vunpack.c.l.b16 %v6665
      %v6762 = vunpack.c.l.b16 %v6666
      %v6763 = vunpack.c.l.b16 %v6667
      %v6764 = vunpack.c.l.b16 %v6668
      %v6765 = vunpack.c.l.b16 %v6669
      %v6766 = vunpack.c.l.b16 %v6670
      %v6767 = vpack.c.b16 %v6751, %v6751
      %v6768 = vpack.c.b16 %v6752, %v6752
      %v6769 = vpack.c.b16 %v6753, %v6753
      %v6770 = vpack.c.b16 %v6754, %v6754
      %v6771 = vpack.c.b16 %v6755, %v6755
      %v6772 = vpack.c.b16 %v6756, %v6756
      %v6773 = vpack.c.b16 %v6757, %v6757
      %v6774 = vpack.c.b16 %v6758, %v6758
      %v6775 = vpack.c.b16 %v6759, %v6759
      %v6776 = vpack.c.b16 %v6760, %v6760
      %v6777 = vpack.c.b16 %v6761, %v6761
      %v6778 = vpack.c.b16 %v6762, %v6762
      %v6779 = vpack.c.b16 %v6763, %v6763
      %v6780 = vpack.c.b16 %v6764, %v6764
      %v6781 = vpack.c.b16 %v6765, %v6765
      %v6782 = vpack.c.b16 %v6766, %v6766
      %6783 = vrot.lane.b32.xlu0 %v6767, 4
      %v6784 = vpop.permute.xlu0 %6783
      %6785 = vrot.lane.b32.xlu0 %v6768, 4
      %v6786 = vpop.permute.xlu0 %6785
      %6787 = vrot.lane.b32.xlu0 %v6769, 4
      %v6788 = vpop.permute.xlu0 %6787
      %6789 = vrot.lane.b32.xlu0 %v6770, 4
      %v6790 = vpop.permute.xlu0 %6789
      %6791 = vrot.lane.b32.xlu0 %v6771, 4
      %v6792 = vpop.permute.xlu0 %6791
      %6793 = vrot.lane.b32.xlu0 %v6772, 4
      %v6794 = vpop.permute.xlu0 %6793
      %6795 = vrot.lane.b32.xlu0 %v6773, 4
      %v6796 = vpop.permute.xlu0 %6795
      %6797 = vrot.lane.b32.xlu0 %v6774, 4
      %v6798 = vpop.permute.xlu0 %6797
      %6799 = vrot.lane.b32.xlu0 %v6775, 4
      %v6800 = vpop.permute.xlu0 %6799
      %6801 = vrot.lane.b32.xlu0 %v6776, 4
      %v6802 = vpop.permute.xlu0 %6801
      %6803 = vrot.lane.b32.xlu0 %v6777, 4
      %v6804 = vpop.permute.xlu0 %6803
      %6805 = vrot.lane.b32.xlu0 %v6778, 4
      %v6806 = vpop.permute.xlu0 %6805
      %6807 = vrot.lane.b32.xlu0 %v6779, 4
      %v6808 = vpop.permute.xlu0 %6807
      %6809 = vrot.lane.b32.xlu0 %v6780, 4
      %v6810 = vpop.permute.xlu0 %6809
      %6811 = vrot.lane.b32.xlu0 %v6781, 4
      %v6812 = vpop.permute.xlu0 %6811
      %6813 = vrot.lane.b32.xlu0 %v6782, 4
      %v6814 = vpop.permute.xlu0 %6813
      %v6831 = vunpack.c.l.b16 %v6671
      %v6832 = vunpack.c.l.b16 %v6672
      %v6833 = vunpack.c.l.b16 %v6673
      %v6834 = vunpack.c.l.b16 %v6674
      %v6835 = vunpack.c.l.b16 %v6675
      %v6836 = vunpack.c.l.b16 %v6676
      %v6837 = vunpack.c.l.b16 %v6677
      %v6838 = vunpack.c.l.b16 %v6678
      %v6839 = vunpack.c.l.b16 %v6679
      %v6840 = vunpack.c.l.b16 %v6680
      %v6841 = vunpack.c.l.b16 %v6681
      %v6842 = vunpack.c.l.b16 %v6682
      %v6843 = vunpack.c.l.b16 %v6683
      %v6844 = vunpack.c.l.b16 %v6684
      %v6845 = vunpack.c.l.b16 %v6685
      %v6846 = vunpack.c.l.b16 %v6686
      %v6847 = vpack.c.b16 %v6831, %v6831
      %v6848 = vpack.c.b16 %v6832, %v6832
      %v6849 = vpack.c.b16 %v6833, %v6833
      %v6850 = vpack.c.b16 %v6834, %v6834
      %v6851 = vpack.c.b16 %v6835, %v6835
      %v6852 = vpack.c.b16 %v6836, %v6836
      %v6853 = vpack.c.b16 %v6837, %v6837
      %v6854 = vpack.c.b16 %v6838, %v6838
      %v6855 = vpack.c.b16 %v6839, %v6839
      %v6856 = vpack.c.b16 %v6840, %v6840
      %v6857 = vpack.c.b16 %v6841, %v6841
      %v6858 = vpack.c.b16 %v6842, %v6842
      %v6859 = vpack.c.b16 %v6843, %v6843
      %v6860 = vpack.c.b16 %v6844, %v6844
      %v6861 = vpack.c.b16 %v6845, %v6845
      %v6862 = vpack.c.b16 %v6846, %v6846
      %6863 = vrot.lane.b32.xlu0 %v6847, 8
      %v6864 = vpop.permute.xlu0 %6863
      %6865 = vrot.lane.b32.xlu0 %v6848, 8
      %v6866 = vpop.permute.xlu0 %6865
      %6867 = vrot.lane.b32.xlu0 %v6849, 8
      %v6868 = vpop.permute.xlu0 %6867
      %6869 = vrot.lane.b32.xlu0 %v6850, 8
      %v6870 = vpop.permute.xlu0 %6869
      %6871 = vrot.lane.b32.xlu0 %v6851, 8
      %v6872 = vpop.permute.xlu0 %6871
      %6873 = vrot.lane.b32.xlu0 %v6852, 8
      %v6874 = vpop.permute.xlu0 %6873
      %6875 = vrot.lane.b32.xlu0 %v6853, 8
      %v6876 = vpop.permute.xlu0 %6875
      %6877 = vrot.lane.b32.xlu0 %v6854, 8
      %v6878 = vpop.permute.xlu0 %6877
      %6879 = vrot.lane.b32.xlu0 %v6855, 8
      %v6880 = vpop.permute.xlu0 %6879
      %6881 = vrot.lane.b32.xlu0 %v6856, 8
      %v6882 = vpop.permute.xlu0 %6881
      %6883 = vrot.lane.b32.xlu0 %v6857, 8
      %v6884 = vpop.permute.xlu0 %6883
      %6885 = vrot.lane.b32.xlu0 %v6858, 8
      %v6886 = vpop.permute.xlu0 %6885
      %6887 = vrot.lane.b32.xlu0 %v6859, 8
      %v6888 = vpop.permute.xlu0 %6887
      %6889 = vrot.lane.b32.xlu0 %v6860, 8
      %v6890 = vpop.permute.xlu0 %6889
      %6891 = vrot.lane.b32.xlu0 %v6861, 8
      %v6892 = vpop.permute.xlu0 %6891
      %6893 = vrot.lane.b32.xlu0 %v6862, 8
      %v6894 = vpop.permute.xlu0 %6893
      %v6897 = vsel %vm1488, %v6719, %v6784
      %v6900 = vsel %vm1488, %v6720, %v6786
      %v6903 = vsel %vm1488, %v6721, %v6788
      %v6906 = vsel %vm1488, %v6722, %v6790
      %v6909 = vsel %vm1488, %v6723, %v6792
      %v6912 = vsel %vm1488, %v6724, %v6794
      %v6915 = vsel %vm1488, %v6725, %v6796
      %v6918 = vsel %vm1488, %v6726, %v6798
      %v6921 = vsel %vm1488, %v6727, %v6800
      %v6924 = vsel %vm1488, %v6728, %v6802
      %v6927 = vsel %vm1488, %v6729, %v6804
      %v6930 = vsel %vm1488, %v6730, %v6806
      %v6933 = vsel %vm1488, %v6731, %v6808
      %v6936 = vsel %vm1488, %v6732, %v6810
      %v6939 = vsel %vm1488, %v6733, %v6812
      %v6942 = vsel %vm1488, %v6734, %v6814
      %v6944 = vsel %vm1537, %v6897, %v6864
      %v6946 = vsel %vm1537, %v6900, %v6866
      %v6948 = vsel %vm1537, %v6903, %v6868
      %v6950 = vsel %vm1537, %v6906, %v6870
      %v6952 = vsel %vm1537, %v6909, %v6872
      %v6954 = vsel %vm1537, %v6912, %v6874
      %v6956 = vsel %vm1537, %v6915, %v6876
      %v6958 = vsel %vm1537, %v6918, %v6878
      %v6960 = vsel %vm1537, %v6921, %v6880
      %v6962 = vsel %vm1537, %v6924, %v6882
      %v6964 = vsel %vm1537, %v6927, %v6884
      %v6966 = vsel %vm1537, %v6930, %v6886
      %v6968 = vsel %vm1537, %v6933, %v6888
      %v6970 = vsel %vm1537, %v6936, %v6890
      %v6972 = vsel %vm1537, %v6939, %v6892
      %v6974 = vsel %vm1537, %v6942, %v6894
      %v6975 = vshrl.u32 %v6606, 16
      %v6977 = vshll.u32 %v6606, 16
      %v6979 = vrot.slane %v6977, 1
      %v6980 = vor.u32 %v6975, %v6979
      %v6981 = vshll.u32 %v6944, 16
      %v6983 = vrot.slane %v6981, 1
      %v6984 = vsel %vm1908, %v6980, %v6983
      %v6985 = vshrl.u32 %v6608, 16
      %v6987 = vshll.u32 %v6608, 16
      %v6989 = vrot.slane %v6987, 1
      %v6990 = vor.u32 %v6985, %v6989
      %v6991 = vshll.u32 %v6946, 16
      %v6993 = vrot.slane %v6991, 1
      %v6994 = vsel %vm1908, %v6990, %v6993
      %v6995 = vshrl.u32 %v6610, 16
      %v6997 = vshll.u32 %v6610, 16
      %v6999 = vrot.slane %v6997, 1
      %v7000 = vor.u32 %v6995, %v6999
      %v7001 = vshll.u32 %v6948, 16
      %v7003 = vrot.slane %v7001, 1
      %v7004 = vsel %vm1908, %v7000, %v7003
      %v7005 = vshrl.u32 %v6612, 16
      %v7007 = vshll.u32 %v6612, 16
      %v7009 = vrot.slane %v7007, 1
      %v7010 = vor.u32 %v7005, %v7009
      %v7011 = vshll.u32 %v6950, 16
      %v7013 = vrot.slane %v7011, 1
      %v7014 = vsel %vm1908, %v7010, %v7013
      %v7015 = vshrl.u32 %v6614, 16
      %v7017 = vshll.u32 %v6614, 16
      %v7019 = vrot.slane %v7017, 1
      %v7020 = vor.u32 %v7015, %v7019
      %v7021 = vshll.u32 %v6952, 16
      %v7023 = vrot.slane %v7021, 1
      %v7024 = vsel %vm1908, %v7020, %v7023
      %v7025 = vshrl.u32 %v6616, 16
      %v7027 = vshll.u32 %v6616, 16
      %v7029 = vrot.slane %v7027, 1
      %v7030 = vor.u32 %v7025, %v7029
      %v7031 = vshll.u32 %v6954, 16
      %v7033 = vrot.slane %v7031, 1
      %v7034 = vsel %vm1908, %v7030, %v7033
      %v7035 = vshrl.u32 %v6618, 16
      %v7037 = vshll.u32 %v6618, 16
      %v7039 = vrot.slane %v7037, 1
      %v7040 = vor.u32 %v7035, %v7039
      %v7041 = vshll.u32 %v6956, 16
      %v7043 = vrot.slane %v7041, 1
      %v7044 = vsel %vm1908, %v7040, %v7043
      %v7045 = vshrl.u32 %v6620, 16
      %v7047 = vshll.u32 %v6620, 16
      %v7049 = vrot.slane %v7047, 1
      %v7050 = vor.u32 %v7045, %v7049
      %v7051 = vshll.u32 %v6958, 16
      %v7053 = vrot.slane %v7051, 1
      %v7054 = vsel %vm1908, %v7050, %v7053
      %v7055 = vshrl.u32 %v6622, 16
      %v7057 = vshll.u32 %v6622, 16
      %v7059 = vrot.slane %v7057, 1
      %v7060 = vor.u32 %v7055, %v7059
      %v7061 = vshll.u32 %v6960, 16
      %v7063 = vrot.slane %v7061, 1
      %v7064 = vsel %vm1908, %v7060, %v7063
      %v7065 = vshrl.u32 %v6624, 16
      %v7067 = vshll.u32 %v6624, 16
      %v7069 = vrot.slane %v7067, 1
      %v7070 = vor.u32 %v7065, %v7069
      %v7071 = vshll.u32 %v6962, 16
      %v7073 = vrot.slane %v7071, 1
      %v7074 = vsel %vm1908, %v7070, %v7073
      %v7075 = vshrl.u32 %v6626, 16
      %v7077 = vshll.u32 %v6626, 16
      %v7079 = vrot.slane %v7077, 1
      %v7080 = vor.u32 %v7075, %v7079
      %v7081 = vshll.u32 %v6964, 16
      %v7083 = vrot.slane %v7081, 1
      %v7084 = vsel %vm1908, %v7080, %v7083
      %v7085 = vshrl.u32 %v6628, 16
      %v7087 = vshll.u32 %v6628, 16
      %v7089 = vrot.slane %v7087, 1
      %v7090 = vor.u32 %v7085, %v7089
      %v7091 = vshll.u32 %v6966, 16
      %v7093 = vrot.slane %v7091, 1
      %v7094 = vsel %vm1908, %v7090, %v7093
      %v7095 = vshrl.u32 %v6630, 16
      %v7097 = vshll.u32 %v6630, 16
      %v7099 = vrot.slane %v7097, 1
      %v7100 = vor.u32 %v7095, %v7099
      %v7101 = vshll.u32 %v6968, 16
      %v7103 = vrot.slane %v7101, 1
      %v7104 = vsel %vm1908, %v7100, %v7103
      %v7105 = vshrl.u32 %v6632, 16
      %v7107 = vshll.u32 %v6632, 16
      %v7109 = vrot.slane %v7107, 1
      %v7110 = vor.u32 %v7105, %v7109
      %v7111 = vshll.u32 %v6970, 16
      %v7113 = vrot.slane %v7111, 1
      %v7114 = vsel %vm1908, %v7110, %v7113
      %v7115 = vshrl.u32 %v6634, 16
      %v7117 = vshll.u32 %v6634, 16
      %v7119 = vrot.slane %v7117, 1
      %v7120 = vor.u32 %v7115, %v7119
      %v7121 = vshll.u32 %v6972, 16
      %v7123 = vrot.slane %v7121, 1
      %v7124 = vsel %vm1908, %v7120, %v7123
      %v7125 = vshrl.u32 %v6636, 16
      %v7127 = vshll.u32 %v6636, 16
      %v7129 = vrot.slane %v7127, 1
      %v7130 = vor.u32 %v7125, %v7129
      %v7131 = vshll.u32 %v6974, 16
      %v7133 = vrot.slane %v7131, 1
      %v7134 = vsel %vm1908, %v7130, %v7133
      %s7135 = scalar_lea.vmem %s5, 8
      %v7136 = vld [vmem:[%s7135] sm:$0xf]
      %v7137 = vld [vmem:[%s7135 + $0x4] sm:$0x3]
      %v7140 = vunpack.c.l.b16 %v7136
      %v7141 = vunpack.c.l.b16 %v7137
      %v7142 = vpack.c.b16 %v7141, %v7140
      %v7144 = vsel %vm2077, %v6984, 0
      %v7147 = vsel %vm2077, %v6994, 0
      %v7150 = vsel %vm2077, %v7004, 0
      %v7153 = vsel %vm2077, %v7014, 0
      %v7156 = vsel %vm2077, %v7024, 0
      %v7159 = vsel %vm2077, %v7034, 0
      %v7162 = vsel %vm2077, %v7044, 0
      %v7165 = vsel %vm2077, %v7054, 0
      %v7168 = vsel %vm2077, %v7064, 0
      %v7171 = vsel %vm2077, %v7074, 0
      %v7174 = vsel %vm2077, %v7084, 0
      %v7177 = vsel %vm2077, %v7094, 0
      %v7180 = vsel %vm2077, %v7104, 0
      %v7183 = vsel %vm2077, %v7114, 0
      %v7186 = vsel %vm2077, %v7124, 0
      %v7189 = vsel %vm2077, %v7134, 0
      %v7192 = vsel %vm2126, %v7142, 0
      %7194 = vmatprep.subr.bf16.mxu0 0
      %7195 = vmatpush1.bf16.msra.mxu0 0
      %7196 = vmatprep.subr.bf16.mxu0 0
      %7197 = vmatpush1.bf16.msra.mxu0 0
      %7198 = vmatprep.subr.bf16.mxu0 0
      %7199 = vmatpush1.bf16.msra.mxu0 0
      %7200 = vmatprep.subr.bf16.mxu0 0
      %7201 = vmatpush1.bf16.msra.mxu0 0
      %7202 = vmatprep.subr.bf16.mxu0 0
      %7203 = vmatpush1.bf16.msra.mxu0 0
      %7204 = vmatprep.subr.bf16.mxu0 0
      %7205 = vmatpush1.bf16.msra.mxu0 0
      %7206 = vmatprep.subr.bf16.mxu0 0
      %7207 = vmatpush1.bf16.msra.mxu0 0
      %7208 = vmatprep.subr.bf16.mxu0 0
      %7209 = vmatpush1.bf16.msra.mxu0 %v7192
      %7210 = vmatprep.subr.bf16.mxu0 0
      %7211 = vmatpush2.bf16.msra.mxu0 0
      %7212 = vmatprep.subr.bf16.mxu0 0
      %7213 = vmatpush2.bf16.msra.mxu0 0
      %7214 = vmatprep.subr.bf16.mxu0 0
      %7215 = vmatpush2.bf16.msra.mxu0 0
      %7216 = vmatprep.subr.bf16.mxu0 0
      %7217 = vmatpush2.bf16.msra.mxu0 0
      %7218 = vmatprep.subr.bf16.mxu0 0
      %7219 = vmatpush2.bf16.msra.mxu0 0
      %7220 = vmatprep.subr.bf16.mxu0 0
      %7221 = vmatpush2.bf16.msra.mxu0 0
      %7222 = vmatprep.subr.bf16.mxu0 0
      %7223 = vmatpush2.bf16.msra.mxu0 0
      %7224 = vmatprep.subr.bf16.mxu0 0
      %7225 = vmatpush2.bf16.msra.mxu0 0
      %7226 = vmatprep.mubr.bf16.mxu0 0
      %7227 = vmatmul.mubr.bf16.gmra.mxu0 %v7144
      %v7228 = vpop.f32.mrf.mxu0
      %v7229 = vadd.f32 0.0, %v7228
      %v7230 = vpop.f32.mrf.mxu0
      %v7231 = vpop.f32.mrf.mxu0
      %v7232 = vadd.f32 0.0, %v7231
      %v7233 = vpop.f32.mrf.mxu0
      %7234 = vmatprep.mubr.bf16.mxu0 0
      %7235 = vmatmul.mubr.bf16.gmra.mxu0 %v7147
      %v7236 = vpop.f32.mrf.mxu0
      %v7237 = vadd.f32 0.0, %v7236
      %v7238 = vpop.f32.mrf.mxu0
      %v7239 = vpop.f32.mrf.mxu0
      %v7240 = vadd.f32 0.0, %v7239
      %v7241 = vpop.f32.mrf.mxu0
      %7242 = vmatprep.mubr.bf16.mxu0 0
      %7243 = vmatmul.mubr.bf16.gmra.mxu0 %v7150
      %v7244 = vpop.f32.mrf.mxu0
      %v7245 = vadd.f32 0.0, %v7244
      %v7246 = vpop.f32.mrf.mxu0
      %v7247 = vpop.f32.mrf.mxu0
      %v7248 = vadd.f32 0.0, %v7247
      %v7249 = vpop.f32.mrf.mxu0
      %7250 = vmatprep.mubr.bf16.mxu0 0
      %7251 = vmatmul.mubr.bf16.gmra.mxu0 %v7153
      %v7252 = vpop.f32.mrf.mxu0
      %v7253 = vadd.f32 0.0, %v7252
      %v7254 = vpop.f32.mrf.mxu0
      %v7255 = vpop.f32.mrf.mxu0
      %v7256 = vadd.f32 0.0, %v7255
      %v7257 = vpop.f32.mrf.mxu0
      %7258 = vmatprep.mubr.bf16.mxu0 0
      %7259 = vmatmul.mubr.bf16.gmra.mxu0 %v7156
      %v7260 = vpop.f32.mrf.mxu0
      %v7261 = vadd.f32 0.0, %v7260
      %v7262 = vpop.f32.mrf.mxu0
      %v7263 = vpop.f32.mrf.mxu0
      %v7264 = vadd.f32 0.0, %v7263
      %v7265 = vpop.f32.mrf.mxu0
      %7266 = vmatprep.mubr.bf16.mxu0 0
      %7267 = vmatmul.mubr.bf16.gmra.mxu0 %v7159
      %v7268 = vpop.f32.mrf.mxu0
      %v7269 = vadd.f32 0.0, %v7268
      %v7270 = vpop.f32.mrf.mxu0
      %v7271 = vpop.f32.mrf.mxu0
      %v7272 = vadd.f32 0.0, %v7271
      %v7273 = vpop.f32.mrf.mxu0
      %7274 = vmatprep.mubr.bf16.mxu0 0
      %7275 = vmatmul.mubr.bf16.gmra.mxu0 %v7162
      %v7276 = vpop.f32.mrf.mxu0
      %v7277 = vadd.f32 0.0, %v7276
      %v7278 = vpop.f32.mrf.mxu0
      %v7279 = vpop.f32.mrf.mxu0
      %v7280 = vadd.f32 0.0, %v7279
      %v7281 = vpop.f32.mrf.mxu0
      %7282 = vmatprep.mubr.bf16.mxu0 0
      %7283 = vmatmul.mubr.bf16.gmra.mxu0 %v7165
      %v7284 = vpop.f32.mrf.mxu0
      %v7285 = vadd.f32 0.0, %v7284
      %v7286 = vpop.f32.mrf.mxu0
      %v7287 = vpop.f32.mrf.mxu0
      %v7288 = vadd.f32 0.0, %v7287
      %v7289 = vpop.f32.mrf.mxu0
      %7290 = vmatprep.mubr.bf16.mxu0 0
      %7291 = vmatmul.mubr.bf16.gmra.mxu0 %v7168
      %v7292 = vpop.f32.mrf.mxu0
      %v7293 = vadd.f32 0.0, %v7292
      %v7294 = vpop.f32.mrf.mxu0
      %v7295 = vpop.f32.mrf.mxu0
      %v7296 = vadd.f32 0.0, %v7295
      %v7297 = vpop.f32.mrf.mxu0
      %7298 = vmatprep.mubr.bf16.mxu0 0
      %7299 = vmatmul.mubr.bf16.gmra.mxu0 %v7171
      %v7300 = vpop.f32.mrf.mxu0
      %v7301 = vadd.f32 0.0, %v7300
      %v7302 = vpop.f32.mrf.mxu0
      %v7303 = vpop.f32.mrf.mxu0
      %v7304 = vadd.f32 0.0, %v7303
      %v7305 = vpop.f32.mrf.mxu0
      %7306 = vmatprep.mubr.bf16.mxu0 0
      %7307 = vmatmul.mubr.bf16.gmra.mxu0 %v7174
      %v7308 = vpop.f32.mrf.mxu0
      %v7309 = vadd.f32 0.0, %v7308
      %v7310 = vpop.f32.mrf.mxu0
      %v7311 = vpop.f32.mrf.mxu0
      %v7312 = vadd.f32 0.0, %v7311
      %v7313 = vpop.f32.mrf.mxu0
      %7314 = vmatprep.mubr.bf16.mxu0 0
      %7315 = vmatmul.mubr.bf16.gmra.mxu0 %v7177
      %v7316 = vpop.f32.mrf.mxu0
      %v7317 = vadd.f32 0.0, %v7316
      %v7318 = vpop.f32.mrf.mxu0
      %v7319 = vpop.f32.mrf.mxu0
      %v7320 = vadd.f32 0.0, %v7319
      %v7321 = vpop.f32.mrf.mxu0
      %7322 = vmatprep.mubr.bf16.mxu0 0
      %7323 = vmatmul.mubr.bf16.gmra.mxu0 %v7180
      %v7324 = vpop.f32.mrf.mxu0
      %v7325 = vadd.f32 0.0, %v7324
      %v7326 = vpop.f32.mrf.mxu0
      %v7327 = vpop.f32.mrf.mxu0
      %v7328 = vadd.f32 0.0, %v7327
      %v7329 = vpop.f32.mrf.mxu0
      %7330 = vmatprep.mubr.bf16.mxu0 0
      %7331 = vmatmul.mubr.bf16.gmra.mxu0 %v7183
      %v7332 = vpop.f32.mrf.mxu0
      %v7333 = vadd.f32 0.0, %v7332
      %v7334 = vpop.f32.mrf.mxu0
      %v7335 = vpop.f32.mrf.mxu0
      %v7336 = vadd.f32 0.0, %v7335
      %v7337 = vpop.f32.mrf.mxu0
      %7338 = vmatprep.mubr.bf16.mxu0 0
      %7339 = vmatmul.mubr.bf16.gmra.mxu0 %v7186
      %v7340 = vpop.f32.mrf.mxu0
      %v7341 = vadd.f32 0.0, %v7340
      %v7342 = vpop.f32.mrf.mxu0
      %v7343 = vpop.f32.mrf.mxu0
      %v7344 = vadd.f32 0.0, %v7343
      %v7345 = vpop.f32.mrf.mxu0
      %7346 = vmatprep.mubr.bf16.mxu0 0
      %7347 = vmatmul.mubr.bf16.gmra.mxu0 %v7189
      %v7348 = vpop.f32.mrf.mxu0
      %v7349 = vadd.f32 0.0, %v7348
      %v7350 = vpop.f32.mrf.mxu0
      %v7351 = vpop.f32.mrf.mxu0
      %v7352 = vadd.f32 0.0, %v7351
      %v7353 = vpop.f32.mrf.mxu0
      %7354 = vdwg.mxu0
      %v7357 = vunpack.c.l.b16 %v6637
      %v7358 = vunpack.c.l.b16 %v6638
      %v7359 = vpack.c.b16 %v7358, %v7357
      %v7360 = vsel %vm2077, %v6606, 0
      %v7362 = vsel %vm2077, %v6608, 0
      %v7364 = vsel %vm2077, %v6610, 0
      %v7366 = vsel %vm2077, %v6612, 0
      %v7368 = vsel %vm2077, %v6614, 0
      %v7370 = vsel %vm2077, %v6616, 0
      %v7372 = vsel %vm2077, %v6618, 0
      %v7374 = vsel %vm2077, %v6620, 0
      %v7376 = vsel %vm2077, %v6622, 0
      %v7378 = vsel %vm2077, %v6624, 0
      %v7380 = vsel %vm2077, %v6626, 0
      %v7382 = vsel %vm2077, %v6628, 0
      %v7384 = vsel %vm2077, %v6630, 0
      %v7386 = vsel %vm2077, %v6632, 0
      %v7388 = vsel %vm2077, %v6634, 0
      %v7390 = vsel %vm2077, %v6636, 0
      %v7393 = vsel %vm2126, %v7359, 0
      %7395 = vmatprep.subr.bf16.mxu0 0
      %7396 = vmatpush1.bf16.msra.mxu0 0
      %7397 = vmatprep.subr.bf16.mxu0 0
      %7398 = vmatpush1.bf16.msra.mxu0 0
      %7399 = vmatprep.subr.bf16.mxu0 0
      %7400 = vmatpush1.bf16.msra.mxu0 0
      %7401 = vmatprep.subr.bf16.mxu0 0
      %7402 = vmatpush1.bf16.msra.mxu0 0
      %7403 = vmatprep.subr.bf16.mxu0 0
      %7404 = vmatpush1.bf16.msra.mxu0 0
      %7405 = vmatprep.subr.bf16.mxu0 0
      %7406 = vmatpush1.bf16.msra.mxu0 0
      %7407 = vmatprep.subr.bf16.mxu0 0
      %7408 = vmatpush1.bf16.msra.mxu0 0
      %7409 = vmatprep.subr.bf16.mxu0 0
      %7410 = vmatpush1.bf16.msra.mxu0 %v7393
      %7411 = vmatprep.subr.bf16.mxu0 0
      %7412 = vmatpush2.bf16.msra.mxu0 0
      %7413 = vmatprep.subr.bf16.mxu0 0
      %7414 = vmatpush2.bf16.msra.mxu0 0
      %7415 = vmatprep.subr.bf16.mxu0 0
      %7416 = vmatpush2.bf16.msra.mxu0 0
      %7417 = vmatprep.subr.bf16.mxu0 0
      %7418 = vmatpush2.bf16.msra.mxu0 0
      %7419 = vmatprep.subr.bf16.mxu0 0
      %7420 = vmatpush2.bf16.msra.mxu0 0
      %7421 = vmatprep.subr.bf16.mxu0 0
      %7422 = vmatpush2.bf16.msra.mxu0 0
      %7423 = vmatprep.subr.bf16.mxu0 0
      %7424 = vmatpush2.bf16.msra.mxu0 0
      %7425 = vmatprep.subr.bf16.mxu0 0
      %7426 = vmatpush2.bf16.msra.mxu0 0
      %7427 = vmatprep.mubr.bf16.mxu0 0
      %7428 = vmatmul.mubr.bf16.gmra.mxu0 %v7360
      %v7429 = vpop.f32.mrf.mxu0
      %v7430 = vadd.f32 %v7229, %v7429
      %v7431 = vpop.f32.mrf.mxu0
      %v7432 = vpop.f32.mrf.mxu0
      %v7433 = vadd.f32 %v7232, %v7432
      %v7434 = vpop.f32.mrf.mxu0
      %7435 = vmatprep.mubr.bf16.mxu0 0
      %7436 = vmatmul.mubr.bf16.gmra.mxu0 %v7362
      %v7437 = vpop.f32.mrf.mxu0
      %v7438 = vadd.f32 %v7237, %v7437
      %v7439 = vpop.f32.mrf.mxu0
      %v7440 = vpop.f32.mrf.mxu0
      %v7441 = vadd.f32 %v7240, %v7440
      %v7442 = vpop.f32.mrf.mxu0
      %7443 = vmatprep.mubr.bf16.mxu0 0
      %7444 = vmatmul.mubr.bf16.gmra.mxu0 %v7364
      %v7445 = vpop.f32.mrf.mxu0
      %v7446 = vadd.f32 %v7245, %v7445
      %v7447 = vpop.f32.mrf.mxu0
      %v7448 = vpop.f32.mrf.mxu0
      %v7449 = vadd.f32 %v7248, %v7448
      %v7450 = vpop.f32.mrf.mxu0
      %7451 = vmatprep.mubr.bf16.mxu0 0
      %7452 = vmatmul.mubr.bf16.gmra.mxu0 %v7366
      %v7453 = vpop.f32.mrf.mxu0
      %v7454 = vadd.f32 %v7253, %v7453
      %v7455 = vpop.f32.mrf.mxu0
      %v7456 = vpop.f32.mrf.mxu0
      %v7457 = vadd.f32 %v7256, %v7456
      %v7458 = vpop.f32.mrf.mxu0
      %7459 = vmatprep.mubr.bf16.mxu0 0
      %7460 = vmatmul.mubr.bf16.gmra.mxu0 %v7368
      %v7461 = vpop.f32.mrf.mxu0
      %v7462 = vadd.f32 %v7261, %v7461
      %v7463 = vpop.f32.mrf.mxu0
      %v7464 = vpop.f32.mrf.mxu0
      %v7465 = vadd.f32 %v7264, %v7464
      %v7466 = vpop.f32.mrf.mxu0
      %7467 = vmatprep.mubr.bf16.mxu0 0
      %7468 = vmatmul.mubr.bf16.gmra.mxu0 %v7370
      %v7469 = vpop.f32.mrf.mxu0
      %v7470 = vadd.f32 %v7269, %v7469
      %v7471 = vpop.f32.mrf.mxu0
      %v7472 = vpop.f32.mrf.mxu0
      %v7473 = vadd.f32 %v7272, %v7472
      %v7474 = vpop.f32.mrf.mxu0
      %7475 = vmatprep.mubr.bf16.mxu0 0
      %7476 = vmatmul.mubr.bf16.gmra.mxu0 %v7372
      %v7477 = vpop.f32.mrf.mxu0
      %v7478 = vadd.f32 %v7277, %v7477
      %v7479 = vpop.f32.mrf.mxu0
      %v7480 = vpop.f32.mrf.mxu0
      %v7481 = vadd.f32 %v7280, %v7480
      %v7482 = vpop.f32.mrf.mxu0
      %7483 = vmatprep.mubr.bf16.mxu0 0
      %7484 = vmatmul.mubr.bf16.gmra.mxu0 %v7374
      %v7485 = vpop.f32.mrf.mxu0
      %v7486 = vadd.f32 %v7285, %v7485
      %v7487 = vpop.f32.mrf.mxu0
      %v7488 = vpop.f32.mrf.mxu0
      %v7489 = vadd.f32 %v7288, %v7488
      %v7490 = vpop.f32.mrf.mxu0
      %7491 = vmatprep.mubr.bf16.mxu0 0
      %7492 = vmatmul.mubr.bf16.gmra.mxu0 %v7376
      %v7493 = vpop.f32.mrf.mxu0
      %v7494 = vadd.f32 %v7293, %v7493
      %v7495 = vpop.f32.mrf.mxu0
      %v7496 = vpop.f32.mrf.mxu0
      %v7497 = vadd.f32 %v7296, %v7496
      %v7498 = vpop.f32.mrf.mxu0
      %7499 = vmatprep.mubr.bf16.mxu0 0
      %7500 = vmatmul.mubr.bf16.gmra.mxu0 %v7378
      %v7501 = vpop.f32.mrf.mxu0
      %v7502 = vadd.f32 %v7301, %v7501
      %v7503 = vpop.f32.mrf.mxu0
      %v7504 = vpop.f32.mrf.mxu0
      %v7505 = vadd.f32 %v7304, %v7504
      %v7506 = vpop.f32.mrf.mxu0
      %7507 = vmatprep.mubr.bf16.mxu0 0
      %7508 = vmatmul.mubr.bf16.gmra.mxu0 %v7380
      %v7509 = vpop.f32.mrf.mxu0
      %v7510 = vadd.f32 %v7309, %v7509
      %v7511 = vpop.f32.mrf.mxu0
      %v7512 = vpop.f32.mrf.mxu0
      %v7513 = vadd.f32 %v7312, %v7512
      %v7514 = vpop.f32.mrf.mxu0
      %7515 = vmatprep.mubr.bf16.mxu0 0
      %7516 = vmatmul.mubr.bf16.gmra.mxu0 %v7382
      %v7517 = vpop.f32.mrf.mxu0
      %v7518 = vadd.f32 %v7317, %v7517
      %v7519 = vpop.f32.mrf.mxu0
      %v7520 = vpop.f32.mrf.mxu0
      %v7521 = vadd.f32 %v7320, %v7520
      %v7522 = vpop.f32.mrf.mxu0
      %7523 = vmatprep.mubr.bf16.mxu0 0
      %7524 = vmatmul.mubr.bf16.gmra.mxu0 %v7384
      %v7525 = vpop.f32.mrf.mxu0
      %v7526 = vadd.f32 %v7325, %v7525
      %v7527 = vpop.f32.mrf.mxu0
      %v7528 = vpop.f32.mrf.mxu0
      %v7529 = vadd.f32 %v7328, %v7528
      %v7530 = vpop.f32.mrf.mxu0
      %7531 = vmatprep.mubr.bf16.mxu0 0
      %7532 = vmatmul.mubr.bf16.gmra.mxu0 %v7386
      %v7533 = vpop.f32.mrf.mxu0
      %v7534 = vadd.f32 %v7333, %v7533
      %v7535 = vpop.f32.mrf.mxu0
      %v7536 = vpop.f32.mrf.mxu0
      %v7537 = vadd.f32 %v7336, %v7536
      %v7538 = vpop.f32.mrf.mxu0
      %7539 = vmatprep.mubr.bf16.mxu0 0
      %7540 = vmatmul.mubr.bf16.gmra.mxu0 %v7388
      %v7541 = vpop.f32.mrf.mxu0
      %v7542 = vadd.f32 %v7341, %v7541
      %v7543 = vpop.f32.mrf.mxu0
      %v7544 = vpop.f32.mrf.mxu0
      %v7545 = vadd.f32 %v7344, %v7544
      %v7546 = vpop.f32.mrf.mxu0
      %7547 = vmatprep.mubr.bf16.mxu0 0
      %7548 = vmatmul.mubr.bf16.gmra.mxu0 %v7390
      %v7549 = vpop.f32.mrf.mxu0
      %v7550 = vadd.f32 %v7349, %v7549
      %v7551 = vpop.f32.mrf.mxu0
      %v7552 = vpop.f32.mrf.mxu0
      %v7553 = vadd.f32 %v7352, %v7552
      %v7554 = vpop.f32.mrf.mxu0
      %7555 = vdwg.mxu0
      %v7556 = vld [vmem:[#allocation2] sm:$0xe]
      %v7557 = vld [vmem:[#allocation2 + $0xc] sm:$0xe]
      %v7558 = vld [vmem:[#allocation2 + $0x18] sm:$0xe]
      %v7559 = vld [vmem:[#allocation2 + $0x24] sm:$0xe]
      %v7560 = vld [vmem:[#allocation2 + $0x30] sm:$0xe]
      %v7561 = vld [vmem:[#allocation2 + $0x3c] sm:$0xe]
      %v7562 = vld [vmem:[#allocation2 + $0x48] sm:$0xe]
      %v7563 = vld [vmem:[#allocation2 + $0x54] sm:$0xe]
      %v7564 = vld [vmem:[#allocation2 + $0x60] sm:$0xe]
      %v7565 = vld [vmem:[#allocation2 + $0x6c] sm:$0xe]
      %v7566 = vld [vmem:[#allocation2 + $0x78] sm:$0xe]
      %v7567 = vld [vmem:[#allocation2 + $0x84] sm:$0xe]
      %v7568 = vld [vmem:[#allocation2 + $0x90] sm:$0xe]
      %v7569 = vld [vmem:[#allocation2 + $0x9c] sm:$0xe]
      %v7570 = vld [vmem:[#allocation2 + $0xa8] sm:$0xe]
      %v7571 = vld [vmem:[#allocation2 + $0xb4] sm:$0xe]
      %v7572 = vld [vmem:[%s972] sm:$0xe]
      %v7573 = vld [vmem:[%s972 + $0xc] sm:$0xe]
      %v7574 = vld [vmem:[%s972 + $0x18] sm:$0xe]
      %v7575 = vld [vmem:[%s972 + $0x24] sm:$0xe]
      %v7576 = vld [vmem:[%s972 + $0x30] sm:$0xe]
      %v7577 = vld [vmem:[%s972 + $0x3c] sm:$0xe]
      %v7578 = vld [vmem:[%s972 + $0x48] sm:$0xe]
      %v7579 = vld [vmem:[%s972 + $0x54] sm:$0xe]
      %v7580 = vld [vmem:[%s972 + $0x60] sm:$0xe]
      %v7581 = vld [vmem:[%s972 + $0x6c] sm:$0xe]
      %v7582 = vld [vmem:[%s972 + $0x78] sm:$0xe]
      %v7583 = vld [vmem:[%s972 + $0x84] sm:$0xe]
      %v7584 = vld [vmem:[%s972 + $0x90] sm:$0xe]
      %v7585 = vld [vmem:[%s972 + $0x9c] sm:$0xe]
      %v7586 = vld [vmem:[%s972 + $0xa8] sm:$0xe]
      %v7587 = vld [vmem:[%s972 + $0xb4] sm:$0xe]
      %v7588 = vld [vmem:[%s1151] sm:$0xe]
      %v7589 = vld [vmem:[%s1151 + $0xc] sm:$0xe]
      %v7590 = vld [vmem:[%s1151 + $0x18] sm:$0xe]
      %v7591 = vld [vmem:[%s1151 + $0x24] sm:$0xe]
      %v7592 = vld [vmem:[%s1151 + $0x30] sm:$0xe]
      %v7593 = vld [vmem:[%s1151 + $0x3c] sm:$0xe]
      %v7594 = vld [vmem:[%s1151 + $0x48] sm:$0xe]
      %v7595 = vld [vmem:[%s1151 + $0x54] sm:$0xe]
      %v7596 = vld [vmem:[%s1151 + $0x60] sm:$0xe]
      %v7597 = vld [vmem:[%s1151 + $0x6c] sm:$0xe]
      %v7598 = vld [vmem:[%s1151 + $0x78] sm:$0xe]
      %v7599 = vld [vmem:[%s1151 + $0x84] sm:$0xe]
      %v7600 = vld [vmem:[%s1151 + $0x90] sm:$0xe]
      %v7601 = vld [vmem:[%s1151 + $0x9c] sm:$0xe]
      %v7602 = vld [vmem:[%s1151 + $0xa8] sm:$0xe]
      %v7603 = vld [vmem:[%s1151 + $0xb4] sm:$0xe]
      %v7620 = vunpack.c.l.b16 %v7556
      %v7621 = vunpack.c.l.b16 %v7557
      %v7622 = vunpack.c.l.b16 %v7558
      %v7623 = vunpack.c.l.b16 %v7559
      %v7624 = vunpack.c.l.b16 %v7560
      %v7625 = vunpack.c.l.b16 %v7561
      %v7626 = vunpack.c.l.b16 %v7562
      %v7627 = vunpack.c.l.b16 %v7563
      %v7628 = vunpack.c.l.b16 %v7564
      %v7629 = vunpack.c.l.b16 %v7565
      %v7630 = vunpack.c.l.b16 %v7566
      %v7631 = vunpack.c.l.b16 %v7567
      %v7632 = vunpack.c.l.b16 %v7568
      %v7633 = vunpack.c.l.b16 %v7569
      %v7634 = vunpack.c.l.b16 %v7570
      %v7635 = vunpack.c.l.b16 %v7571
      %v7636 = vpack.c.b16 %v6286, %v7620
      %v7637 = vpack.c.b16 %v6288, %v7621
      %v7638 = vpack.c.b16 %v6290, %v7622
      %v7639 = vpack.c.b16 %v6292, %v7623
      %v7640 = vpack.c.b16 %v6294, %v7624
      %v7641 = vpack.c.b16 %v6296, %v7625
      %v7642 = vpack.c.b16 %v6298, %v7626
      %v7643 = vpack.c.b16 %v6300, %v7627
      %v7644 = vpack.c.b16 %v6302, %v7628
      %v7645 = vpack.c.b16 %v6304, %v7629
      %v7646 = vpack.c.b16 %v6306, %v7630
      %v7647 = vpack.c.b16 %v6308, %v7631
      %v7648 = vpack.c.b16 %v6310, %v7632
      %v7649 = vpack.c.b16 %v6312, %v7633
      %v7650 = vpack.c.b16 %v6314, %v7634
      %v7651 = vpack.c.b16 %v6316, %v7635
      %v7668 = vunpack.c.l.b16 %v7572
      %v7669 = vunpack.c.l.b16 %v7573
      %v7670 = vunpack.c.l.b16 %v7574
      %v7671 = vunpack.c.l.b16 %v7575
      %v7672 = vunpack.c.l.b16 %v7576
      %v7673 = vunpack.c.l.b16 %v7577
      %v7674 = vunpack.c.l.b16 %v7578
      %v7675 = vunpack.c.l.b16 %v7579
      %v7676 = vunpack.c.l.b16 %v7580
      %v7677 = vunpack.c.l.b16 %v7581
      %v7678 = vunpack.c.l.b16 %v7582
      %v7679 = vunpack.c.l.b16 %v7583
      %v7680 = vunpack.c.l.b16 %v7584
      %v7681 = vunpack.c.l.b16 %v7585
      %v7682 = vunpack.c.l.b16 %v7586
      %v7683 = vunpack.c.l.b16 %v7587
      %v7684 = vpack.c.b16 %v6366, %v7668
      %v7685 = vpack.c.b16 %v6368, %v7669
      %v7686 = vpack.c.b16 %v6370, %v7670
      %v7687 = vpack.c.b16 %v6372, %v7671
      %v7688 = vpack.c.b16 %v6374, %v7672
      %v7689 = vpack.c.b16 %v6376, %v7673
      %v7690 = vpack.c.b16 %v6378, %v7674
      %v7691 = vpack.c.b16 %v6380, %v7675
      %v7692 = vpack.c.b16 %v6382, %v7676
      %v7693 = vpack.c.b16 %v6384, %v7677
      %v7694 = vpack.c.b16 %v6386, %v7678
      %v7695 = vpack.c.b16 %v6388, %v7679
      %v7696 = vpack.c.b16 %v6390, %v7680
      %v7697 = vpack.c.b16 %v6392, %v7681
      %v7698 = vpack.c.b16 %v6394, %v7682
      %v7699 = vpack.c.b16 %v6396, %v7683
      %7700 = vrot.lane.b32.xlu0 %v7684, 4
      %v7701 = vpop.permute.xlu0 %7700
      %7702 = vrot.lane.b32.xlu0 %v7685, 4
      %v7703 = vpop.permute.xlu0 %7702
      %7704 = vrot.lane.b32.xlu0 %v7686, 4
      %v7705 = vpop.permute.xlu0 %7704
      %7706 = vrot.lane.b32.xlu0 %v7687, 4
      %v7707 = vpop.permute.xlu0 %7706
      %7708 = vrot.lane.b32.xlu0 %v7688, 4
      %v7709 = vpop.permute.xlu0 %7708
      %7710 = vrot.lane.b32.xlu0 %v7689, 4
      %v7711 = vpop.permute.xlu0 %7710
      %7712 = vrot.lane.b32.xlu0 %v7690, 4
      %v7713 = vpop.permute.xlu0 %7712
      %7714 = vrot.lane.b32.xlu0 %v7691, 4
      %v7715 = vpop.permute.xlu0 %7714
      %7716 = vrot.lane.b32.xlu0 %v7692, 4
      %v7717 = vpop.permute.xlu0 %7716
      %7718 = vrot.lane.b32.xlu0 %v7693, 4
      %v7719 = vpop.permute.xlu0 %7718
      %7720 = vrot.lane.b32.xlu0 %v7694, 4
      %v7721 = vpop.permute.xlu0 %7720
      %7722 = vrot.lane.b32.xlu0 %v7695, 4
      %v7723 = vpop.permute.xlu0 %7722
      %7724 = vrot.lane.b32.xlu0 %v7696, 4
      %v7725 = vpop.permute.xlu0 %7724
      %7726 = vrot.lane.b32.xlu0 %v7697, 4
      %v7727 = vpop.permute.xlu0 %7726
      %7728 = vrot.lane.b32.xlu0 %v7698, 4
      %v7729 = vpop.permute.xlu0 %7728
      %7730 = vrot.lane.b32.xlu0 %v7699, 4
      %v7731 = vpop.permute.xlu0 %7730
      %v7748 = vunpack.c.l.b16 %v7588
      %v7749 = vunpack.c.l.b16 %v7589
      %v7750 = vunpack.c.l.b16 %v7590
      %v7751 = vunpack.c.l.b16 %v7591
      %v7752 = vunpack.c.l.b16 %v7592
      %v7753 = vunpack.c.l.b16 %v7593
      %v7754 = vunpack.c.l.b16 %v7594
      %v7755 = vunpack.c.l.b16 %v7595
      %v7756 = vunpack.c.l.b16 %v7596
      %v7757 = vunpack.c.l.b16 %v7597
      %v7758 = vunpack.c.l.b16 %v7598
      %v7759 = vunpack.c.l.b16 %v7599
      %v7760 = vunpack.c.l.b16 %v7600
      %v7761 = vunpack.c.l.b16 %v7601
      %v7762 = vunpack.c.l.b16 %v7602
      %v7763 = vunpack.c.l.b16 %v7603
      %v7764 = vpack.c.b16 %v6478, %v7748
      %v7765 = vpack.c.b16 %v6480, %v7749
      %v7766 = vpack.c.b16 %v6482, %v7750
      %v7767 = vpack.c.b16 %v6484, %v7751
      %v7768 = vpack.c.b16 %v6486, %v7752
      %v7769 = vpack.c.b16 %v6488, %v7753
      %v7770 = vpack.c.b16 %v6490, %v7754
      %v7771 = vpack.c.b16 %v6492, %v7755
      %v7772 = vpack.c.b16 %v6494, %v7756
      %v7773 = vpack.c.b16 %v6496, %v7757
      %v7774 = vpack.c.b16 %v6498, %v7758
      %v7775 = vpack.c.b16 %v6500, %v7759
      %v7776 = vpack.c.b16 %v6502, %v7760
      %v7777 = vpack.c.b16 %v6504, %v7761
      %v7778 = vpack.c.b16 %v6506, %v7762
      %v7779 = vpack.c.b16 %v6508, %v7763
      %7780 = vrot.lane.b32.xlu0 %v7764, 8
      %v7781 = vpop.permute.xlu0 %7780
      %7782 = vrot.lane.b32.xlu0 %v7765, 8
      %v7783 = vpop.permute.xlu0 %7782
      %7784 = vrot.lane.b32.xlu0 %v7766, 8
      %v7785 = vpop.permute.xlu0 %7784
      %7786 = vrot.lane.b32.xlu0 %v7767, 8
      %v7787 = vpop.permute.xlu0 %7786
      %7788 = vrot.lane.b32.xlu0 %v7768, 8
      %v7789 = vpop.permute.xlu0 %7788
      %7790 = vrot.lane.b32.xlu0 %v7769, 8
      %v7791 = vpop.permute.xlu0 %7790
      %7792 = vrot.lane.b32.xlu0 %v7770, 8
      %v7793 = vpop.permute.xlu0 %7792
      %7794 = vrot.lane.b32.xlu0 %v7771, 8
      %v7795 = vpop.permute.xlu0 %7794
      %7796 = vrot.lane.b32.xlu0 %v7772, 8
      %v7797 = vpop.permute.xlu0 %7796
      %7798 = vrot.lane.b32.xlu0 %v7773, 8
      %v7799 = vpop.permute.xlu0 %7798
      %7800 = vrot.lane.b32.xlu0 %v7774, 8
      %v7801 = vpop.permute.xlu0 %7800
      %7802 = vrot.lane.b32.xlu0 %v7775, 8
      %v7803 = vpop.permute.xlu0 %7802
      %7804 = vrot.lane.b32.xlu0 %v7776, 8
      %v7805 = vpop.permute.xlu0 %7804
      %7806 = vrot.lane.b32.xlu0 %v7777, 8
      %v7807 = vpop.permute.xlu0 %7806
      %7808 = vrot.lane.b32.xlu0 %v7778, 8
      %v7809 = vpop.permute.xlu0 %7808
      %7810 = vrot.lane.b32.xlu0 %v7779, 8
      %v7811 = vpop.permute.xlu0 %7810
      %v7814 = vsel %vm1488, %v7636, %v7701
      %v7817 = vsel %vm1488, %v7637, %v7703
      %v7820 = vsel %vm1488, %v7638, %v7705
      %v7823 = vsel %vm1488, %v7639, %v7707
      %v7826 = vsel %vm1488, %v7640, %v7709
      %v7829 = vsel %vm1488, %v7641, %v7711
      %v7832 = vsel %vm1488, %v7642, %v7713
      %v7835 = vsel %vm1488, %v7643, %v7715
      %v7838 = vsel %vm1488, %v7644, %v7717
      %v7841 = vsel %vm1488, %v7645, %v7719
      %v7844 = vsel %vm1488, %v7646, %v7721
      %v7847 = vsel %vm1488, %v7647, %v7723
      %v7850 = vsel %vm1488, %v7648, %v7725
      %v7853 = vsel %vm1488, %v7649, %v7727
      %v7856 = vsel %vm1488, %v7650, %v7729
      %v7859 = vsel %vm1488, %v7651, %v7731
      %v7861 = vsel %vm1537, %v7814, %v7781
      %v7863 = vsel %vm1537, %v7817, %v7783
      %v7865 = vsel %vm1537, %v7820, %v7785
      %v7867 = vsel %vm1537, %v7823, %v7787
      %v7869 = vsel %vm1537, %v7826, %v7789
      %v7871 = vsel %vm1537, %v7829, %v7791
      %v7873 = vsel %vm1537, %v7832, %v7793
      %v7875 = vsel %vm1537, %v7835, %v7795
      %v7877 = vsel %vm1537, %v7838, %v7797
      %v7879 = vsel %vm1537, %v7841, %v7799
      %v7881 = vsel %vm1537, %v7844, %v7801
      %v7883 = vsel %vm1537, %v7847, %v7803
      %v7885 = vsel %vm1537, %v7850, %v7805
      %v7887 = vsel %vm1537, %v7853, %v7807
      %v7889 = vsel %vm1537, %v7856, %v7809
      %v7891 = vsel %vm1537, %v7859, %v7811
      %v7924 = vrot.slane %v7861, 1
      %v7925 = vrot.slane %v6944, 1
      %v7926 = vsel %vm2860, %v7924, %v7925
      %v7927 = vrot.slane %v7863, 1
      %v7928 = vrot.slane %v6946, 1
      %v7929 = vsel %vm2860, %v7927, %v7928
      %v7930 = vrot.slane %v7865, 1
      %v7931 = vrot.slane %v6948, 1
      %v7932 = vsel %vm2860, %v7930, %v7931
      %v7933 = vrot.slane %v7867, 1
      %v7934 = vrot.slane %v6950, 1
      %v7935 = vsel %vm2860, %v7933, %v7934
      %v7936 = vrot.slane %v7869, 1
      %v7937 = vrot.slane %v6952, 1
      %v7938 = vsel %vm2860, %v7936, %v7937
      %v7939 = vrot.slane %v7871, 1
      %v7940 = vrot.slane %v6954, 1
      %v7941 = vsel %vm2860, %v7939, %v7940
      %v7942 = vrot.slane %v7873, 1
      %v7943 = vrot.slane %v6956, 1
      %v7944 = vsel %vm2860, %v7942, %v7943
      %v7945 = vrot.slane %v7875, 1
      %v7946 = vrot.slane %v6958, 1
      %v7947 = vsel %vm2860, %v7945, %v7946
      %v7948 = vrot.slane %v7877, 1
      %v7949 = vrot.slane %v6960, 1
      %v7950 = vsel %vm2860, %v7948, %v7949
      %v7951 = vrot.slane %v7879, 1
      %v7952 = vrot.slane %v6962, 1
      %v7953 = vsel %vm2860, %v7951, %v7952
      %v7954 = vrot.slane %v7881, 1
      %v7955 = vrot.slane %v6964, 1
      %v7956 = vsel %vm2860, %v7954, %v7955
      %v7957 = vrot.slane %v7883, 1
      %v7958 = vrot.slane %v6966, 1
      %v7959 = vsel %vm2860, %v7957, %v7958
      %v7960 = vrot.slane %v7885, 1
      %v7961 = vrot.slane %v6968, 1
      %v7962 = vsel %vm2860, %v7960, %v7961
      %v7963 = vrot.slane %v7887, 1
      %v7964 = vrot.slane %v6970, 1
      %v7965 = vsel %vm2860, %v7963, %v7964
      %v7966 = vrot.slane %v7889, 1
      %v7967 = vrot.slane %v6972, 1
      %v7968 = vsel %vm2860, %v7966, %v7967
      %v7969 = vrot.slane %v7891, 1
      %v7970 = vrot.slane %v6974, 1
      %v7971 = vsel %vm2860, %v7969, %v7970
      %s7972 = scalar_lea.vmem %s5, 16
      %v7973 = vld [vmem:[%s7972] sm:$0xf]
      %v7974 = vld [vmem:[%s7972 + $0x4] sm:$0x3]
      %v7977 = vunpack.c.l.b16 %v7973
      %v7978 = vunpack.c.l.b16 %v7974
      %v7979 = vpack.c.b16 %v7978, %v7977
      %v7981 = vsel %vm2077, %v7926, 0
      %v7984 = vsel %vm2077, %v7929, 0
      %v7987 = vsel %vm2077, %v7932, 0
      %v7990 = vsel %vm2077, %v7935, 0
      %v7993 = vsel %vm2077, %v7938, 0
      %v7996 = vsel %vm2077, %v7941, 0
      %v7999 = vsel %vm2077, %v7944, 0
      %v8002 = vsel %vm2077, %v7947, 0
      %v8005 = vsel %vm2077, %v7950, 0
      %v8008 = vsel %vm2077, %v7953, 0
      %v8011 = vsel %vm2077, %v7956, 0
      %v8014 = vsel %vm2077, %v7959, 0
      %v8017 = vsel %vm2077, %v7962, 0
      %v8020 = vsel %vm2077, %v7965, 0
      %v8023 = vsel %vm2077, %v7968, 0
      %v8026 = vsel %vm2077, %v7971, 0
      %v8029 = vsel %vm2126, %v7979, 0
      %8031 = vmatprep.subr.bf16.mxu0 0
      %8032 = vmatpush1.bf16.msra.mxu0 0
      %8033 = vmatprep.subr.bf16.mxu0 0
      %8034 = vmatpush1.bf16.msra.mxu0 0
      %8035 = vmatprep.subr.bf16.mxu0 0
      %8036 = vmatpush1.bf16.msra.mxu0 0
      %8037 = vmatprep.subr.bf16.mxu0 0
      %8038 = vmatpush1.bf16.msra.mxu0 0
      %8039 = vmatprep.subr.bf16.mxu0 0
      %8040 = vmatpush1.bf16.msra.mxu0 0
      %8041 = vmatprep.subr.bf16.mxu0 0
      %8042 = vmatpush1.bf16.msra.mxu0 0
      %8043 = vmatprep.subr.bf16.mxu0 0
      %8044 = vmatpush1.bf16.msra.mxu0 0
      %8045 = vmatprep.subr.bf16.mxu0 0
      %8046 = vmatpush1.bf16.msra.mxu0 %v8029
      %8047 = vmatprep.subr.bf16.mxu0 0
      %8048 = vmatpush2.bf16.msra.mxu0 0
      %8049 = vmatprep.subr.bf16.mxu0 0
      %8050 = vmatpush2.bf16.msra.mxu0 0
      %8051 = vmatprep.subr.bf16.mxu0 0
      %8052 = vmatpush2.bf16.msra.mxu0 0
      %8053 = vmatprep.subr.bf16.mxu0 0
      %8054 = vmatpush2.bf16.msra.mxu0 0
      %8055 = vmatprep.subr.bf16.mxu0 0
      %8056 = vmatpush2.bf16.msra.mxu0 0
      %8057 = vmatprep.subr.bf16.mxu0 0
      %8058 = vmatpush2.bf16.msra.mxu0 0
      %8059 = vmatprep.subr.bf16.mxu0 0
      %8060 = vmatpush2.bf16.msra.mxu0 0
      %8061 = vmatprep.subr.bf16.mxu0 0
      %8062 = vmatpush2.bf16.msra.mxu0 0
      %8063 = vmatprep.mubr.bf16.mxu0 0
      %8064 = vmatmul.mubr.bf16.gmra.mxu0 %v7981
      %v8065 = vpop.f32.mrf.mxu0
      %v8066 = vadd.f32 0.0, %v8065
      %v8067 = vpop.f32.mrf.mxu0
      %v8068 = vpop.f32.mrf.mxu0
      %v8069 = vadd.f32 0.0, %v8068
      %v8070 = vpop.f32.mrf.mxu0
      %8071 = vmatprep.mubr.bf16.mxu0 0
      %8072 = vmatmul.mubr.bf16.gmra.mxu0 %v7984
      %v8073 = vpop.f32.mrf.mxu0
      %v8074 = vadd.f32 0.0, %v8073
      %v8075 = vpop.f32.mrf.mxu0
      %v8076 = vpop.f32.mrf.mxu0
      %v8077 = vadd.f32 0.0, %v8076
      %v8078 = vpop.f32.mrf.mxu0
      %8079 = vmatprep.mubr.bf16.mxu0 0
      %8080 = vmatmul.mubr.bf16.gmra.mxu0 %v7987
      %v8081 = vpop.f32.mrf.mxu0
      %v8082 = vadd.f32 0.0, %v8081
      %v8083 = vpop.f32.mrf.mxu0
      %v8084 = vpop.f32.mrf.mxu0
      %v8085 = vadd.f32 0.0, %v8084
      %v8086 = vpop.f32.mrf.mxu0
      %8087 = vmatprep.mubr.bf16.mxu0 0
      %8088 = vmatmul.mubr.bf16.gmra.mxu0 %v7990
      %v8089 = vpop.f32.mrf.mxu0
      %v8090 = vadd.f32 0.0, %v8089
      %v8091 = vpop.f32.mrf.mxu0
      %v8092 = vpop.f32.mrf.mxu0
      %v8093 = vadd.f32 0.0, %v8092
      %v8094 = vpop.f32.mrf.mxu0
      %8095 = vmatprep.mubr.bf16.mxu0 0
      %8096 = vmatmul.mubr.bf16.gmra.mxu0 %v7993
      %v8097 = vpop.f32.mrf.mxu0
      %v8098 = vadd.f32 0.0, %v8097
      %v8099 = vpop.f32.mrf.mxu0
      %v8100 = vpop.f32.mrf.mxu0
      %v8101 = vadd.f32 0.0, %v8100
      %v8102 = vpop.f32.mrf.mxu0
      %8103 = vmatprep.mubr.bf16.mxu0 0
      %8104 = vmatmul.mubr.bf16.gmra.mxu0 %v7996
      %v8105 = vpop.f32.mrf.mxu0
      %v8106 = vadd.f32 0.0, %v8105
      %v8107 = vpop.f32.mrf.mxu0
      %v8108 = vpop.f32.mrf.mxu0
      %v8109 = vadd.f32 0.0, %v8108
      %v8110 = vpop.f32.mrf.mxu0
      %8111 = vmatprep.mubr.bf16.mxu0 0
      %8112 = vmatmul.mubr.bf16.gmra.mxu0 %v7999
      %v8113 = vpop.f32.mrf.mxu0
      %v8114 = vadd.f32 0.0, %v8113
      %v8115 = vpop.f32.mrf.mxu0
      %v8116 = vpop.f32.mrf.mxu0
      %v8117 = vadd.f32 0.0, %v8116
      %v8118 = vpop.f32.mrf.mxu0
      %8119 = vmatprep.mubr.bf16.mxu0 0
      %8120 = vmatmul.mubr.bf16.gmra.mxu0 %v8002
      %v8121 = vpop.f32.mrf.mxu0
      %v8122 = vadd.f32 0.0, %v8121
      %v8123 = vpop.f32.mrf.mxu0
      %v8124 = vpop.f32.mrf.mxu0
      %v8125 = vadd.f32 0.0, %v8124
      %v8126 = vpop.f32.mrf.mxu0
      %8127 = vmatprep.mubr.bf16.mxu0 0
      %8128 = vmatmul.mubr.bf16.gmra.mxu0 %v8005
      %v8129 = vpop.f32.mrf.mxu0
      %v8130 = vadd.f32 0.0, %v8129
      %v8131 = vpop.f32.mrf.mxu0
      %v8132 = vpop.f32.mrf.mxu0
      %v8133 = vadd.f32 0.0, %v8132
      %v8134 = vpop.f32.mrf.mxu0
      %8135 = vmatprep.mubr.bf16.mxu0 0
      %8136 = vmatmul.mubr.bf16.gmra.mxu0 %v8008
      %v8137 = vpop.f32.mrf.mxu0
      %v8138 = vadd.f32 0.0, %v8137
      %v8139 = vpop.f32.mrf.mxu0
      %v8140 = vpop.f32.mrf.mxu0
      %v8141 = vadd.f32 0.0, %v8140
      %v8142 = vpop.f32.mrf.mxu0
      %8143 = vmatprep.mubr.bf16.mxu0 0
      %8144 = vmatmul.mubr.bf16.gmra.mxu0 %v8011
      %v8145 = vpop.f32.mrf.mxu0
      %v8146 = vadd.f32 0.0, %v8145
      %v8147 = vpop.f32.mrf.mxu0
      %v8148 = vpop.f32.mrf.mxu0
      %v8149 = vadd.f32 0.0, %v8148
      %v8150 = vpop.f32.mrf.mxu0
      %8151 = vmatprep.mubr.bf16.mxu0 0
      %8152 = vmatmul.mubr.bf16.gmra.mxu0 %v8014
      %v8153 = vpop.f32.mrf.mxu0
      %v8154 = vadd.f32 0.0, %v8153
      %v8155 = vpop.f32.mrf.mxu0
      %v8156 = vpop.f32.mrf.mxu0
      %v8157 = vadd.f32 0.0, %v8156
      %v8158 = vpop.f32.mrf.mxu0
      %8159 = vmatprep.mubr.bf16.mxu0 0
      %8160 = vmatmul.mubr.bf16.gmra.mxu0 %v8017
      %v8161 = vpop.f32.mrf.mxu0
      %v8162 = vadd.f32 0.0, %v8161
      %v8163 = vpop.f32.mrf.mxu0
      %v8164 = vpop.f32.mrf.mxu0
      %v8165 = vadd.f32 0.0, %v8164
      %v8166 = vpop.f32.mrf.mxu0
      %8167 = vmatprep.mubr.bf16.mxu0 0
      %8168 = vmatmul.mubr.bf16.gmra.mxu0 %v8020
      %v8169 = vpop.f32.mrf.mxu0
      %v8170 = vadd.f32 0.0, %v8169
      %v8171 = vpop.f32.mrf.mxu0
      %v8172 = vpop.f32.mrf.mxu0
      %v8173 = vadd.f32 0.0, %v8172
      %v8174 = vpop.f32.mrf.mxu0
      %8175 = vmatprep.mubr.bf16.mxu0 0
      %8176 = vmatmul.mubr.bf16.gmra.mxu0 %v8023
      %v8177 = vpop.f32.mrf.mxu0
      %v8178 = vadd.f32 0.0, %v8177
      %v8179 = vpop.f32.mrf.mxu0
      %v8180 = vpop.f32.mrf.mxu0
      %v8181 = vadd.f32 0.0, %v8180
      %v8182 = vpop.f32.mrf.mxu0
      %8183 = vmatprep.mubr.bf16.mxu0 0
      %8184 = vmatmul.mubr.bf16.gmra.mxu0 %v8026
      %v8185 = vpop.f32.mrf.mxu0
      %v8186 = vadd.f32 0.0, %v8185
      %v8187 = vpop.f32.mrf.mxu0
      %v8188 = vpop.f32.mrf.mxu0
      %v8189 = vadd.f32 0.0, %v8188
      %v8190 = vpop.f32.mrf.mxu0
      %8191 = vdwg.mxu0
      %v8192 = vadd.f32 %v7430, %v8066
      %v8193 = vadd.f32 %v7433, %v8069
      %v8194 = vadd.f32 %v7438, %v8074
      %v8195 = vadd.f32 %v7441, %v8077
      %v8196 = vadd.f32 %v7446, %v8082
      %v8197 = vadd.f32 %v7449, %v8085
      %v8198 = vadd.f32 %v7454, %v8090
      %v8199 = vadd.f32 %v7457, %v8093
      %v8200 = vadd.f32 %v7462, %v8098
      %v8201 = vadd.f32 %v7465, %v8101
      %v8202 = vadd.f32 %v7470, %v8106
      %v8203 = vadd.f32 %v7473, %v8109
      %v8204 = vadd.f32 %v7478, %v8114
      %v8205 = vadd.f32 %v7481, %v8117
      %v8206 = vadd.f32 %v7486, %v8122
      %v8207 = vadd.f32 %v7489, %v8125
      %v8208 = vadd.f32 %v7494, %v8130
      %v8209 = vadd.f32 %v7497, %v8133
      %v8210 = vadd.f32 %v7502, %v8138
      %v8211 = vadd.f32 %v7505, %v8141
      %v8212 = vadd.f32 %v7510, %v8146
      %v8213 = vadd.f32 %v7513, %v8149
      %v8214 = vadd.f32 %v7518, %v8154
      %v8215 = vadd.f32 %v7521, %v8157
      %v8216 = vadd.f32 %v7526, %v8162
      %v8217 = vadd.f32 %v7529, %v8165
      %v8218 = vadd.f32 %v7534, %v8170
      %v8219 = vadd.f32 %v7537, %v8173
      %v8220 = vadd.f32 %v7542, %v8178
      %v8221 = vadd.f32 %v7545, %v8181
      %v8222 = vadd.f32 %v7550, %v8186
      %v8223 = vadd.f32 %v7553, %v8189
      %v8224 = vadd.f32 %v5856, %v8192
      %v8225 = vadd.f32 %v5857, %v8193
      %v8226 = vadd.f32 %v5858, %v8194
      %v8227 = vadd.f32 %v5859, %v8195
      %v8228 = vadd.f32 %v5860, %v8196
      %v8229 = vadd.f32 %v5861, %v8197
      %v8230 = vadd.f32 %v5862, %v8198
      %v8231 = vadd.f32 %v5863, %v8199
      %v8232 = vadd.f32 %v5864, %v8200
      %v8233 = vadd.f32 %v5865, %v8201
      %v8234 = vadd.f32 %v5866, %v8202
      %v8235 = vadd.f32 %v5867, %v8203
      %v8236 = vadd.f32 %v5868, %v8204
      %v8237 = vadd.f32 %v5869, %v8205
      %v8238 = vadd.f32 %v5870, %v8206
      %v8239 = vadd.f32 %v5871, %v8207
      %v8240 = vadd.f32 %v5872, %v8208
      %v8241 = vadd.f32 %v5873, %v8209
      %v8242 = vadd.f32 %v5874, %v8210
      %v8243 = vadd.f32 %v5875, %v8211
      %v8244 = vadd.f32 %v5876, %v8212
      %v8245 = vadd.f32 %v5877, %v8213
      %v8246 = vadd.f32 %v5878, %v8214
      %v8247 = vadd.f32 %v5879, %v8215
      %v8248 = vadd.f32 %v5880, %v8216
      %v8249 = vadd.f32 %v5881, %v8217
      %v8250 = vadd.f32 %v5882, %v8218
      %v8251 = vadd.f32 %v5883, %v8219
      %v8252 = vadd.f32 %v5884, %v8220
      %v8253 = vadd.f32 %v5885, %v8221
      %v8254 = vadd.f32 %v5886, %v8222
      %v8255 = vadd.f32 %v5887, %v8223
      %v8256 = vld [vmem:[%s6] sm:$0x1]
      %v8258 = vlaneseq
      %v8259 = vshrl.u32 %v8258, 7
      %v8260 = vsub.s32 0, %v8259
      %v8261 = vrot.slane %v8256, %v8260
      %v8263 = vadd.f32 %v8224, %v8261
      %v8264 = vadd.f32 %v8225, %v8261
      %v8265 = vadd.f32 %v8226, %v8261
      %v8266 = vadd.f32 %v8227, %v8261
      %v8267 = vadd.f32 %v8228, %v8261
      %v8268 = vadd.f32 %v8229, %v8261
      %v8269 = vadd.f32 %v8230, %v8261
      %v8270 = vadd.f32 %v8231, %v8261
      %v8271 = vadd.f32 %v8232, %v8261
      %v8272 = vadd.f32 %v8233, %v8261
      %v8273 = vadd.f32 %v8234, %v8261
      %v8274 = vadd.f32 %v8235, %v8261
      %v8275 = vadd.f32 %v8236, %v8261
      %v8276 = vadd.f32 %v8237, %v8261
      %v8277 = vadd.f32 %v8238, %v8261
      %v8278 = vadd.f32 %v8239, %v8261
      %v8279 = vadd.f32 %v8240, %v8261
      %v8280 = vadd.f32 %v8241, %v8261
      %v8281 = vadd.f32 %v8242, %v8261
      %v8282 = vadd.f32 %v8243, %v8261
      %v8283 = vadd.f32 %v8244, %v8261
      %v8284 = vadd.f32 %v8245, %v8261
      %v8285 = vadd.f32 %v8246, %v8261
      %v8286 = vadd.f32 %v8247, %v8261
      %v8287 = vadd.f32 %v8248, %v8261
      %v8288 = vadd.f32 %v8249, %v8261
      %v8289 = vadd.f32 %v8250, %v8261
      %v8290 = vadd.f32 %v8251, %v8261
      %v8291 = vadd.f32 %v8252, %v8261
      %v8292 = vadd.f32 %v8253, %v8261
      %v8293 = vadd.f32 %v8254, %v8261
      %v8294 = vadd.f32 %v8255, %v8261
      %v8295 = vmax.f32 %v8263, 0.0
      %v8296 = vmax.f32 %v8264, 0.0
      %v8297 = vmax.f32 %v8265, 0.0
      %v8298 = vmax.f32 %v8266, 0.0
      %v8299 = vmax.f32 %v8267, 0.0
      %v8300 = vmax.f32 %v8268, 0.0
      %v8301 = vmax.f32 %v8269, 0.0
      %v8302 = vmax.f32 %v8270, 0.0
      %v8303 = vmax.f32 %v8271, 0.0
      %v8304 = vmax.f32 %v8272, 0.0
      %v8305 = vmax.f32 %v8273, 0.0
      %v8306 = vmax.f32 %v8274, 0.0
      %v8307 = vmax.f32 %v8275, 0.0
      %v8308 = vmax.f32 %v8276, 0.0
      %v8309 = vmax.f32 %v8277, 0.0
      %v8310 = vmax.f32 %v8278, 0.0
      %v8311 = vmax.f32 %v8279, 0.0
      %v8312 = vmax.f32 %v8280, 0.0
      %v8313 = vmax.f32 %v8281, 0.0
      %v8314 = vmax.f32 %v8282, 0.0
      %v8315 = vmax.f32 %v8283, 0.0
      %v8316 = vmax.f32 %v8284, 0.0
      %v8317 = vmax.f32 %v8285, 0.0
      %v8318 = vmax.f32 %v8286, 0.0
      %v8319 = vmax.f32 %v8287, 0.0
      %v8320 = vmax.f32 %v8288, 0.0
      %v8321 = vmax.f32 %v8289, 0.0
      %v8322 = vmax.f32 %v8290, 0.0
      %v8323 = vmax.f32 %v8291, 0.0
      %v8324 = vmax.f32 %v8292, 0.0
      %v8325 = vmax.f32 %v8293, 0.0
      %v8326 = vmax.f32 %v8294, 0.0
      %8327 = vst.msk [vmem:[%s278] sm:$0xff] %vm1537, %v8295
      %8328 = vst.msk [vmem:[%s278 + $0x8] sm:$0xff] %vm1537, %v8296
      %8329 = vst.msk [vmem:[%s278 + $0x10] sm:$0xff] %vm1537, %v8297
      %8330 = vst.msk [vmem:[%s278 + $0x18] sm:$0xff] %vm1537, %v8298
      %8331 = vst.msk [vmem:[%s278 + $0x20] sm:$0xff] %vm1537, %v8299
      %8332 = vst.msk [vmem:[%s278 + $0x28] sm:$0xff] %vm1537, %v8300
      %8333 = vst.msk [vmem:[%s278 + $0x30] sm:$0xff] %vm1537, %v8301
      %8334 = vst.msk [vmem:[%s278 + $0x38] sm:$0xff] %vm1537, %v8302
      %8335 = vst.msk [vmem:[%s278 + $0x40] sm:$0xff] %vm1537, %v8303
      %8336 = vst.msk [vmem:[%s278 + $0x48] sm:$0xff] %vm1537, %v8304
      %8337 = vst.msk [vmem:[%s278 + $0x50] sm:$0xff] %vm1537, %v8305
      %8338 = vst.msk [vmem:[%s278 + $0x58] sm:$0xff] %vm1537, %v8306
      %8339 = vst.msk [vmem:[%s278 + $0x60] sm:$0xff] %vm1537, %v8307
      %8340 = vst.msk [vmem:[%s278 + $0x68] sm:$0xff] %vm1537, %v8308
      %8341 = vst.msk [vmem:[%s278 + $0x70] sm:$0xff] %vm1537, %v8309
      %8342 = vst.msk [vmem:[%s278 + $0x78] sm:$0xff] %vm1537, %v8310
      %8343 = vst.msk [vmem:[%s278 + $0x80] sm:$0xff] %vm1537, %v8311
      %8344 = vst.msk [vmem:[%s278 + $0x88] sm:$0xff] %vm1537, %v8312
      %8345 = vst.msk [vmem:[%s278 + $0x90] sm:$0xff] %vm1537, %v8313
      %8346 = vst.msk [vmem:[%s278 + $0x98] sm:$0xff] %vm1537, %v8314
      %8347 = vst.msk [vmem:[%s278 + $0xa0] sm:$0xff] %vm1537, %v8315
      %8348 = vst.msk [vmem:[%s278 + $0xa8] sm:$0xff] %vm1537, %v8316
      %8349 = vst.msk [vmem:[%s278 + $0xb0] sm:$0xff] %vm1537, %v8317
      %8350 = vst.msk [vmem:[%s278 + $0xb8] sm:$0xff] %vm1537, %v8318
      %8351 = vst.msk [vmem:[%s278 + $0xc0] sm:$0xff] %vm1537, %v8319
      %8352 = vst.msk [vmem:[%s278 + $0xc8] sm:$0xff] %vm1537, %v8320
      %8353 = vst.msk [vmem:[%s278 + $0xd0] sm:$0xff] %vm1537, %v8321
      %8354 = vst.msk [vmem:[%s278 + $0xd8] sm:$0xff] %vm1537, %v8322
      %8355 = vst.msk [vmem:[%s278 + $0xe0] sm:$0xff] %vm1537, %v8323
      %8356 = vst.msk [vmem:[%s278 + $0xe8] sm:$0xff] %vm1537, %v8324
      %8357 = vst.msk [vmem:[%s278 + $0xf0] sm:$0xff] %vm1537, %v8325
      %8358 = vst.msk [vmem:[%s278 + $0xf8] sm:$0xff] %vm1537, %v8326
      %p8359 = scmp.lt.s32.totalorder %s18, 1
      %s8360 = scalar_select %p8359, %s18, 1
      %s8361 = smul.addr %s8360, 32
      %s8362 = smul.addr %s8361, 8
      %s8363 = scalar_lea.vmem %s7, %s8362
      // Predicated region
      $region49: #{_lambda_.1} parent=47 // pred_check
        %p8364 = pneg %p188
      $region50: #{_lambda_.1} parent=47 // pred_check_branch
        %8366 = sbr.rel (%p8364) target = $region52
      $region51: #{_lambda_.1} parent=47 // pred_region
        _
      $region52: #{_lambda_.1} parent=47 // pred_fallthru
        _
    $region48: #{_lambda_.1} parent=5 // pred_fallthru
      _
    %p8367 = scmp.le.s32.totalorder 2, %s13
    // Predicated region
    $region53: #{_lambda_.1} parent=5 // pred_check
      %p8368 = pneg %p8367
    $region54: #{_lambda_.1} parent=5 // pred_check_branch
      %8370 = sbr.rel (%p8368) target = $region56
    $region55: #{_lambda_.1} parent=5 // pred_region
      %s8371 = ssub.s32 %s13, 2
      // Predicated region
      $region57: #{_lambda_.1} parent=55 // pred_check
        %p8372 = pneg %p194
      $region58: #{_lambda_.1} parent=55 // pred_check_branch
        %8374 = sbr.rel (%p8372) target = $region60
      $region59: #{_lambda_.1} parent=55 // pred_region
        %p8375 = scmp.lt.s32.totalorder %s19, 1
        %s8376 = scalar_select %p8375, %s19, 1
        %s8377 = smul.addr %s8376, 32
        %s8378 = smul.addr %s8377, 8
        %s8379 = scalar_lea.vmem %s7, %s8378
      $region60: #{_lambda_.1} parent=55 // pred_fallthru
        _
    $region56: #{_lambda_.1} parent=5 // pred_fallthru
      _
  $region6: #{_lambda_.1} parent=0 // loop_footer
    %s17 = sadd.s32 1, %s13
  $region7: #{_lambda_.1} parent=0 // loop_footer_branch
    %12 = sbr.rel target = $region3
  $region8: #{_lambda_.1} parent=0 // loop_exit
    _

</llo_original>
